<compile_context>
chip_gen: v5e
topology: v5e:2x2
jax: 0.10.0
libtpu: 0.0.40
codegen_flags: <defaults>
</compile_context>

<pallas_src>
import functools

import jax
import jax.numpy as jnp
from jax.experimental import pallas as pl
from jax.experimental.pallas import tpu as pltpu

# ---- static module config (mirrors PointCloudTo2D.__init__ arguments) ----
SCALE = 4
PCN_I = 3                       # input channels (rgb)
PCN_H = 32                      # h (feature channels)
MAP_RES = (8, 8)                # (map_h, map_w) -> X, Y
V_RES = 4
MAP_BBOX = (-1.0, -1.0, 1.0, 1.0)   # h1, w1, h2, w2
V_BBOX = (-1.0, 1.0)
XYZ_TO_H = 0
XYZ_TO_W = 1
XYZ_TO_V = 2                    # the remaining axis

PAYLOAD_F = 128                 # lane-dense payload width: [feat | rgb | 1 | 0...]
_NEG = -3.0e38                  # -inf stand-in for maxpool implicit padding
_BIN_TILE = V_RES * MAP_RES[0] * MAP_RES[1]   # 256: one bin tile == one batch elem


# ----------------------------------------------------------------------------
# In-kernel helpers (trace-time; operate on VMEM-resident values)
# ----------------------------------------------------------------------------
def _mish(x):
    # mish(x) = x * tanh(softplus(x)) = x * t(t+2) / (t(t+2)+2), t = e^x
    # approx reciprocal (EUP) -> chain is not bit-exact vs torch Mish (~1e-3 rel)
    t = jnp.exp(jnp.minimum(x, 20.0))
    num = t * (t + 2.0)
    return x * (num * pl.reciprocal(num + 2.0, approx=True))


def _pad_w(x, p):
    """Zero-pad the W (second) dim of (H, W, C) by p."""
    hh, ww, c = x.shape
    col = jnp.zeros((hh, p, c), x.dtype)
    return jnp.concatenate([col, x, col], axis=1)


def _pad_hw(x, p):
    """Zero-pad the two leading (spatial) dims of (H, W, C) by p."""
    hh, ww, c = x.shape
    row = jnp.zeros((p, ww, c), x.dtype)
    return _pad_w(jnp.concatenate([row, x, row], axis=0), p)


def _conv3x3_d2_mish(xpad, w, ho, wo):
    """Dilation-2 3x3 conv (stride 1, no bias) + Mish via one im2col matmul.

    xpad: (ho+4, wo+4, cin) padded input; w: (9*cin, cout), rows (kh, kw, cin)."""
    cin = xpad.shape[-1]
    taps = [xpad[2 * kh:2 * kh + ho, 2 * kw:2 * kw + wo, :]
            for kh in range(3) for kw in range(3)]
    pm = jnp.concatenate(taps, axis=-1).reshape(ho * wo, 9 * cin)
    acc = jnp.dot(pm, w, preferred_element_type=jnp.float32)   # one MXU matmul
    return _mish(acc).reshape(ho, wo, w.shape[-1])


def _maxpool_3x3_s2_p1(y):
    """PyTorch MaxPool2d(kernel_size=3, stride=2, padding=1) on (H, W, C).

    Both axes use whole-array even/odd reshapes (no per-column loops)."""
    hh, ww, c = y.shape
    ho, wo = hh // 2, ww // 2
    # H axis
    neg_row = jnp.full((1, ww, c), _NEG, y.dtype)
    p = jnp.concatenate([neg_row, y], axis=0)                  # p[k] = y[k-1]
    a = p[0:hh].reshape(ho, 2, ww, c)
    d = p[1:hh + 1].reshape(ho, 2, ww, c)
    r = jnp.maximum(jnp.maximum(a[:, 0], d[:, 0]), d[:, 1])    # (ho, ww, c)
    # W axis
    neg_col = jnp.full((ho, 1, c), _NEG, y.dtype)
    q = jnp.concatenate([neg_col, r], axis=1)                  # q[:,k] = r[:,k-1]
    a2 = q[:, 0:ww].reshape(ho, wo, 2, c)
    d2 = q[:, 1:ww + 1].reshape(ho, wo, 2, c)
    return jnp.maximum(jnp.maximum(a2[:, :, 0], d2[:, :, 0]), d2[:, :, 1])


def _avgpool4(x):
    """F.avg_pool2d(x, 4) on (H, W, C); whole-array reshapes on both axes."""
    hh, ww, c = x.shape
    ho, wo = hh // 4, ww // 4
    a = x.reshape(ho, 4, ww, c)
    r = a[:, 0] + a[:, 1] + a[:, 2] + a[:, 3]                  # (ho, ww, c)
    b = r.reshape(ho, wo, 4, c)
    return (b[:, :, 0] + b[:, :, 1] + b[:, :, 2] + b[:, :, 3]) * 0.0625


def _mask_rows(y, g0, size, fill):
    """Replace rows whose global index g0+i falls outside [0, size) with fill."""
    rows = y.shape[0]
    g = g0 + jax.lax.broadcasted_iota(jnp.int32, (rows, 1, 1), 0)
    ok = (g >= 0) & (g < size)
    return jnp.where(ok, y, jnp.float32(fill))


# ----------------------------------------------------------------------------
# Kernel 1: fused per-(image, row-band) feature chain
#   conv1+Mish -> maxpool -> conv2+Mish -> maxpool  (+ rgb 4x4 avg-pool)
#   output: 128-lane payload rows [features | rgb | 1 | zeros]
# ----------------------------------------------------------------------------
def _fused_payload_kernel(x_ref, w1_ref, w2_ref, o_ref, *, H, W, QB):
    # x_ref : (1, 4*QB+16, W, 3)   haloed row band (original rows [4qlo-10, 4qhi+6))
    # w1_ref: (9*3, CH)            im2col weights, rows ordered (kh, kw, cin)
    # w2_ref: (9*CH, CH)
    # o_ref : (1, QB*(W//4), 128)
    CH = w1_ref.shape[-1]
    ws = W // 4
    b = pl.program_id(1)
    qlo = b * QB                                # first quarter-res row of this band
    in_rows = 4 * QB + 16

    x3 = x_ref[0]                               # (in_rows, W, 3)

    # stage 1: conv(3->CH, dil 2) + Mish; row "padding" comes from the halo
    ho1 = in_rows - 4                           # rows global [4qlo-8, 4qhi+4)
    c1 = _conv3x3_d2_mish(_pad_w(x3, 2), w1_ref[...], ho1, W)
    c1 = _mask_rows(c1, 4 * qlo - 8, H, _NEG)          # maxpool's -inf padding
    m1 = _maxpool_3x3_s2_p1(c1)                        # rows [2qlo-4, 2qhi+2)
    m1 = _mask_rows(m1, 2 * qlo - 4, H // 2, 0.0)      # conv2's zero padding

    # stage 2: conv(CH->CH, dil 2) + Mish + maxpool
    c2 = _conv3x3_d2_mish(_pad_hw(m1, 2), w2_ref[...], 2 * QB + 6, W // 2)
    c2 = _mask_rows(c2, 2 * qlo - 4, H // 2, _NEG)
    m2 = _maxpool_3x3_s2_p1(c2)                        # rows [qlo-2, qhi+1)
    feats = m2[2:2 + QB].reshape(QB * ws, CH)          # rows [qlo, qhi)

    # 4x4 rgb average pool over this band's own rows (local rows 10 .. 10+4*QB)
    rgbp = _avgpool4(x3[10:10 + 4 * QB]).reshape(QB * ws, 3)

    # lane-dense payload: zero-init + disjoint lane-slice stores (no lane concat)
    o_ref[...] = jnp.zeros_like(o_ref)
    o_ref[0, :, 0:CH] = feats
    o_ref[0, :, CH:CH + 3] = rgbp
    o_ref[0, :, CH + 3:CH + 4] = jnp.ones((QB * ws, 1), jnp.float32)


def _vmem_limit_bytes():
    """Generation-aware scoped VMEM limit: ~48 MiB on v7x, 96 MiB on v5e/v6e."""
    try:
        cap = int(pltpu.get_tpu_info().vmem_capacity_bytes)
    except Exception:
        cap = 128 * 1024 * 1024
    return int(min(96 * 1024 * 1024, max(32 * 1024 * 1024, (cap * 3) // 4)))


def _pick_band_rows(H, W, budget_bytes):
    """Largest quarter-res band height (divisor of H//4) whose working set fits."""
    hq, ws = H // 4, W // 4

    def est(qb):                       # rough per-band VMEM (f32, lane-padded)
        e = 2 * (4 * qb + 16) * W * 128 * 4            # double-buffered input band
        e += 2 * (4 * qb + 12) * W * 128 * 4           # conv1 im2col + activations
        e += (2 * qb + 6) * (W // 2) * (3 * 128) * 4   # conv2 im2col (288 lanes)
        e += 2 * (2 * qb + 6) * (W // 2) * 128 * 4     # m1 + conv2 activations
        return e

    cands = [qb for qb in range(1, hq + 1)
             if hq % qb == 0 and (qb == hq or (qb * ws) % 8 == 0)]
    fits = [qb for qb in cands if est(qb) <= budget_bytes]
    # TODO(synk): add W tiling for very wide images where even the smallest
    # row band exceeds the budget.
    return max(fits) if fits else min(cands)


def fused_point_features(rgb_nchw, w1_mat, w2_mat, *, band_rows=None):
    """rgb (N, 3, H, W) f32 -> payload (N, (H//4)*(W//4), 128) f32."""
    N, _, H, W = rgb_nchw.shape
    assert H % SCALE == 0 and W % SCALE == 0
    Hs, Ws = H // SCALE, W // SCALE
    vmem_limit = _vmem_limit_bytes()
    QB = band_rows if band_rows is not None else _pick_band_rows(H, W, vmem_limit // 2)
    assert Hs % QB == 0 and (QB == Hs or (QB * Ws) % 8 == 0)
    num_bands = Hs // QB
    in_rows = 4 * QB + 16

    # NHWC + 10/6 zero halo rows, then materialize overlapped row bands so each
    # grid step receives a disjoint, contiguous block (dilation-2 conv halo).
    # TODO(synk): the NCHW->NHWC transpose stays in XLA; a channels-last data
    # pipeline would remove it.
    x = jnp.transpose(rgb_nchw, (0, 2, 3, 1)).astype(jnp.float32)
    xp = jnp.pad(x, ((0, 0), (10, 6), (0, 0), (0, 0)))
    bands = jnp.stack(
        [xp[:, 4 * QB * b: 4 * QB * b + in_rows] for b in range(num_bands)],
        axis=1).reshape(N * num_bands, in_rows, W, PCN_I)

    kernel = functools.partial(_fused_payload_kernel, H=H, W=W, QB=QB)
    return pl.pallas_call(
        kernel,
        out_shape=jax.ShapeDtypeStruct((N, Hs * Ws, PAYLOAD_F), jnp.float32),
        grid=(N, num_bands),
        in_specs=[
            pl.BlockSpec((1, in_rows, W, PCN_I),
                         lambda n, b: (n * num_bands + b, 0, 0, 0)),
            pl.BlockSpec(w1_mat.shape, lambda n, b: (0, 0)),
            pl.BlockSpec(w2_mat.shape, lambda n, b: (0, 0)),
        ],
        out_specs=pl.BlockSpec((1, QB * Ws, PAYLOAD_F), lambda n, b: (n, b, 0)),
        compiler_params=pltpu.CompilerParams(
            dimension_semantics=("parallel", "parallel"),
            vmem_limit_bytes=vmem_limit),
    )(bands, w1_mat, w2_mat)


# ----------------------------------------------------------------------------
# Kernel 2: bin_reduce scatter-sum via one-hot MXU matmul
#   grid = (bin tiles [parallel], point chunks [arbitrary, accumulated])
#   scalar-prefetched hit table skips chunks that cannot touch this bin tile
# ----------------------------------------------------------------------------
def _bin_reduce_kernel(hits_ref, bidx_ref, data_ref, o_ref, *, num_chunks):
    # hits_ref: (num_tiles*num_chunks,) SMEM  1 if chunk m has points for tile i
    # bidx_ref: (1, CHUNK)                    per-point bin index (-1 = dropped)
    # data_ref: (CHUNK, F)                    per-point payload
    # o_ref   : (TILE_NB, F)                  accumulated scatter-sum (this tile)
    i = pl.program_id(0)
    m = pl.program_id(1)

    @pl.when(m == 0)
    def _init():
        o_ref[...] = jnp.zeros_like(o_ref)

    @pl.when(hits_ref[i * num_chunks + m] > 0)
    def _acc():
        tile_nb = o_ref.shape[0]
        chunk = data_ref.shape[0]
        rows = i * tile_nb + jax.lax.broadcasted_iota(
            jnp.int32, (tile_nb, chunk), 0)
        onehot = (rows == bidx_ref[...]).astype(jnp.float32)   # (TILE_NB, CHUNK)
        o_ref[...] += jnp.dot(onehot, data_ref[...],
                              preferred_element_type=jnp.float32)


def bin_reduce(bin_idx, data, num_bins):
    """bin_idx (M,) i32 (-1 = dropped), data (M, F) f32 -> (num_bins, F) f32."""
    M, F = data.shape
    assert num_bins % _BIN_TILE == 0
    tile_nb = _BIN_TILE               # 256 bins/tile -> >=2 parallel tiles for B>=2
    num_tiles = num_bins // tile_nb

    chunk = min(2048, ((M + 127) // 128) * 128)
    m_pad = ((M + chunk - 1) // chunk) * chunk
    if m_pad != M:
        bin_idx = jnp.concatenate(
            [bin_idx, jnp.full((m_pad - M,), -1, jnp.int32)])
        data = jnp.concatenate(
            [data, jnp.zeros((m_pad - M, F), data.dtype)], axis=0)
    num_chunks = m_pad // chunk
    bidx2d = bin_idx.reshape(1, m_pad).astype(jnp.int32)

    # batch-block sparsity: with tile_nb == V*X*Y every bin tile is exactly one
    # batch element, so only chunks containing that element's points matter.
    point_tile = jnp.where(bin_idx >= 0, bin_idx // tile_nb, -1)
    point_tile = point_tile.reshape(num_chunks, chunk)
    hits = (point_tile[None, :, :]
            == jnp.arange(num_tiles, dtype=jnp.int32)[:, None, None]).any(-1)
    hits = hits.reshape(num_tiles * num_chunks).astype(jnp.int32)

    kernel = functools.partial(_bin_reduce_kernel, num_chunks=num_chunks)
    return pl.pallas_call(
        kernel,
        out_shape=jax.ShapeDtypeStruct((num_bins, F), jnp.float32),
        grid_spec=pltpu.PrefetchScalarGridSpec(
            num_scalar_prefetch=1,
            grid=(num_tiles, num_chunks),
            in_specs=[
                pl.BlockSpec((1, chunk), lambda i, m, hits: (0, m)),
                pl.BlockSpec((chunk, F), lambda i, m, hits: (m, 0)),
            ],
            out_specs=pl.BlockSpec((tile_nb, F), lambda i, m, hits: (i, 0))),
        compiler_params=pltpu.CompilerParams(
            dimension_semantics=("parallel", "arbitrary"),
            vmem_limit_bytes=32 * 1024 * 1024),
    )(hits, bidx2d, data)


# ----------------------------------------------------------------------------
# Plain-JAX glue
# ----------------------------------------------------------------------------
def _coord_to_bin_index(flat_xyz, flat_index):
    """coord_to_grid + selector_to_index, hoisted out of the Pallas grid."""
    map_h, map_w = MAP_RES
    h1, w1, h2, w2 = MAP_BBOX
    v1, v2 = V_BBOX
    # torch .long() truncates toward zero; f32->i32 cast does the same
    hs = ((flat_xyz[:, XYZ_TO_H] - h1) * map_h / (h2 - h1)).astype(jnp.int32)
    ws = ((flat_xyz[:, XYZ_TO_W] - w1) * map_w / (w2 - w1)).astype(jnp.int32)
    vs = ((flat_xyz[:, XYZ_TO_V] - v1) * V_RES / (v2 - v1)).astype(jnp.int32)
    valid = ((hs >= 0) & (hs < map_h) & (ws >= 0) & (ws < map_w)
             & (vs >= 0) & (vs < V_RES))
    bin_idx = (flat_index.astype(jnp.int32) * (V_RES * map_h * map_w)
               + vs * (map_h * map_w) + hs * map_w + ws)
    return jnp.where(valid, bin_idx, -1).astype(jnp.int32)


def init_params():
    """Deterministic synthetic weights (shapes from the module's __init__)."""
    k1, k2 = jax.random.split(jax.random.PRNGKey(42))
    # Conv2d(pcn_i -> h, 3x3, dil 2, bias=False), generated HWIO then folded to
    # (9*Cin, Cout) im2col layout with rows ordered (kh, kw, cin).
    # TODO(synk): real PyTorch checkpoints are OIHW and must be permuted to
    # (kh, kw, cin) rows before this reshape.
    w1 = jax.random.normal(k1, (3, 3, PCN_I, PCN_H), jnp.float32) / jnp.sqrt(
        3.0 * 3.0 * PCN_I)
    w2 = jax.random.normal(k2, (3, 3, PCN_H, PCN_H), jnp.float32) / jnp.sqrt(
        3.0 * 3.0 * PCN_H)
    # TODO(synk): pre_dot_layer / post_dot_layer / resnet / attention branches
    # are unused when target_emb is None and use_resnet/use_attention are off.
    return {"w1": w1.reshape(9 * PCN_I, PCN_H),
            "w2": w2.reshape(9 * PCN_H, PCN_H)}


def point_cloud_to_2d_forward(params, rgb, surf_xyz, index, *, batch_size,
                              band_rows=None):
    """
    rgb      : (N, 3, H, W)  f32  (NCHW, PyTorch convention)
    surf_xyz : (N, 3, H, W)  f32
    index    : (N,)          i32  batch element index per observation
    returns dict matching PointCloudTo2D.forward
    """
    N, _, H, W = rgb.shape
    map_h, map_w = MAP_RES
    Hs, Ws = H // SCALE, W // SCALE
    h = params["w1"].shape[-1]

    # Fused Pallas kernel: conv/Mish/maxpool chain + rgb avg-pool -> payload rows
    payload = fused_point_features(rgb, params["w1"], params["w2"],
                                   band_rows=band_rows)
    M = N * Hs * Ws
    payload = payload.reshape(M, PAYLOAD_F)                  # (n h w) ordering

    # surf_xyz = surf_xyz[:, :, 2::4, 2::4]; coord_to_grid hoisted to wrapper
    surf_xyz_s = surf_xyz[:, :, SCALE // 2::SCALE, SCALE // 2::SCALE]
    flat_xyz = jnp.transpose(surf_xyz_s, (0, 2, 3, 1)).reshape(M, 3)
    flat_index = jnp.broadcast_to(
        index.astype(jnp.int32)[:, None, None], (N, Hs, Ws)).reshape(M)
    bin_idx = _coord_to_bin_index(flat_xyz, flat_index)

    num_bins = batch_size * V_RES * map_h * map_w
    bins = bin_reduce(bin_idx, payload, num_bins)            # (NB, 128)
    bins = bins.reshape(batch_size, V_RES, map_h, map_w, PAYLOAD_F)

    feature_map = jnp.transpose(bins[..., :h], (0, 4, 1, 2, 3))      # (B,h,V,X,Y)
    rgb_map = jnp.transpose(bins[..., h:h + 3], (0, 4, 1, 2, 3))     # (B,3,V,X,Y)
    feature_counts = bins[..., h + 3].astype(jnp.int32)[:, None]     # (B,1,V,X,Y)

    return {"feature_map": feature_map,
            "feature_counts": feature_counts,
            "rgb_map": rgb_map}


# ----------------------------------------------------------------------------
# Pure-JAX/XLA reference (exact Mish) -- used only for in-script validation
# ----------------------------------------------------------------------------
def _reference_forward(params, rgb, surf_xyz, index, *, batch_size):
    N, _, H, W = rgb.shape
    Hs, Ws = H // SCALE, W // SCALE
    w1 = params["w1"].reshape(3, 3, PCN_I, PCN_H)
    w2 = params["w2"].reshape(3, 3, PCN_H, PCN_H)

    def conv(x, w):
        return jax.lax.conv_general_dilated(
            x, w, window_strides=(1, 1), padding=((2, 2), (2, 2)),
            rhs_dilation=(2, 2), dimension_numbers=("NCHW", "HWIO", "NCHW"))

    def mish(x):
        return x * jnp.tanh(jax.nn.softplus(x))

    def maxpool(x):
        return jax.lax.reduce_window(
            x, -jnp.inf, jax.lax.max, (1, 1, 3, 3), (1, 1, 2, 2),
            ((0, 0), (0, 0), (1, 1), (1, 1)))

    feats = maxpool(mish(conv(rgb, w1)))
    feats = maxpool(mish(conv(feats, w2)))                       # (N, h, Hs, Ws)
    surf_rgb = jax.lax.reduce_window(
        rgb, 0.0, jax.lax.add, (1, 1, 4, 4), (1, 1, 4, 4), ((0, 0),) * 4) / 16.0
    sxyz = surf_xyz[:, :, 2::4, 2::4]

    M = N * Hs * Ws
    flat_feat = jnp.transpose(feats, (0, 2, 3, 1)).reshape(M, PCN_H)
    flat_rgb = jnp.transpose(surf_rgb, (0, 2, 3, 1)).reshape(M, 3)
    flat_xyz = jnp.transpose(sxyz, (0, 2, 3, 1)).reshape(M, 3)
    flat_idx = jnp.broadcast_to(index.astype(jnp.int32)[:, None, None],
                                (N, Hs, Ws)).reshape(M)
    bin_idx = _coord_to_bin_index(flat_xyz, flat_idx)
    num_bins = batch_size * V_RES * MAP_RES[0] * MAP_RES[1]
    seg = jnp.where(bin_idx >= 0, bin_idx, num_bins)             # dropped points

    fm = jax.ops.segment_sum(flat_feat, seg, num_segments=num_bins + 1)[:num_bins]
    rm = jax.ops.segment_sum(flat_rgb, seg, num_segments=num_bins + 1)[:num_bins]
    cnt = jax.ops.segment_sum(jnp.ones((M,), jnp.float32), seg,
                              num_segments=num_bins + 1)[:num_bins]
    fm = fm.reshape(batch_size, V_RES, *MAP_RES, PCN_H)
    rm = rm.reshape(batch_size, V_RES, *MAP_RES, 3)
    cnt = cnt.reshape(batch_size, V_RES, *MAP_RES).astype(jnp.int32)
    return {"feature_map": jnp.transpose(fm, (0, 4, 1, 2, 3)),
            "rgb_map": jnp.transpose(rm, (0, 4, 1, 2, 3)),
            "feature_counts": cnt[:, None]}


if __name__ == "__main__":
    key = jax.random.PRNGKey(0)
    kr, kx = jax.random.split(key)

    N, H, W = 4, 16, 16
    B = 2
    rgb = jax.random.normal(kr, (N, PCN_I, H, W), jnp.float32)
    # XYZ slightly wider than the bbox so some points fall out of bounds
    surf_xyz = jax.random.uniform(kx, (N, 3, H, W), jnp.float32,
                                  minval=-1.2, maxval=1.2)
    index = jnp.array([0, 0, 1, 1], dtype=jnp.int32)

    params = init_params()
    fwd = jax.jit(functools.partial(point_cloud_to_2d_forward, batch_size=B))
    out = fwd(params, rgb, surf_xyz, index)
    jax.block_until_ready(out)

    assert out["feature_map"].shape == (B, PCN_H, V_RES, *MAP_RES)
    assert out["feature_counts"].shape == (B, 1, V_RES, *MAP_RES)
    assert out["rgb_map"].shape == (B, 3, V_RES, *MAP_RES)

    # The spatially tiled (multi row-band) path must agree with the single-band
    # path (identical arithmetic on identical values).
    fwd_banded = jax.jit(functools.partial(point_cloud_to_2d_forward,
                                           batch_size=B, band_rows=2))
    out_b = fwd_banded(params, rgb, surf_xyz, index)
    jax.block_until_ready(out_b)
    assert bool(jnp.allclose(out["feature_map"], out_b["feature_map"],
                             rtol=1e-5, atol=1e-5))
    assert bool(jnp.allclose(out["rgb_map"], out_b["rgb_map"],
                             rtol=1e-5, atol=1e-5))
    assert bool(jnp.array_equal(out["feature_counts"], out_b["feature_counts"]))

    # Pure-JAX reference with exact Mish.  The Pallas path uses an approximate
    # reciprocal inside Mish, so the feature map is compared with a loose
    # tolerance; rgb / counts involve no transcendentals and are checked tight.
    ref = _reference_forward(params, rgb, surf_xyz, index, batch_size=B)
    assert bool(jnp.array_equal(out["feature_counts"], ref["feature_counts"]))
    assert bool(jnp.allclose(out["rgb_map"], ref["rgb_map"],
                             rtol=1e-4, atol=1e-4))
    assert bool(jnp.allclose(out["feature_map"], ref["feature_map"],
                             rtol=5e-2, atol=2e-1))

    print("KERNEL_OK")
</pallas_src>

<mosaic_0001>
module attributes {stable_mosaic.version = 11 : i64} {
  func.func @_fused_payload_kernel(%arg0: i32, %arg1: i32, %arg2: memref<1x32x16x3xf32, #tpu.memory_space<vmem>>, %arg3: memref<27x32xf32, #tpu.memory_space<vmem>>, %arg4: memref<288x32xf32, #tpu.memory_space<vmem>>, %arg5: memref<1x16x128xf32, #tpu.memory_space<vmem>>) attributes {dimension_semantics = [#tpu.dimension_semantics<parallel>, #tpu.dimension_semantics<parallel>], iteration_bounds = array<i64: 4, 1>, scalar_prefetch = 0 : i64, scratch_operands = 0 : i64, tpu.core_type = #tpu.core_type<tc>, window_params = [{transform_indices = @transform_0, window_bounds = array<i64: 1, 32, 16, 3>}, {pipeline_mode = #tpu.pipeline_mode<synchronous>, transform_indices = @transform_1, window_bounds = array<i64: 27, 32>}, {pipeline_mode = #tpu.pipeline_mode<synchronous>, transform_indices = @transform_2, window_bounds = array<i64: 288, 32>}, {transform_indices = @transform_3, window_bounds = array<i64: 1, 16, 128>}]} {
    %c4_i32 = arith.constant 4 : i32
    %0 = arith.muli %arg1, %c4_i32 : i32
    %c0 = arith.constant 0 : index
    %c0_0 = arith.constant 0 : index
    %c0_1 = arith.constant 0 : index
    %c0_2 = arith.constant 0 : index
    %1 = vector.load %arg2[%c0, %c0_0, %c0_1, %c0_2] : memref<1x32x16x3xf32, #tpu.memory_space<vmem>>, vector<1x32x16x3xf32>
    %2 = vector.shape_cast %1 : vector<1x32x16x3xf32> to vector<32x16x3xf32>
    %cst = arith.constant 0.000000e+00 : f32
    %3 = vector.broadcast %cst : f32 to vector<32x2x3xf32>
    %4 = tpu.concatenate %3, %2, %3 in 1 : vector<32x2x3xf32>, vector<32x16x3xf32>, vector<32x2x3xf32> -> vector<32x20x3xf32>
    %c0_3 = arith.constant 0 : index
    %c0_4 = arith.constant 0 : index
    %5 = vector.load %arg3[%c0_3, %c0_4] : memref<27x32xf32, #tpu.memory_space<vmem>>, vector<27x32xf32>
    %6 = vector.extract_strided_slice %4 {offsets = [0, 0, 0], sizes = [28, 16, 3], strides = [1, 1, 1]} : vector<32x20x3xf32> to vector<28x16x3xf32>
    %7 = vector.extract_strided_slice %4 {offsets = [0, 2, 0], sizes = [28, 16, 3], strides = [1, 1, 1]} : vector<32x20x3xf32> to vector<28x16x3xf32>
    %8 = vector.extract_strided_slice %4 {offsets = [0, 4, 0], sizes = [28, 16, 3], strides = [1, 1, 1]} : vector<32x20x3xf32> to vector<28x16x3xf32>
    %9 = vector.extract_strided_slice %4 {offsets = [2, 0, 0], sizes = [28, 16, 3], strides = [1, 1, 1]} : vector<32x20x3xf32> to vector<28x16x3xf32>
    %10 = vector.extract_strided_slice %4 {offsets = [2, 2, 0], sizes = [28, 16, 3], strides = [1, 1, 1]} : vector<32x20x3xf32> to vector<28x16x3xf32>
    %11 = vector.extract_strided_slice %4 {offsets = [2, 4, 0], sizes = [28, 16, 3], strides = [1, 1, 1]} : vector<32x20x3xf32> to vector<28x16x3xf32>
    %12 = vector.extract_strided_slice %4 {offsets = [4, 0, 0], sizes = [28, 16, 3], strides = [1, 1, 1]} : vector<32x20x3xf32> to vector<28x16x3xf32>
    %13 = vector.extract_strided_slice %4 {offsets = [4, 2, 0], sizes = [28, 16, 3], strides = [1, 1, 1]} : vector<32x20x3xf32> to vector<28x16x3xf32>
    %14 = vector.extract_strided_slice %4 {offsets = [4, 4, 0], sizes = [28, 16, 3], strides = [1, 1, 1]} : vector<32x20x3xf32> to vector<28x16x3xf32>
    %15 = tpu.concatenate %6, %7, %8, %9, %10, %11, %12, %13, %14 in 2 : vector<28x16x3xf32>, vector<28x16x3xf32>, vector<28x16x3xf32>, vector<28x16x3xf32>, vector<28x16x3xf32>, vector<28x16x3xf32>, vector<28x16x3xf32>, vector<28x16x3xf32>, vector<28x16x3xf32> -> vector<28x16x27xf32>
    %16 = vector.shape_cast %15 : vector<28x16x27xf32> to vector<448x27xf32>
    %cst_5 = arith.constant dense<0.000000e+00> : vector<448x32xf32>
    %17 = tpu.matmul %16, %5, %cst_5 {dimension_numbers = #tpu.dot_dimension_numbers<[1], [0], [0], [1], [0, 0, 1, 1], [], []>} : vector<448x27xf32>, vector<27x32xf32>, vector<448x32xf32> -> vector<448x32xf32>
    %cst_6 = arith.constant 2.000000e+01 : f32
    %18 = vector.broadcast %cst_6 : f32 to vector<448x32xf32>
    %19 = arith.minimumf %17, %18 : vector<448x32xf32>
    %20 = math.exp %19 : vector<448x32xf32>
    %cst_7 = arith.constant 2.000000e+00 : f32
    %21 = vector.broadcast %cst_7 : f32 to vector<448x32xf32>
    %22 = arith.addf %20, %21 : vector<448x32xf32>
    %23 = arith.mulf %20, %22 : vector<448x32xf32>
    %cst_8 = arith.constant 2.000000e+00 : f32
    %24 = vector.broadcast %cst_8 : f32 to vector<448x32xf32>
    %25 = arith.addf %23, %24 : vector<448x32xf32>
    %26 = tpu.reciprocal %25 {approx = true} : vector<448x32xf32> -> vector<448x32xf32>
    %27 = arith.mulf %23, %26 : vector<448x32xf32>
    %28 = arith.mulf %17, %27 : vector<448x32xf32>
    %29 = vector.shape_cast %28 : vector<448x32xf32> to vector<28x16x32xf32>
    %c4_i32_9 = arith.constant 4 : i32
    %30 = arith.muli %c4_i32_9, %0 : i32
    %c8_i32 = arith.constant 8 : i32
    %31 = arith.subi %30, %c8_i32 : i32
    %32 = tpu.iota {dimensions = array<i32: 0>} : vector<28x1x1xi32>
    %33 = vector.broadcast %31 : i32 to vector<28x1x1xi32>
    %34 = arith.addi %33, %32 : vector<28x1x1xi32>
    %c0_i32 = arith.constant 0 : i32
    %35 = vector.broadcast %c0_i32 : i32 to vector<28x1x1xi32>
    %36 = arith.cmpi sge, %34, %35 : vector<28x1x1xi32>
    %c16_i32 = arith.constant 16 : i32
    %37 = vector.broadcast %c16_i32 : i32 to vector<28x1x1xi32>
    %38 = arith.cmpi slt, %34, %37 : vector<28x1x1xi32>
    %39 = arith.andi %36, %38 : vector<28x1x1xi1>
    %cst_10 = arith.constant -3.000000e+38 : f32
    %40 = vector.shape_cast %39 : vector<28x1x1xi1> to vector<28x1x1xi1>
    %41 = vector.broadcast %40 : vector<28x1x1xi1> to vector<28x16x32xi1>
    %42 = vector.broadcast %cst_10 : f32 to vector<28x16x32xf32>
    %43 = arith.select %41, %29, %42 : vector<28x16x32xi1>, vector<28x16x32xf32>
    %cst_11 = arith.constant -3.000000e+38 : f32
    %44 = vector.broadcast %cst_11 : f32 to vector<1x16x32xf32>
    %45 = tpu.concatenate %44, %43 in 0 : vector<1x16x32xf32>, vector<28x16x32xf32> -> vector<29x16x32xf32>
    %46 = vector.extract_strided_slice %45 {offsets = [0, 0, 0], sizes = [28, 16, 32], strides = [1, 1, 1]} : vector<29x16x32xf32> to vector<28x16x32xf32>
    %47 = vector.shape_cast %46 : vector<28x16x32xf32> to vector<14x2x16x32xf32>
    %48 = vector.extract_strided_slice %45 {offsets = [1, 0, 0], sizes = [28, 16, 32], strides = [1, 1, 1]} : vector<29x16x32xf32> to vector<28x16x32xf32>
    %49 = vector.shape_cast %48 : vector<28x16x32xf32> to vector<14x2x16x32xf32>
    %50 = vector.extract_strided_slice %47 {offsets = [0, 0, 0, 0], sizes = [14, 1, 16, 32], strides = [1, 1, 1, 1]} : vector<14x2x16x32xf32> to vector<14x1x16x32xf32>
    %51 = vector.shape_cast %50 : vector<14x1x16x32xf32> to vector<14x16x32xf32>
    %52 = vector.extract_strided_slice %49 {offsets = [0, 0, 0, 0], sizes = [14, 1, 16, 32], strides = [1, 1, 1, 1]} : vector<14x2x16x32xf32> to vector<14x1x16x32xf32>
    %53 = vector.shape_cast %52 : vector<14x1x16x32xf32> to vector<14x16x32xf32>
    %54 = arith.maximumf %51, %53 : vector<14x16x32xf32>
    %55 = vector.extract_strided_slice %49 {offsets = [0, 1, 0, 0], sizes = [14, 1, 16, 32], strides = [1, 1, 1, 1]} : vector<14x2x16x32xf32> to vector<14x1x16x32xf32>
    %56 = vector.shape_cast %55 : vector<14x1x16x32xf32> to vector<14x16x32xf32>
    %57 = arith.maximumf %54, %56 : vector<14x16x32xf32>
    %cst_12 = arith.constant -3.000000e+38 : f32
    %58 = vector.broadcast %cst_12 : f32 to vector<14x1x32xf32>
    %59 = tpu.concatenate %58, %57 in 1 : vector<14x1x32xf32>, vector<14x16x32xf32> -> vector<14x17x32xf32>
    %60 = vector.extract_strided_slice %59 {offsets = [0, 0, 0], sizes = [14, 16, 32], strides = [1, 1, 1]} : vector<14x17x32xf32> to vector<14x16x32xf32>
    %61 = vector.shape_cast %60 : vector<14x16x32xf32> to vector<14x8x2x32xf32>
    %62 = vector.extract_strided_slice %59 {offsets = [0, 1, 0], sizes = [14, 16, 32], strides = [1, 1, 1]} : vector<14x17x32xf32> to vector<14x16x32xf32>
    %63 = vector.shape_cast %62 : vector<14x16x32xf32> to vector<14x8x2x32xf32>
    %64 = vector.extract_strided_slice %61 {offsets = [0, 0, 0, 0], sizes = [14, 8, 1, 32], strides = [1, 1, 1, 1]} : vector<14x8x2x32xf32> to vector<14x8x1x32xf32>
    %65 = vector.shape_cast %64 : vector<14x8x1x32xf32> to vector<14x8x32xf32>
    %66 = vector.extract_strided_slice %63 {offsets = [0, 0, 0, 0], sizes = [14, 8, 1, 32], strides = [1, 1, 1, 1]} : vector<14x8x2x32xf32> to vector<14x8x1x32xf32>
    %67 = vector.shape_cast %66 : vector<14x8x1x32xf32> to vector<14x8x32xf32>
    %68 = arith.maximumf %65, %67 : vector<14x8x32xf32>
    %69 = vector.extract_strided_slice %63 {offsets = [0, 0, 1, 0], sizes = [14, 8, 1, 32], strides = [1, 1, 1, 1]} : vector<14x8x2x32xf32> to vector<14x8x1x32xf32>
    %70 = vector.shape_cast %69 : vector<14x8x1x32xf32> to vector<14x8x32xf32>
    %71 = arith.maximumf %68, %70 : vector<14x8x32xf32>
    %c2_i32 = arith.constant 2 : i32
    %72 = arith.muli %c2_i32, %0 : i32
    %c4_i32_13 = arith.constant 4 : i32
    %73 = arith.subi %72, %c4_i32_13 : i32
    %74 = tpu.iota {dimensions = array<i32: 0>} : vector<14x1x1xi32>
    %75 = vector.broadcast %73 : i32 to vector<14x1x1xi32>
    %76 = arith.addi %75, %74 : vector<14x1x1xi32>
    %c0_i32_14 = arith.constant 0 : i32
    %77 = vector.broadcast %c0_i32_14 : i32 to vector<14x1x1xi32>
    %78 = arith.cmpi sge, %76, %77 : vector<14x1x1xi32>
    %c8_i32_15 = arith.constant 8 : i32
    %79 = vector.broadcast %c8_i32_15 : i32 to vector<14x1x1xi32>
    %80 = arith.cmpi slt, %76, %79 : vector<14x1x1xi32>
    %81 = arith.andi %78, %80 : vector<14x1x1xi1>
    %cst_16 = arith.constant 0.000000e+00 : f32
    %82 = vector.shape_cast %81 : vector<14x1x1xi1> to vector<14x1x1xi1>
    %83 = vector.broadcast %82 : vector<14x1x1xi1> to vector<14x8x32xi1>
    %84 = vector.broadcast %cst_16 : f32 to vector<14x8x32xf32>
    %85 = arith.select %83, %71, %84 : vector<14x8x32xi1>, vector<14x8x32xf32>
    %cst_17 = arith.constant 0.000000e+00 : f32
    %86 = vector.broadcast %cst_17 : f32 to vector<2x8x32xf32>
    %87 = tpu.concatenate %86, %85, %86 in 0 : vector<2x8x32xf32>, vector<14x8x32xf32>, vector<2x8x32xf32> -> vector<18x8x32xf32>
    %cst_18 = arith.constant 0.000000e+00 : f32
    %88 = vector.broadcast %cst_18 : f32 to vector<18x2x32xf32>
    %89 = tpu.concatenate %88, %87, %88 in 1 : vector<18x2x32xf32>, vector<18x8x32xf32>, vector<18x2x32xf32> -> vector<18x12x32xf32>
    %c0_19 = arith.constant 0 : index
    %c0_20 = arith.constant 0 : index
    %90 = vector.load %arg4[%c0_19, %c0_20] : memref<288x32xf32, #tpu.memory_space<vmem>>, vector<288x32xf32>
    %91 = vector.extract_strided_slice %89 {offsets = [0, 0, 0], sizes = [14, 8, 32], strides = [1, 1, 1]} : vector<18x12x32xf32> to vector<14x8x32xf32>
    %92 = vector.extract_strided_slice %89 {offsets = [0, 2, 0], sizes = [14, 8, 32], strides = [1, 1, 1]} : vector<18x12x32xf32> to vector<14x8x32xf32>
    %93 = vector.extract_strided_slice %89 {offsets = [0, 4, 0], sizes = [14, 8, 32], strides = [1, 1, 1]} : vector<18x12x32xf32> to vector<14x8x32xf32>
    %94 = vector.extract_strided_slice %89 {offsets = [2, 0, 0], sizes = [14, 8, 32], strides = [1, 1, 1]} : vector<18x12x32xf32> to vector<14x8x32xf32>
    %95 = vector.extract_strided_slice %89 {offsets = [2, 2, 0], sizes = [14, 8, 32], strides = [1, 1, 1]} : vector<18x12x32xf32> to vector<14x8x32xf32>
    %96 = vector.extract_strided_slice %89 {offsets = [2, 4, 0], sizes = [14, 8, 32], strides = [1, 1, 1]} : vector<18x12x32xf32> to vector<14x8x32xf32>
    %97 = vector.extract_strided_slice %89 {offsets = [4, 0, 0], sizes = [14, 8, 32], strides = [1, 1, 1]} : vector<18x12x32xf32> to vector<14x8x32xf32>
    %98 = vector.extract_strided_slice %89 {offsets = [4, 2, 0], sizes = [14, 8, 32], strides = [1, 1, 1]} : vector<18x12x32xf32> to vector<14x8x32xf32>
    %99 = vector.extract_strided_slice %89 {offsets = [4, 4, 0], sizes = [14, 8, 32], strides = [1, 1, 1]} : vector<18x12x32xf32> to vector<14x8x32xf32>
    %100 = tpu.concatenate %91, %92, %93, %94, %95, %96, %97, %98, %99 in 2 : vector<14x8x32xf32>, vector<14x8x32xf32>, vector<14x8x32xf32>, vector<14x8x32xf32>, vector<14x8x32xf32>, vector<14x8x32xf32>, vector<14x8x32xf32>, vector<14x8x32xf32>, vector<14x8x32xf32> -> vector<14x8x288xf32>
    %101 = vector.shape_cast %100 : vector<14x8x288xf32> to vector<112x288xf32>
    %cst_21 = arith.constant dense<0.000000e+00> : vector<112x32xf32>
    %102 = tpu.matmul %101, %90, %cst_21 {dimension_numbers = #tpu.dot_dimension_numbers<[1], [0], [0], [1], [0, 0, 1, 1], [], []>} : vector<112x288xf32>, vector<288x32xf32>, vector<112x32xf32> -> vector<112x32xf32>
    %cst_22 = arith.constant 2.000000e+01 : f32
    %103 = vector.broadcast %cst_22 : f32 to vector<112x32xf32>
    %104 = arith.minimumf %102, %103 : vector<112x32xf32>
    %105 = math.exp %104 : vector<112x32xf32>
    %cst_23 = arith.constant 2.000000e+00 : f32
    %106 = vector.broadcast %cst_23 : f32 to vector<112x32xf32>
    %107 = arith.addf %105, %106 : vector<112x32xf32>
    %108 = arith.mulf %105, %107 : vector<112x32xf32>
    %cst_24 = arith.constant 2.000000e+00 : f32
    %109 = vector.broadcast %cst_24 : f32 to vector<112x32xf32>
    %110 = arith.addf %108, %109 : vector<112x32xf32>
    %111 = tpu.reciprocal %110 {approx = true} : vector<112x32xf32> -> vector<112x32xf32>
    %112 = arith.mulf %108, %111 : vector<112x32xf32>
    %113 = arith.mulf %102, %112 : vector<112x32xf32>
    %114 = vector.shape_cast %113 : vector<112x32xf32> to vector<14x8x32xf32>
    %c2_i32_25 = arith.constant 2 : i32
    %115 = arith.muli %c2_i32_25, %0 : i32
    %c4_i32_26 = arith.constant 4 : i32
    %116 = arith.subi %115, %c4_i32_26 : i32
    %117 = tpu.iota {dimensions = array<i32: 0>} : vector<14x1x1xi32>
    %118 = vector.broadcast %116 : i32 to vector<14x1x1xi32>
    %119 = arith.addi %118, %117 : vector<14x1x1xi32>
    %c0_i32_27 = arith.constant 0 : i32
    %120 = vector.broadcast %c0_i32_27 : i32 to vector<14x1x1xi32>
    %121 = arith.cmpi sge, %119, %120 : vector<14x1x1xi32>
    %c8_i32_28 = arith.constant 8 : i32
    %122 = vector.broadcast %c8_i32_28 : i32 to vector<14x1x1xi32>
    %123 = arith.cmpi slt, %119, %122 : vector<14x1x1xi32>
    %124 = arith.andi %121, %123 : vector<14x1x1xi1>
    %cst_29 = arith.constant -3.000000e+38 : f32
    %125 = vector.shape_cast %124 : vector<14x1x1xi1> to vector<14x1x1xi1>
    %126 = vector.broadcast %125 : vector<14x1x1xi1> to vector<14x8x32xi1>
    %127 = vector.broadcast %cst_29 : f32 to vector<14x8x32xf32>
    %128 = arith.select %126, %114, %127 : vector<14x8x32xi1>, vector<14x8x32xf32>
    %cst_30 = arith.constant -3.000000e+38 : f32
    %129 = vector.broadcast %cst_30 : f32 to vector<1x8x32xf32>
    %130 = tpu.concatenate %129, %128 in 0 : vector<1x8x32xf32>, vector<14x8x32xf32> -> vector<15x8x32xf32>
    %131 = vector.extract_strided_slice %130 {offsets = [0, 0, 0], sizes = [14, 8, 32], strides = [1, 1, 1]} : vector<15x8x32xf32> to vector<14x8x32xf32>
    %132 = vector.shape_cast %131 : vector<14x8x32xf32> to vector<7x2x8x32xf32>
    %133 = vector.extract_strided_slice %130 {offsets = [1, 0, 0], sizes = [14, 8, 32], strides = [1, 1, 1]} : vector<15x8x32xf32> to vector<14x8x32xf32>
    %134 = vector.shape_cast %133 : vector<14x8x32xf32> to vector<7x2x8x32xf32>
    %135 = vector.extract_strided_slice %132 {offsets = [0, 0, 0, 0], sizes = [7, 1, 8, 32], strides = [1, 1, 1, 1]} : vector<7x2x8x32xf32> to vector<7x1x8x32xf32>
    %136 = vector.shape_cast %135 : vector<7x1x8x32xf32> to vector<7x8x32xf32>
    %137 = vector.extract_strided_slice %134 {offsets = [0, 0, 0, 0], sizes = [7, 1, 8, 32], strides = [1, 1, 1, 1]} : vector<7x2x8x32xf32> to vector<7x1x8x32xf32>
    %138 = vector.shape_cast %137 : vector<7x1x8x32xf32> to vector<7x8x32xf32>
    %139 = arith.maximumf %136, %138 : vector<7x8x32xf32>
    %140 = vector.extract_strided_slice %134 {offsets = [0, 1, 0, 0], sizes = [7, 1, 8, 32], strides = [1, 1, 1, 1]} : vector<7x2x8x32xf32> to vector<7x1x8x32xf32>
    %141 = vector.shape_cast %140 : vector<7x1x8x32xf32> to vector<7x8x32xf32>
    %142 = arith.maximumf %139, %141 : vector<7x8x32xf32>
    %cst_31 = arith.constant -3.000000e+38 : f32
    %143 = vector.broadcast %cst_31 : f32 to vector<7x1x32xf32>
    %144 = tpu.concatenate %143, %142 in 1 : vector<7x1x32xf32>, vector<7x8x32xf32> -> vector<7x9x32xf32>
    %145 = vector.extract_strided_slice %144 {offsets = [0, 0, 0], sizes = [7, 8, 32], strides = [1, 1, 1]} : vector<7x9x32xf32> to vector<7x8x32xf32>
    %146 = vector.shape_cast %145 : vector<7x8x32xf32> to vector<7x4x2x32xf32>
    %147 = vector.extract_strided_slice %144 {offsets = [0, 1, 0], sizes = [7, 8, 32], strides = [1, 1, 1]} : vector<7x9x32xf32> to vector<7x8x32xf32>
    %148 = vector.shape_cast %147 : vector<7x8x32xf32> to vector<7x4x2x32xf32>
    %149 = vector.extract_strided_slice %146 {offsets = [0, 0, 0, 0], sizes = [7, 4, 1, 32], strides = [1, 1, 1, 1]} : vector<7x4x2x32xf32> to vector<7x4x1x32xf32>
    %150 = vector.shape_cast %149 : vector<7x4x1x32xf32> to vector<7x4x32xf32>
    %151 = vector.extract_strided_slice %148 {offsets = [0, 0, 0, 0], sizes = [7, 4, 1, 32], strides = [1, 1, 1, 1]} : vector<7x4x2x32xf32> to vector<7x4x1x32xf32>
    %152 = vector.shape_cast %151 : vector<7x4x1x32xf32> to vector<7x4x32xf32>
    %153 = arith.maximumf %150, %152 : vector<7x4x32xf32>
    %154 = vector.extract_strided_slice %148 {offsets = [0, 0, 1, 0], sizes = [7, 4, 1, 32], strides = [1, 1, 1, 1]} : vector<7x4x2x32xf32> to vector<7x4x1x32xf32>
    %155 = vector.shape_cast %154 : vector<7x4x1x32xf32> to vector<7x4x32xf32>
    %156 = arith.maximumf %153, %155 : vector<7x4x32xf32>
    %157 = vector.extract_strided_slice %156 {offsets = [2, 0, 0], sizes = [4, 4, 32], strides = [1, 1, 1]} : vector<7x4x32xf32> to vector<4x4x32xf32>
    %158 = vector.shape_cast %157 : vector<4x4x32xf32> to vector<16x32xf32>
    %159 = vector.extract_strided_slice %2 {offsets = [10, 0, 0], sizes = [16, 16, 3], strides = [1, 1, 1]} : vector<32x16x3xf32> to vector<16x16x3xf32>
    %160 = vector.shape_cast %159 : vector<16x16x3xf32> to vector<4x4x16x3xf32>
    %161 = vector.extract_strided_slice %160 {offsets = [0, 0, 0, 0], sizes = [4, 1, 16, 3], strides = [1, 1, 1, 1]} : vector<4x4x16x3xf32> to vector<4x1x16x3xf32>
    %162 = vector.shape_cast %161 : vector<4x1x16x3xf32> to vector<4x16x3xf32>
    %163 = vector.extract_strided_slice %160 {offsets = [0, 1, 0, 0], sizes = [4, 1, 16, 3], strides = [1, 1, 1, 1]} : vector<4x4x16x3xf32> to vector<4x1x16x3xf32>
    %164 = vector.shape_cast %163 : vector<4x1x16x3xf32> to vector<4x16x3xf32>
    %165 = arith.addf %162, %164 : vector<4x16x3xf32>
    %166 = vector.extract_strided_slice %160 {offsets = [0, 2, 0, 0], sizes = [4, 1, 16, 3], strides = [1, 1, 1, 1]} : vector<4x4x16x3xf32> to vector<4x1x16x3xf32>
    %167 = vector.shape_cast %166 : vector<4x1x16x3xf32> to vector<4x16x3xf32>
    %168 = arith.addf %165, %167 : vector<4x16x3xf32>
    %169 = vector.extract_strided_slice %160 {offsets = [0, 3, 0, 0], sizes = [4, 1, 16, 3], strides = [1, 1, 1, 1]} : vector<4x4x16x3xf32> to vector<4x1x16x3xf32>
    %170 = vector.shape_cast %169 : vector<4x1x16x3xf32> to vector<4x16x3xf32>
    %171 = arith.addf %168, %170 : vector<4x16x3xf32>
    %172 = vector.shape_cast %171 : vector<4x16x3xf32> to vector<4x4x4x3xf32>
    %173 = vector.extract_strided_slice %172 {offsets = [0, 0, 0, 0], sizes = [4, 4, 1, 3], strides = [1, 1, 1, 1]} : vector<4x4x4x3xf32> to vector<4x4x1x3xf32>
    %174 = vector.shape_cast %173 : vector<4x4x1x3xf32> to vector<4x4x3xf32>
    %175 = vector.extract_strided_slice %172 {offsets = [0, 0, 1, 0], sizes = [4, 4, 1, 3], strides = [1, 1, 1, 1]} : vector<4x4x4x3xf32> to vector<4x4x1x3xf32>
    %176 = vector.shape_cast %175 : vector<4x4x1x3xf32> to vector<4x4x3xf32>
    %177 = arith.addf %174, %176 : vector<4x4x3xf32>
    %178 = vector.extract_strided_slice %172 {offsets = [0, 0, 2, 0], sizes = [4, 4, 1, 3], strides = [1, 1, 1, 1]} : vector<4x4x4x3xf32> to vector<4x4x1x3xf32>
    %179 = vector.shape_cast %178 : vector<4x4x1x3xf32> to vector<4x4x3xf32>
    %180 = arith.addf %177, %179 : vector<4x4x3xf32>
    %181 = vector.extract_strided_slice %172 {offsets = [0, 0, 3, 0], sizes = [4, 4, 1, 3], strides = [1, 1, 1, 1]} : vector<4x4x4x3xf32> to vector<4x4x1x3xf32>
    %182 = vector.shape_cast %181 : vector<4x4x1x3xf32> to vector<4x4x3xf32>
    %183 = arith.addf %180, %182 : vector<4x4x3xf32>
    %cst_32 = arith.constant 6.250000e-02 : f32
    %184 = vector.broadcast %cst_32 : f32 to vector<4x4x3xf32>
    %185 = arith.mulf %183, %184 : vector<4x4x3xf32>
    %186 = vector.shape_cast %185 : vector<4x4x3xf32> to vector<16x3xf32>
    %cst_33 = arith.constant 0.000000e+00 : f32
    %187 = vector.broadcast %cst_33 : f32 to vector<1x16x128xf32>
    %c0_34 = arith.constant 0 : index
    %c0_35 = arith.constant 0 : index
    %c0_36 = arith.constant 0 : index
    %188 = vector.load %arg5[%c0_34, %c0_35, %c0_36] : memref<1x16x128xf32, #tpu.memory_space<vmem>>, vector<1x16x128xf32>
    tpu.vector_store %arg5[%c0_34, %c0_35, %c0_36], %187 {strides = array<i32>} : memref<1x16x128xf32, #tpu.memory_space<vmem>>, vector<1x16x128xf32>,
    %c0_37 = arith.constant 0 : index
    %c0_38 = arith.constant 0 : index
    %c0_39 = arith.constant 0 : index
    %189 = vector.load %arg5[%c0_37, %c0_38, %c0_39] : memref<1x16x128xf32, #tpu.memory_space<vmem>>, vector<1x16x32xf32>
    %190 = vector.shape_cast %189 : vector<1x16x32xf32> to vector<16x32xf32>
    %191 = vector.shape_cast %158 : vector<16x32xf32> to vector<1x16x32xf32>
    tpu.vector_store %arg5[%c0_37, %c0_38, %c0_39], %191 {strides = array<i32>} : memref<1x16x128xf32, #tpu.memory_space<vmem>>, vector<1x16x32xf32>,
    %c0_40 = arith.constant 0 : index
    %c0_41 = arith.constant 0 : index
    %c32 = arith.constant 32 : index
    %192 = vector.load %arg5[%c0_40, %c0_41, %c32] : memref<1x16x128xf32, #tpu.memory_space<vmem>>, vector<1x16x3xf32>
    %193 = vector.shape_cast %192 : vector<1x16x3xf32> to vector<16x3xf32>
    %194 = vector.shape_cast %186 : vector<16x3xf32> to vector<1x16x3xf32>
    tpu.vector_store %arg5[%c0_40, %c0_41, %c32], %194 {strides = array<i32>} : memref<1x16x128xf32, #tpu.memory_space<vmem>>, vector<1x16x3xf32>,
    %cst_42 = arith.constant 1.000000e+00 : f32
    %195 = vector.broadcast %cst_42 : f32 to vector<16x1xf32>
    %c0_43 = arith.constant 0 : index
    %c0_44 = arith.constant 0 : index
    %c35 = arith.constant 35 : index
    %196 = vector.load %arg5[%c0_43, %c0_44, %c35] : memref<1x16x128xf32, #tpu.memory_space<vmem>>, vector<1x16x1xf32>
    %197 = vector.shape_cast %196 : vector<1x16x1xf32> to vector<16x1xf32>
    %198 = vector.shape_cast %195 : vector<16x1xf32> to vector<1x16x1xf32>
    tpu.vector_store %arg5[%c0_43, %c0_44, %c35], %198 {strides = array<i32>} : memref<1x16x128xf32, #tpu.memory_space<vmem>>, vector<1x16x1xf32>,
    return
  }
  func.func @transform_0(%arg0: i32, %arg1: i32) -> (i32, i32, i32, i32) {
    %c1_i32 = arith.constant 1 : i32
    %0 = arith.muli %arg0, %c1_i32 : i32
    %1 = arith.addi %0, %arg1 : i32
    %c0_i32 = arith.constant 0 : i32
    %c0_i32_0 = arith.constant 0 : i32
    %c0_i32_1 = arith.constant 0 : i32
    %c0_i32_2 = arith.constant 0 : i32
    return %1, %c0_i32, %c0_i32_0, %c0_i32_1 : i32, i32, i32, i32
  }
  func.func @transform_1(%arg0: i32, %arg1: i32) -> (i32, i32) {
    %c0_i32 = arith.constant 0 : i32
    %c0_i32_0 = arith.constant 0 : i32
    %c0_i32_1 = arith.constant 0 : i32
    return %c0_i32, %c0_i32_0 : i32, i32
  }
  func.func @transform_2(%arg0: i32, %arg1: i32) -> (i32, i32) {
    %c0_i32 = arith.constant 0 : i32
    %c0_i32_0 = arith.constant 0 : i32
    %c0_i32_1 = arith.constant 0 : i32
    return %c0_i32, %c0_i32_0 : i32, i32
  }
  func.func @transform_3(%arg0: i32, %arg1: i32) -> (i32, i32, i32) {
    %c0_i32 = arith.constant 0 : i32
    %c0_i32_0 = arith.constant 0 : i32
    return %arg0, %arg1, %c0_i32 : i32, i32, i32
  }
}

module attributes {stable_mosaic.version = 11 : i64} {
  func.func @_bin_reduce_kernel(%arg0: i32, %arg1: i32, %arg2: memref<2xi32, #tpu.memory_space<smem>>, %arg3: memref<1x128xi32, #tpu.memory_space<vmem>>, %arg4: memref<128x128xf32, #tpu.memory_space<vmem>>, %arg5: memref<256x128xf32, #tpu.memory_space<vmem>>) attributes {dimension_semantics = [#tpu.dimension_semantics<parallel>, #tpu.dimension_semantics<arbitrary>], iteration_bounds = array<i64: 2, 1>, scalar_prefetch = 1 : i64, scratch_operands = 0 : i64, tpu.core_type = #tpu.core_type<tc>, window_params = [{transform_indices = @transform_0, window_bounds = array<i64: 1, 128>}, {transform_indices = @transform_1, window_bounds = array<i64: 128, 128>}, {transform_indices = @transform_2, window_bounds = array<i64: 256, 128>}]} {
    %c0_i32 = arith.constant 0 : i32
    %0 = arith.cmpi eq, %arg1, %c0_i32 : i32
    %1 = arith.extui %0 : i1 to i32
    %c0_i32_0 = arith.constant 0 : i32
    %2 = arith.cmpi ne, %1, %c0_i32_0 : i32
    scf.if %2 {
      %cst = arith.constant 0.000000e+00 : f32
      %10 = vector.broadcast %cst : f32 to vector<256x128xf32>
      %c0 = arith.constant 0 : index
      %c0_3 = arith.constant 0 : index
      %11 = vector.load %arg5[%c0, %c0_3] : memref<256x128xf32, #tpu.memory_space<vmem>>, vector<256x128xf32>
      tpu.vector_store %arg5[%c0, %c0_3], %10 {strides = array<i32>} : memref<256x128xf32, #tpu.memory_space<vmem>>, vector<256x128xf32>,
    } else {
    }
    %c1_i32 = arith.constant 1 : i32
    %3 = arith.muli %arg0, %c1_i32 : i32
    %4 = arith.addi %3, %arg1 : i32
    %5 = arith.index_cast %4 : i32 to index
    %6 = memref.load %arg2[%5] : memref<2xi32, #tpu.memory_space<smem>>
    %c0_i32_1 = arith.constant 0 : i32
    %7 = arith.cmpi sgt, %6, %c0_i32_1 : i32
    %8 = arith.extui %7 : i1 to i32
    %c0_i32_2 = arith.constant 0 : i32
    %9 = arith.cmpi ne, %8, %c0_i32_2 : i32
    scf.if %9 {
      %c256_i32 = arith.constant 256 : i32
      %10 = arith.muli %arg0, %c256_i32 : i32
      %11 = tpu.iota {dimensions = array<i32: 0>} : vector<256x128xi32>
      %12 = vector.broadcast %10 : i32 to vector<256x128xi32>
      %13 = arith.addi %12, %11 : vector<256x128xi32>
      %c0 = arith.constant 0 : index
      %c0_3 = arith.constant 0 : index
      %14 = vector.load %arg3[%c0, %c0_3] : memref<1x128xi32, #tpu.memory_space<vmem>>, vector<1x128xi32>
      %15 = vector.broadcast %14 : vector<1x128xi32> to vector<256x128xi32>
      %16 = arith.cmpi eq, %13, %15 : vector<256x128xi32>
      %17 = arith.extui %16 : vector<256x128xi1> to vector<256x128xi32>
      %18 = arith.sitofp %17 : vector<256x128xi32> to vector<256x128xf32>
      %c0_4 = arith.constant 0 : index
      %c0_5 = arith.constant 0 : index
      %19 = vector.load %arg5[%c0_4, %c0_5] : memref<256x128xf32, #tpu.memory_space<vmem>>, vector<256x128xf32>
      %c0_6 = arith.constant 0 : index
      %c0_7 = arith.constant 0 : index
      %20 = vector.load %arg4[%c0_6, %c0_7] : memref<128x128xf32, #tpu.memory_space<vmem>>, vector<128x128xf32>
      %cst = arith.constant dense<0.000000e+00> : vector<256x128xf32>
      %21 = tpu.matmul %18, %20, %cst {dimension_numbers = #tpu.dot_dimension_numbers<[1], [0], [0], [1], [0, 0, 1, 1], [], []>} : vector<256x128xf32>, vector<128x128xf32>, vector<256x128xf32> -> vector<256x128xf32>
      %22 = arith.addf %19, %21 : vector<256x128xf32>
      %c0_8 = arith.constant 0 : index
      %c0_9 = arith.constant 0 : index
      %23 = vector.load %arg5[%c0_8, %c0_9] : memref<256x128xf32, #tpu.memory_space<vmem>>, vector<256x128xf32>
      tpu.vector_store %arg5[%c0_8, %c0_9], %22 {strides = array<i32>} : memref<256x128xf32, #tpu.memory_space<vmem>>, vector<256x128xf32>,
    } else {
    }
    return
  }
  func.func @transform_0(%arg0: i32, %arg1: i32, %arg2: memref<2xi32, #tpu.memory_space<smem>>) -> (i32, i32) {
    %c0_i32 = arith.constant 0 : i32
    %c0_i32_0 = arith.constant 0 : i32
    return %c0_i32, %arg1 : i32, i32
  }
  func.func @transform_1(%arg0: i32, %arg1: i32, %arg2: memref<2xi32, #tpu.memory_space<smem>>) -> (i32, i32) {
    %c0_i32 = arith.constant 0 : i32
    %c0_i32_0 = arith.constant 0 : i32
    return %arg1, %c0_i32 : i32, i32
  }
  func.func @transform_2(%arg0: i32, %arg1: i32, %arg2: memref<2xi32, #tpu.memory_space<smem>>) -> (i32, i32) {
    %c0_i32 = arith.constant 0 : i32
    %c0_i32_0 = arith.constant 0 : i32
    return %arg0, %c0_i32 : i32, i32
  }
}

</mosaic_0001>

<llo_original>
// kernel: point_cloud_to_2d_forward.3
$region0: #{point_cloud_to_2d_forward.3}
  #allocation0 [shape = 'u32[]', space=smem, size = 0x4, offset = 0x4, fixed_abs, tag = 'smem constant byte address 0x4 - core index']
  #allocation1 [shape = 'u32[72,128]{1,0:T(1,128)}', space=vmem, size = 0x9000, scoped, tag = 'internal scratch']
  #allocation2 [shape = 's32[1]{0}', space=sflag, size = 0x4, scoped, tag = 'scoped memory for point_cloud_to_2d_forward.3']
  #allocation3 [shape = 'u8[512]{0}', space=smem, size = 0x200, scoped, tag = 'prefetched SMEM operand 0']
  %s0 = inlined_call_operand.vmem [shape: s32[2], index: 0, kind: input, shape index: {}]
  %s1 = inlined_call_operand.vmem [shape: s32[1,128], index: 1, kind: input, shape index: {}]
  %s2 = inlined_call_operand.vmem [shape: f32[128,128], index: 2, kind: input, shape index: {}]
  %s3 = inlined_call_operand.vmem [shape: f32[512,128], index: 3, kind: output, shape index: {}]
  %s4 = sld [smem:[#allocation0]]
  $region49: #{point_cloud_to_2d_forward.3} parent=0
    _
  %s6 = ssub.s32 1, %s4
  %s7 = scalar_select 0, %s6, %s4
  %s9 = sshll.u32 %s0, 4
  %s10 = int_to_ptr.vmem [resolvable:$true] %s9
  %12 = dma.vmem_to_smem %s10, 16, [#allocation3], [#allocation2]
  %14 = dma.done [#allocation2], 16
  %15 = sfence
  loop: start=0, step=1, limit=4
  $region2: #{point_cloud_to_2d_forward.3} parent=0 // loop_pre_header
    _
  $region3: #{point_cloud_to_2d_forward.3} parent=0 // loop_header
    %s17 = sphi 0, %s21
    %p18 = scmp.ge.s32.totalorder %s17, 4
    %s24 = sphi 0, %s36
    %s25 = sphi 0, %s32
    %s26 = sphi 0, %s24
    %s27 = sphi 0, %s25
    %s28 = sphi 0, %s26
    %s29 = sphi 0, %s27
    %s39 = sphi 0, %s41
    %s42 = sphi 0, %s39
    %s43 = sphi 0, %s42
    %s59 = sphi 0, %s43
    %s65 = sphi 0, %s67
    %s68 = sphi 0, %s65
    %s69 = sphi 0, %s68
    %s85 = sphi 0, %s69
    %s91 = sphi 0, %s93
    %s94 = sphi 0, %s91
    %s95 = sphi 0, %s94
    %s111 = sphi 0, %s95
  $region4: #{point_cloud_to_2d_forward.3} parent=0 // loop_header_branch
    %20 = sbr.rel (%p18) target = $region8
  $region5: #{point_cloud_to_2d_forward.3} parent=0 // loop_body
    %s22 = ssub.s32 %s17, 1
    %s23 = ssub.s32 %s17, 2
    %s30 = sadd.s32 1, %s25
    %p31 = scmp.ge.s32.totalorder %s30, 1
    %s32 = scalar_select %p31, 0, %s30
    %s33 = sadd.s32 1, %s24
    %s34 = scalar_select %p31, %s33, %s24
    %p35 = scmp.ge.s32.totalorder %s34, 2
    %s36 = scalar_select %p35, 0, %s34
    %s37 = ssub.s32 %s25, %s32
    %p38 = scmp.eq.s32.totalorder %s37, 0
    %s40 = sadd.s32 %s39, 1
    %s41 = scalar_select %p38, %s39, %s40
    %p44 = pneg %p38
    %p45 = scmp.eq.s32.totalorder %s17, 1
    %p46 = por %p44, %p45
    %p47 = scmp.ne.s32.totalorder %s39, %s42
    %p48 = scmp.eq.s32.totalorder %s17, 0
    %p49 = por %p47, %p48
    %p50 = scmp.ne.s32.totalorder %s39, %s42
    %p51 = scmp.eq.s32.totalorder %s22, 1
    %p52 = por %p50, %p51
    %p53 = scmp.ne.s32.totalorder %s42, %s43
    %p54 = scmp.eq.s32.totalorder %s22, 0
    %p55 = por %p53, %p54
    %p56 = scmp.ne.s32.totalorder %s42, %s43
    %p57 = scmp.eq.s32.totalorder %s23, 1
    %p58 = por %p56, %p57
    %p60 = scmp.ne.s32.totalorder %s43, %s59
    %p61 = scmp.eq.s32.totalorder %s23, 0
    %p62 = por %p60, %p61
    %s63 = ssub.s32 %s25, %s32
    %p64 = scmp.eq.s32.totalorder %s63, 0
    %s66 = sadd.s32 %s65, 1
    %s67 = scalar_select %p64, %s65, %s66
    %p70 = pneg %p64
    %p71 = scmp.eq.s32.totalorder %s17, 1
    %p72 = por %p70, %p71
    %p73 = scmp.ne.s32.totalorder %s65, %s68
    %p74 = scmp.eq.s32.totalorder %s17, 0
    %p75 = por %p73, %p74
    %p76 = scmp.ne.s32.totalorder %s65, %s68
    %p77 = scmp.eq.s32.totalorder %s22, 1
    %p78 = por %p76, %p77
    %p79 = scmp.ne.s32.totalorder %s68, %s69
    %p80 = scmp.eq.s32.totalorder %s22, 0
    %p81 = por %p79, %p80
    %p82 = scmp.ne.s32.totalorder %s68, %s69
    %p83 = scmp.eq.s32.totalorder %s23, 1
    %p84 = por %p82, %p83
    %p86 = scmp.ne.s32.totalorder %s69, %s85
    %p87 = scmp.eq.s32.totalorder %s23, 0
    %p88 = por %p86, %p87
    %s89 = ssub.s32 %s24, %s36
    %p90 = scmp.eq.s32.totalorder %s89, 0
    %s92 = sadd.s32 %s91, 1
    %s93 = scalar_select %p90, %s91, %s92
    %p96 = pneg %p90
    %p97 = scmp.eq.s32.totalorder %s17, 1
    %p98 = por %p96, %p97
    %p99 = scmp.ne.s32.totalorder %s91, %s94
    %p100 = scmp.eq.s32.totalorder %s17, 0
    %p101 = por %p99, %p100
    %p102 = scmp.ne.s32.totalorder %s91, %s94
    %p103 = scmp.eq.s32.totalorder %s22, 1
    %p104 = por %p102, %p103
    %p105 = scmp.ne.s32.totalorder %s94, %s95
    %p106 = scmp.eq.s32.totalorder %s22, 0
    %p107 = por %p105, %p106
    %p108 = scmp.ne.s32.totalorder %s94, %s95
    %p109 = scmp.eq.s32.totalorder %s23, 1
    %p110 = por %p108, %p109
    %p112 = scmp.ne.s32.totalorder %s95, %s111
    %p113 = scmp.eq.s32.totalorder %s23, 0
    %p114 = por %p112, %p113
    %p115 = scmp.le.s32.totalorder 1, %s17
    %p116 = scmp.lt.s32.totalorder %s17, 3
    %p117 = pnand %p115, %p116
    %p118 = pneg %p117
    // Predicated region
    $region9: #{point_cloud_to_2d_forward.3} parent=5 // pred_check
      _
    $region10: #{point_cloud_to_2d_forward.3} parent=5 // pred_check_branch
      %120 = sbr.rel (%p117) target = $region12
    $region11: #{point_cloud_to_2d_forward.3} parent=5 // pred_region
      %s121 = ssub.s32 %s17, 1
      // Predicated region
      $region13: #{point_cloud_to_2d_forward.3} parent=11 // pred_check
        %p122 = pneg %p55
      $region14: #{point_cloud_to_2d_forward.3} parent=11 // pred_check_branch
        %124 = sbr.rel (%p122) target = $region16
      $region15: #{point_cloud_to_2d_forward.3} parent=11 // pred_region
        %p125 = scmp.lt.s32.totalorder %s27, 0
        %s126 = scalar_select %p125, %s27, 0
        %s127 = scalar_lea.vmem %s1, %s126
      $region16: #{point_cloud_to_2d_forward.3} parent=11 // pred_fallthru
        _
      // Predicated region
      $region17: #{point_cloud_to_2d_forward.3} parent=11 // pred_check
        %p128 = pneg %p81
      $region18: #{point_cloud_to_2d_forward.3} parent=11 // pred_check_branch
        %130 = sbr.rel (%p128) target = $region20
      $region19: #{point_cloud_to_2d_forward.3} parent=11 // pred_region
        %s131 = smul.u32 16, %s27
        %p132 = scmp.lt.s32.totalorder %s131, 15
        %s133 = scalar_select %p132, %s131, 15
        %s134 = smul.addr %s133, 8
        %s135 = scalar_lea.vmem %s2, %s134
        %s136 = smul.u32 16, %s27
      $region20: #{point_cloud_to_2d_forward.3} parent=11 // pred_fallthru
        _
    $region12: #{point_cloud_to_2d_forward.3} parent=5 // pred_fallthru
      _
    %p137 = scmp.lt.s32.totalorder %s17, 2
    // Predicated region
    $region21: #{point_cloud_to_2d_forward.3} parent=5 // pred_check
      %p138 = pneg %p137
    $region22: #{point_cloud_to_2d_forward.3} parent=5 // pred_check_branch
      %140 = sbr.rel (%p138) target = $region24
    $region23: #{point_cloud_to_2d_forward.3} parent=5 // pred_region
      _
    $region24: #{point_cloud_to_2d_forward.3} parent=5 // pred_fallthru
      _
    %p141 = scmp.le.s32.totalorder 1, %s17
    %p142 = scmp.lt.s32.totalorder %s17, 3
    %p143 = pnand %p141, %p142
    %p144 = pneg %p143
    // Predicated region
    $region25: #{point_cloud_to_2d_forward.3} parent=5 // pred_check
      _
    $region26: #{point_cloud_to_2d_forward.3} parent=5 // pred_check_branch
      %146 = sbr.rel (%p143) target = $region28
    $region27: #{point_cloud_to_2d_forward.3} parent=5 // pred_region
      %s147 = ssub.s32 %s17, 1
      %p148 = scmp.lt.s32.totalorder %s27, 0
      %s149 = scalar_select %p148, %s27, 0
      %s150 = scalar_lea.vmem %s1, %s149
      %p151 = pneg %p55
      %p152 = pneg %p52
      %s153 = smul.u32 16, %s27
      %p154 = scmp.lt.s32.totalorder %s153, 15
      %s155 = scalar_select %p154, %s153, 15
      %s156 = smul.addr %s155, 8
      %s157 = scalar_lea.vmem %s2, %s156
      %p158 = pneg %p81
      %p159 = pneg %p78
      %p160 = pneg %p107
      %p161 = pneg %p104
      %s162 = smul.u32 32, %s26
      %p163 = scmp.lt.s32.totalorder %s162, 63
      %s164 = scalar_select %p163, %s162, 63
      %s165 = smul.addr %s164, 8
      %s166 = scalar_lea.vmem %s3, %s165
      %p167 = scmp.lt.s32.totalorder %s27, 0
      %s168 = scalar_select %p167, %s27, 0
      %s169 = scalar_lea.vmem %s1, %s168
      %s170 = smul.u32 16, %s27
      %p171 = scmp.lt.s32.totalorder %s170, 15
      %s172 = scalar_select %p171, %s170, 15
      %s173 = smul.addr %s172, 8
      %s174 = scalar_lea.vmem %s2, %s173
      %s175 = smul.u32 16, %s27
      %s176 = smul.u32 32, %s26
      %p177 = scmp.lt.s32.totalorder %s176, 63
      %s178 = scalar_select %p177, %s176, 63
      %s179 = smul.addr %s178, 8
      %s180 = scalar_lea.vmem %s3, %s179
      %s181 = smul.u32 32, %s26
      %p182 = scmp.eq.s32.totalorder %s27, 0
      // Predicated region
      $region29: #{point_cloud_to_2d_forward.3} parent=27 // pred_check
        %p183 = pneg %p182
      $region30: #{point_cloud_to_2d_forward.3} parent=27 // pred_check_branch
        %185 = sbr.rel (%p183) target = $region32
      $region31: #{point_cloud_to_2d_forward.3} parent=27 // pred_region
        %186 = vst [vmem:[%s180] sm:$0xff] 0.0
        %187 = vst [vmem:[%s180 + $0x8] sm:$0xff] 0.0
        %188 = vst [vmem:[%s180 + $0x10] sm:$0xff] 0.0
        %189 = vst [vmem:[%s180 + $0x18] sm:$0xff] 0.0
        %190 = vst [vmem:[%s180 + $0x20] sm:$0xff] 0.0
        %191 = vst [vmem:[%s180 + $0x28] sm:$0xff] 0.0
        %192 = vst [vmem:[%s180 + $0x30] sm:$0xff] 0.0
        %193 = vst [vmem:[%s180 + $0x38] sm:$0xff] 0.0
        %194 = vst [vmem:[%s180 + $0x40] sm:$0xff] 0.0
        %195 = vst [vmem:[%s180 + $0x48] sm:$0xff] 0.0
        %196 = vst [vmem:[%s180 + $0x50] sm:$0xff] 0.0
        %197 = vst [vmem:[%s180 + $0x58] sm:$0xff] 0.0
        %198 = vst [vmem:[%s180 + $0x60] sm:$0xff] 0.0
        %199 = vst [vmem:[%s180 + $0x68] sm:$0xff] 0.0
        %200 = vst [vmem:[%s180 + $0x70] sm:$0xff] 0.0
        %201 = vst [vmem:[%s180 + $0x78] sm:$0xff] 0.0
        %202 = vst [vmem:[%s180 + $0x80] sm:$0xff] 0.0
        %203 = vst [vmem:[%s180 + $0x88] sm:$0xff] 0.0
        %204 = vst [vmem:[%s180 + $0x90] sm:$0xff] 0.0
        %205 = vst [vmem:[%s180 + $0x98] sm:$0xff] 0.0
        %206 = vst [vmem:[%s180 + $0xa0] sm:$0xff] 0.0
        %207 = vst [vmem:[%s180 + $0xa8] sm:$0xff] 0.0
        %208 = vst [vmem:[%s180 + $0xb0] sm:$0xff] 0.0
        %209 = vst [vmem:[%s180 + $0xb8] sm:$0xff] 0.0
        %210 = vst [vmem:[%s180 + $0xc0] sm:$0xff] 0.0
        %211 = vst [vmem:[%s180 + $0xc8] sm:$0xff] 0.0
        %212 = vst [vmem:[%s180 + $0xd0] sm:$0xff] 0.0
        %213 = vst [vmem:[%s180 + $0xd8] sm:$0xff] 0.0
        %214 = vst [vmem:[%s180 + $0xe0] sm:$0xff] 0.0
        %215 = vst [vmem:[%s180 + $0xe8] sm:$0xff] 0.0
        %216 = vst [vmem:[%s180 + $0xf0] sm:$0xff] 0.0
        %217 = vst [vmem:[%s180 + $0xf8] sm:$0xff] 0.0
      $region32: #{point_cloud_to_2d_forward.3} parent=27 // pred_fallthru
        _
      %s218 = sadd.s32 %s26, %s27
      %s219 = sld [smem:[#allocation3 + %s218]]
      %p220 = scmp.gt.s32.totalorder %s219, 0
      // Predicated region
      $region33: #{point_cloud_to_2d_forward.3} parent=27 // pred_check
        %p221 = pneg %p220
      $region34: #{point_cloud_to_2d_forward.3} parent=27 // pred_check_branch
        %223 = sbr.rel (%p221) target = $region36
      $region35: #{point_cloud_to_2d_forward.3} parent=27 // pred_region
        %s224 = smul.u32 %s26, 256
        %v225 = vlaneseq
        %v226 = vshrl.u32 %v225, 7
        %v227 = vadd.s32 %v226, 8
        %v228 = vadd.s32 %v226, 16
        %v229 = vadd.s32 %v226, 24
        %v230 = vadd.s32 %v226, 32
        %v231 = vadd.s32 %v226, 40
        %v232 = vadd.s32 %v226, 48
        %v233 = vadd.s32 %v226, 56
        %v234 = vadd.s32 %v226, 64
        %v235 = vadd.s32 %v226, 72
        %v236 = vadd.s32 %v226, 80
        %v237 = vadd.s32 %v226, 88
        %v238 = vadd.s32 %v226, 96
        %v239 = vadd.s32 %v226, 104
        %v240 = vadd.s32 %v226, 112
        %v241 = vadd.s32 %v226, 120
        %v242 = vadd.s32 %v226, 128
        %v243 = vadd.s32 %v226, 136
        %v244 = vadd.s32 %v226, 144
        %v245 = vadd.s32 %v226, 152
        %v246 = vadd.s32 %v226, 160
        %v247 = vadd.s32 %v226, 168
        %v248 = vadd.s32 %v226, 176
        %v249 = vadd.s32 %v226, 184
        %v250 = vadd.s32 %v226, 192
        %v251 = vadd.s32 %v226, 200
        %v252 = vadd.s32 %v226, 208
        %v253 = vadd.s32 %v226, 216
        %v254 = vadd.s32 %v226, 224
        %v255 = vadd.s32 %v226, 232
        %v256 = vadd.s32 %v226, 240
        %v257 = vadd.s32 %v226, 248
        %v258 = vstv %s224
        %v259 = vadd.s32 %v258, %v226
        %v260 = vadd.s32 %v258, %v227
        %v261 = vadd.s32 %v258, %v228
        %v262 = vadd.s32 %v258, %v229
        %v263 = vadd.s32 %v258, %v230
        %v264 = vadd.s32 %v258, %v231
        %v265 = vadd.s32 %v258, %v232
        %v266 = vadd.s32 %v258, %v233
        %v267 = vadd.s32 %v258, %v234
        %v268 = vadd.s32 %v258, %v235
        %v269 = vadd.s32 %v258, %v236
        %v270 = vadd.s32 %v258, %v237
        %v271 = vadd.s32 %v258, %v238
        %v272 = vadd.s32 %v258, %v239
        %v273 = vadd.s32 %v258, %v240
        %v274 = vadd.s32 %v258, %v241
        %v275 = vadd.s32 %v258, %v242
        %v276 = vadd.s32 %v258, %v243
        %v277 = vadd.s32 %v258, %v244
        %v278 = vadd.s32 %v258, %v245
        %v279 = vadd.s32 %v258, %v246
        %v280 = vadd.s32 %v258, %v247
        %v281 = vadd.s32 %v258, %v248
        %v282 = vadd.s32 %v258, %v249
        %v283 = vadd.s32 %v258, %v250
        %v284 = vadd.s32 %v258, %v251
        %v285 = vadd.s32 %v258, %v252
        %v286 = vadd.s32 %v258, %v253
        %v287 = vadd.s32 %v258, %v254
        %v288 = vadd.s32 %v258, %v255
        %v289 = vadd.s32 %v258, %v256
        %v290 = vadd.s32 %v258, %v257
        %v291 = vld [vmem:[%s169] sm:$0x1]
        %v292 = vperm.slane %v291, 0
        %vm293 = vcmp.eq.s32.totalorder %v259, %v292
        %vm294 = vcmp.eq.s32.totalorder %v260, %v292
        %vm295 = vcmp.eq.s32.totalorder %v261, %v292
        %vm296 = vcmp.eq.s32.totalorder %v262, %v292
        %vm297 = vcmp.eq.s32.totalorder %v263, %v292
        %vm298 = vcmp.eq.s32.totalorder %v264, %v292
        %vm299 = vcmp.eq.s32.totalorder %v265, %v292
        %vm300 = vcmp.eq.s32.totalorder %v266, %v292
        %vm301 = vcmp.eq.s32.totalorder %v267, %v292
        %vm302 = vcmp.eq.s32.totalorder %v268, %v292
        %vm303 = vcmp.eq.s32.totalorder %v269, %v292
        %vm304 = vcmp.eq.s32.totalorder %v270, %v292
        %vm305 = vcmp.eq.s32.totalorder %v271, %v292
        %vm306 = vcmp.eq.s32.totalorder %v272, %v292
        %vm307 = vcmp.eq.s32.totalorder %v273, %v292
        %vm308 = vcmp.eq.s32.totalorder %v274, %v292
        %vm309 = vcmp.eq.s32.totalorder %v275, %v292
        %vm310 = vcmp.eq.s32.totalorder %v276, %v292
        %vm311 = vcmp.eq.s32.totalorder %v277, %v292
        %vm312 = vcmp.eq.s32.totalorder %v278, %v292
        %vm313 = vcmp.eq.s32.totalorder %v279, %v292
        %vm314 = vcmp.eq.s32.totalorder %v280, %v292
        %vm315 = vcmp.eq.s32.totalorder %v281, %v292
        %vm316 = vcmp.eq.s32.totalorder %v282, %v292
        %vm317 = vcmp.eq.s32.totalorder %v283, %v292
        %vm318 = vcmp.eq.s32.totalorder %v284, %v292
        %vm319 = vcmp.eq.s32.totalorder %v285, %v292
        %vm320 = vcmp.eq.s32.totalorder %v286, %v292
        %vm321 = vcmp.eq.s32.totalorder %v287, %v292
        %vm322 = vcmp.eq.s32.totalorder %v288, %v292
        %vm323 = vcmp.eq.s32.totalorder %v289, %v292
        %vm324 = vcmp.eq.s32.totalorder %v290, %v292
        %v325 = vsel %vm293, 1, 0
        %v326 = vsel %vm294, 1, 0
        %v327 = vsel %vm295, 1, 0
        %v328 = vsel %vm296, 1, 0
        %v329 = vsel %vm297, 1, 0
        %v330 = vsel %vm298, 1, 0
        %v331 = vsel %vm299, 1, 0
        %v332 = vsel %vm300, 1, 0
        %v333 = vsel %vm301, 1, 0
        %v334 = vsel %vm302, 1, 0
        %v335 = vsel %vm303, 1, 0
        %v336 = vsel %vm304, 1, 0
        %v337 = vsel %vm305, 1, 0
        %v338 = vsel %vm306, 1, 0
        %v339 = vsel %vm307, 1, 0
        %v340 = vsel %vm308, 1, 0
        %v341 = vsel %vm309, 1, 0
        %v342 = vsel %vm310, 1, 0
        %v343 = vsel %vm311, 1, 0
        %v344 = vsel %vm312, 1, 0
        %v345 = vsel %vm313, 1, 0
        %v346 = vsel %vm314, 1, 0
        %v347 = vsel %vm315, 1, 0
        %v348 = vsel %vm316, 1, 0
        %v349 = vsel %vm317, 1, 0
        %v350 = vsel %vm318, 1, 0
        %v351 = vsel %vm319, 1, 0
        %v352 = vsel %vm320, 1, 0
        %v353 = vsel %vm321, 1, 0
        %v354 = vsel %vm322, 1, 0
        %v355 = vsel %vm323, 1, 0
        %v356 = vsel %vm324, 1, 0
        %v357 = vcvt.s32.f32 %v325
        %v358 = vcvt.s32.f32 %v326
        %v359 = vcvt.s32.f32 %v327
        %v360 = vcvt.s32.f32 %v328
        %v361 = vcvt.s32.f32 %v329
        %v362 = vcvt.s32.f32 %v330
        %v363 = vcvt.s32.f32 %v331
        %v364 = vcvt.s32.f32 %v332
        %v365 = vcvt.s32.f32 %v333
        %v366 = vcvt.s32.f32 %v334
        %v367 = vcvt.s32.f32 %v335
        %v368 = vcvt.s32.f32 %v336
        %v369 = vcvt.s32.f32 %v337
        %v370 = vcvt.s32.f32 %v338
        %v371 = vcvt.s32.f32 %v339
        %v372 = vcvt.s32.f32 %v340
        %v373 = vcvt.s32.f32 %v341
        %v374 = vcvt.s32.f32 %v342
        %v375 = vcvt.s32.f32 %v343
        %v376 = vcvt.s32.f32 %v344
        %v377 = vcvt.s32.f32 %v345
        %v378 = vcvt.s32.f32 %v346
        %v379 = vcvt.s32.f32 %v347
        %v380 = vcvt.s32.f32 %v348
        %v381 = vcvt.s32.f32 %v349
        %v382 = vcvt.s32.f32 %v350
        %v383 = vcvt.s32.f32 %v351
        %v384 = vcvt.s32.f32 %v352
        %v385 = vcvt.s32.f32 %v353
        %v386 = vcvt.s32.f32 %v354
        %v387 = vcvt.s32.f32 %v355
        %v388 = vcvt.s32.f32 %v356
        %v389 = vld [vmem:[%s180] sm:$0xff]
        %v390 = vld [vmem:[%s180 + $0x8] sm:$0xff]
        %v391 = vld [vmem:[%s180 + $0x10] sm:$0xff]
        %v392 = vld [vmem:[%s180 + $0x18] sm:$0xff]
        %v393 = vld [vmem:[%s180 + $0x20] sm:$0xff]
        %v394 = vld [vmem:[%s180 + $0x28] sm:$0xff]
        %v395 = vld [vmem:[%s180 + $0x30] sm:$0xff]
        %v396 = vld [vmem:[%s180 + $0x38] sm:$0xff]
        %v397 = vld [vmem:[%s180 + $0x40] sm:$0xff]
        %v398 = vld [vmem:[%s180 + $0x48] sm:$0xff]
        %v399 = vld [vmem:[%s180 + $0x50] sm:$0xff]
        %v400 = vld [vmem:[%s180 + $0x58] sm:$0xff]
        %v401 = vld [vmem:[%s180 + $0x60] sm:$0xff]
        %v402 = vld [vmem:[%s180 + $0x68] sm:$0xff]
        %v403 = vld [vmem:[%s180 + $0x70] sm:$0xff]
        %v404 = vld [vmem:[%s180 + $0x78] sm:$0xff]
        %v405 = vld [vmem:[%s180 + $0x80] sm:$0xff]
        %v406 = vld [vmem:[%s180 + $0x88] sm:$0xff]
        %v407 = vld [vmem:[%s180 + $0x90] sm:$0xff]
        %v408 = vld [vmem:[%s180 + $0x98] sm:$0xff]
        %v409 = vld [vmem:[%s180 + $0xa0] sm:$0xff]
        %v410 = vld [vmem:[%s180 + $0xa8] sm:$0xff]
        %v411 = vld [vmem:[%s180 + $0xb0] sm:$0xff]
        %v412 = vld [vmem:[%s180 + $0xb8] sm:$0xff]
        %v413 = vld [vmem:[%s180 + $0xc0] sm:$0xff]
        %v414 = vld [vmem:[%s180 + $0xc8] sm:$0xff]
        %v415 = vld [vmem:[%s180 + $0xd0] sm:$0xff]
        %v416 = vld [vmem:[%s180 + $0xd8] sm:$0xff]
        %v417 = vld [vmem:[%s180 + $0xe0] sm:$0xff]
        %v418 = vld [vmem:[%s180 + $0xe8] sm:$0xff]
        %v419 = vld [vmem:[%s180 + $0xf0] sm:$0xff]
        %v420 = vld [vmem:[%s180 + $0xf8] sm:$0xff]
        %v421 = vld [vmem:[%s174] sm:$0xff]
        %v422 = vld [vmem:[%s174 + $0x8] sm:$0xff]
        %v423 = vld [vmem:[%s174 + $0x10] sm:$0xff]
        %v424 = vld [vmem:[%s174 + $0x18] sm:$0xff]
        %v425 = vld [vmem:[%s174 + $0x20] sm:$0xff]
        %v426 = vld [vmem:[%s174 + $0x28] sm:$0xff]
        %v427 = vld [vmem:[%s174 + $0x30] sm:$0xff]
        %v428 = vld [vmem:[%s174 + $0x38] sm:$0xff]
        %v429 = vld [vmem:[%s174 + $0x40] sm:$0xff]
        %v430 = vld [vmem:[%s174 + $0x48] sm:$0xff]
        %v431 = vld [vmem:[%s174 + $0x50] sm:$0xff]
        %v432 = vld [vmem:[%s174 + $0x58] sm:$0xff]
        %v433 = vld [vmem:[%s174 + $0x60] sm:$0xff]
        %v434 = vld [vmem:[%s174 + $0x68] sm:$0xff]
        %v435 = vld [vmem:[%s174 + $0x70] sm:$0xff]
        %v436 = vld [vmem:[%s174 + $0x78] sm:$0xff]
        %437 = vmatpush.msra.mxu0 %v436
        %438 = vmatpush.msra.mxu0 %v435
        %439 = vmatpush.msra.mxu0 %v434
        %440 = vmatpush.msra.mxu0 %v433
        %441 = vmatpush.msra.mxu0 %v432
        %442 = vmatpush.msra.mxu0 %v431
        %443 = vmatpush.msra.mxu0 %v430
        %444 = vmatpush.msra.mxu0 %v429
        %445 = vmatpush.msra.mxu0 %v428
        %446 = vmatpush.msra.mxu0 %v427
        %447 = vmatpush.msra.mxu0 %v426
        %448 = vmatpush.msra.mxu0 %v425
        %449 = vmatpush.msra.mxu0 %v424
        %450 = vmatpush.msra.mxu0 %v423
        %451 = vmatpush.msra.mxu0 %v422
        %452 = vmatpush.msra.mxu0 %v421
        %453 = vmatmul.f32.gmra.mxu0 %v357
        %v454 = vpop.f32.mrf.mxu0
        %v455 = vadd.f32 0.0, %v454
        %456 = vmatmul.f32.gmra.mxu0 %v358
        %v457 = vpop.f32.mrf.mxu0
        %v458 = vadd.f32 0.0, %v457
        %459 = vmatmul.f32.gmra.mxu0 %v359
        %v460 = vpop.f32.mrf.mxu0
        %v461 = vadd.f32 0.0, %v460
        %462 = vmatmul.f32.gmra.mxu0 %v360
        %v463 = vpop.f32.mrf.mxu0
        %v464 = vadd.f32 0.0, %v463
        %465 = vmatmul.f32.gmra.mxu0 %v361
        %v466 = vpop.f32.mrf.mxu0
        %v467 = vadd.f32 0.0, %v466
        %468 = vmatmul.f32.gmra.mxu0 %v362
        %v469 = vpop.f32.mrf.mxu0
        %v470 = vadd.f32 0.0, %v469
        %471 = vmatmul.f32.gmra.mxu0 %v363
        %v472 = vpop.f32.mrf.mxu0
        %v473 = vadd.f32 0.0, %v472
        %474 = vmatmul.f32.gmra.mxu0 %v364
        %v475 = vpop.f32.mrf.mxu0
        %v476 = vadd.f32 0.0, %v475
        %477 = vmatmul.f32.gmra.mxu0 %v365
        %v478 = vpop.f32.mrf.mxu0
        %v479 = vadd.f32 0.0, %v478
        %480 = vmatmul.f32.gmra.mxu0 %v366
        %v481 = vpop.f32.mrf.mxu0
        %v482 = vadd.f32 0.0, %v481
        %483 = vmatmul.f32.gmra.mxu0 %v367
        %v484 = vpop.f32.mrf.mxu0
        %v485 = vadd.f32 0.0, %v484
        %486 = vmatmul.f32.gmra.mxu0 %v368
        %v487 = vpop.f32.mrf.mxu0
        %v488 = vadd.f32 0.0, %v487
        %489 = vmatmul.f32.gmra.mxu0 %v369
        %v490 = vpop.f32.mrf.mxu0
        %v491 = vadd.f32 0.0, %v490
        %492 = vmatmul.f32.gmra.mxu0 %v370
        %v493 = vpop.f32.mrf.mxu0
        %v494 = vadd.f32 0.0, %v493
        %495 = vmatmul.f32.gmra.mxu0 %v371
        %v496 = vpop.f32.mrf.mxu0
        %v497 = vadd.f32 0.0, %v496
        %498 = vmatmul.f32.gmra.mxu0 %v372
        %v499 = vpop.f32.mrf.mxu0
        %v500 = vadd.f32 0.0, %v499
        %501 = vmatmul.f32.gmra.mxu0 %v373
        %v502 = vpop.f32.mrf.mxu0
        %v503 = vadd.f32 0.0, %v502
        %504 = vmatmul.f32.gmra.mxu0 %v374
        %v505 = vpop.f32.mrf.mxu0
        %v506 = vadd.f32 0.0, %v505
        %507 = vmatmul.f32.gmra.mxu0 %v375
        %v508 = vpop.f32.mrf.mxu0
        %v509 = vadd.f32 0.0, %v508
        %510 = vmatmul.f32.gmra.mxu0 %v376
        %v511 = vpop.f32.mrf.mxu0
        %v512 = vadd.f32 0.0, %v511
        %513 = vmatmul.f32.gmra.mxu0 %v377
        %v514 = vpop.f32.mrf.mxu0
        %v515 = vadd.f32 0.0, %v514
        %516 = vmatmul.f32.gmra.mxu0 %v378
        %v517 = vpop.f32.mrf.mxu0
        %v518 = vadd.f32 0.0, %v517
        %519 = vmatmul.f32.gmra.mxu0 %v379
        %v520 = vpop.f32.mrf.mxu0
        %v521 = vadd.f32 0.0, %v520
        %522 = vmatmul.f32.gmra.mxu0 %v380
        %v523 = vpop.f32.mrf.mxu0
        %v524 = vadd.f32 0.0, %v523
        %525 = vmatmul.f32.gmra.mxu0 %v381
        %v526 = vpop.f32.mrf.mxu0
        %v527 = vadd.f32 0.0, %v526
        %528 = vmatmul.f32.gmra.mxu0 %v382
        %v529 = vpop.f32.mrf.mxu0
        %v530 = vadd.f32 0.0, %v529
        %531 = vmatmul.f32.gmra.mxu0 %v383
        %v532 = vpop.f32.mrf.mxu0
        %v533 = vadd.f32 0.0, %v532
        %534 = vmatmul.f32.gmra.mxu0 %v384
        %v535 = vpop.f32.mrf.mxu0
        %v536 = vadd.f32 0.0, %v535
        %537 = vmatmul.f32.gmra.mxu0 %v385
        %v538 = vpop.f32.mrf.mxu0
        %v539 = vadd.f32 0.0, %v538
        %540 = vmatmul.f32.gmra.mxu0 %v386
        %v541 = vpop.f32.mrf.mxu0
        %v542 = vadd.f32 0.0, %v541
        %543 = vmatmul.f32.gmra.mxu0 %v387
        %v544 = vpop.f32.mrf.mxu0
        %v545 = vadd.f32 0.0, %v544
        %546 = vmatmul.f32.gmra.mxu0 %v388
        %v547 = vpop.f32.mrf.mxu0
        %v548 = vadd.f32 0.0, %v547
        %549 = vdwg.mxu0
        %v550 = vadd.f32 %v389, %v455
        %v551 = vadd.f32 %v390, %v458
        %v552 = vadd.f32 %v391, %v461
        %v553 = vadd.f32 %v392, %v464
        %v554 = vadd.f32 %v393, %v467
        %v555 = vadd.f32 %v394, %v470
        %v556 = vadd.f32 %v395, %v473
        %v557 = vadd.f32 %v396, %v476
        %v558 = vadd.f32 %v397, %v479
        %v559 = vadd.f32 %v398, %v482
        %v560 = vadd.f32 %v399, %v485
        %v561 = vadd.f32 %v400, %v488
        %v562 = vadd.f32 %v401, %v491
        %v563 = vadd.f32 %v402, %v494
        %v564 = vadd.f32 %v403, %v497
        %v565 = vadd.f32 %v404, %v500
        %v566 = vadd.f32 %v405, %v503
        %v567 = vadd.f32 %v406, %v506
        %v568 = vadd.f32 %v407, %v509
        %v569 = vadd.f32 %v408, %v512
        %v570 = vadd.f32 %v409, %v515
        %v571 = vadd.f32 %v410, %v518
        %v572 = vadd.f32 %v411, %v521
        %v573 = vadd.f32 %v412, %v524
        %v574 = vadd.f32 %v413, %v527
        %v575 = vadd.f32 %v414, %v530
        %v576 = vadd.f32 %v415, %v533
        %v577 = vadd.f32 %v416, %v536
        %v578 = vadd.f32 %v417, %v539
        %v579 = vadd.f32 %v418, %v542
        %v580 = vadd.f32 %v419, %v545
        %v581 = vadd.f32 %v420, %v548
        %582 = vst [vmem:[%s180] sm:$0xff] %v550
        %583 = vst [vmem:[%s180 + $0x8] sm:$0xff] %v551
        %584 = vst [vmem:[%s180 + $0x10] sm:$0xff] %v552
        %585 = vst [vmem:[%s180 + $0x18] sm:$0xff] %v553
        %586 = vst [vmem:[%s180 + $0x20] sm:$0xff] %v554
        %587 = vst [vmem:[%s180 + $0x28] sm:$0xff] %v555
        %588 = vst [vmem:[%s180 + $0x30] sm:$0xff] %v556
        %589 = vst [vmem:[%s180 + $0x38] sm:$0xff] %v557
        %590 = vst [vmem:[%s180 + $0x40] sm:$0xff] %v558
        %591 = vst [vmem:[%s180 + $0x48] sm:$0xff] %v559
        %592 = vst [vmem:[%s180 + $0x50] sm:$0xff] %v560
        %593 = vst [vmem:[%s180 + $0x58] sm:$0xff] %v561
        %594 = vst [vmem:[%s180 + $0x60] sm:$0xff] %v562
        %595 = vst [vmem:[%s180 + $0x68] sm:$0xff] %v563
        %596 = vst [vmem:[%s180 + $0x70] sm:$0xff] %v564
        %597 = vst [vmem:[%s180 + $0x78] sm:$0xff] %v565
        %598 = vst [vmem:[%s180 + $0x80] sm:$0xff] %v566
        %599 = vst [vmem:[%s180 + $0x88] sm:$0xff] %v567
        %600 = vst [vmem:[%s180 + $0x90] sm:$0xff] %v568
        %601 = vst [vmem:[%s180 + $0x98] sm:$0xff] %v569
        %602 = vst [vmem:[%s180 + $0xa0] sm:$0xff] %v570
        %603 = vst [vmem:[%s180 + $0xa8] sm:$0xff] %v571
        %604 = vst [vmem:[%s180 + $0xb0] sm:$0xff] %v572
        %605 = vst [vmem:[%s180 + $0xb8] sm:$0xff] %v573
        %606 = vst [vmem:[%s180 + $0xc0] sm:$0xff] %v574
        %607 = vst [vmem:[%s180 + $0xc8] sm:$0xff] %v575
        %608 = vst [vmem:[%s180 + $0xd0] sm:$0xff] %v576
        %609 = vst [vmem:[%s180 + $0xd8] sm:$0xff] %v577
        %610 = vst [vmem:[%s180 + $0xe0] sm:$0xff] %v578
        %611 = vst [vmem:[%s180 + $0xe8] sm:$0xff] %v579
        %612 = vst [vmem:[%s180 + $0xf0] sm:$0xff] %v580
        %613 = vst [vmem:[%s180 + $0xf8] sm:$0xff] %v581
      $region36: #{point_cloud_to_2d_forward.3} parent=27 // pred_fallthru
        _
      %s614 = smul.u32 32, %s26
      %p615 = scmp.lt.s32.totalorder %s614, 63
      %s616 = scalar_select %p615, %s614, 63
      %s617 = smul.addr %s616, 8
      %s618 = scalar_lea.vmem %s3, %s617
      // Predicated region
      $region37: #{point_cloud_to_2d_forward.3} parent=27 // pred_check
        %p619 = pneg %p104
      $region38: #{point_cloud_to_2d_forward.3} parent=27 // pred_check_branch
        %621 = sbr.rel (%p619) target = $region40
      $region39: #{point_cloud_to_2d_forward.3} parent=27 // pred_region
        %s622 = smul.u32 32, %s26
      $region40: #{point_cloud_to_2d_forward.3} parent=27 // pred_fallthru
        _
    $region28: #{point_cloud_to_2d_forward.3} parent=5 // pred_fallthru
      _
    %p623 = scmp.le.s32.totalorder 2, %s17
    // Predicated region
    $region41: #{point_cloud_to_2d_forward.3} parent=5 // pred_check
      %p624 = pneg %p623
    $region42: #{point_cloud_to_2d_forward.3} parent=5 // pred_check_branch
      %626 = sbr.rel (%p624) target = $region44
    $region43: #{point_cloud_to_2d_forward.3} parent=5 // pred_region
      %s627 = ssub.s32 %s17, 2
      // Predicated region
      $region45: #{point_cloud_to_2d_forward.3} parent=43 // pred_check
        %p628 = pneg %p110
      $region46: #{point_cloud_to_2d_forward.3} parent=43 // pred_check_branch
        %630 = sbr.rel (%p628) target = $region48
      $region47: #{point_cloud_to_2d_forward.3} parent=43 // pred_region
        %s631 = smul.u32 32, %s28
        %p632 = scmp.lt.s32.totalorder %s631, 63
        %s633 = scalar_select %p632, %s631, 63
        %s634 = smul.addr %s633, 8
        %s635 = scalar_lea.vmem %s3, %s634
      $region48: #{point_cloud_to_2d_forward.3} parent=43 // pred_fallthru
        _
    $region44: #{point_cloud_to_2d_forward.3} parent=5 // pred_fallthru
      _
  $region6: #{point_cloud_to_2d_forward.3} parent=0 // loop_footer
    %s21 = sadd.s32 1, %s17
  $region7: #{point_cloud_to_2d_forward.3} parent=0 // loop_footer_branch
    %16 = sbr.rel target = $region3
  $region8: #{point_cloud_to_2d_forward.3} parent=0 // loop_exit
    _

// kernel: point_cloud_to_2d_forward.2
$region0: #{point_cloud_to_2d_forward.2}
  #allocation0 [shape = 'u32[]', space=smem, size = 0x4, offset = 0x4, fixed_abs, tag = 'smem constant byte address 0x4 - core index']
  #allocation1 [shape = 'u32[72,128]{1,0:T(1,128)}', space=vmem, size = 0x9000, scoped, tag = 'internal scratch']
  %s0 = inlined_call_operand.vmem [shape: f32[4,32,16,3], index: 0, kind: input, shape index: {}]
  %s1 = inlined_call_operand.vmem [shape: f32[27,32], index: 1, kind: input, shape index: {}]
  %s2 = inlined_call_operand.vmem [shape: f32[288,32], index: 2, kind: input, shape index: {}]
  %s3 = inlined_call_operand.vmem [shape: f32[4,16,128], index: 3, kind: output, shape index: {}]
  %s4 = sld [smem:[#allocation0]]
  $region45: #{point_cloud_to_2d_forward.2} parent=0
    _
  %s6 = ssub.s32 1, %s4
  %s7 = scalar_select 0, %s6, %s4
  loop: start=0, step=1, limit=6
  $region2: #{point_cloud_to_2d_forward.2} parent=0 // loop_pre_header
    _
  $region3: #{point_cloud_to_2d_forward.2} parent=0 // loop_header
    %s9 = sphi 0, %s13
    %p10 = scmp.ge.s32.totalorder %s9, 6
    %s16 = sphi 0, %s28
    %s17 = sphi 0, %s24
    %s18 = sphi 0, %s16
    %s19 = sphi 0, %s17
    %s20 = sphi 0, %s18
    %s21 = sphi 0, %s19
    %s33 = sphi 0, %s35
    %s36 = sphi 0, %s33
    %s37 = sphi 0, %s36
    %s53 = sphi 0, %s37
    %s57 = sphi 0, %s57
    %s59 = sphi 0, %s57
    %s60 = sphi 0, %s59
    %s74 = sphi 0, %s60
    %s78 = sphi 0, %s78
    %s80 = sphi 0, %s78
    %s81 = sphi 0, %s80
    %s95 = sphi 0, %s81
    %s103 = sphi 0, %s105
    %s106 = sphi 0, %s103
    %s107 = sphi 0, %s106
    %s123 = sphi 0, %s107
  $region4: #{point_cloud_to_2d_forward.2} parent=0 // loop_header_branch
    %12 = sbr.rel (%p10) target = $region8
  $region5: #{point_cloud_to_2d_forward.2} parent=0 // loop_body
    %s14 = ssub.s32 %s9, 1
    %s15 = ssub.s32 %s9, 2
    %s22 = sadd.s32 1, %s17
    %p23 = scmp.ge.s32.totalorder %s22, 1
    %s24 = scalar_select %p23, 0, %s22
    %s25 = sadd.s32 1, %s16
    %s26 = scalar_select %p23, %s25, %s16
    %p27 = scmp.ge.s32.totalorder %s26, 4
    %s28 = scalar_select %p27, 0, %s26
    %s29 = sadd.s32 %s16, %s17
    %s30 = sadd.s32 %s28, %s24
    %s31 = ssub.s32 %s29, %s30
    %p32 = scmp.eq.s32.totalorder %s31, 0
    %s34 = sadd.s32 %s33, 1
    %s35 = scalar_select %p32, %s33, %s34
    %p38 = pneg %p32
    %p39 = scmp.eq.s32.totalorder %s9, 3
    %p40 = por %p38, %p39
    %p41 = scmp.ne.s32.totalorder %s33, %s36
    %p42 = scmp.eq.s32.totalorder %s9, 0
    %p43 = por %p41, %p42
    %p44 = scmp.ne.s32.totalorder %s33, %s36
    %p45 = scmp.eq.s32.totalorder %s14, 3
    %p46 = por %p44, %p45
    %p47 = scmp.ne.s32.totalorder %s36, %s37
    %p48 = scmp.eq.s32.totalorder %s14, 0
    %p49 = por %p47, %p48
    %p50 = scmp.ne.s32.totalorder %s36, %s37
    %p51 = scmp.eq.s32.totalorder %s15, 3
    %p52 = por %p50, %p51
    %p54 = scmp.ne.s32.totalorder %s37, %s53
    %p55 = scmp.eq.s32.totalorder %s15, 0
    %p56 = por %p54, %p55
    %s58 = sadd.s32 %s57, 1
    %p61 = scmp.eq.s32.totalorder %s9, 3
    %p62 = scmp.ne.s32.totalorder %s57, %s59
    %p63 = scmp.eq.s32.totalorder %s9, 0
    %p64 = por %p62, %p63
    %p65 = scmp.ne.s32.totalorder %s57, %s59
    %p66 = scmp.eq.s32.totalorder %s14, 3
    %p67 = por %p65, %p66
    %p68 = scmp.ne.s32.totalorder %s59, %s60
    %p69 = scmp.eq.s32.totalorder %s14, 0
    %p70 = por %p68, %p69
    %p71 = scmp.ne.s32.totalorder %s59, %s60
    %p72 = scmp.eq.s32.totalorder %s15, 3
    %p73 = por %p71, %p72
    %p75 = scmp.ne.s32.totalorder %s60, %s74
    %p76 = scmp.eq.s32.totalorder %s15, 0
    %p77 = por %p75, %p76
    %s79 = sadd.s32 %s78, 1
    %p82 = scmp.eq.s32.totalorder %s9, 3
    %p83 = scmp.ne.s32.totalorder %s78, %s80
    %p84 = scmp.eq.s32.totalorder %s9, 0
    %p85 = por %p83, %p84
    %p86 = scmp.ne.s32.totalorder %s78, %s80
    %p87 = scmp.eq.s32.totalorder %s14, 3
    %p88 = por %p86, %p87
    %p89 = scmp.ne.s32.totalorder %s80, %s81
    %p90 = scmp.eq.s32.totalorder %s14, 0
    %p91 = por %p89, %p90
    %p92 = scmp.ne.s32.totalorder %s80, %s81
    %p93 = scmp.eq.s32.totalorder %s15, 3
    %p94 = por %p92, %p93
    %p96 = scmp.ne.s32.totalorder %s81, %s95
    %p97 = scmp.eq.s32.totalorder %s15, 0
    %p98 = por %p96, %p97
    %s99 = ssub.s32 %s16, %s28
    %s100 = ssub.s32 %s17, %s24
    %s101 = sor.u32 %s99, %s100
    %p102 = scmp.eq.s32.totalorder %s101, 0
    %s104 = sadd.s32 %s103, 1
    %s105 = scalar_select %p102, %s103, %s104
    %p108 = pneg %p102
    %p109 = scmp.eq.s32.totalorder %s9, 3
    %p110 = por %p108, %p109
    %p111 = scmp.ne.s32.totalorder %s103, %s106
    %p112 = scmp.eq.s32.totalorder %s9, 0
    %p113 = por %p111, %p112
    %p114 = scmp.ne.s32.totalorder %s103, %s106
    %p115 = scmp.eq.s32.totalorder %s14, 3
    %p116 = por %p114, %p115
    %p117 = scmp.ne.s32.totalorder %s106, %s107
    %p118 = scmp.eq.s32.totalorder %s14, 0
    %p119 = por %p117, %p118
    %p120 = scmp.ne.s32.totalorder %s106, %s107
    %p121 = scmp.eq.s32.totalorder %s15, 3
    %p122 = por %p120, %p121
    %p124 = scmp.ne.s32.totalorder %s107, %s123
    %p125 = scmp.eq.s32.totalorder %s15, 0
    %p126 = por %p124, %p125
    %p127 = scmp.le.s32.totalorder 1, %s9
    %p128 = scmp.lt.s32.totalorder %s9, 5
    %p129 = pnand %p127, %p128
    %p130 = pneg %p129
    // Predicated region
    $region9: #{point_cloud_to_2d_forward.2} parent=5 // pred_check
      _
    $region10: #{point_cloud_to_2d_forward.2} parent=5 // pred_check_branch
      %132 = sbr.rel (%p129) target = $region12
    $region11: #{point_cloud_to_2d_forward.2} parent=5 // pred_region
      %s133 = ssub.s32 %s9, 1
      // Predicated region
      $region13: #{point_cloud_to_2d_forward.2} parent=11 // pred_check
        %p134 = pneg %p70
      $region14: #{point_cloud_to_2d_forward.2} parent=11 // pred_check_branch
        %136 = sbr.rel (%p134) target = $region16
      $region15: #{point_cloud_to_2d_forward.2} parent=11 // pred_region
        _
      $region16: #{point_cloud_to_2d_forward.2} parent=11 // pred_fallthru
        _
      // Predicated region
      $region17: #{point_cloud_to_2d_forward.2} parent=11 // pred_check
        %p137 = pneg %p91
      $region18: #{point_cloud_to_2d_forward.2} parent=11 // pred_check_branch
        %139 = sbr.rel (%p137) target = $region20
      $region19: #{point_cloud_to_2d_forward.2} parent=11 // pred_region
        _
      $region20: #{point_cloud_to_2d_forward.2} parent=11 // pred_fallthru
        _
    $region12: #{point_cloud_to_2d_forward.2} parent=5 // pred_fallthru
      _
    %p140 = scmp.lt.s32.totalorder %s9, 4
    // Predicated region
    $region21: #{point_cloud_to_2d_forward.2} parent=5 // pred_check
      %p141 = pneg %p140
    $region22: #{point_cloud_to_2d_forward.2} parent=5 // pred_check_branch
      %143 = sbr.rel (%p141) target = $region24
    $region23: #{point_cloud_to_2d_forward.2} parent=5 // pred_region
      // Predicated region
      $region25: #{point_cloud_to_2d_forward.2} parent=23 // pred_check
        %p144 = pneg %p43
      $region26: #{point_cloud_to_2d_forward.2} parent=23 // pred_check_branch
        %146 = sbr.rel (%p144) target = $region28
      $region27: #{point_cloud_to_2d_forward.2} parent=23 // pred_region
        %s147 = sadd.s32 %s16, %s17
        %p148 = scmp.lt.s32.totalorder %s147, 3
        %s149 = scalar_select %p148, %s147, 3
        %s150 = smul.addr %s149, 64
        %s151 = smul.addr %s150, 8
        %s152 = scalar_lea.vmem %s0, %s151
        %s153 = sadd.s32 %s16, %s17
      $region28: #{point_cloud_to_2d_forward.2} parent=23 // pred_fallthru
        _
    $region24: #{point_cloud_to_2d_forward.2} parent=5 // pred_fallthru
      _
    %p154 = scmp.le.s32.totalorder 1, %s9
    %p155 = scmp.lt.s32.totalorder %s9, 5
    %p156 = pnand %p154, %p155
    %p157 = pneg %p156
    // Predicated region
    $region29: #{point_cloud_to_2d_forward.2} parent=5 // pred_check
      _
    $region30: #{point_cloud_to_2d_forward.2} parent=5 // pred_check_branch
      %159 = sbr.rel (%p156) target = $region32
    $region31: #{point_cloud_to_2d_forward.2} parent=5 // pred_region
      %s160 = ssub.s32 %s9, 1
      %s161 = sadd.s32 %s18, %s19
      %p162 = scmp.lt.s32.totalorder %s161, 3
      %s163 = scalar_select %p162, %s161, 3
      %s164 = smul.addr %s163, 64
      %s165 = smul.addr %s164, 8
      %s166 = scalar_lea.vmem %s0, %s165
      %p167 = pneg %p49
      %p168 = pneg %p46
      %p169 = pneg %p70
      %p170 = pneg %p67
      %p171 = pneg %p91
      %p172 = pneg %p88
      %p173 = pneg %p119
      %p174 = pneg %p116
      %s175 = smul.u32 2, %s19
      %p176 = scmp.lt.s32.totalorder %s18, 3
      %s177 = scalar_select %p176, %s18, 3
      %p178 = scmp.lt.s32.totalorder %s175, 1
      %s179 = scalar_select %p178, %s175, 1
      %s180 = smul.addr %s177, 2
      %s181 = sadd.s32 %s179, %s180
      %s182 = smul.addr %s181, 8
      %s183 = scalar_lea.vmem %s3, %s182
      %s184 = sadd.s32 %s18, %s19
      %p185 = scmp.lt.s32.totalorder %s184, 3
      %s186 = scalar_select %p185, %s184, 3
      %s187 = smul.addr %s186, 64
      %s188 = smul.addr %s187, 8
      %s189 = scalar_lea.vmem %s0, %s188
      %s190 = sadd.s32 %s18, %s19
      %s191 = smul.u32 2, %s19
      %p192 = scmp.lt.s32.totalorder %s18, 3
      %s193 = scalar_select %p192, %s18, 3
      %p194 = scmp.lt.s32.totalorder %s191, 1
      %s195 = scalar_select %p194, %s191, 1
      %s196 = smul.addr %s193, 2
      %s197 = sadd.s32 %s195, %s196
      %s198 = smul.addr %s197, 8
      %s199 = scalar_lea.vmem %s3, %s198
      %s200 = smul.u32 2, %s19
      %v201 = vld [vmem:[%s189] sm:$0xff]
      %v202 = vld [vmem:[%s189 + $0x8] sm:$0xff]
      %v203 = vld [vmem:[%s189 + $0x10] sm:$0xff]
      %v204 = vld [vmem:[%s189 + $0x18] sm:$0xff]
      %v205 = vld [vmem:[%s189 + $0x20] sm:$0xff]
      %v206 = vld [vmem:[%s189 + $0x28] sm:$0xff]
      %v207 = vld [vmem:[%s189 + $0x30] sm:$0xff]
      %v208 = vld [vmem:[%s189 + $0x38] sm:$0xff]
      %v209 = vld [vmem:[%s189 + $0x40] sm:$0xff]
      %v210 = vld [vmem:[%s189 + $0x48] sm:$0xff]
      %v211 = vld [vmem:[%s189 + $0x50] sm:$0xff]
      %v212 = vld [vmem:[%s189 + $0x58] sm:$0xff]
      %v213 = vld [vmem:[%s189 + $0x60] sm:$0xff]
      %v214 = vld [vmem:[%s189 + $0x68] sm:$0xff]
      %v215 = vld [vmem:[%s189 + $0x70] sm:$0xff]
      %v216 = vld [vmem:[%s189 + $0x78] sm:$0xff]
      %v217 = vld [vmem:[%s189 + $0x80] sm:$0xff]
      %v218 = vld [vmem:[%s189 + $0x88] sm:$0xff]
      %v219 = vld [vmem:[%s189 + $0x90] sm:$0xff]
      %v220 = vld [vmem:[%s189 + $0x98] sm:$0xff]
      %v221 = vld [vmem:[%s189 + $0xa0] sm:$0xff]
      %v222 = vld [vmem:[%s189 + $0xa8] sm:$0xff]
      %v223 = vld [vmem:[%s189 + $0xb0] sm:$0xff]
      %v224 = vld [vmem:[%s189 + $0xb8] sm:$0xff]
      %v225 = vld [vmem:[%s189 + $0xc0] sm:$0xff]
      %v226 = vld [vmem:[%s189 + $0xc8] sm:$0xff]
      %v227 = vld [vmem:[%s189 + $0xd0] sm:$0xff]
      %v228 = vld [vmem:[%s189 + $0xd8] sm:$0xff]
      %v229 = vld [vmem:[%s189 + $0xe0] sm:$0xff]
      %v230 = vld [vmem:[%s189 + $0xe8] sm:$0xff]
      %v231 = vld [vmem:[%s189 + $0xf0] sm:$0xff]
      %v232 = vld [vmem:[%s189 + $0xf8] sm:$0xff]
      %v233 = vld [vmem:[%s189 + $0x100] sm:$0xff]
      %v234 = vld [vmem:[%s189 + $0x108] sm:$0xff]
      %v235 = vld [vmem:[%s189 + $0x110] sm:$0xff]
      %v236 = vld [vmem:[%s189 + $0x118] sm:$0xff]
      %v237 = vld [vmem:[%s189 + $0x120] sm:$0xff]
      %v238 = vld [vmem:[%s189 + $0x128] sm:$0xff]
      %v239 = vld [vmem:[%s189 + $0x130] sm:$0xff]
      %v240 = vld [vmem:[%s189 + $0x138] sm:$0xff]
      %v241 = vld [vmem:[%s189 + $0x140] sm:$0xff]
      %v242 = vld [vmem:[%s189 + $0x148] sm:$0xff]
      %v243 = vld [vmem:[%s189 + $0x150] sm:$0xff]
      %v244 = vld [vmem:[%s189 + $0x158] sm:$0xff]
      %v245 = vld [vmem:[%s189 + $0x160] sm:$0xff]
      %v246 = vld [vmem:[%s189 + $0x168] sm:$0xff]
      %v247 = vld [vmem:[%s189 + $0x170] sm:$0xff]
      %v248 = vld [vmem:[%s189 + $0x178] sm:$0xff]
      %v249 = vld [vmem:[%s189 + $0x180] sm:$0xff]
      %v250 = vld [vmem:[%s189 + $0x188] sm:$0xff]
      %v251 = vld [vmem:[%s189 + $0x190] sm:$0xff]
      %v252 = vld [vmem:[%s189 + $0x198] sm:$0xff]
      %v253 = vld [vmem:[%s189 + $0x1a0] sm:$0xff]
      %v254 = vld [vmem:[%s189 + $0x1a8] sm:$0xff]
      %v255 = vld [vmem:[%s189 + $0x1b0] sm:$0xff]
      %v256 = vld [vmem:[%s189 + $0x1b8] sm:$0xff]
      %v257 = vld [vmem:[%s189 + $0x1c0] sm:$0xff]
      %v258 = vld [vmem:[%s189 + $0x1c8] sm:$0xff]
      %v259 = vld [vmem:[%s189 + $0x1d0] sm:$0xff]
      %v260 = vld [vmem:[%s189 + $0x1d8] sm:$0xff]
      %v261 = vld [vmem:[%s189 + $0x1e0] sm:$0xff]
      %v262 = vld [vmem:[%s189 + $0x1e8] sm:$0xff]
      %v263 = vld [vmem:[%s189 + $0x1f0] sm:$0xff]
      %v264 = vld [vmem:[%s189 + $0x1f8] sm:$0xff]
      %vm329 = vcmask 1041408
      %v330 = vrot.slane %v201, 6
      %v331 = vrot.slane %v202, 6
      %v332 = vsel %vm329, %v330, %v331
      %v333 = vrot.slane %v203, 6
      %v334 = vrot.slane %v204, 6
      %v335 = vsel %vm329, %v333, %v334
      %v336 = vrot.slane %v205, 6
      %v337 = vrot.slane %v206, 6
      %v338 = vsel %vm329, %v336, %v337
      %v339 = vrot.slane %v207, 6
      %v340 = vrot.slane %v208, 6
      %v341 = vsel %vm329, %v339, %v340
      %v342 = vrot.slane %v209, 6
      %v343 = vrot.slane %v210, 6
      %v344 = vsel %vm329, %v342, %v343
      %v345 = vrot.slane %v211, 6
      %v346 = vrot.slane %v212, 6
      %v347 = vsel %vm329, %v345, %v346
      %v348 = vrot.slane %v213, 6
      %v349 = vrot.slane %v214, 6
      %v350 = vsel %vm329, %v348, %v349
      %v351 = vrot.slane %v215, 6
      %v352 = vrot.slane %v216, 6
      %v353 = vsel %vm329, %v351, %v352
      %v354 = vrot.slane %v217, 6
      %v355 = vrot.slane %v218, 6
      %v356 = vsel %vm329, %v354, %v355
      %v357 = vrot.slane %v219, 6
      %v358 = vrot.slane %v220, 6
      %v359 = vsel %vm329, %v357, %v358
      %v360 = vrot.slane %v221, 6
      %v361 = vrot.slane %v222, 6
      %v362 = vsel %vm329, %v360, %v361
      %v363 = vrot.slane %v223, 6
      %v364 = vrot.slane %v224, 6
      %v365 = vsel %vm329, %v363, %v364
      %v366 = vrot.slane %v225, 6
      %v367 = vrot.slane %v226, 6
      %v368 = vsel %vm329, %v366, %v367
      %v369 = vrot.slane %v227, 6
      %v370 = vrot.slane %v228, 6
      %v371 = vsel %vm329, %v369, %v370
      %v372 = vrot.slane %v229, 6
      %v373 = vrot.slane %v230, 6
      %v374 = vsel %vm329, %v372, %v373
      %v375 = vrot.slane %v231, 6
      %v376 = vrot.slane %v232, 6
      %v377 = vsel %vm329, %v375, %v376
      %v378 = vrot.slane %v233, 6
      %v379 = vrot.slane %v234, 6
      %v380 = vsel %vm329, %v378, %v379
      %v381 = vrot.slane %v235, 6
      %v382 = vrot.slane %v236, 6
      %v383 = vsel %vm329, %v381, %v382
      %v384 = vrot.slane %v237, 6
      %v385 = vrot.slane %v238, 6
      %v386 = vsel %vm329, %v384, %v385
      %v387 = vrot.slane %v239, 6
      %v388 = vrot.slane %v240, 6
      %v389 = vsel %vm329, %v387, %v388
      %v390 = vrot.slane %v241, 6
      %v391 = vrot.slane %v242, 6
      %v392 = vsel %vm329, %v390, %v391
      %v393 = vrot.slane %v243, 6
      %v394 = vrot.slane %v244, 6
      %v395 = vsel %vm329, %v393, %v394
      %v396 = vrot.slane %v245, 6
      %v397 = vrot.slane %v246, 6
      %v398 = vsel %vm329, %v396, %v397
      %v399 = vrot.slane %v247, 6
      %v400 = vrot.slane %v248, 6
      %v401 = vsel %vm329, %v399, %v400
      %v402 = vrot.slane %v249, 6
      %v403 = vrot.slane %v250, 6
      %v404 = vsel %vm329, %v402, %v403
      %v405 = vrot.slane %v251, 6
      %v406 = vrot.slane %v252, 6
      %v407 = vsel %vm329, %v405, %v406
      %v408 = vrot.slane %v253, 6
      %v409 = vrot.slane %v254, 6
      %v410 = vsel %vm329, %v408, %v409
      %v411 = vrot.slane %v255, 6
      %v412 = vrot.slane %v256, 6
      %v413 = vsel %vm329, %v411, %v412
      %v414 = vrot.slane %v257, 6
      %v415 = vrot.slane %v258, 6
      %v416 = vsel %vm329, %v414, %v415
      %v417 = vrot.slane %v259, 6
      %v418 = vrot.slane %v260, 6
      %v419 = vsel %vm329, %v417, %v418
      %v420 = vrot.slane %v261, 6
      %v421 = vrot.slane %v262, 6
      %v422 = vsel %vm329, %v420, %v421
      %v423 = vrot.slane %v263, 6
      %v424 = vrot.slane %v264, 6
      %v425 = vsel %vm329, %v423, %v424
      %v518 = vsel %vm329, 0.0, %v330
      %v519 = vsel %vm329, 0.0, %v333
      %v520 = vsel %vm329, 0.0, %v336
      %v521 = vsel %vm329, 0.0, %v339
      %v522 = vsel %vm329, 0.0, %v342
      %v523 = vsel %vm329, 0.0, %v345
      %v524 = vsel %vm329, 0.0, %v348
      %v525 = vsel %vm329, 0.0, %v351
      %v526 = vsel %vm329, 0.0, %v354
      %v527 = vsel %vm329, 0.0, %v357
      %v528 = vsel %vm329, 0.0, %v360
      %v529 = vsel %vm329, 0.0, %v363
      %v530 = vsel %vm329, 0.0, %v366
      %v531 = vsel %vm329, 0.0, %v369
      %v532 = vsel %vm329, 0.0, %v372
      %v533 = vsel %vm329, 0.0, %v375
      %v534 = vsel %vm329, 0.0, %v378
      %v535 = vsel %vm329, 0.0, %v381
      %v536 = vsel %vm329, 0.0, %v384
      %v537 = vsel %vm329, 0.0, %v387
      %v538 = vsel %vm329, 0.0, %v390
      %v539 = vsel %vm329, 0.0, %v393
      %v540 = vsel %vm329, 0.0, %v396
      %v541 = vsel %vm329, 0.0, %v399
      %v542 = vsel %vm329, 0.0, %v402
      %v543 = vsel %vm329, 0.0, %v405
      %v544 = vsel %vm329, 0.0, %v408
      %v545 = vsel %vm329, 0.0, %v411
      %v546 = vsel %vm329, 0.0, %v414
      %v547 = vsel %vm329, 0.0, %v417
      %v548 = vsel %vm329, 0.0, %v420
      %v549 = vsel %vm329, 0.0, %v423
      %v550 = vsel %vm329, %v331, 0.0
      %v551 = vsel %vm329, %v334, 0.0
      %v552 = vsel %vm329, %v337, 0.0
      %v553 = vsel %vm329, %v340, 0.0
      %v554 = vsel %vm329, %v343, 0.0
      %v555 = vsel %vm329, %v346, 0.0
      %v556 = vsel %vm329, %v349, 0.0
      %v557 = vsel %vm329, %v352, 0.0
      %v558 = vsel %vm329, %v355, 0.0
      %v559 = vsel %vm329, %v358, 0.0
      %v560 = vsel %vm329, %v361, 0.0
      %v561 = vsel %vm329, %v364, 0.0
      %v562 = vsel %vm329, %v367, 0.0
      %v563 = vsel %vm329, %v370, 0.0
      %v564 = vsel %vm329, %v373, 0.0
      %v565 = vsel %vm329, %v376, 0.0
      %v566 = vsel %vm329, %v379, 0.0
      %v567 = vsel %vm329, %v382, 0.0
      %v568 = vsel %vm329, %v385, 0.0
      %v569 = vsel %vm329, %v388, 0.0
      %v570 = vsel %vm329, %v391, 0.0
      %v571 = vsel %vm329, %v394, 0.0
      %v572 = vsel %vm329, %v397, 0.0
      %v573 = vsel %vm329, %v400, 0.0
      %v574 = vsel %vm329, %v403, 0.0
      %v575 = vsel %vm329, %v406, 0.0
      %v576 = vsel %vm329, %v409, 0.0
      %v577 = vsel %vm329, %v412, 0.0
      %v578 = vsel %vm329, %v415, 0.0
      %v579 = vsel %vm329, %v418, 0.0
      %v580 = vsel %vm329, %v421, 0.0
      %v581 = vsel %vm329, %v424, 0.0
      %v582 = vld [vmem:[%s1] sm:$0xff]
      %v583 = vld [vmem:[%s1 + $0x8] sm:$0xff]
      %v584 = vld [vmem:[%s1 + $0x10] sm:$0xff]
      %v585 = vld [vmem:[%s1 + $0x18] sm:$0x7]
      %vm642 = vcmask 1045504
      %v643 = vrot.slane %v518, 2
      %v644 = vrot.slane %v332, 2
      %v645 = vsel %vm642, %v643, %v644
      %v646 = vrot.slane %v550, 2
      %v647 = vsel %vm642, %v644, %v646
      %v648 = vrot.slane %v519, 2
      %v649 = vrot.slane %v335, 2
      %v650 = vsel %vm642, %v648, %v649
      %v651 = vrot.slane %v551, 2
      %v652 = vsel %vm642, %v649, %v651
      %v653 = vrot.slane %v520, 2
      %v654 = vrot.slane %v338, 2
      %v655 = vsel %vm642, %v653, %v654
      %v656 = vrot.slane %v552, 2
      %v657 = vsel %vm642, %v654, %v656
      %v658 = vrot.slane %v521, 2
      %v659 = vrot.slane %v341, 2
      %v660 = vsel %vm642, %v658, %v659
      %v661 = vrot.slane %v553, 2
      %v662 = vsel %vm642, %v659, %v661
      %v663 = vrot.slane %v522, 2
      %v664 = vrot.slane %v344, 2
      %v665 = vsel %vm642, %v663, %v664
      %v666 = vrot.slane %v554, 2
      %v667 = vsel %vm642, %v664, %v666
      %v668 = vrot.slane %v523, 2
      %v669 = vrot.slane %v347, 2
      %v670 = vsel %vm642, %v668, %v669
      %v671 = vrot.slane %v555, 2
      %v672 = vsel %vm642, %v669, %v671
      %v673 = vrot.slane %v524, 2
      %v674 = vrot.slane %v350, 2
      %v675 = vsel %vm642, %v673, %v674
      %v676 = vrot.slane %v556, 2
      %v677 = vsel %vm642, %v674, %v676
      %v678 = vrot.slane %v525, 2
      %v679 = vrot.slane %v353, 2
      %v680 = vsel %vm642, %v678, %v679
      %v681 = vrot.slane %v557, 2
      %v682 = vsel %vm642, %v679, %v681
      %v683 = vrot.slane %v526, 2
      %v684 = vrot.slane %v356, 2
      %v685 = vsel %vm642, %v683, %v684
      %v686 = vrot.slane %v558, 2
      %v687 = vsel %vm642, %v684, %v686
      %v688 = vrot.slane %v527, 2
      %v689 = vrot.slane %v359, 2
      %v690 = vsel %vm642, %v688, %v689
      %v691 = vrot.slane %v559, 2
      %v692 = vsel %vm642, %v689, %v691
      %v693 = vrot.slane %v528, 2
      %v694 = vrot.slane %v362, 2
      %v695 = vsel %vm642, %v693, %v694
      %v696 = vrot.slane %v560, 2
      %v697 = vsel %vm642, %v694, %v696
      %v698 = vrot.slane %v529, 2
      %v699 = vrot.slane %v365, 2
      %v700 = vsel %vm642, %v698, %v699
      %v701 = vrot.slane %v561, 2
      %v702 = vsel %vm642, %v699, %v701
      %v703 = vrot.slane %v530, 2
      %v704 = vrot.slane %v368, 2
      %v705 = vsel %vm642, %v703, %v704
      %v706 = vrot.slane %v562, 2
      %v707 = vsel %vm642, %v704, %v706
      %v708 = vrot.slane %v531, 2
      %v709 = vrot.slane %v371, 2
      %v710 = vsel %vm642, %v708, %v709
      %v711 = vrot.slane %v563, 2
      %v712 = vsel %vm642, %v709, %v711
      %v713 = vrot.slane %v532, 2
      %v714 = vrot.slane %v374, 2
      %v715 = vsel %vm642, %v713, %v714
      %v716 = vrot.slane %v564, 2
      %v717 = vsel %vm642, %v714, %v716
      %v718 = vrot.slane %v533, 2
      %v719 = vrot.slane %v377, 2
      %v720 = vsel %vm642, %v718, %v719
      %v721 = vrot.slane %v565, 2
      %v722 = vsel %vm642, %v719, %v721
      %v723 = vrot.slane %v534, 2
      %v724 = vrot.slane %v380, 2
      %v725 = vsel %vm642, %v723, %v724
      %v726 = vrot.slane %v566, 2
      %v727 = vsel %vm642, %v724, %v726
      %v728 = vrot.slane %v535, 2
      %v729 = vrot.slane %v383, 2
      %v730 = vsel %vm642, %v728, %v729
      %v731 = vrot.slane %v567, 2
      %v732 = vsel %vm642, %v729, %v731
      %v733 = vrot.slane %v536, 2
      %v734 = vrot.slane %v386, 2
      %v735 = vsel %vm642, %v733, %v734
      %v736 = vrot.slane %v568, 2
      %v737 = vsel %vm642, %v734, %v736
      %v738 = vrot.slane %v537, 2
      %v739 = vrot.slane %v389, 2
      %v740 = vsel %vm642, %v738, %v739
      %v741 = vrot.slane %v569, 2
      %v742 = vsel %vm642, %v739, %v741
      %v743 = vrot.slane %v538, 2
      %v744 = vrot.slane %v392, 2
      %v745 = vsel %vm642, %v743, %v744
      %v746 = vrot.slane %v570, 2
      %v747 = vsel %vm642, %v744, %v746
      %v748 = vrot.slane %v539, 2
      %v749 = vrot.slane %v395, 2
      %v750 = vsel %vm642, %v748, %v749
      %v751 = vrot.slane %v571, 2
      %v752 = vsel %vm642, %v749, %v751
      %v753 = vrot.slane %v540, 2
      %v754 = vrot.slane %v398, 2
      %v755 = vsel %vm642, %v753, %v754
      %v756 = vrot.slane %v572, 2
      %v757 = vsel %vm642, %v754, %v756
      %v758 = vrot.slane %v541, 2
      %v759 = vrot.slane %v401, 2
      %v760 = vsel %vm642, %v758, %v759
      %v761 = vrot.slane %v573, 2
      %v762 = vsel %vm642, %v759, %v761
      %v763 = vrot.slane %v542, 2
      %v764 = vrot.slane %v404, 2
      %v765 = vsel %vm642, %v763, %v764
      %v766 = vrot.slane %v574, 2
      %v767 = vsel %vm642, %v764, %v766
      %v768 = vrot.slane %v543, 2
      %v769 = vrot.slane %v407, 2
      %v770 = vsel %vm642, %v768, %v769
      %v771 = vrot.slane %v575, 2
      %v772 = vsel %vm642, %v769, %v771
      %v773 = vrot.slane %v544, 2
      %v774 = vrot.slane %v410, 2
      %v775 = vsel %vm642, %v773, %v774
      %v776 = vrot.slane %v576, 2
      %v777 = vsel %vm642, %v774, %v776
      %v778 = vrot.slane %v545, 2
      %v779 = vrot.slane %v413, 2
      %v780 = vsel %vm642, %v778, %v779
      %v781 = vrot.slane %v577, 2
      %v782 = vsel %vm642, %v779, %v781
      %783 = vrot.lane.b32.xlu0 %v645, 3
      %v784 = vpop.permute.xlu0 %783
      %785 = vrot.lane.b32.xlu0 %v647, 3
      %v786 = vpop.permute.xlu0 %785
      %787 = vrot.lane.b32.xlu0 %v650, 3
      %v788 = vpop.permute.xlu0 %787
      %789 = vrot.lane.b32.xlu0 %v652, 3
      %v790 = vpop.permute.xlu0 %789
      %791 = vrot.lane.b32.xlu0 %v655, 3
      %v792 = vpop.permute.xlu0 %791
      %793 = vrot.lane.b32.xlu0 %v657, 3
      %v794 = vpop.permute.xlu0 %793
      %795 = vrot.lane.b32.xlu0 %v660, 3
      %v796 = vpop.permute.xlu0 %795
      %797 = vrot.lane.b32.xlu0 %v662, 3
      %v798 = vpop.permute.xlu0 %797
      %799 = vrot.lane.b32.xlu0 %v665, 3
      %v800 = vpop.permute.xlu0 %799
      %801 = vrot.lane.b32.xlu0 %v667, 3
      %v802 = vpop.permute.xlu0 %801
      %803 = vrot.lane.b32.xlu0 %v670, 3
      %v804 = vpop.permute.xlu0 %803
      %805 = vrot.lane.b32.xlu0 %v672, 3
      %v806 = vpop.permute.xlu0 %805
      %807 = vrot.lane.b32.xlu0 %v675, 3
      %v808 = vpop.permute.xlu0 %807
      %809 = vrot.lane.b32.xlu0 %v677, 3
      %v810 = vpop.permute.xlu0 %809
      %811 = vrot.lane.b32.xlu0 %v680, 3
      %v812 = vpop.permute.xlu0 %811
      %813 = vrot.lane.b32.xlu0 %v682, 3
      %v814 = vpop.permute.xlu0 %813
      %815 = vrot.lane.b32.xlu0 %v685, 3
      %v816 = vpop.permute.xlu0 %815
      %817 = vrot.lane.b32.xlu0 %v687, 3
      %v818 = vpop.permute.xlu0 %817
      %819 = vrot.lane.b32.xlu0 %v690, 3
      %v820 = vpop.permute.xlu0 %819
      %821 = vrot.lane.b32.xlu0 %v692, 3
      %v822 = vpop.permute.xlu0 %821
      %823 = vrot.lane.b32.xlu0 %v695, 3
      %v824 = vpop.permute.xlu0 %823
      %825 = vrot.lane.b32.xlu0 %v697, 3
      %v826 = vpop.permute.xlu0 %825
      %827 = vrot.lane.b32.xlu0 %v700, 3
      %v828 = vpop.permute.xlu0 %827
      %829 = vrot.lane.b32.xlu0 %v702, 3
      %v830 = vpop.permute.xlu0 %829
      %831 = vrot.lane.b32.xlu0 %v705, 3
      %v832 = vpop.permute.xlu0 %831
      %833 = vrot.lane.b32.xlu0 %v707, 3
      %v834 = vpop.permute.xlu0 %833
      %835 = vrot.lane.b32.xlu0 %v710, 3
      %v836 = vpop.permute.xlu0 %835
      %837 = vrot.lane.b32.xlu0 %v712, 3
      %v838 = vpop.permute.xlu0 %837
      %839 = vrot.lane.b32.xlu0 %v715, 3
      %v840 = vpop.permute.xlu0 %839
      %841 = vrot.lane.b32.xlu0 %v717, 3
      %v842 = vpop.permute.xlu0 %841
      %843 = vrot.lane.b32.xlu0 %v720, 3
      %v844 = vpop.permute.xlu0 %843
      %845 = vrot.lane.b32.xlu0 %v722, 3
      %v846 = vpop.permute.xlu0 %845
      %847 = vrot.lane.b32.xlu0 %v725, 3
      %v848 = vpop.permute.xlu0 %847
      %849 = vrot.lane.b32.xlu0 %v727, 3
      %v850 = vpop.permute.xlu0 %849
      %851 = vrot.lane.b32.xlu0 %v730, 3
      %v852 = vpop.permute.xlu0 %851
      %853 = vrot.lane.b32.xlu0 %v732, 3
      %v854 = vpop.permute.xlu0 %853
      %855 = vrot.lane.b32.xlu0 %v735, 3
      %v856 = vpop.permute.xlu0 %855
      %857 = vrot.lane.b32.xlu0 %v737, 3
      %v858 = vpop.permute.xlu0 %857
      %859 = vrot.lane.b32.xlu0 %v740, 3
      %v860 = vpop.permute.xlu0 %859
      %861 = vrot.lane.b32.xlu0 %v742, 3
      %v862 = vpop.permute.xlu0 %861
      %863 = vrot.lane.b32.xlu0 %v745, 3
      %v864 = vpop.permute.xlu0 %863
      %865 = vrot.lane.b32.xlu0 %v747, 3
      %v866 = vpop.permute.xlu0 %865
      %867 = vrot.lane.b32.xlu0 %v750, 3
      %v868 = vpop.permute.xlu0 %867
      %869 = vrot.lane.b32.xlu0 %v752, 3
      %v870 = vpop.permute.xlu0 %869
      %871 = vrot.lane.b32.xlu0 %v755, 3
      %v872 = vpop.permute.xlu0 %871
      %873 = vrot.lane.b32.xlu0 %v757, 3
      %v874 = vpop.permute.xlu0 %873
      %875 = vrot.lane.b32.xlu0 %v760, 3
      %v876 = vpop.permute.xlu0 %875
      %877 = vrot.lane.b32.xlu0 %v762, 3
      %v878 = vpop.permute.xlu0 %877
      %879 = vrot.lane.b32.xlu0 %v765, 3
      %v880 = vpop.permute.xlu0 %879
      %881 = vrot.lane.b32.xlu0 %v767, 3
      %v882 = vpop.permute.xlu0 %881
      %883 = vrot.lane.b32.xlu0 %v770, 3
      %v884 = vpop.permute.xlu0 %883
      %885 = vrot.lane.b32.xlu0 %v772, 3
      %v886 = vpop.permute.xlu0 %885
      %887 = vrot.lane.b32.xlu0 %v775, 3
      %v888 = vpop.permute.xlu0 %887
      %889 = vrot.lane.b32.xlu0 %v777, 3
      %v890 = vpop.permute.xlu0 %889
      %891 = vrot.lane.b32.xlu0 %v780, 3
      %v892 = vpop.permute.xlu0 %891
      %893 = vrot.lane.b32.xlu0 %v782, 3
      %v894 = vpop.permute.xlu0 %893
      %vm951 = vcmask 1043456
      %v952 = vrot.slane %v518, 4
      %v953 = vrot.slane %v332, 4
      %v954 = vsel %vm951, %v952, %v953
      %v955 = vrot.slane %v550, 4
      %v956 = vsel %vm951, %v953, %v955
      %v957 = vrot.slane %v519, 4
      %v958 = vrot.slane %v335, 4
      %v959 = vsel %vm951, %v957, %v958
      %v960 = vrot.slane %v551, 4
      %v961 = vsel %vm951, %v958, %v960
      %v962 = vrot.slane %v520, 4
      %v963 = vrot.slane %v338, 4
      %v964 = vsel %vm951, %v962, %v963
      %v965 = vrot.slane %v552, 4
      %v966 = vsel %vm951, %v963, %v965
      %v967 = vrot.slane %v521, 4
      %v968 = vrot.slane %v341, 4
      %v969 = vsel %vm951, %v967, %v968
      %v970 = vrot.slane %v553, 4
      %v971 = vsel %vm951, %v968, %v970
      %v972 = vrot.slane %v522, 4
      %v973 = vrot.slane %v344, 4
      %v974 = vsel %vm951, %v972, %v973
      %v975 = vrot.slane %v554, 4
      %v976 = vsel %vm951, %v973, %v975
      %v977 = vrot.slane %v523, 4
      %v978 = vrot.slane %v347, 4
      %v979 = vsel %vm951, %v977, %v978
      %v980 = vrot.slane %v555, 4
      %v981 = vsel %vm951, %v978, %v980
      %v982 = vrot.slane %v524, 4
      %v983 = vrot.slane %v350, 4
      %v984 = vsel %vm951, %v982, %v983
      %v985 = vrot.slane %v556, 4
      %v986 = vsel %vm951, %v983, %v985
      %v987 = vrot.slane %v525, 4
      %v988 = vrot.slane %v353, 4
      %v989 = vsel %vm951, %v987, %v988
      %v990 = vrot.slane %v557, 4
      %v991 = vsel %vm951, %v988, %v990
      %v992 = vrot.slane %v526, 4
      %v993 = vrot.slane %v356, 4
      %v994 = vsel %vm951, %v992, %v993
      %v995 = vrot.slane %v558, 4
      %v996 = vsel %vm951, %v993, %v995
      %v997 = vrot.slane %v527, 4
      %v998 = vrot.slane %v359, 4
      %v999 = vsel %vm951, %v997, %v998
      %v1000 = vrot.slane %v559, 4
      %v1001 = vsel %vm951, %v998, %v1000
      %v1002 = vrot.slane %v528, 4
      %v1003 = vrot.slane %v362, 4
      %v1004 = vsel %vm951, %v1002, %v1003
      %v1005 = vrot.slane %v560, 4
      %v1006 = vsel %vm951, %v1003, %v1005
      %v1007 = vrot.slane %v529, 4
      %v1008 = vrot.slane %v365, 4
      %v1009 = vsel %vm951, %v1007, %v1008
      %v1010 = vrot.slane %v561, 4
      %v1011 = vsel %vm951, %v1008, %v1010
      %v1012 = vrot.slane %v530, 4
      %v1013 = vrot.slane %v368, 4
      %v1014 = vsel %vm951, %v1012, %v1013
      %v1015 = vrot.slane %v562, 4
      %v1016 = vsel %vm951, %v1013, %v1015
      %v1017 = vrot.slane %v531, 4
      %v1018 = vrot.slane %v371, 4
      %v1019 = vsel %vm951, %v1017, %v1018
      %v1020 = vrot.slane %v563, 4
      %v1021 = vsel %vm951, %v1018, %v1020
      %v1022 = vrot.slane %v532, 4
      %v1023 = vrot.slane %v374, 4
      %v1024 = vsel %vm951, %v1022, %v1023
      %v1025 = vrot.slane %v564, 4
      %v1026 = vsel %vm951, %v1023, %v1025
      %v1027 = vrot.slane %v533, 4
      %v1028 = vrot.slane %v377, 4
      %v1029 = vsel %vm951, %v1027, %v1028
      %v1030 = vrot.slane %v565, 4
      %v1031 = vsel %vm951, %v1028, %v1030
      %v1032 = vrot.slane %v534, 4
      %v1033 = vrot.slane %v380, 4
      %v1034 = vsel %vm951, %v1032, %v1033
      %v1035 = vrot.slane %v566, 4
      %v1036 = vsel %vm951, %v1033, %v1035
      %v1037 = vrot.slane %v535, 4
      %v1038 = vrot.slane %v383, 4
      %v1039 = vsel %vm951, %v1037, %v1038
      %v1040 = vrot.slane %v567, 4
      %v1041 = vsel %vm951, %v1038, %v1040
      %v1042 = vrot.slane %v536, 4
      %v1043 = vrot.slane %v386, 4
      %v1044 = vsel %vm951, %v1042, %v1043
      %v1045 = vrot.slane %v568, 4
      %v1046 = vsel %vm951, %v1043, %v1045
      %v1047 = vrot.slane %v537, 4
      %v1048 = vrot.slane %v389, 4
      %v1049 = vsel %vm951, %v1047, %v1048
      %v1050 = vrot.slane %v569, 4
      %v1051 = vsel %vm951, %v1048, %v1050
      %v1052 = vrot.slane %v538, 4
      %v1053 = vrot.slane %v392, 4
      %v1054 = vsel %vm951, %v1052, %v1053
      %v1055 = vrot.slane %v570, 4
      %v1056 = vsel %vm951, %v1053, %v1055
      %v1057 = vrot.slane %v539, 4
      %v1058 = vrot.slane %v395, 4
      %v1059 = vsel %vm951, %v1057, %v1058
      %v1060 = vrot.slane %v571, 4
      %v1061 = vsel %vm951, %v1058, %v1060
      %v1062 = vrot.slane %v540, 4
      %v1063 = vrot.slane %v398, 4
      %v1064 = vsel %vm951, %v1062, %v1063
      %v1065 = vrot.slane %v572, 4
      %v1066 = vsel %vm951, %v1063, %v1065
      %v1067 = vrot.slane %v541, 4
      %v1068 = vrot.slane %v401, 4
      %v1069 = vsel %vm951, %v1067, %v1068
      %v1070 = vrot.slane %v573, 4
      %v1071 = vsel %vm951, %v1068, %v1070
      %v1072 = vrot.slane %v542, 4
      %v1073 = vrot.slane %v404, 4
      %v1074 = vsel %vm951, %v1072, %v1073
      %v1075 = vrot.slane %v574, 4
      %v1076 = vsel %vm951, %v1073, %v1075
      %v1077 = vrot.slane %v543, 4
      %v1078 = vrot.slane %v407, 4
      %v1079 = vsel %vm951, %v1077, %v1078
      %v1080 = vrot.slane %v575, 4
      %v1081 = vsel %vm951, %v1078, %v1080
      %v1082 = vrot.slane %v544, 4
      %v1083 = vrot.slane %v410, 4
      %v1084 = vsel %vm951, %v1082, %v1083
      %v1085 = vrot.slane %v576, 4
      %v1086 = vsel %vm951, %v1083, %v1085
      %v1087 = vrot.slane %v545, 4
      %v1088 = vrot.slane %v413, 4
      %v1089 = vsel %vm951, %v1087, %v1088
      %v1090 = vrot.slane %v577, 4
      %v1091 = vsel %vm951, %v1088, %v1090
      %1092 = vrot.lane.b32.xlu0 %v954, 6
      %v1093 = vpop.permute.xlu0 %1092
      %1094 = vrot.lane.b32.xlu0 %v956, 6
      %v1095 = vpop.permute.xlu0 %1094
      %1096 = vrot.lane.b32.xlu0 %v959, 6
      %v1097 = vpop.permute.xlu0 %1096
      %1098 = vrot.lane.b32.xlu0 %v961, 6
      %v1099 = vpop.permute.xlu0 %1098
      %1100 = vrot.lane.b32.xlu0 %v964, 6
      %v1101 = vpop.permute.xlu0 %1100
      %1102 = vrot.lane.b32.xlu0 %v966, 6
      %v1103 = vpop.permute.xlu0 %1102
      %1104 = vrot.lane.b32.xlu0 %v969, 6
      %v1105 = vpop.permute.xlu0 %1104
      %1106 = vrot.lane.b32.xlu0 %v971, 6
      %v1107 = vpop.permute.xlu0 %1106
      %1108 = vrot.lane.b32.xlu0 %v974, 6
      %v1109 = vpop.permute.xlu0 %1108
      %1110 = vrot.lane.b32.xlu0 %v976, 6
      %v1111 = vpop.permute.xlu0 %1110
      %1112 = vrot.lane.b32.xlu0 %v979, 6
      %v1113 = vpop.permute.xlu0 %1112
      %1114 = vrot.lane.b32.xlu0 %v981, 6
      %v1115 = vpop.permute.xlu0 %1114
      %1116 = vrot.lane.b32.xlu0 %v984, 6
      %v1117 = vpop.permute.xlu0 %1116
      %1118 = vrot.lane.b32.xlu0 %v986, 6
      %v1119 = vpop.permute.xlu0 %1118
      %1120 = vrot.lane.b32.xlu0 %v989, 6
      %v1121 = vpop.permute.xlu0 %1120
      %1122 = vrot.lane.b32.xlu0 %v991, 6
      %v1123 = vpop.permute.xlu0 %1122
      %1124 = vrot.lane.b32.xlu0 %v994, 6
      %v1125 = vpop.permute.xlu0 %1124
      %1126 = vrot.lane.b32.xlu0 %v996, 6
      %v1127 = vpop.permute.xlu0 %1126
      %1128 = vrot.lane.b32.xlu0 %v999, 6
      %v1129 = vpop.permute.xlu0 %1128
      %1130 = vrot.lane.b32.xlu0 %v1001, 6
      %v1131 = vpop.permute.xlu0 %1130
      %1132 = vrot.lane.b32.xlu0 %v1004, 6
      %v1133 = vpop.permute.xlu0 %1132
      %1134 = vrot.lane.b32.xlu0 %v1006, 6
      %v1135 = vpop.permute.xlu0 %1134
      %1136 = vrot.lane.b32.xlu0 %v1009, 6
      %v1137 = vpop.permute.xlu0 %1136
      %1138 = vrot.lane.b32.xlu0 %v1011, 6
      %v1139 = vpop.permute.xlu0 %1138
      %1140 = vrot.lane.b32.xlu0 %v1014, 6
      %v1141 = vpop.permute.xlu0 %1140
      %1142 = vrot.lane.b32.xlu0 %v1016, 6
      %v1143 = vpop.permute.xlu0 %1142
      %1144 = vrot.lane.b32.xlu0 %v1019, 6
      %v1145 = vpop.permute.xlu0 %1144
      %1146 = vrot.lane.b32.xlu0 %v1021, 6
      %v1147 = vpop.permute.xlu0 %1146
      %1148 = vrot.lane.b32.xlu0 %v1024, 6
      %v1149 = vpop.permute.xlu0 %1148
      %1150 = vrot.lane.b32.xlu0 %v1026, 6
      %v1151 = vpop.permute.xlu0 %1150
      %1152 = vrot.lane.b32.xlu0 %v1029, 6
      %v1153 = vpop.permute.xlu0 %1152
      %1154 = vrot.lane.b32.xlu0 %v1031, 6
      %v1155 = vpop.permute.xlu0 %1154
      %1156 = vrot.lane.b32.xlu0 %v1034, 6
      %v1157 = vpop.permute.xlu0 %1156
      %1158 = vrot.lane.b32.xlu0 %v1036, 6
      %v1159 = vpop.permute.xlu0 %1158
      %1160 = vrot.lane.b32.xlu0 %v1039, 6
      %v1161 = vpop.permute.xlu0 %1160
      %1162 = vrot.lane.b32.xlu0 %v1041, 6
      %v1163 = vpop.permute.xlu0 %1162
      %1164 = vrot.lane.b32.xlu0 %v1044, 6
      %v1165 = vpop.permute.xlu0 %1164
      %1166 = vrot.lane.b32.xlu0 %v1046, 6
      %v1167 = vpop.permute.xlu0 %1166
      %1168 = vrot.lane.b32.xlu0 %v1049, 6
      %v1169 = vpop.permute.xlu0 %1168
      %1170 = vrot.lane.b32.xlu0 %v1051, 6
      %v1171 = vpop.permute.xlu0 %1170
      %1172 = vrot.lane.b32.xlu0 %v1054, 6
      %v1173 = vpop.permute.xlu0 %1172
      %1174 = vrot.lane.b32.xlu0 %v1056, 6
      %v1175 = vpop.permute.xlu0 %1174
      %1176 = vrot.lane.b32.xlu0 %v1059, 6
      %v1177 = vpop.permute.xlu0 %1176
      %1178 = vrot.lane.b32.xlu0 %v1061, 6
      %v1179 = vpop.permute.xlu0 %1178
      %1180 = vrot.lane.b32.xlu0 %v1064, 6
      %v1181 = vpop.permute.xlu0 %1180
      %1182 = vrot.lane.b32.xlu0 %v1066, 6
      %v1183 = vpop.permute.xlu0 %1182
      %1184 = vrot.lane.b32.xlu0 %v1069, 6
      %v1185 = vpop.permute.xlu0 %1184
      %1186 = vrot.lane.b32.xlu0 %v1071, 6
      %v1187 = vpop.permute.xlu0 %1186
      %1188 = vrot.lane.b32.xlu0 %v1074, 6
      %v1189 = vpop.permute.xlu0 %1188
      %1190 = vrot.lane.b32.xlu0 %v1076, 6
      %v1191 = vpop.permute.xlu0 %1190
      %1192 = vrot.lane.b32.xlu0 %v1079, 6
      %v1193 = vpop.permute.xlu0 %1192
      %1194 = vrot.lane.b32.xlu0 %v1081, 6
      %v1195 = vpop.permute.xlu0 %1194
      %1196 = vrot.lane.b32.xlu0 %v1084, 6
      %v1197 = vpop.permute.xlu0 %1196
      %1198 = vrot.lane.b32.xlu0 %v1086, 6
      %v1199 = vpop.permute.xlu0 %1198
      %1200 = vrot.lane.b32.xlu0 %v1089, 6
      %v1201 = vpop.permute.xlu0 %1200
      %1202 = vrot.lane.b32.xlu0 %v1091, 6
      %v1203 = vpop.permute.xlu0 %1202
      %1262 = vrot.lane.b32.xlu0 %v520, 9
      %v1263 = vpop.permute.xlu0 %1262
      %1264 = vrot.lane.b32.xlu0 %v338, 9
      %v1265 = vpop.permute.xlu0 %1264
      %1266 = vrot.lane.b32.xlu0 %v521, 9
      %v1267 = vpop.permute.xlu0 %1266
      %1268 = vrot.lane.b32.xlu0 %v341, 9
      %v1269 = vpop.permute.xlu0 %1268
      %1270 = vrot.lane.b32.xlu0 %v522, 9
      %v1271 = vpop.permute.xlu0 %1270
      %1272 = vrot.lane.b32.xlu0 %v344, 9
      %v1273 = vpop.permute.xlu0 %1272
      %1274 = vrot.lane.b32.xlu0 %v523, 9
      %v1275 = vpop.permute.xlu0 %1274
      %1276 = vrot.lane.b32.xlu0 %v347, 9
      %v1277 = vpop.permute.xlu0 %1276
      %1278 = vrot.lane.b32.xlu0 %v524, 9
      %v1279 = vpop.permute.xlu0 %1278
      %1280 = vrot.lane.b32.xlu0 %v350, 9
      %v1281 = vpop.permute.xlu0 %1280
      %1282 = vrot.lane.b32.xlu0 %v525, 9
      %v1283 = vpop.permute.xlu0 %1282
      %1284 = vrot.lane.b32.xlu0 %v353, 9
      %v1285 = vpop.permute.xlu0 %1284
      %1286 = vrot.lane.b32.xlu0 %v526, 9
      %v1287 = vpop.permute.xlu0 %1286
      %1288 = vrot.lane.b32.xlu0 %v356, 9
      %v1289 = vpop.permute.xlu0 %1288
      %1290 = vrot.lane.b32.xlu0 %v527, 9
      %v1291 = vpop.permute.xlu0 %1290
      %1292 = vrot.lane.b32.xlu0 %v359, 9
      %v1293 = vpop.permute.xlu0 %1292
      %1294 = vrot.lane.b32.xlu0 %v528, 9
      %v1295 = vpop.permute.xlu0 %1294
      %1296 = vrot.lane.b32.xlu0 %v362, 9
      %v1297 = vpop.permute.xlu0 %1296
      %1298 = vrot.lane.b32.xlu0 %v529, 9
      %v1299 = vpop.permute.xlu0 %1298
      %1300 = vrot.lane.b32.xlu0 %v365, 9
      %v1301 = vpop.permute.xlu0 %1300
      %1302 = vrot.lane.b32.xlu0 %v530, 9
      %v1303 = vpop.permute.xlu0 %1302
      %1304 = vrot.lane.b32.xlu0 %v368, 9
      %v1305 = vpop.permute.xlu0 %1304
      %1306 = vrot.lane.b32.xlu0 %v531, 9
      %v1307 = vpop.permute.xlu0 %1306
      %1308 = vrot.lane.b32.xlu0 %v371, 9
      %v1309 = vpop.permute.xlu0 %1308
      %1310 = vrot.lane.b32.xlu0 %v532, 9
      %v1311 = vpop.permute.xlu0 %1310
      %1312 = vrot.lane.b32.xlu0 %v374, 9
      %v1313 = vpop.permute.xlu0 %1312
      %1314 = vrot.lane.b32.xlu0 %v533, 9
      %v1315 = vpop.permute.xlu0 %1314
      %1316 = vrot.lane.b32.xlu0 %v377, 9
      %v1317 = vpop.permute.xlu0 %1316
      %1318 = vrot.lane.b32.xlu0 %v534, 9
      %v1319 = vpop.permute.xlu0 %1318
      %1320 = vrot.lane.b32.xlu0 %v380, 9
      %v1321 = vpop.permute.xlu0 %1320
      %1322 = vrot.lane.b32.xlu0 %v535, 9
      %v1323 = vpop.permute.xlu0 %1322
      %1324 = vrot.lane.b32.xlu0 %v383, 9
      %v1325 = vpop.permute.xlu0 %1324
      %1326 = vrot.lane.b32.xlu0 %v536, 9
      %v1327 = vpop.permute.xlu0 %1326
      %1328 = vrot.lane.b32.xlu0 %v386, 9
      %v1329 = vpop.permute.xlu0 %1328
      %1330 = vrot.lane.b32.xlu0 %v537, 9
      %v1331 = vpop.permute.xlu0 %1330
      %1332 = vrot.lane.b32.xlu0 %v389, 9
      %v1333 = vpop.permute.xlu0 %1332
      %1334 = vrot.lane.b32.xlu0 %v538, 9
      %v1335 = vpop.permute.xlu0 %1334
      %1336 = vrot.lane.b32.xlu0 %v392, 9
      %v1337 = vpop.permute.xlu0 %1336
      %1338 = vrot.lane.b32.xlu0 %v539, 9
      %v1339 = vpop.permute.xlu0 %1338
      %1340 = vrot.lane.b32.xlu0 %v395, 9
      %v1341 = vpop.permute.xlu0 %1340
      %1342 = vrot.lane.b32.xlu0 %v540, 9
      %v1343 = vpop.permute.xlu0 %1342
      %1344 = vrot.lane.b32.xlu0 %v398, 9
      %v1345 = vpop.permute.xlu0 %1344
      %1346 = vrot.lane.b32.xlu0 %v541, 9
      %v1347 = vpop.permute.xlu0 %1346
      %1348 = vrot.lane.b32.xlu0 %v401, 9
      %v1349 = vpop.permute.xlu0 %1348
      %1350 = vrot.lane.b32.xlu0 %v542, 9
      %v1351 = vpop.permute.xlu0 %1350
      %1352 = vrot.lane.b32.xlu0 %v404, 9
      %v1353 = vpop.permute.xlu0 %1352
      %1354 = vrot.lane.b32.xlu0 %v543, 9
      %v1355 = vpop.permute.xlu0 %1354
      %1356 = vrot.lane.b32.xlu0 %v407, 9
      %v1357 = vpop.permute.xlu0 %1356
      %1358 = vrot.lane.b32.xlu0 %v544, 9
      %v1359 = vpop.permute.xlu0 %1358
      %1360 = vrot.lane.b32.xlu0 %v410, 9
      %v1361 = vpop.permute.xlu0 %1360
      %1362 = vrot.lane.b32.xlu0 %v545, 9
      %v1363 = vpop.permute.xlu0 %1362
      %1364 = vrot.lane.b32.xlu0 %v413, 9
      %v1365 = vpop.permute.xlu0 %1364
      %1366 = vrot.lane.b32.xlu0 %v546, 9
      %v1367 = vpop.permute.xlu0 %1366
      %1368 = vrot.lane.b32.xlu0 %v416, 9
      %v1369 = vpop.permute.xlu0 %1368
      %1370 = vrot.lane.b32.xlu0 %v547, 9
      %v1371 = vpop.permute.xlu0 %1370
      %1372 = vrot.lane.b32.xlu0 %v419, 9
      %v1373 = vpop.permute.xlu0 %1372
      %v1432 = vrot.slane %v546, 2
      %v1433 = vrot.slane %v416, 2
      %v1434 = vsel %vm642, %v1432, %v1433
      %v1435 = vrot.slane %v578, 2
      %v1436 = vsel %vm642, %v1433, %v1435
      %v1437 = vrot.slane %v547, 2
      %v1438 = vrot.slane %v419, 2
      %v1439 = vsel %vm642, %v1437, %v1438
      %v1440 = vrot.slane %v579, 2
      %v1441 = vsel %vm642, %v1438, %v1440
      %1442 = vrot.lane.b32.xlu0 %v655, 12
      %v1443 = vpop.permute.xlu0 %1442
      %1444 = vrot.lane.b32.xlu0 %v657, 12
      %v1445 = vpop.permute.xlu0 %1444
      %1446 = vrot.lane.b32.xlu0 %v660, 12
      %v1447 = vpop.permute.xlu0 %1446
      %1448 = vrot.lane.b32.xlu0 %v662, 12
      %v1449 = vpop.permute.xlu0 %1448
      %1450 = vrot.lane.b32.xlu0 %v665, 12
      %v1451 = vpop.permute.xlu0 %1450
      %1452 = vrot.lane.b32.xlu0 %v667, 12
      %v1453 = vpop.permute.xlu0 %1452
      %1454 = vrot.lane.b32.xlu0 %v670, 12
      %v1455 = vpop.permute.xlu0 %1454
      %1456 = vrot.lane.b32.xlu0 %v672, 12
      %v1457 = vpop.permute.xlu0 %1456
      %1458 = vrot.lane.b32.xlu0 %v675, 12
      %v1459 = vpop.permute.xlu0 %1458
      %1460 = vrot.lane.b32.xlu0 %v677, 12
      %v1461 = vpop.permute.xlu0 %1460
      %1462 = vrot.lane.b32.xlu0 %v680, 12
      %v1463 = vpop.permute.xlu0 %1462
      %1464 = vrot.lane.b32.xlu0 %v682, 12
      %v1465 = vpop.permute.xlu0 %1464
      %1466 = vrot.lane.b32.xlu0 %v685, 12
      %v1467 = vpop.permute.xlu0 %1466
      %1468 = vrot.lane.b32.xlu0 %v687, 12
      %v1469 = vpop.permute.xlu0 %1468
      %1470 = vrot.lane.b32.xlu0 %v690, 12
      %v1471 = vpop.permute.xlu0 %1470
      %1472 = vrot.lane.b32.xlu0 %v692, 12
      %v1473 = vpop.permute.xlu0 %1472
      %1474 = vrot.lane.b32.xlu0 %v695, 12
      %v1475 = vpop.permute.xlu0 %1474
      %1476 = vrot.lane.b32.xlu0 %v697, 12
      %v1477 = vpop.permute.xlu0 %1476
      %1478 = vrot.lane.b32.xlu0 %v700, 12
      %v1479 = vpop.permute.xlu0 %1478
      %1480 = vrot.lane.b32.xlu0 %v702, 12
      %v1481 = vpop.permute.xlu0 %1480
      %1482 = vrot.lane.b32.xlu0 %v705, 12
      %v1483 = vpop.permute.xlu0 %1482
      %1484 = vrot.lane.b32.xlu0 %v707, 12
      %v1485 = vpop.permute.xlu0 %1484
      %1486 = vrot.lane.b32.xlu0 %v710, 12
      %v1487 = vpop.permute.xlu0 %1486
      %1488 = vrot.lane.b32.xlu0 %v712, 12
      %v1489 = vpop.permute.xlu0 %1488
      %1490 = vrot.lane.b32.xlu0 %v715, 12
      %v1491 = vpop.permute.xlu0 %1490
      %1492 = vrot.lane.b32.xlu0 %v717, 12
      %v1493 = vpop.permute.xlu0 %1492
      %1494 = vrot.lane.b32.xlu0 %v720, 12
      %v1495 = vpop.permute.xlu0 %1494
      %1496 = vrot.lane.b32.xlu0 %v722, 12
      %v1497 = vpop.permute.xlu0 %1496
      %1498 = vrot.lane.b32.xlu0 %v725, 12
      %v1499 = vpop.permute.xlu0 %1498
      %1500 = vrot.lane.b32.xlu0 %v727, 12
      %v1501 = vpop.permute.xlu0 %1500
      %1502 = vrot.lane.b32.xlu0 %v730, 12
      %v1503 = vpop.permute.xlu0 %1502
      %1504 = vrot.lane.b32.xlu0 %v732, 12
      %v1505 = vpop.permute.xlu0 %1504
      %1506 = vrot.lane.b32.xlu0 %v735, 12
      %v1507 = vpop.permute.xlu0 %1506
      %1508 = vrot.lane.b32.xlu0 %v737, 12
      %v1509 = vpop.permute.xlu0 %1508
      %1510 = vrot.lane.b32.xlu0 %v740, 12
      %v1511 = vpop.permute.xlu0 %1510
      %1512 = vrot.lane.b32.xlu0 %v742, 12
      %v1513 = vpop.permute.xlu0 %1512
      %1514 = vrot.lane.b32.xlu0 %v745, 12
      %v1515 = vpop.permute.xlu0 %1514
      %1516 = vrot.lane.b32.xlu0 %v747, 12
      %v1517 = vpop.permute.xlu0 %1516
      %1518 = vrot.lane.b32.xlu0 %v750, 12
      %v1519 = vpop.permute.xlu0 %1518
      %1520 = vrot.lane.b32.xlu0 %v752, 12
      %v1521 = vpop.permute.xlu0 %1520
      %1522 = vrot.lane.b32.xlu0 %v755, 12
      %v1523 = vpop.permute.xlu0 %1522
      %1524 = vrot.lane.b32.xlu0 %v757, 12
      %v1525 = vpop.permute.xlu0 %1524
      %1526 = vrot.lane.b32.xlu0 %v760, 12
      %v1527 = vpop.permute.xlu0 %1526
      %1528 = vrot.lane.b32.xlu0 %v762, 12
      %v1529 = vpop.permute.xlu0 %1528
      %1530 = vrot.lane.b32.xlu0 %v765, 12
      %v1531 = vpop.permute.xlu0 %1530
      %1532 = vrot.lane.b32.xlu0 %v767, 12
      %v1533 = vpop.permute.xlu0 %1532
      %1534 = vrot.lane.b32.xlu0 %v770, 12
      %v1535 = vpop.permute.xlu0 %1534
      %1536 = vrot.lane.b32.xlu0 %v772, 12
      %v1537 = vpop.permute.xlu0 %1536
      %1538 = vrot.lane.b32.xlu0 %v775, 12
      %v1539 = vpop.permute.xlu0 %1538
      %1540 = vrot.lane.b32.xlu0 %v777, 12
      %v1541 = vpop.permute.xlu0 %1540
      %1542 = vrot.lane.b32.xlu0 %v780, 12
      %v1543 = vpop.permute.xlu0 %1542
      %1544 = vrot.lane.b32.xlu0 %v782, 12
      %v1545 = vpop.permute.xlu0 %1544
      %1546 = vrot.lane.b32.xlu0 %v1434, 12
      %v1547 = vpop.permute.xlu0 %1546
      %1548 = vrot.lane.b32.xlu0 %v1436, 12
      %v1549 = vpop.permute.xlu0 %1548
      %1550 = vrot.lane.b32.xlu0 %v1439, 12
      %v1551 = vpop.permute.xlu0 %1550
      %1552 = vrot.lane.b32.xlu0 %v1441, 12
      %v1553 = vpop.permute.xlu0 %1552
      %v1610 = vrot.slane %v546, 4
      %v1611 = vrot.slane %v416, 4
      %v1612 = vsel %vm951, %v1610, %v1611
      %v1613 = vrot.slane %v578, 4
      %v1614 = vsel %vm951, %v1611, %v1613
      %v1615 = vrot.slane %v547, 4
      %v1616 = vrot.slane %v419, 4
      %v1617 = vsel %vm951, %v1615, %v1616
      %v1618 = vrot.slane %v579, 4
      %v1619 = vsel %vm951, %v1616, %v1618
      %1620 = vrot.lane.b32.xlu0 %v964, 15
      %v1621 = vpop.permute.xlu0 %1620
      %1622 = vrot.lane.b32.xlu0 %v966, 15
      %v1623 = vpop.permute.xlu0 %1622
      %1624 = vrot.lane.b32.xlu0 %v969, 15
      %v1625 = vpop.permute.xlu0 %1624
      %1626 = vrot.lane.b32.xlu0 %v971, 15
      %v1627 = vpop.permute.xlu0 %1626
      %1628 = vrot.lane.b32.xlu0 %v974, 15
      %v1629 = vpop.permute.xlu0 %1628
      %1630 = vrot.lane.b32.xlu0 %v976, 15
      %v1631 = vpop.permute.xlu0 %1630
      %1632 = vrot.lane.b32.xlu0 %v979, 15
      %v1633 = vpop.permute.xlu0 %1632
      %1634 = vrot.lane.b32.xlu0 %v981, 15
      %v1635 = vpop.permute.xlu0 %1634
      %1636 = vrot.lane.b32.xlu0 %v984, 15
      %v1637 = vpop.permute.xlu0 %1636
      %1638 = vrot.lane.b32.xlu0 %v986, 15
      %v1639 = vpop.permute.xlu0 %1638
      %1640 = vrot.lane.b32.xlu0 %v989, 15
      %v1641 = vpop.permute.xlu0 %1640
      %1642 = vrot.lane.b32.xlu0 %v991, 15
      %v1643 = vpop.permute.xlu0 %1642
      %1644 = vrot.lane.b32.xlu0 %v994, 15
      %v1645 = vpop.permute.xlu0 %1644
      %1646 = vrot.lane.b32.xlu0 %v996, 15
      %v1647 = vpop.permute.xlu0 %1646
      %1648 = vrot.lane.b32.xlu0 %v999, 15
      %v1649 = vpop.permute.xlu0 %1648
      %1650 = vrot.lane.b32.xlu0 %v1001, 15
      %v1651 = vpop.permute.xlu0 %1650
      %1652 = vrot.lane.b32.xlu0 %v1004, 15
      %v1653 = vpop.permute.xlu0 %1652
      %1654 = vrot.lane.b32.xlu0 %v1006, 15
      %v1655 = vpop.permute.xlu0 %1654
      %1656 = vrot.lane.b32.xlu0 %v1009, 15
      %v1657 = vpop.permute.xlu0 %1656
      %1658 = vrot.lane.b32.xlu0 %v1011, 15
      %v1659 = vpop.permute.xlu0 %1658
      %1660 = vrot.lane.b32.xlu0 %v1014, 15
      %v1661 = vpop.permute.xlu0 %1660
      %1662 = vrot.lane.b32.xlu0 %v1016, 15
      %v1663 = vpop.permute.xlu0 %1662
      %1664 = vrot.lane.b32.xlu0 %v1019, 15
      %v1665 = vpop.permute.xlu0 %1664
      %1666 = vrot.lane.b32.xlu0 %v1021, 15
      %v1667 = vpop.permute.xlu0 %1666
      %1668 = vrot.lane.b32.xlu0 %v1024, 15
      %v1669 = vpop.permute.xlu0 %1668
      %1670 = vrot.lane.b32.xlu0 %v1026, 15
      %v1671 = vpop.permute.xlu0 %1670
      %1672 = vrot.lane.b32.xlu0 %v1029, 15
      %v1673 = vpop.permute.xlu0 %1672
      %1674 = vrot.lane.b32.xlu0 %v1031, 15
      %v1675 = vpop.permute.xlu0 %1674
      %1676 = vrot.lane.b32.xlu0 %v1034, 15
      %v1677 = vpop.permute.xlu0 %1676
      %1678 = vrot.lane.b32.xlu0 %v1036, 15
      %v1679 = vpop.permute.xlu0 %1678
      %1680 = vrot.lane.b32.xlu0 %v1039, 15
      %v1681 = vpop.permute.xlu0 %1680
      %1682 = vrot.lane.b32.xlu0 %v1041, 15
      %v1683 = vpop.permute.xlu0 %1682
      %1684 = vrot.lane.b32.xlu0 %v1044, 15
      %v1685 = vpop.permute.xlu0 %1684
      %1686 = vrot.lane.b32.xlu0 %v1046, 15
      %v1687 = vpop.permute.xlu0 %1686
      %1688 = vrot.lane.b32.xlu0 %v1049, 15
      %v1689 = vpop.permute.xlu0 %1688
      %1690 = vrot.lane.b32.xlu0 %v1051, 15
      %v1691 = vpop.permute.xlu0 %1690
      %1692 = vrot.lane.b32.xlu0 %v1054, 15
      %v1693 = vpop.permute.xlu0 %1692
      %1694 = vrot.lane.b32.xlu0 %v1056, 15
      %v1695 = vpop.permute.xlu0 %1694
      %1696 = vrot.lane.b32.xlu0 %v1059, 15
      %v1697 = vpop.permute.xlu0 %1696
      %1698 = vrot.lane.b32.xlu0 %v1061, 15
      %v1699 = vpop.permute.xlu0 %1698
      %1700 = vrot.lane.b32.xlu0 %v1064, 15
      %v1701 = vpop.permute.xlu0 %1700
      %1702 = vrot.lane.b32.xlu0 %v1066, 15
      %v1703 = vpop.permute.xlu0 %1702
      %1704 = vrot.lane.b32.xlu0 %v1069, 15
      %v1705 = vpop.permute.xlu0 %1704
      %1706 = vrot.lane.b32.xlu0 %v1071, 15
      %v1707 = vpop.permute.xlu0 %1706
      %1708 = vrot.lane.b32.xlu0 %v1074, 15
      %v1709 = vpop.permute.xlu0 %1708
      %1710 = vrot.lane.b32.xlu0 %v1076, 15
      %v1711 = vpop.permute.xlu0 %1710
      %1712 = vrot.lane.b32.xlu0 %v1079, 15
      %v1713 = vpop.permute.xlu0 %1712
      %1714 = vrot.lane.b32.xlu0 %v1081, 15
      %v1715 = vpop.permute.xlu0 %1714
      %1716 = vrot.lane.b32.xlu0 %v1084, 15
      %v1717 = vpop.permute.xlu0 %1716
      %1718 = vrot.lane.b32.xlu0 %v1086, 15
      %v1719 = vpop.permute.xlu0 %1718
      %1720 = vrot.lane.b32.xlu0 %v1089, 15
      %v1721 = vpop.permute.xlu0 %1720
      %1722 = vrot.lane.b32.xlu0 %v1091, 15
      %v1723 = vpop.permute.xlu0 %1722
      %1724 = vrot.lane.b32.xlu0 %v1612, 15
      %v1725 = vpop.permute.xlu0 %1724
      %1726 = vrot.lane.b32.xlu0 %v1614, 15
      %v1727 = vpop.permute.xlu0 %1726
      %1728 = vrot.lane.b32.xlu0 %v1617, 15
      %v1729 = vpop.permute.xlu0 %1728
      %1730 = vrot.lane.b32.xlu0 %v1619, 15
      %v1731 = vpop.permute.xlu0 %1730
      %1790 = vrot.lane.b32.xlu0 %v522, 18
      %v1791 = vpop.permute.xlu0 %1790
      %1792 = vrot.lane.b32.xlu0 %v344, 18
      %v1793 = vpop.permute.xlu0 %1792
      %1794 = vrot.lane.b32.xlu0 %v523, 18
      %v1795 = vpop.permute.xlu0 %1794
      %1796 = vrot.lane.b32.xlu0 %v347, 18
      %v1797 = vpop.permute.xlu0 %1796
      %1798 = vrot.lane.b32.xlu0 %v524, 18
      %v1799 = vpop.permute.xlu0 %1798
      %1800 = vrot.lane.b32.xlu0 %v350, 18
      %v1801 = vpop.permute.xlu0 %1800
      %1802 = vrot.lane.b32.xlu0 %v525, 18
      %v1803 = vpop.permute.xlu0 %1802
      %1804 = vrot.lane.b32.xlu0 %v353, 18
      %v1805 = vpop.permute.xlu0 %1804
      %1806 = vrot.lane.b32.xlu0 %v526, 18
      %v1807 = vpop.permute.xlu0 %1806
      %1808 = vrot.lane.b32.xlu0 %v356, 18
      %v1809 = vpop.permute.xlu0 %1808
      %1810 = vrot.lane.b32.xlu0 %v527, 18
      %v1811 = vpop.permute.xlu0 %1810
      %1812 = vrot.lane.b32.xlu0 %v359, 18
      %v1813 = vpop.permute.xlu0 %1812
      %1814 = vrot.lane.b32.xlu0 %v528, 18
      %v1815 = vpop.permute.xlu0 %1814
      %1816 = vrot.lane.b32.xlu0 %v362, 18
      %v1817 = vpop.permute.xlu0 %1816
      %1818 = vrot.lane.b32.xlu0 %v529, 18
      %v1819 = vpop.permute.xlu0 %1818
      %1820 = vrot.lane.b32.xlu0 %v365, 18
      %v1821 = vpop.permute.xlu0 %1820
      %1822 = vrot.lane.b32.xlu0 %v530, 18
      %v1823 = vpop.permute.xlu0 %1822
      %1824 = vrot.lane.b32.xlu0 %v368, 18
      %v1825 = vpop.permute.xlu0 %1824
      %1826 = vrot.lane.b32.xlu0 %v531, 18
      %v1827 = vpop.permute.xlu0 %1826
      %1828 = vrot.lane.b32.xlu0 %v371, 18
      %v1829 = vpop.permute.xlu0 %1828
      %1830 = vrot.lane.b32.xlu0 %v532, 18
      %v1831 = vpop.permute.xlu0 %1830
      %1832 = vrot.lane.b32.xlu0 %v374, 18
      %v1833 = vpop.permute.xlu0 %1832
      %1834 = vrot.lane.b32.xlu0 %v533, 18
      %v1835 = vpop.permute.xlu0 %1834
      %1836 = vrot.lane.b32.xlu0 %v377, 18
      %v1837 = vpop.permute.xlu0 %1836
      %1838 = vrot.lane.b32.xlu0 %v534, 18
      %v1839 = vpop.permute.xlu0 %1838
      %1840 = vrot.lane.b32.xlu0 %v380, 18
      %v1841 = vpop.permute.xlu0 %1840
      %1842 = vrot.lane.b32.xlu0 %v535, 18
      %v1843 = vpop.permute.xlu0 %1842
      %1844 = vrot.lane.b32.xlu0 %v383, 18
      %v1845 = vpop.permute.xlu0 %1844
      %1846 = vrot.lane.b32.xlu0 %v536, 18
      %v1847 = vpop.permute.xlu0 %1846
      %1848 = vrot.lane.b32.xlu0 %v386, 18
      %v1849 = vpop.permute.xlu0 %1848
      %1850 = vrot.lane.b32.xlu0 %v537, 18
      %v1851 = vpop.permute.xlu0 %1850
      %1852 = vrot.lane.b32.xlu0 %v389, 18
      %v1853 = vpop.permute.xlu0 %1852
      %1854 = vrot.lane.b32.xlu0 %v538, 18
      %v1855 = vpop.permute.xlu0 %1854
      %1856 = vrot.lane.b32.xlu0 %v392, 18
      %v1857 = vpop.permute.xlu0 %1856
      %1858 = vrot.lane.b32.xlu0 %v539, 18
      %v1859 = vpop.permute.xlu0 %1858
      %1860 = vrot.lane.b32.xlu0 %v395, 18
      %v1861 = vpop.permute.xlu0 %1860
      %1862 = vrot.lane.b32.xlu0 %v540, 18
      %v1863 = vpop.permute.xlu0 %1862
      %1864 = vrot.lane.b32.xlu0 %v398, 18
      %v1865 = vpop.permute.xlu0 %1864
      %1866 = vrot.lane.b32.xlu0 %v541, 18
      %v1867 = vpop.permute.xlu0 %1866
      %1868 = vrot.lane.b32.xlu0 %v401, 18
      %v1869 = vpop.permute.xlu0 %1868
      %1870 = vrot.lane.b32.xlu0 %v542, 18
      %v1871 = vpop.permute.xlu0 %1870
      %1872 = vrot.lane.b32.xlu0 %v404, 18
      %v1873 = vpop.permute.xlu0 %1872
      %1874 = vrot.lane.b32.xlu0 %v543, 18
      %v1875 = vpop.permute.xlu0 %1874
      %1876 = vrot.lane.b32.xlu0 %v407, 18
      %v1877 = vpop.permute.xlu0 %1876
      %1878 = vrot.lane.b32.xlu0 %v544, 18
      %v1879 = vpop.permute.xlu0 %1878
      %1880 = vrot.lane.b32.xlu0 %v410, 18
      %v1881 = vpop.permute.xlu0 %1880
      %1882 = vrot.lane.b32.xlu0 %v545, 18
      %v1883 = vpop.permute.xlu0 %1882
      %1884 = vrot.lane.b32.xlu0 %v413, 18
      %v1885 = vpop.permute.xlu0 %1884
      %1886 = vrot.lane.b32.xlu0 %v546, 18
      %v1887 = vpop.permute.xlu0 %1886
      %1888 = vrot.lane.b32.xlu0 %v416, 18
      %v1889 = vpop.permute.xlu0 %1888
      %1890 = vrot.lane.b32.xlu0 %v547, 18
      %v1891 = vpop.permute.xlu0 %1890
      %1892 = vrot.lane.b32.xlu0 %v419, 18
      %v1893 = vpop.permute.xlu0 %1892
      %1894 = vrot.lane.b32.xlu0 %v548, 18
      %v1895 = vpop.permute.xlu0 %1894
      %1896 = vrot.lane.b32.xlu0 %v422, 18
      %v1897 = vpop.permute.xlu0 %1896
      %1898 = vrot.lane.b32.xlu0 %v549, 18
      %v1899 = vpop.permute.xlu0 %1898
      %1900 = vrot.lane.b32.xlu0 %v425, 18
      %v1901 = vpop.permute.xlu0 %1900
      %v1960 = vrot.slane %v548, 2
      %v1961 = vrot.slane %v422, 2
      %v1962 = vsel %vm642, %v1960, %v1961
      %v1963 = vrot.slane %v580, 2
      %v1964 = vsel %vm642, %v1961, %v1963
      %v1965 = vrot.slane %v549, 2
      %v1966 = vrot.slane %v425, 2
      %v1967 = vsel %vm642, %v1965, %v1966
      %v1968 = vrot.slane %v581, 2
      %v1969 = vsel %vm642, %v1966, %v1968
      %1970 = vrot.lane.b32.xlu0 %v665, 21
      %v1971 = vpop.permute.xlu0 %1970
      %1972 = vrot.lane.b32.xlu0 %v667, 21
      %v1973 = vpop.permute.xlu0 %1972
      %1974 = vrot.lane.b32.xlu0 %v670, 21
      %v1975 = vpop.permute.xlu0 %1974
      %1976 = vrot.lane.b32.xlu0 %v672, 21
      %v1977 = vpop.permute.xlu0 %1976
      %1978 = vrot.lane.b32.xlu0 %v675, 21
      %v1979 = vpop.permute.xlu0 %1978
      %1980 = vrot.lane.b32.xlu0 %v677, 21
      %v1981 = vpop.permute.xlu0 %1980
      %1982 = vrot.lane.b32.xlu0 %v680, 21
      %v1983 = vpop.permute.xlu0 %1982
      %1984 = vrot.lane.b32.xlu0 %v682, 21
      %v1985 = vpop.permute.xlu0 %1984
      %1986 = vrot.lane.b32.xlu0 %v685, 21
      %v1987 = vpop.permute.xlu0 %1986
      %1988 = vrot.lane.b32.xlu0 %v687, 21
      %v1989 = vpop.permute.xlu0 %1988
      %1990 = vrot.lane.b32.xlu0 %v690, 21
      %v1991 = vpop.permute.xlu0 %1990
      %1992 = vrot.lane.b32.xlu0 %v692, 21
      %v1993 = vpop.permute.xlu0 %1992
      %1994 = vrot.lane.b32.xlu0 %v695, 21
      %v1995 = vpop.permute.xlu0 %1994
      %1996 = vrot.lane.b32.xlu0 %v697, 21
      %v1997 = vpop.permute.xlu0 %1996
      %1998 = vrot.lane.b32.xlu0 %v700, 21
      %v1999 = vpop.permute.xlu0 %1998
      %2000 = vrot.lane.b32.xlu0 %v702, 21
      %v2001 = vpop.permute.xlu0 %2000
      %2002 = vrot.lane.b32.xlu0 %v705, 21
      %v2003 = vpop.permute.xlu0 %2002
      %2004 = vrot.lane.b32.xlu0 %v707, 21
      %v2005 = vpop.permute.xlu0 %2004
      %2006 = vrot.lane.b32.xlu0 %v710, 21
      %v2007 = vpop.permute.xlu0 %2006
      %2008 = vrot.lane.b32.xlu0 %v712, 21
      %v2009 = vpop.permute.xlu0 %2008
      %2010 = vrot.lane.b32.xlu0 %v715, 21
      %v2011 = vpop.permute.xlu0 %2010
      %2012 = vrot.lane.b32.xlu0 %v717, 21
      %v2013 = vpop.permute.xlu0 %2012
      %2014 = vrot.lane.b32.xlu0 %v720, 21
      %v2015 = vpop.permute.xlu0 %2014
      %2016 = vrot.lane.b32.xlu0 %v722, 21
      %v2017 = vpop.permute.xlu0 %2016
      %2018 = vrot.lane.b32.xlu0 %v725, 21
      %v2019 = vpop.permute.xlu0 %2018
      %2020 = vrot.lane.b32.xlu0 %v727, 21
      %v2021 = vpop.permute.xlu0 %2020
      %2022 = vrot.lane.b32.xlu0 %v730, 21
      %v2023 = vpop.permute.xlu0 %2022
      %2024 = vrot.lane.b32.xlu0 %v732, 21
      %v2025 = vpop.permute.xlu0 %2024
      %2026 = vrot.lane.b32.xlu0 %v735, 21
      %v2027 = vpop.permute.xlu0 %2026
      %2028 = vrot.lane.b32.xlu0 %v737, 21
      %v2029 = vpop.permute.xlu0 %2028
      %2030 = vrot.lane.b32.xlu0 %v740, 21
      %v2031 = vpop.permute.xlu0 %2030
      %2032 = vrot.lane.b32.xlu0 %v742, 21
      %v2033 = vpop.permute.xlu0 %2032
      %2034 = vrot.lane.b32.xlu0 %v745, 21
      %v2035 = vpop.permute.xlu0 %2034
      %2036 = vrot.lane.b32.xlu0 %v747, 21
      %v2037 = vpop.permute.xlu0 %2036
      %2038 = vrot.lane.b32.xlu0 %v750, 21
      %v2039 = vpop.permute.xlu0 %2038
      %2040 = vrot.lane.b32.xlu0 %v752, 21
      %v2041 = vpop.permute.xlu0 %2040
      %2042 = vrot.lane.b32.xlu0 %v755, 21
      %v2043 = vpop.permute.xlu0 %2042
      %2044 = vrot.lane.b32.xlu0 %v757, 21
      %v2045 = vpop.permute.xlu0 %2044
      %2046 = vrot.lane.b32.xlu0 %v760, 21
      %v2047 = vpop.permute.xlu0 %2046
      %2048 = vrot.lane.b32.xlu0 %v762, 21
      %v2049 = vpop.permute.xlu0 %2048
      %2050 = vrot.lane.b32.xlu0 %v765, 21
      %v2051 = vpop.permute.xlu0 %2050
      %2052 = vrot.lane.b32.xlu0 %v767, 21
      %v2053 = vpop.permute.xlu0 %2052
      %2054 = vrot.lane.b32.xlu0 %v770, 21
      %v2055 = vpop.permute.xlu0 %2054
      %2056 = vrot.lane.b32.xlu0 %v772, 21
      %v2057 = vpop.permute.xlu0 %2056
      %2058 = vrot.lane.b32.xlu0 %v775, 21
      %v2059 = vpop.permute.xlu0 %2058
      %2060 = vrot.lane.b32.xlu0 %v777, 21
      %v2061 = vpop.permute.xlu0 %2060
      %2062 = vrot.lane.b32.xlu0 %v780, 21
      %v2063 = vpop.permute.xlu0 %2062
      %2064 = vrot.lane.b32.xlu0 %v782, 21
      %v2065 = vpop.permute.xlu0 %2064
      %2066 = vrot.lane.b32.xlu0 %v1434, 21
      %v2067 = vpop.permute.xlu0 %2066
      %2068 = vrot.lane.b32.xlu0 %v1436, 21
      %v2069 = vpop.permute.xlu0 %2068
      %2070 = vrot.lane.b32.xlu0 %v1439, 21
      %v2071 = vpop.permute.xlu0 %2070
      %2072 = vrot.lane.b32.xlu0 %v1441, 21
      %v2073 = vpop.permute.xlu0 %2072
      %2074 = vrot.lane.b32.xlu0 %v1962, 21
      %v2075 = vpop.permute.xlu0 %2074
      %2076 = vrot.lane.b32.xlu0 %v1964, 21
      %v2077 = vpop.permute.xlu0 %2076
      %2078 = vrot.lane.b32.xlu0 %v1967, 21
      %v2079 = vpop.permute.xlu0 %2078
      %2080 = vrot.lane.b32.xlu0 %v1969, 21
      %v2081 = vpop.permute.xlu0 %2080
      %v2138 = vrot.slane %v548, 4
      %v2139 = vrot.slane %v422, 4
      %v2140 = vsel %vm951, %v2138, %v2139
      %v2141 = vrot.slane %v580, 4
      %v2142 = vsel %vm951, %v2139, %v2141
      %v2143 = vrot.slane %v549, 4
      %v2144 = vrot.slane %v425, 4
      %v2145 = vsel %vm951, %v2143, %v2144
      %v2146 = vrot.slane %v581, 4
      %v2147 = vsel %vm951, %v2144, %v2146
      %2148 = vrot.lane.b32.xlu0 %v974, 24
      %v2149 = vpop.permute.xlu0 %2148
      %2150 = vrot.lane.b32.xlu0 %v976, 24
      %v2151 = vpop.permute.xlu0 %2150
      %2152 = vrot.lane.b32.xlu0 %v979, 24
      %v2153 = vpop.permute.xlu0 %2152
      %2154 = vrot.lane.b32.xlu0 %v981, 24
      %v2155 = vpop.permute.xlu0 %2154
      %2156 = vrot.lane.b32.xlu0 %v984, 24
      %v2157 = vpop.permute.xlu0 %2156
      %2158 = vrot.lane.b32.xlu0 %v986, 24
      %v2159 = vpop.permute.xlu0 %2158
      %2160 = vrot.lane.b32.xlu0 %v989, 24
      %v2161 = vpop.permute.xlu0 %2160
      %2162 = vrot.lane.b32.xlu0 %v991, 24
      %v2163 = vpop.permute.xlu0 %2162
      %2164 = vrot.lane.b32.xlu0 %v994, 24
      %v2165 = vpop.permute.xlu0 %2164
      %2166 = vrot.lane.b32.xlu0 %v996, 24
      %v2167 = vpop.permute.xlu0 %2166
      %2168 = vrot.lane.b32.xlu0 %v999, 24
      %v2169 = vpop.permute.xlu0 %2168
      %2170 = vrot.lane.b32.xlu0 %v1001, 24
      %v2171 = vpop.permute.xlu0 %2170
      %2172 = vrot.lane.b32.xlu0 %v1004, 24
      %v2173 = vpop.permute.xlu0 %2172
      %2174 = vrot.lane.b32.xlu0 %v1006, 24
      %v2175 = vpop.permute.xlu0 %2174
      %2176 = vrot.lane.b32.xlu0 %v1009, 24
      %v2177 = vpop.permute.xlu0 %2176
      %2178 = vrot.lane.b32.xlu0 %v1011, 24
      %v2179 = vpop.permute.xlu0 %2178
      %2180 = vrot.lane.b32.xlu0 %v1014, 24
      %v2181 = vpop.permute.xlu0 %2180
      %2182 = vrot.lane.b32.xlu0 %v1016, 24
      %v2183 = vpop.permute.xlu0 %2182
      %2184 = vrot.lane.b32.xlu0 %v1019, 24
      %v2185 = vpop.permute.xlu0 %2184
      %2186 = vrot.lane.b32.xlu0 %v1021, 24
      %v2187 = vpop.permute.xlu0 %2186
      %2188 = vrot.lane.b32.xlu0 %v1024, 24
      %v2189 = vpop.permute.xlu0 %2188
      %2190 = vrot.lane.b32.xlu0 %v1026, 24
      %v2191 = vpop.permute.xlu0 %2190
      %2192 = vrot.lane.b32.xlu0 %v1029, 24
      %v2193 = vpop.permute.xlu0 %2192
      %2194 = vrot.lane.b32.xlu0 %v1031, 24
      %v2195 = vpop.permute.xlu0 %2194
      %2196 = vrot.lane.b32.xlu0 %v1034, 24
      %v2197 = vpop.permute.xlu0 %2196
      %2198 = vrot.lane.b32.xlu0 %v1036, 24
      %v2199 = vpop.permute.xlu0 %2198
      %2200 = vrot.lane.b32.xlu0 %v1039, 24
      %v2201 = vpop.permute.xlu0 %2200
      %2202 = vrot.lane.b32.xlu0 %v1041, 24
      %v2203 = vpop.permute.xlu0 %2202
      %2204 = vrot.lane.b32.xlu0 %v1044, 24
      %v2205 = vpop.permute.xlu0 %2204
      %2206 = vrot.lane.b32.xlu0 %v1046, 24
      %v2207 = vpop.permute.xlu0 %2206
      %2208 = vrot.lane.b32.xlu0 %v1049, 24
      %v2209 = vpop.permute.xlu0 %2208
      %2210 = vrot.lane.b32.xlu0 %v1051, 24
      %v2211 = vpop.permute.xlu0 %2210
      %2212 = vrot.lane.b32.xlu0 %v1054, 24
      %v2213 = vpop.permute.xlu0 %2212
      %2214 = vrot.lane.b32.xlu0 %v1056, 24
      %v2215 = vpop.permute.xlu0 %2214
      %2216 = vrot.lane.b32.xlu0 %v1059, 24
      %v2217 = vpop.permute.xlu0 %2216
      %2218 = vrot.lane.b32.xlu0 %v1061, 24
      %v2219 = vpop.permute.xlu0 %2218
      %2220 = vrot.lane.b32.xlu0 %v1064, 24
      %v2221 = vpop.permute.xlu0 %2220
      %2222 = vrot.lane.b32.xlu0 %v1066, 24
      %v2223 = vpop.permute.xlu0 %2222
      %2224 = vrot.lane.b32.xlu0 %v1069, 24
      %v2225 = vpop.permute.xlu0 %2224
      %2226 = vrot.lane.b32.xlu0 %v1071, 24
      %v2227 = vpop.permute.xlu0 %2226
      %2228 = vrot.lane.b32.xlu0 %v1074, 24
      %v2229 = vpop.permute.xlu0 %2228
      %2230 = vrot.lane.b32.xlu0 %v1076, 24
      %v2231 = vpop.permute.xlu0 %2230
      %2232 = vrot.lane.b32.xlu0 %v1079, 24
      %v2233 = vpop.permute.xlu0 %2232
      %2234 = vrot.lane.b32.xlu0 %v1081, 24
      %v2235 = vpop.permute.xlu0 %2234
      %2236 = vrot.lane.b32.xlu0 %v1084, 24
      %v2237 = vpop.permute.xlu0 %2236
      %2238 = vrot.lane.b32.xlu0 %v1086, 24
      %v2239 = vpop.permute.xlu0 %2238
      %2240 = vrot.lane.b32.xlu0 %v1089, 24
      %v2241 = vpop.permute.xlu0 %2240
      %2242 = vrot.lane.b32.xlu0 %v1091, 24
      %v2243 = vpop.permute.xlu0 %2242
      %2244 = vrot.lane.b32.xlu0 %v1612, 24
      %v2245 = vpop.permute.xlu0 %2244
      %2246 = vrot.lane.b32.xlu0 %v1614, 24
      %v2247 = vpop.permute.xlu0 %2246
      %2248 = vrot.lane.b32.xlu0 %v1617, 24
      %v2249 = vpop.permute.xlu0 %2248
      %2250 = vrot.lane.b32.xlu0 %v1619, 24
      %v2251 = vpop.permute.xlu0 %2250
      %2252 = vrot.lane.b32.xlu0 %v2140, 24
      %v2253 = vpop.permute.xlu0 %2252
      %2254 = vrot.lane.b32.xlu0 %v2142, 24
      %v2255 = vpop.permute.xlu0 %2254
      %2256 = vrot.lane.b32.xlu0 %v2145, 24
      %v2257 = vpop.permute.xlu0 %2256
      %2258 = vrot.lane.b32.xlu0 %v2147, 24
      %v2259 = vpop.permute.xlu0 %2258
      %vm2316 = vcmask 23552
      %v2317 = vsel %vm2316, %v518, %v784
      %v2318 = vsel %vm2316, %v332, %v786
      %v2319 = vsel %vm2316, %v519, %v788
      %v2320 = vsel %vm2316, %v335, %v790
      %v2321 = vsel %vm2316, %v520, %v792
      %v2322 = vsel %vm2316, %v338, %v794
      %v2323 = vsel %vm2316, %v521, %v796
      %v2324 = vsel %vm2316, %v341, %v798
      %v2325 = vsel %vm2316, %v522, %v800
      %v2326 = vsel %vm2316, %v344, %v802
      %v2327 = vsel %vm2316, %v523, %v804
      %v2328 = vsel %vm2316, %v347, %v806
      %v2329 = vsel %vm2316, %v524, %v808
      %v2330 = vsel %vm2316, %v350, %v810
      %v2331 = vsel %vm2316, %v525, %v812
      %v2332 = vsel %vm2316, %v353, %v814
      %v2333 = vsel %vm2316, %v526, %v816
      %v2334 = vsel %vm2316, %v356, %v818
      %v2335 = vsel %vm2316, %v527, %v820
      %v2336 = vsel %vm2316, %v359, %v822
      %v2337 = vsel %vm2316, %v528, %v824
      %v2338 = vsel %vm2316, %v362, %v826
      %v2339 = vsel %vm2316, %v529, %v828
      %v2340 = vsel %vm2316, %v365, %v830
      %v2341 = vsel %vm2316, %v530, %v832
      %v2342 = vsel %vm2316, %v368, %v834
      %v2343 = vsel %vm2316, %v531, %v836
      %v2344 = vsel %vm2316, %v371, %v838
      %v2345 = vsel %vm2316, %v532, %v840
      %v2346 = vsel %vm2316, %v374, %v842
      %v2347 = vsel %vm2316, %v533, %v844
      %v2348 = vsel %vm2316, %v377, %v846
      %v2349 = vsel %vm2316, %v534, %v848
      %v2350 = vsel %vm2316, %v380, %v850
      %v2351 = vsel %vm2316, %v535, %v852
      %v2352 = vsel %vm2316, %v383, %v854
      %v2353 = vsel %vm2316, %v536, %v856
      %v2354 = vsel %vm2316, %v386, %v858
      %v2355 = vsel %vm2316, %v537, %v860
      %v2356 = vsel %vm2316, %v389, %v862
      %v2357 = vsel %vm2316, %v538, %v864
      %v2358 = vsel %vm2316, %v392, %v866
      %v2359 = vsel %vm2316, %v539, %v868
      %v2360 = vsel %vm2316, %v395, %v870
      %v2361 = vsel %vm2316, %v540, %v872
      %v2362 = vsel %vm2316, %v398, %v874
      %v2363 = vsel %vm2316, %v541, %v876
      %v2364 = vsel %vm2316, %v401, %v878
      %v2365 = vsel %vm2316, %v542, %v880
      %v2366 = vsel %vm2316, %v404, %v882
      %v2367 = vsel %vm2316, %v543, %v884
      %v2368 = vsel %vm2316, %v407, %v886
      %v2369 = vsel %vm2316, %v544, %v888
      %v2370 = vsel %vm2316, %v410, %v890
      %v2371 = vsel %vm2316, %v545, %v892
      %v2372 = vsel %vm2316, %v413, %v894
      %vm2373 = vcmask 48128
      %v2374 = vsel %vm2373, %v2317, %v1093
      %v2375 = vsel %vm2373, %v2318, %v1095
      %v2376 = vsel %vm2373, %v2319, %v1097
      %v2377 = vsel %vm2373, %v2320, %v1099
      %v2378 = vsel %vm2373, %v2321, %v1101
      %v2379 = vsel %vm2373, %v2322, %v1103
      %v2380 = vsel %vm2373, %v2323, %v1105
      %v2381 = vsel %vm2373, %v2324, %v1107
      %v2382 = vsel %vm2373, %v2325, %v1109
      %v2383 = vsel %vm2373, %v2326, %v1111
      %v2384 = vsel %vm2373, %v2327, %v1113
      %v2385 = vsel %vm2373, %v2328, %v1115
      %v2386 = vsel %vm2373, %v2329, %v1117
      %v2387 = vsel %vm2373, %v2330, %v1119
      %v2388 = vsel %vm2373, %v2331, %v1121
      %v2389 = vsel %vm2373, %v2332, %v1123
      %v2390 = vsel %vm2373, %v2333, %v1125
      %v2391 = vsel %vm2373, %v2334, %v1127
      %v2392 = vsel %vm2373, %v2335, %v1129
      %v2393 = vsel %vm2373, %v2336, %v1131
      %v2394 = vsel %vm2373, %v2337, %v1133
      %v2395 = vsel %vm2373, %v2338, %v1135
      %v2396 = vsel %vm2373, %v2339, %v1137
      %v2397 = vsel %vm2373, %v2340, %v1139
      %v2398 = vsel %vm2373, %v2341, %v1141
      %v2399 = vsel %vm2373, %v2342, %v1143
      %v2400 = vsel %vm2373, %v2343, %v1145
      %v2401 = vsel %vm2373, %v2344, %v1147
      %v2402 = vsel %vm2373, %v2345, %v1149
      %v2403 = vsel %vm2373, %v2346, %v1151
      %v2404 = vsel %vm2373, %v2347, %v1153
      %v2405 = vsel %vm2373, %v2348, %v1155
      %v2406 = vsel %vm2373, %v2349, %v1157
      %v2407 = vsel %vm2373, %v2350, %v1159
      %v2408 = vsel %vm2373, %v2351, %v1161
      %v2409 = vsel %vm2373, %v2352, %v1163
      %v2410 = vsel %vm2373, %v2353, %v1165
      %v2411 = vsel %vm2373, %v2354, %v1167
      %v2412 = vsel %vm2373, %v2355, %v1169
      %v2413 = vsel %vm2373, %v2356, %v1171
      %v2414 = vsel %vm2373, %v2357, %v1173
      %v2415 = vsel %vm2373, %v2358, %v1175
      %v2416 = vsel %vm2373, %v2359, %v1177
      %v2417 = vsel %vm2373, %v2360, %v1179
      %v2418 = vsel %vm2373, %v2361, %v1181
      %v2419 = vsel %vm2373, %v2362, %v1183
      %v2420 = vsel %vm2373, %v2363, %v1185
      %v2421 = vsel %vm2373, %v2364, %v1187
      %v2422 = vsel %vm2373, %v2365, %v1189
      %v2423 = vsel %vm2373, %v2366, %v1191
      %v2424 = vsel %vm2373, %v2367, %v1193
      %v2425 = vsel %vm2373, %v2368, %v1195
      %v2426 = vsel %vm2373, %v2369, %v1197
      %v2427 = vsel %vm2373, %v2370, %v1199
      %v2428 = vsel %vm2373, %v2371, %v1201
      %v2429 = vsel %vm2373, %v2372, %v1203
      %vm2430 = vcmask 72704
      %v2431 = vsel %vm2430, %v2374, %v1263
      %v2432 = vsel %vm2430, %v2375, %v1265
      %v2433 = vsel %vm2430, %v2376, %v1267
      %v2434 = vsel %vm2430, %v2377, %v1269
      %v2435 = vsel %vm2430, %v2378, %v1271
      %v2436 = vsel %vm2430, %v2379, %v1273
      %v2437 = vsel %vm2430, %v2380, %v1275
      %v2438 = vsel %vm2430, %v2381, %v1277
      %v2439 = vsel %vm2430, %v2382, %v1279
      %v2440 = vsel %vm2430, %v2383, %v1281
      %v2441 = vsel %vm2430, %v2384, %v1283
      %v2442 = vsel %vm2430, %v2385, %v1285
      %v2443 = vsel %vm2430, %v2386, %v1287
      %v2444 = vsel %vm2430, %v2387, %v1289
      %v2445 = vsel %vm2430, %v2388, %v1291
      %v2446 = vsel %vm2430, %v2389, %v1293
      %v2447 = vsel %vm2430, %v2390, %v1295
      %v2448 = vsel %vm2430, %v2391, %v1297
      %v2449 = vsel %vm2430, %v2392, %v1299
      %v2450 = vsel %vm2430, %v2393, %v1301
      %v2451 = vsel %vm2430, %v2394, %v1303
      %v2452 = vsel %vm2430, %v2395, %v1305
      %v2453 = vsel %vm2430, %v2396, %v1307
      %v2454 = vsel %vm2430, %v2397, %v1309
      %v2455 = vsel %vm2430, %v2398, %v1311
      %v2456 = vsel %vm2430, %v2399, %v1313
      %v2457 = vsel %vm2430, %v2400, %v1315
      %v2458 = vsel %vm2430, %v2401, %v1317
      %v2459 = vsel %vm2430, %v2402, %v1319
      %v2460 = vsel %vm2430, %v2403, %v1321
      %v2461 = vsel %vm2430, %v2404, %v1323
      %v2462 = vsel %vm2430, %v2405, %v1325
      %v2463 = vsel %vm2430, %v2406, %v1327
      %v2464 = vsel %vm2430, %v2407, %v1329
      %v2465 = vsel %vm2430, %v2408, %v1331
      %v2466 = vsel %vm2430, %v2409, %v1333
      %v2467 = vsel %vm2430, %v2410, %v1335
      %v2468 = vsel %vm2430, %v2411, %v1337
      %v2469 = vsel %vm2430, %v2412, %v1339
      %v2470 = vsel %vm2430, %v2413, %v1341
      %v2471 = vsel %vm2430, %v2414, %v1343
      %v2472 = vsel %vm2430, %v2415, %v1345
      %v2473 = vsel %vm2430, %v2416, %v1347
      %v2474 = vsel %vm2430, %v2417, %v1349
      %v2475 = vsel %vm2430, %v2418, %v1351
      %v2476 = vsel %vm2430, %v2419, %v1353
      %v2477 = vsel %vm2430, %v2420, %v1355
      %v2478 = vsel %vm2430, %v2421, %v1357
      %v2479 = vsel %vm2430, %v2422, %v1359
      %v2480 = vsel %vm2430, %v2423, %v1361
      %v2481 = vsel %vm2430, %v2424, %v1363
      %v2482 = vsel %vm2430, %v2425, %v1365
      %v2483 = vsel %vm2430, %v2426, %v1367
      %v2484 = vsel %vm2430, %v2427, %v1369
      %v2485 = vsel %vm2430, %v2428, %v1371
      %v2486 = vsel %vm2430, %v2429, %v1373
      %vm2487 = vcmask 97280
      %v2488 = vsel %vm2487, %v2431, %v1443
      %v2489 = vsel %vm2487, %v2432, %v1445
      %v2490 = vsel %vm2487, %v2433, %v1447
      %v2491 = vsel %vm2487, %v2434, %v1449
      %v2492 = vsel %vm2487, %v2435, %v1451
      %v2493 = vsel %vm2487, %v2436, %v1453
      %v2494 = vsel %vm2487, %v2437, %v1455
      %v2495 = vsel %vm2487, %v2438, %v1457
      %v2496 = vsel %vm2487, %v2439, %v1459
      %v2497 = vsel %vm2487, %v2440, %v1461
      %v2498 = vsel %vm2487, %v2441, %v1463
      %v2499 = vsel %vm2487, %v2442, %v1465
      %v2500 = vsel %vm2487, %v2443, %v1467
      %v2501 = vsel %vm2487, %v2444, %v1469
      %v2502 = vsel %vm2487, %v2445, %v1471
      %v2503 = vsel %vm2487, %v2446, %v1473
      %v2504 = vsel %vm2487, %v2447, %v1475
      %v2505 = vsel %vm2487, %v2448, %v1477
      %v2506 = vsel %vm2487, %v2449, %v1479
      %v2507 = vsel %vm2487, %v2450, %v1481
      %v2508 = vsel %vm2487, %v2451, %v1483
      %v2509 = vsel %vm2487, %v2452, %v1485
      %v2510 = vsel %vm2487, %v2453, %v1487
      %v2511 = vsel %vm2487, %v2454, %v1489
      %v2512 = vsel %vm2487, %v2455, %v1491
      %v2513 = vsel %vm2487, %v2456, %v1493
      %v2514 = vsel %vm2487, %v2457, %v1495
      %v2515 = vsel %vm2487, %v2458, %v1497
      %v2516 = vsel %vm2487, %v2459, %v1499
      %v2517 = vsel %vm2487, %v2460, %v1501
      %v2518 = vsel %vm2487, %v2461, %v1503
      %v2519 = vsel %vm2487, %v2462, %v1505
      %v2520 = vsel %vm2487, %v2463, %v1507
      %v2521 = vsel %vm2487, %v2464, %v1509
      %v2522 = vsel %vm2487, %v2465, %v1511
      %v2523 = vsel %vm2487, %v2466, %v1513
      %v2524 = vsel %vm2487, %v2467, %v1515
      %v2525 = vsel %vm2487, %v2468, %v1517
      %v2526 = vsel %vm2487, %v2469, %v1519
      %v2527 = vsel %vm2487, %v2470, %v1521
      %v2528 = vsel %vm2487, %v2471, %v1523
      %v2529 = vsel %vm2487, %v2472, %v1525
      %v2530 = vsel %vm2487, %v2473, %v1527
      %v2531 = vsel %vm2487, %v2474, %v1529
      %v2532 = vsel %vm2487, %v2475, %v1531
      %v2533 = vsel %vm2487, %v2476, %v1533
      %v2534 = vsel %vm2487, %v2477, %v1535
      %v2535 = vsel %vm2487, %v2478, %v1537
      %v2536 = vsel %vm2487, %v2479, %v1539
      %v2537 = vsel %vm2487, %v2480, %v1541
      %v2538 = vsel %vm2487, %v2481, %v1543
      %v2539 = vsel %vm2487, %v2482, %v1545
      %v2540 = vsel %vm2487, %v2483, %v1547
      %v2541 = vsel %vm2487, %v2484, %v1549
      %v2542 = vsel %vm2487, %v2485, %v1551
      %v2543 = vsel %vm2487, %v2486, %v1553
      %vm2544 = vcmask 121856
      %v2545 = vsel %vm2544, %v2488, %v1621
      %v2546 = vsel %vm2544, %v2489, %v1623
      %v2547 = vsel %vm2544, %v2490, %v1625
      %v2548 = vsel %vm2544, %v2491, %v1627
      %v2549 = vsel %vm2544, %v2492, %v1629
      %v2550 = vsel %vm2544, %v2493, %v1631
      %v2551 = vsel %vm2544, %v2494, %v1633
      %v2552 = vsel %vm2544, %v2495, %v1635
      %v2553 = vsel %vm2544, %v2496, %v1637
      %v2554 = vsel %vm2544, %v2497, %v1639
      %v2555 = vsel %vm2544, %v2498, %v1641
      %v2556 = vsel %vm2544, %v2499, %v1643
      %v2557 = vsel %vm2544, %v2500, %v1645
      %v2558 = vsel %vm2544, %v2501, %v1647
      %v2559 = vsel %vm2544, %v2502, %v1649
      %v2560 = vsel %vm2544, %v2503, %v1651
      %v2561 = vsel %vm2544, %v2504, %v1653
      %v2562 = vsel %vm2544, %v2505, %v1655
      %v2563 = vsel %vm2544, %v2506, %v1657
      %v2564 = vsel %vm2544, %v2507, %v1659
      %v2565 = vsel %vm2544, %v2508, %v1661
      %v2566 = vsel %vm2544, %v2509, %v1663
      %v2567 = vsel %vm2544, %v2510, %v1665
      %v2568 = vsel %vm2544, %v2511, %v1667
      %v2569 = vsel %vm2544, %v2512, %v1669
      %v2570 = vsel %vm2544, %v2513, %v1671
      %v2571 = vsel %vm2544, %v2514, %v1673
      %v2572 = vsel %vm2544, %v2515, %v1675
      %v2573 = vsel %vm2544, %v2516, %v1677
      %v2574 = vsel %vm2544, %v2517, %v1679
      %v2575 = vsel %vm2544, %v2518, %v1681
      %v2576 = vsel %vm2544, %v2519, %v1683
      %v2577 = vsel %vm2544, %v2520, %v1685
      %v2578 = vsel %vm2544, %v2521, %v1687
      %v2579 = vsel %vm2544, %v2522, %v1689
      %v2580 = vsel %vm2544, %v2523, %v1691
      %v2581 = vsel %vm2544, %v2524, %v1693
      %v2582 = vsel %vm2544, %v2525, %v1695
      %v2583 = vsel %vm2544, %v2526, %v1697
      %v2584 = vsel %vm2544, %v2527, %v1699
      %v2585 = vsel %vm2544, %v2528, %v1701
      %v2586 = vsel %vm2544, %v2529, %v1703
      %v2587 = vsel %vm2544, %v2530, %v1705
      %v2588 = vsel %vm2544, %v2531, %v1707
      %v2589 = vsel %vm2544, %v2532, %v1709
      %v2590 = vsel %vm2544, %v2533, %v1711
      %v2591 = vsel %vm2544, %v2534, %v1713
      %v2592 = vsel %vm2544, %v2535, %v1715
      %v2593 = vsel %vm2544, %v2536, %v1717
      %v2594 = vsel %vm2544, %v2537, %v1719
      %v2595 = vsel %vm2544, %v2538, %v1721
      %v2596 = vsel %vm2544, %v2539, %v1723
      %v2597 = vsel %vm2544, %v2540, %v1725
      %v2598 = vsel %vm2544, %v2541, %v1727
      %v2599 = vsel %vm2544, %v2542, %v1729
      %v2600 = vsel %vm2544, %v2543, %v1731
      %vm2601 = vcmask 146432
      %v2602 = vsel %vm2601, %v2545, %v1791
      %v2603 = vsel %vm2601, %v2546, %v1793
      %v2604 = vsel %vm2601, %v2547, %v1795
      %v2605 = vsel %vm2601, %v2548, %v1797
      %v2606 = vsel %vm2601, %v2549, %v1799
      %v2607 = vsel %vm2601, %v2550, %v1801
      %v2608 = vsel %vm2601, %v2551, %v1803
      %v2609 = vsel %vm2601, %v2552, %v1805
      %v2610 = vsel %vm2601, %v2553, %v1807
      %v2611 = vsel %vm2601, %v2554, %v1809
      %v2612 = vsel %vm2601, %v2555, %v1811
      %v2613 = vsel %vm2601, %v2556, %v1813
      %v2614 = vsel %vm2601, %v2557, %v1815
      %v2615 = vsel %vm2601, %v2558, %v1817
      %v2616 = vsel %vm2601, %v2559, %v1819
      %v2617 = vsel %vm2601, %v2560, %v1821
      %v2618 = vsel %vm2601, %v2561, %v1823
      %v2619 = vsel %vm2601, %v2562, %v1825
      %v2620 = vsel %vm2601, %v2563, %v1827
      %v2621 = vsel %vm2601, %v2564, %v1829
      %v2622 = vsel %vm2601, %v2565, %v1831
      %v2623 = vsel %vm2601, %v2566, %v1833
      %v2624 = vsel %vm2601, %v2567, %v1835
      %v2625 = vsel %vm2601, %v2568, %v1837
      %v2626 = vsel %vm2601, %v2569, %v1839
      %v2627 = vsel %vm2601, %v2570, %v1841
      %v2628 = vsel %vm2601, %v2571, %v1843
      %v2629 = vsel %vm2601, %v2572, %v1845
      %v2630 = vsel %vm2601, %v2573, %v1847
      %v2631 = vsel %vm2601, %v2574, %v1849
      %v2632 = vsel %vm2601, %v2575, %v1851
      %v2633 = vsel %vm2601, %v2576, %v1853
      %v2634 = vsel %vm2601, %v2577, %v1855
      %v2635 = vsel %vm2601, %v2578, %v1857
      %v2636 = vsel %vm2601, %v2579, %v1859
      %v2637 = vsel %vm2601, %v2580, %v1861
      %v2638 = vsel %vm2601, %v2581, %v1863
      %v2639 = vsel %vm2601, %v2582, %v1865
      %v2640 = vsel %vm2601, %v2583, %v1867
      %v2641 = vsel %vm2601, %v2584, %v1869
      %v2642 = vsel %vm2601, %v2585, %v1871
      %v2643 = vsel %vm2601, %v2586, %v1873
      %v2644 = vsel %vm2601, %v2587, %v1875
      %v2645 = vsel %vm2601, %v2588, %v1877
      %v2646 = vsel %vm2601, %v2589, %v1879
      %v2647 = vsel %vm2601, %v2590, %v1881
      %v2648 = vsel %vm2601, %v2591, %v1883
      %v2649 = vsel %vm2601, %v2592, %v1885
      %v2650 = vsel %vm2601, %v2593, %v1887
      %v2651 = vsel %vm2601, %v2594, %v1889
      %v2652 = vsel %vm2601, %v2595, %v1891
      %v2653 = vsel %vm2601, %v2596, %v1893
      %v2654 = vsel %vm2601, %v2597, %v1895
      %v2655 = vsel %vm2601, %v2598, %v1897
      %v2656 = vsel %vm2601, %v2599, %v1899
      %v2657 = vsel %vm2601, %v2600, %v1901
      %vm2658 = vcmask 171008
      %v2659 = vsel %vm2658, %v2602, %v1971
      %v2660 = vsel %vm2658, %v2603, %v1973
      %v2661 = vsel %vm2658, %v2604, %v1975
      %v2662 = vsel %vm2658, %v2605, %v1977
      %v2663 = vsel %vm2658, %v2606, %v1979
      %v2664 = vsel %vm2658, %v2607, %v1981
      %v2665 = vsel %vm2658, %v2608, %v1983
      %v2666 = vsel %vm2658, %v2609, %v1985
      %v2667 = vsel %vm2658, %v2610, %v1987
      %v2668 = vsel %vm2658, %v2611, %v1989
      %v2669 = vsel %vm2658, %v2612, %v1991
      %v2670 = vsel %vm2658, %v2613, %v1993
      %v2671 = vsel %vm2658, %v2614, %v1995
      %v2672 = vsel %vm2658, %v2615, %v1997
      %v2673 = vsel %vm2658, %v2616, %v1999
      %v2674 = vsel %vm2658, %v2617, %v2001
      %v2675 = vsel %vm2658, %v2618, %v2003
      %v2676 = vsel %vm2658, %v2619, %v2005
      %v2677 = vsel %vm2658, %v2620, %v2007
      %v2678 = vsel %vm2658, %v2621, %v2009
      %v2679 = vsel %vm2658, %v2622, %v2011
      %v2680 = vsel %vm2658, %v2623, %v2013
      %v2681 = vsel %vm2658, %v2624, %v2015
      %v2682 = vsel %vm2658, %v2625, %v2017
      %v2683 = vsel %vm2658, %v2626, %v2019
      %v2684 = vsel %vm2658, %v2627, %v2021
      %v2685 = vsel %vm2658, %v2628, %v2023
      %v2686 = vsel %vm2658, %v2629, %v2025
      %v2687 = vsel %vm2658, %v2630, %v2027
      %v2688 = vsel %vm2658, %v2631, %v2029
      %v2689 = vsel %vm2658, %v2632, %v2031
      %v2690 = vsel %vm2658, %v2633, %v2033
      %v2691 = vsel %vm2658, %v2634, %v2035
      %v2692 = vsel %vm2658, %v2635, %v2037
      %v2693 = vsel %vm2658, %v2636, %v2039
      %v2694 = vsel %vm2658, %v2637, %v2041
      %v2695 = vsel %vm2658, %v2638, %v2043
      %v2696 = vsel %vm2658, %v2639, %v2045
      %v2697 = vsel %vm2658, %v2640, %v2047
      %v2698 = vsel %vm2658, %v2641, %v2049
      %v2699 = vsel %vm2658, %v2642, %v2051
      %v2700 = vsel %vm2658, %v2643, %v2053
      %v2701 = vsel %vm2658, %v2644, %v2055
      %v2702 = vsel %vm2658, %v2645, %v2057
      %v2703 = vsel %vm2658, %v2646, %v2059
      %v2704 = vsel %vm2658, %v2647, %v2061
      %v2705 = vsel %vm2658, %v2648, %v2063
      %v2706 = vsel %vm2658, %v2649, %v2065
      %v2707 = vsel %vm2658, %v2650, %v2067
      %v2708 = vsel %vm2658, %v2651, %v2069
      %v2709 = vsel %vm2658, %v2652, %v2071
      %v2710 = vsel %vm2658, %v2653, %v2073
      %v2711 = vsel %vm2658, %v2654, %v2075
      %v2712 = vsel %vm2658, %v2655, %v2077
      %v2713 = vsel %vm2658, %v2656, %v2079
      %v2714 = vsel %vm2658, %v2657, %v2081
      %vm2715 = vcmask 195584
      %v2716 = vsel %vm2715, %v2659, %v2149
      %v2717 = vsel %vm2715, %v2660, %v2151
      %v2718 = vsel %vm2715, %v2661, %v2153
      %v2719 = vsel %vm2715, %v2662, %v2155
      %v2720 = vsel %vm2715, %v2663, %v2157
      %v2721 = vsel %vm2715, %v2664, %v2159
      %v2722 = vsel %vm2715, %v2665, %v2161
      %v2723 = vsel %vm2715, %v2666, %v2163
      %v2724 = vsel %vm2715, %v2667, %v2165
      %v2725 = vsel %vm2715, %v2668, %v2167
      %v2726 = vsel %vm2715, %v2669, %v2169
      %v2727 = vsel %vm2715, %v2670, %v2171
      %v2728 = vsel %vm2715, %v2671, %v2173
      %v2729 = vsel %vm2715, %v2672, %v2175
      %v2730 = vsel %vm2715, %v2673, %v2177
      %v2731 = vsel %vm2715, %v2674, %v2179
      %v2732 = vsel %vm2715, %v2675, %v2181
      %v2733 = vsel %vm2715, %v2676, %v2183
      %v2734 = vsel %vm2715, %v2677, %v2185
      %v2735 = vsel %vm2715, %v2678, %v2187
      %v2736 = vsel %vm2715, %v2679, %v2189
      %v2737 = vsel %vm2715, %v2680, %v2191
      %v2738 = vsel %vm2715, %v2681, %v2193
      %v2739 = vsel %vm2715, %v2682, %v2195
      %v2740 = vsel %vm2715, %v2683, %v2197
      %v2741 = vsel %vm2715, %v2684, %v2199
      %v2742 = vsel %vm2715, %v2685, %v2201
      %v2743 = vsel %vm2715, %v2686, %v2203
      %v2744 = vsel %vm2715, %v2687, %v2205
      %v2745 = vsel %vm2715, %v2688, %v2207
      %v2746 = vsel %vm2715, %v2689, %v2209
      %v2747 = vsel %vm2715, %v2690, %v2211
      %v2748 = vsel %vm2715, %v2691, %v2213
      %v2749 = vsel %vm2715, %v2692, %v2215
      %v2750 = vsel %vm2715, %v2693, %v2217
      %v2751 = vsel %vm2715, %v2694, %v2219
      %v2752 = vsel %vm2715, %v2695, %v2221
      %v2753 = vsel %vm2715, %v2696, %v2223
      %v2754 = vsel %vm2715, %v2697, %v2225
      %v2755 = vsel %vm2715, %v2698, %v2227
      %v2756 = vsel %vm2715, %v2699, %v2229
      %v2757 = vsel %vm2715, %v2700, %v2231
      %v2758 = vsel %vm2715, %v2701, %v2233
      %v2759 = vsel %vm2715, %v2702, %v2235
      %v2760 = vsel %vm2715, %v2703, %v2237
      %v2761 = vsel %vm2715, %v2704, %v2239
      %v2762 = vsel %vm2715, %v2705, %v2241
      %v2763 = vsel %vm2715, %v2706, %v2243
      %v2764 = vsel %vm2715, %v2707, %v2245
      %v2765 = vsel %vm2715, %v2708, %v2247
      %v2766 = vsel %vm2715, %v2709, %v2249
      %v2767 = vsel %vm2715, %v2710, %v2251
      %v2768 = vsel %vm2715, %v2711, %v2253
      %v2769 = vsel %vm2715, %v2712, %v2255
      %v2770 = vsel %vm2715, %v2713, %v2257
      %v2771 = vsel %vm2715, %v2714, %v2259
      %vm2772 = vcmask 220160
      %v2774 = vsel %vm2772, %v2716, 0
      %v2777 = vsel %vm2772, %v2717, 0
      %v2780 = vsel %vm2772, %v2718, 0
      %v2783 = vsel %vm2772, %v2719, 0
      %v2786 = vsel %vm2772, %v2720, 0
      %v2789 = vsel %vm2772, %v2721, 0
      %v2792 = vsel %vm2772, %v2722, 0
      %v2795 = vsel %vm2772, %v2723, 0
      %v2798 = vsel %vm2772, %v2724, 0
      %v2801 = vsel %vm2772, %v2725, 0
      %v2804 = vsel %vm2772, %v2726, 0
      %v2807 = vsel %vm2772, %v2727, 0
      %v2810 = vsel %vm2772, %v2728, 0
      %v2813 = vsel %vm2772, %v2729, 0
      %v2816 = vsel %vm2772, %v2730, 0
      %v2819 = vsel %vm2772, %v2731, 0
      %v2822 = vsel %vm2772, %v2732, 0
      %v2825 = vsel %vm2772, %v2733, 0
      %v2828 = vsel %vm2772, %v2734, 0
      %v2831 = vsel %vm2772, %v2735, 0
      %v2834 = vsel %vm2772, %v2736, 0
      %v2837 = vsel %vm2772, %v2737, 0
      %v2840 = vsel %vm2772, %v2738, 0
      %v2843 = vsel %vm2772, %v2739, 0
      %v2846 = vsel %vm2772, %v2740, 0
      %v2849 = vsel %vm2772, %v2741, 0
      %v2852 = vsel %vm2772, %v2742, 0
      %v2855 = vsel %vm2772, %v2743, 0
      %v2858 = vsel %vm2772, %v2744, 0
      %v2861 = vsel %vm2772, %v2745, 0
      %v2864 = vsel %vm2772, %v2746, 0
      %v2867 = vsel %vm2772, %v2747, 0
      %v2870 = vsel %vm2772, %v2748, 0
      %v2873 = vsel %vm2772, %v2749, 0
      %v2876 = vsel %vm2772, %v2750, 0
      %v2879 = vsel %vm2772, %v2751, 0
      %v2882 = vsel %vm2772, %v2752, 0
      %v2885 = vsel %vm2772, %v2753, 0
      %v2888 = vsel %vm2772, %v2754, 0
      %v2891 = vsel %vm2772, %v2755, 0
      %v2894 = vsel %vm2772, %v2756, 0
      %v2897 = vsel %vm2772, %v2757, 0
      %v2900 = vsel %vm2772, %v2758, 0
      %v2903 = vsel %vm2772, %v2759, 0
      %v2906 = vsel %vm2772, %v2760, 0
      %v2909 = vsel %vm2772, %v2761, 0
      %v2912 = vsel %vm2772, %v2762, 0
      %v2915 = vsel %vm2772, %v2763, 0
      %v2918 = vsel %vm2772, %v2764, 0
      %v2921 = vsel %vm2772, %v2765, 0
      %v2924 = vsel %vm2772, %v2766, 0
      %v2927 = vsel %vm2772, %v2767, 0
      %v2930 = vsel %vm2772, %v2768, 0
      %v2933 = vsel %vm2772, %v2769, 0
      %v2936 = vsel %vm2772, %v2770, 0
      %v2939 = vsel %vm2772, %v2771, 0
      %vm2941 = vcmask 1042432
      %v2943 = vsel %vm2941, %v585, 0
      %2945 = vmatpush.msra.mxu0 0.0
      %2946 = vmatpush.msra.mxu0 0.0
      %2947 = vmatpush.msra.mxu0 0.0
      %2948 = vmatpush.msra.mxu0 0.0
      %2949 = vmatpush.msra.mxu0 0.0
      %2950 = vmatpush.msra.mxu0 0.0
      %2951 = vmatpush.msra.mxu0 0.0
      %2952 = vmatpush.msra.mxu0 0.0
      %2953 = vmatpush.msra.mxu0 0.0
      %2954 = vmatpush.msra.mxu0 0.0
      %2955 = vmatpush.msra.mxu0 0.0
      %2956 = vmatpush.msra.mxu0 0.0
      %2957 = vmatpush.msra.mxu0 %v2943
      %2958 = vmatpush.msra.mxu0 %v584
      %2959 = vmatpush.msra.mxu0 %v583
      %2960 = vmatpush.msra.mxu0 %v582
      %2961 = vmatmul.f32.gmra.mxu0 %v2774
      %v2962 = vpop.f32.mrf.mxu0
      %v2963 = vadd.f32 0.0, %v2962
      %2964 = vmatmul.f32.gmra.mxu0 %v2777
      %v2965 = vpop.f32.mrf.mxu0
      %v2966 = vadd.f32 0.0, %v2965
      %2967 = vmatmul.f32.gmra.mxu0 %v2780
      %v2968 = vpop.f32.mrf.mxu0
      %v2969 = vadd.f32 0.0, %v2968
      %2970 = vmatmul.f32.gmra.mxu0 %v2783
      %v2971 = vpop.f32.mrf.mxu0
      %v2972 = vadd.f32 0.0, %v2971
      %2973 = vmatmul.f32.gmra.mxu0 %v2786
      %v2974 = vpop.f32.mrf.mxu0
      %v2975 = vadd.f32 0.0, %v2974
      %2976 = vmatmul.f32.gmra.mxu0 %v2789
      %v2977 = vpop.f32.mrf.mxu0
      %v2978 = vadd.f32 0.0, %v2977
      %2979 = vmatmul.f32.gmra.mxu0 %v2792
      %v2980 = vpop.f32.mrf.mxu0
      %v2981 = vadd.f32 0.0, %v2980
      %2982 = vmatmul.f32.gmra.mxu0 %v2795
      %v2983 = vpop.f32.mrf.mxu0
      %v2984 = vadd.f32 0.0, %v2983
      %2985 = vmatmul.f32.gmra.mxu0 %v2798
      %v2986 = vpop.f32.mrf.mxu0
      %v2987 = vadd.f32 0.0, %v2986
      %2988 = vmatmul.f32.gmra.mxu0 %v2801
      %v2989 = vpop.f32.mrf.mxu0
      %v2990 = vadd.f32 0.0, %v2989
      %2991 = vmatmul.f32.gmra.mxu0 %v2804
      %v2992 = vpop.f32.mrf.mxu0
      %v2993 = vadd.f32 0.0, %v2992
      %2994 = vmatmul.f32.gmra.mxu0 %v2807
      %v2995 = vpop.f32.mrf.mxu0
      %v2996 = vadd.f32 0.0, %v2995
      %2997 = vmatmul.f32.gmra.mxu0 %v2810
      %v2998 = vpop.f32.mrf.mxu0
      %v2999 = vadd.f32 0.0, %v2998
      %3000 = vmatmul.f32.gmra.mxu0 %v2813
      %v3001 = vpop.f32.mrf.mxu0
      %v3002 = vadd.f32 0.0, %v3001
      %3003 = vmatmul.f32.gmra.mxu0 %v2816
      %v3004 = vpop.f32.mrf.mxu0
      %v3005 = vadd.f32 0.0, %v3004
      %3006 = vmatmul.f32.gmra.mxu0 %v2819
      %v3007 = vpop.f32.mrf.mxu0
      %v3008 = vadd.f32 0.0, %v3007
      %3009 = vmatmul.f32.gmra.mxu0 %v2822
      %v3010 = vpop.f32.mrf.mxu0
      %v3011 = vadd.f32 0.0, %v3010
      %3012 = vmatmul.f32.gmra.mxu0 %v2825
      %v3013 = vpop.f32.mrf.mxu0
      %v3014 = vadd.f32 0.0, %v3013
      %3015 = vmatmul.f32.gmra.mxu0 %v2828
      %v3016 = vpop.f32.mrf.mxu0
      %v3017 = vadd.f32 0.0, %v3016
      %3018 = vmatmul.f32.gmra.mxu0 %v2831
      %v3019 = vpop.f32.mrf.mxu0
      %v3020 = vadd.f32 0.0, %v3019
      %3021 = vmatmul.f32.gmra.mxu0 %v2834
      %v3022 = vpop.f32.mrf.mxu0
      %v3023 = vadd.f32 0.0, %v3022
      %3024 = vmatmul.f32.gmra.mxu0 %v2837
      %v3025 = vpop.f32.mrf.mxu0
      %v3026 = vadd.f32 0.0, %v3025
      %3027 = vmatmul.f32.gmra.mxu0 %v2840
      %v3028 = vpop.f32.mrf.mxu0
      %v3029 = vadd.f32 0.0, %v3028
      %3030 = vmatmul.f32.gmra.mxu0 %v2843
      %v3031 = vpop.f32.mrf.mxu0
      %v3032 = vadd.f32 0.0, %v3031
      %3033 = vmatmul.f32.gmra.mxu0 %v2846
      %v3034 = vpop.f32.mrf.mxu0
      %v3035 = vadd.f32 0.0, %v3034
      %3036 = vmatmul.f32.gmra.mxu0 %v2849
      %v3037 = vpop.f32.mrf.mxu0
      %v3038 = vadd.f32 0.0, %v3037
      %3039 = vmatmul.f32.gmra.mxu0 %v2852
      %v3040 = vpop.f32.mrf.mxu0
      %v3041 = vadd.f32 0.0, %v3040
      %3042 = vmatmul.f32.gmra.mxu0 %v2855
      %v3043 = vpop.f32.mrf.mxu0
      %v3044 = vadd.f32 0.0, %v3043
      %3045 = vmatmul.f32.gmra.mxu0 %v2858
      %v3046 = vpop.f32.mrf.mxu0
      %v3047 = vadd.f32 0.0, %v3046
      %3048 = vmatmul.f32.gmra.mxu0 %v2861
      %v3049 = vpop.f32.mrf.mxu0
      %v3050 = vadd.f32 0.0, %v3049
      %3051 = vmatmul.f32.gmra.mxu0 %v2864
      %v3052 = vpop.f32.mrf.mxu0
      %v3053 = vadd.f32 0.0, %v3052
      %3054 = vmatmul.f32.gmra.mxu0 %v2867
      %v3055 = vpop.f32.mrf.mxu0
      %v3056 = vadd.f32 0.0, %v3055
      %3057 = vmatmul.f32.gmra.mxu0 %v2870
      %v3058 = vpop.f32.mrf.mxu0
      %v3059 = vadd.f32 0.0, %v3058
      %3060 = vmatmul.f32.gmra.mxu0 %v2873
      %v3061 = vpop.f32.mrf.mxu0
      %v3062 = vadd.f32 0.0, %v3061
      %3063 = vmatmul.f32.gmra.mxu0 %v2876
      %v3064 = vpop.f32.mrf.mxu0
      %v3065 = vadd.f32 0.0, %v3064
      %3066 = vmatmul.f32.gmra.mxu0 %v2879
      %v3067 = vpop.f32.mrf.mxu0
      %v3068 = vadd.f32 0.0, %v3067
      %3069 = vmatmul.f32.gmra.mxu0 %v2882
      %v3070 = vpop.f32.mrf.mxu0
      %v3071 = vadd.f32 0.0, %v3070
      %3072 = vmatmul.f32.gmra.mxu0 %v2885
      %v3073 = vpop.f32.mrf.mxu0
      %v3074 = vadd.f32 0.0, %v3073
      %3075 = vmatmul.f32.gmra.mxu0 %v2888
      %v3076 = vpop.f32.mrf.mxu0
      %v3077 = vadd.f32 0.0, %v3076
      %3078 = vmatmul.f32.gmra.mxu0 %v2891
      %v3079 = vpop.f32.mrf.mxu0
      %v3080 = vadd.f32 0.0, %v3079
      %3081 = vmatmul.f32.gmra.mxu0 %v2894
      %v3082 = vpop.f32.mrf.mxu0
      %v3083 = vadd.f32 0.0, %v3082
      %3084 = vmatmul.f32.gmra.mxu0 %v2897
      %v3085 = vpop.f32.mrf.mxu0
      %v3086 = vadd.f32 0.0, %v3085
      %3087 = vmatmul.f32.gmra.mxu0 %v2900
      %v3088 = vpop.f32.mrf.mxu0
      %v3089 = vadd.f32 0.0, %v3088
      %3090 = vmatmul.f32.gmra.mxu0 %v2903
      %v3091 = vpop.f32.mrf.mxu0
      %v3092 = vadd.f32 0.0, %v3091
      %3093 = vmatmul.f32.gmra.mxu0 %v2906
      %v3094 = vpop.f32.mrf.mxu0
      %v3095 = vadd.f32 0.0, %v3094
      %3096 = vmatmul.f32.gmra.mxu0 %v2909
      %v3097 = vpop.f32.mrf.mxu0
      %v3098 = vadd.f32 0.0, %v3097
      %3099 = vmatmul.f32.gmra.mxu0 %v2912
      %v3100 = vpop.f32.mrf.mxu0
      %v3101 = vadd.f32 0.0, %v3100
      %3102 = vmatmul.f32.gmra.mxu0 %v2915
      %v3103 = vpop.f32.mrf.mxu0
      %v3104 = vadd.f32 0.0, %v3103
      %3105 = vmatmul.f32.gmra.mxu0 %v2918
      %v3106 = vpop.f32.mrf.mxu0
      %v3107 = vadd.f32 0.0, %v3106
      %3108 = vmatmul.f32.gmra.mxu0 %v2921
      %v3109 = vpop.f32.mrf.mxu0
      %v3110 = vadd.f32 0.0, %v3109
      %3111 = vmatmul.f32.gmra.mxu0 %v2924
      %v3112 = vpop.f32.mrf.mxu0
      %v3113 = vadd.f32 0.0, %v3112
      %3114 = vmatmul.f32.gmra.mxu0 %v2927
      %v3115 = vpop.f32.mrf.mxu0
      %v3116 = vadd.f32 0.0, %v3115
      %3117 = vmatmul.f32.gmra.mxu0 %v2930
      %v3118 = vpop.f32.mrf.mxu0
      %v3119 = vadd.f32 0.0, %v3118
      %3120 = vmatmul.f32.gmra.mxu0 %v2933
      %v3121 = vpop.f32.mrf.mxu0
      %v3122 = vadd.f32 0.0, %v3121
      %3123 = vmatmul.f32.gmra.mxu0 %v2936
      %v3124 = vpop.f32.mrf.mxu0
      %v3125 = vadd.f32 0.0, %v3124
      %3126 = vmatmul.f32.gmra.mxu0 %v2939
      %v3127 = vpop.f32.mrf.mxu0
      %v3128 = vadd.f32 0.0, %v3127
      %3129 = vdwg.mxu0
      %v3130 = vmin.f32 %v2963, 20.0
      %v3131 = vmin.f32 %v2966, 20.0
      %v3132 = vmin.f32 %v2969, 20.0
      %v3133 = vmin.f32 %v2972, 20.0
      %v3134 = vmin.f32 %v2975, 20.0
      %v3135 = vmin.f32 %v2978, 20.0
      %v3136 = vmin.f32 %v2981, 20.0
      %v3137 = vmin.f32 %v2984, 20.0
      %v3138 = vmin.f32 %v2987, 20.0
      %v3139 = vmin.f32 %v2990, 20.0
      %v3140 = vmin.f32 %v2993, 20.0
      %v3141 = vmin.f32 %v2996, 20.0
      %v3142 = vmin.f32 %v2999, 20.0
      %v3143 = vmin.f32 %v3002, 20.0
      %v3144 = vmin.f32 %v3005, 20.0
      %v3145 = vmin.f32 %v3008, 20.0
      %v3146 = vmin.f32 %v3011, 20.0
      %v3147 = vmin.f32 %v3014, 20.0
      %v3148 = vmin.f32 %v3017, 20.0
      %v3149 = vmin.f32 %v3020, 20.0
      %v3150 = vmin.f32 %v3023, 20.0
      %v3151 = vmin.f32 %v3026, 20.0
      %v3152 = vmin.f32 %v3029, 20.0
      %v3153 = vmin.f32 %v3032, 20.0
      %v3154 = vmin.f32 %v3035, 20.0
      %v3155 = vmin.f32 %v3038, 20.0
      %v3156 = vmin.f32 %v3041, 20.0
      %v3157 = vmin.f32 %v3044, 20.0
      %v3158 = vmin.f32 %v3047, 20.0
      %v3159 = vmin.f32 %v3050, 20.0
      %v3160 = vmin.f32 %v3053, 20.0
      %v3161 = vmin.f32 %v3056, 20.0
      %v3162 = vmin.f32 %v3059, 20.0
      %v3163 = vmin.f32 %v3062, 20.0
      %v3164 = vmin.f32 %v3065, 20.0
      %v3165 = vmin.f32 %v3068, 20.0
      %v3166 = vmin.f32 %v3071, 20.0
      %v3167 = vmin.f32 %v3074, 20.0
      %v3168 = vmin.f32 %v3077, 20.0
      %v3169 = vmin.f32 %v3080, 20.0
      %v3170 = vmin.f32 %v3083, 20.0
      %v3171 = vmin.f32 %v3086, 20.0
      %v3172 = vmin.f32 %v3089, 20.0
      %v3173 = vmin.f32 %v3092, 20.0
      %v3174 = vmin.f32 %v3095, 20.0
      %v3175 = vmin.f32 %v3098, 20.0
      %v3176 = vmin.f32 %v3101, 20.0
      %v3177 = vmin.f32 %v3104, 20.0
      %v3178 = vmin.f32 %v3107, 20.0
      %v3179 = vmin.f32 %v3110, 20.0
      %v3180 = vmin.f32 %v3113, 20.0
      %v3181 = vmin.f32 %v3116, 20.0
      %v3182 = vmin.f32 %v3119, 20.0
      %v3183 = vmin.f32 %v3122, 20.0
      %v3184 = vmin.f32 %v3125, 20.0
      %v3185 = vmin.f32 %v3128, 20.0
      %v3186 = vmul.f32 %v3130, 1.442695
      %v3187 = vpow.pop %v3186
      %v3188 = vmul.f32 %v3131, 1.442695
      %v3189 = vpow.pop %v3188
      %v3190 = vmul.f32 %v3132, 1.442695
      %v3191 = vpow.pop %v3190
      %v3192 = vmul.f32 %v3133, 1.442695
      %v3193 = vpow.pop %v3192
      %v3194 = vmul.f32 %v3134, 1.442695
      %v3195 = vpow.pop %v3194
      %v3196 = vmul.f32 %v3135, 1.442695
      %v3197 = vpow.pop %v3196
      %v3198 = vmul.f32 %v3136, 1.442695
      %v3199 = vpow.pop %v3198
      %v3200 = vmul.f32 %v3137, 1.442695
      %v3201 = vpow.pop %v3200
      %v3202 = vmul.f32 %v3138, 1.442695
      %v3203 = vpow.pop %v3202
      %v3204 = vmul.f32 %v3139, 1.442695
      %v3205 = vpow.pop %v3204
      %v3206 = vmul.f32 %v3140, 1.442695
      %v3207 = vpow.pop %v3206
      %v3208 = vmul.f32 %v3141, 1.442695
      %v3209 = vpow.pop %v3208
      %v3210 = vmul.f32 %v3142, 1.442695
      %v3211 = vpow.pop %v3210
      %v3212 = vmul.f32 %v3143, 1.442695
      %v3213 = vpow.pop %v3212
      %v3214 = vmul.f32 %v3144, 1.442695
      %v3215 = vpow.pop %v3214
      %v3216 = vmul.f32 %v3145, 1.442695
      %v3217 = vpow.pop %v3216
      %v3218 = vmul.f32 %v3146, 1.442695
      %v3219 = vpow.pop %v3218
      %v3220 = vmul.f32 %v3147, 1.442695
      %v3221 = vpow.pop %v3220
      %v3222 = vmul.f32 %v3148, 1.442695
      %v3223 = vpow.pop %v3222
      %v3224 = vmul.f32 %v3149, 1.442695
      %v3225 = vpow.pop %v3224
      %v3226 = vmul.f32 %v3150, 1.442695
      %v3227 = vpow.pop %v3226
      %v3228 = vmul.f32 %v3151, 1.442695
      %v3229 = vpow.pop %v3228
      %v3230 = vmul.f32 %v3152, 1.442695
      %v3231 = vpow.pop %v3230
      %v3232 = vmul.f32 %v3153, 1.442695
      %v3233 = vpow.pop %v3232
      %v3234 = vmul.f32 %v3154, 1.442695
      %v3235 = vpow.pop %v3234
      %v3236 = vmul.f32 %v3155, 1.442695
      %v3237 = vpow.pop %v3236
      %v3238 = vmul.f32 %v3156, 1.442695
      %v3239 = vpow.pop %v3238
      %v3240 = vmul.f32 %v3157, 1.442695
      %v3241 = vpow.pop %v3240
      %v3242 = vmul.f32 %v3158, 1.442695
      %v3243 = vpow.pop %v3242
      %v3244 = vmul.f32 %v3159, 1.442695
      %v3245 = vpow.pop %v3244
      %v3246 = vmul.f32 %v3160, 1.442695
      %v3247 = vpow.pop %v3246
      %v3248 = vmul.f32 %v3161, 1.442695
      %v3249 = vpow.pop %v3248
      %v3250 = vmul.f32 %v3162, 1.442695
      %v3251 = vpow.pop %v3250
      %v3252 = vmul.f32 %v3163, 1.442695
      %v3253 = vpow.pop %v3252
      %v3254 = vmul.f32 %v3164, 1.442695
      %v3255 = vpow.pop %v3254
      %v3256 = vmul.f32 %v3165, 1.442695
      %v3257 = vpow.pop %v3256
      %v3258 = vmul.f32 %v3166, 1.442695
      %v3259 = vpow.pop %v3258
      %v3260 = vmul.f32 %v3167, 1.442695
      %v3261 = vpow.pop %v3260
      %v3262 = vmul.f32 %v3168, 1.442695
      %v3263 = vpow.pop %v3262
      %v3264 = vmul.f32 %v3169, 1.442695
      %v3265 = vpow.pop %v3264
      %v3266 = vmul.f32 %v3170, 1.442695
      %v3267 = vpow.pop %v3266
      %v3268 = vmul.f32 %v3171, 1.442695
      %v3269 = vpow.pop %v3268
      %v3270 = vmul.f32 %v3172, 1.442695
      %v3271 = vpow.pop %v3270
      %v3272 = vmul.f32 %v3173, 1.442695
      %v3273 = vpow.pop %v3272
      %v3274 = vmul.f32 %v3174, 1.442695
      %v3275 = vpow.pop %v3274
      %v3276 = vmul.f32 %v3175, 1.442695
      %v3277 = vpow.pop %v3276
      %v3278 = vmul.f32 %v3176, 1.442695
      %v3279 = vpow.pop %v3278
      %v3280 = vmul.f32 %v3177, 1.442695
      %v3281 = vpow.pop %v3280
      %v3282 = vmul.f32 %v3178, 1.442695
      %v3283 = vpow.pop %v3282
      %v3284 = vmul.f32 %v3179, 1.442695
      %v3285 = vpow.pop %v3284
      %v3286 = vmul.f32 %v3180, 1.442695
      %v3287 = vpow.pop %v3286
      %v3288 = vmul.f32 %v3181, 1.442695
      %v3289 = vpow.pop %v3288
      %v3290 = vmul.f32 %v3182, 1.442695
      %v3291 = vpow.pop %v3290
      %v3292 = vmul.f32 %v3183, 1.442695
      %v3293 = vpow.pop %v3292
      %v3294 = vmul.f32 %v3184, 1.442695
      %v3295 = vpow.pop %v3294
      %v3296 = vmul.f32 %v3185, 1.442695
      %v3297 = vpow.pop %v3296
      %v3298 = vadd.f32 %v3187, 2.0
      %v3299 = vadd.f32 %v3189, 2.0
      %v3300 = vadd.f32 %v3191, 2.0
      %v3301 = vadd.f32 %v3193, 2.0
      %v3302 = vadd.f32 %v3195, 2.0
      %v3303 = vadd.f32 %v3197, 2.0
      %v3304 = vadd.f32 %v3199, 2.0
      %v3305 = vadd.f32 %v3201, 2.0
      %v3306 = vadd.f32 %v3203, 2.0
      %v3307 = vadd.f32 %v3205, 2.0
      %v3308 = vadd.f32 %v3207, 2.0
      %v3309 = vadd.f32 %v3209, 2.0
      %v3310 = vadd.f32 %v3211, 2.0
      %v3311 = vadd.f32 %v3213, 2.0
      %v3312 = vadd.f32 %v3215, 2.0
      %v3313 = vadd.f32 %v3217, 2.0
      %v3314 = vadd.f32 %v3219, 2.0
      %v3315 = vadd.f32 %v3221, 2.0
      %v3316 = vadd.f32 %v3223, 2.0
      %v3317 = vadd.f32 %v3225, 2.0
      %v3318 = vadd.f32 %v3227, 2.0
      %v3319 = vadd.f32 %v3229, 2.0
      %v3320 = vadd.f32 %v3231, 2.0
      %v3321 = vadd.f32 %v3233, 2.0
      %v3322 = vadd.f32 %v3235, 2.0
      %v3323 = vadd.f32 %v3237, 2.0
      %v3324 = vadd.f32 %v3239, 2.0
      %v3325 = vadd.f32 %v3241, 2.0
      %v3326 = vadd.f32 %v3243, 2.0
      %v3327 = vadd.f32 %v3245, 2.0
      %v3328 = vadd.f32 %v3247, 2.0
      %v3329 = vadd.f32 %v3249, 2.0
      %v3330 = vadd.f32 %v3251, 2.0
      %v3331 = vadd.f32 %v3253, 2.0
      %v3332 = vadd.f32 %v3255, 2.0
      %v3333 = vadd.f32 %v3257, 2.0
      %v3334 = vadd.f32 %v3259, 2.0
      %v3335 = vadd.f32 %v3261, 2.0
      %v3336 = vadd.f32 %v3263, 2.0
      %v3337 = vadd.f32 %v3265, 2.0
      %v3338 = vadd.f32 %v3267, 2.0
      %v3339 = vadd.f32 %v3269, 2.0
      %v3340 = vadd.f32 %v3271, 2.0
      %v3341 = vadd.f32 %v3273, 2.0
      %v3342 = vadd.f32 %v3275, 2.0
      %v3343 = vadd.f32 %v3277, 2.0
      %v3344 = vadd.f32 %v3279, 2.0
      %v3345 = vadd.f32 %v3281, 2.0
      %v3346 = vadd.f32 %v3283, 2.0
      %v3347 = vadd.f32 %v3285, 2.0
      %v3348 = vadd.f32 %v3287, 2.0
      %v3349 = vadd.f32 %v3289, 2.0
      %v3350 = vadd.f32 %v3291, 2.0
      %v3351 = vadd.f32 %v3293, 2.0
      %v3352 = vadd.f32 %v3295, 2.0
      %v3353 = vadd.f32 %v3297, 2.0
      %v3354 = vmul.f32 %v3187, %v3298
      %v3355 = vmul.f32 %v3189, %v3299
      %v3356 = vmul.f32 %v3191, %v3300
      %v3357 = vmul.f32 %v3193, %v3301
      %v3358 = vmul.f32 %v3195, %v3302
      %v3359 = vmul.f32 %v3197, %v3303
      %v3360 = vmul.f32 %v3199, %v3304
      %v3361 = vmul.f32 %v3201, %v3305
      %v3362 = vmul.f32 %v3203, %v3306
      %v3363 = vmul.f32 %v3205, %v3307
      %v3364 = vmul.f32 %v3207, %v3308
      %v3365 = vmul.f32 %v3209, %v3309
      %v3366 = vmul.f32 %v3211, %v3310
      %v3367 = vmul.f32 %v3213, %v3311
      %v3368 = vmul.f32 %v3215, %v3312
      %v3369 = vmul.f32 %v3217, %v3313
      %v3370 = vmul.f32 %v3219, %v3314
      %v3371 = vmul.f32 %v3221, %v3315
      %v3372 = vmul.f32 %v3223, %v3316
      %v3373 = vmul.f32 %v3225, %v3317
      %v3374 = vmul.f32 %v3227, %v3318
      %v3375 = vmul.f32 %v3229, %v3319
      %v3376 = vmul.f32 %v3231, %v3320
      %v3377 = vmul.f32 %v3233, %v3321
      %v3378 = vmul.f32 %v3235, %v3322
      %v3379 = vmul.f32 %v3237, %v3323
      %v3380 = vmul.f32 %v3239, %v3324
      %v3381 = vmul.f32 %v3241, %v3325
      %v3382 = vmul.f32 %v3243, %v3326
      %v3383 = vmul.f32 %v3245, %v3327
      %v3384 = vmul.f32 %v3247, %v3328
      %v3385 = vmul.f32 %v3249, %v3329
      %v3386 = vmul.f32 %v3251, %v3330
      %v3387 = vmul.f32 %v3253, %v3331
      %v3388 = vmul.f32 %v3255, %v3332
      %v3389 = vmul.f32 %v3257, %v3333
      %v3390 = vmul.f32 %v3259, %v3334
      %v3391 = vmul.f32 %v3261, %v3335
      %v3392 = vmul.f32 %v3263, %v3336
      %v3393 = vmul.f32 %v3265, %v3337
      %v3394 = vmul.f32 %v3267, %v3338
      %v3395 = vmul.f32 %v3269, %v3339
      %v3396 = vmul.f32 %v3271, %v3340
      %v3397 = vmul.f32 %v3273, %v3341
      %v3398 = vmul.f32 %v3275, %v3342
      %v3399 = vmul.f32 %v3277, %v3343
      %v3400 = vmul.f32 %v3279, %v3344
      %v3401 = vmul.f32 %v3281, %v3345
      %v3402 = vmul.f32 %v3283, %v3346
      %v3403 = vmul.f32 %v3285, %v3347
      %v3404 = vmul.f32 %v3287, %v3348
      %v3405 = vmul.f32 %v3289, %v3349
      %v3406 = vmul.f32 %v3291, %v3350
      %v3407 = vmul.f32 %v3293, %v3351
      %v3408 = vmul.f32 %v3295, %v3352
      %v3409 = vmul.f32 %v3297, %v3353
      %v3410 = vadd.f32 %v3354, 2.0
      %v3411 = vadd.f32 %v3355, 2.0
      %v3412 = vadd.f32 %v3356, 2.0
      %v3413 = vadd.f32 %v3357, 2.0
      %v3414 = vadd.f32 %v3358, 2.0
      %v3415 = vadd.f32 %v3359, 2.0
      %v3416 = vadd.f32 %v3360, 2.0
      %v3417 = vadd.f32 %v3361, 2.0
      %v3418 = vadd.f32 %v3362, 2.0
      %v3419 = vadd.f32 %v3363, 2.0
      %v3420 = vadd.f32 %v3364, 2.0
      %v3421 = vadd.f32 %v3365, 2.0
      %v3422 = vadd.f32 %v3366, 2.0
      %v3423 = vadd.f32 %v3367, 2.0
      %v3424 = vadd.f32 %v3368, 2.0
      %v3425 = vadd.f32 %v3369, 2.0
      %v3426 = vadd.f32 %v3370, 2.0
      %v3427 = vadd.f32 %v3371, 2.0
      %v3428 = vadd.f32 %v3372, 2.0
      %v3429 = vadd.f32 %v3373, 2.0
      %v3430 = vadd.f32 %v3374, 2.0
      %v3431 = vadd.f32 %v3375, 2.0
      %v3432 = vadd.f32 %v3376, 2.0
      %v3433 = vadd.f32 %v3377, 2.0
      %v3434 = vadd.f32 %v3378, 2.0
      %v3435 = vadd.f32 %v3379, 2.0
      %v3436 = vadd.f32 %v3380, 2.0
      %v3437 = vadd.f32 %v3381, 2.0
      %v3438 = vadd.f32 %v3382, 2.0
      %v3439 = vadd.f32 %v3383, 2.0
      %v3440 = vadd.f32 %v3384, 2.0
      %v3441 = vadd.f32 %v3385, 2.0
      %v3442 = vadd.f32 %v3386, 2.0
      %v3443 = vadd.f32 %v3387, 2.0
      %v3444 = vadd.f32 %v3388, 2.0
      %v3445 = vadd.f32 %v3389, 2.0
      %v3446 = vadd.f32 %v3390, 2.0
      %v3447 = vadd.f32 %v3391, 2.0
      %v3448 = vadd.f32 %v3392, 2.0
      %v3449 = vadd.f32 %v3393, 2.0
      %v3450 = vadd.f32 %v3394, 2.0
      %v3451 = vadd.f32 %v3395, 2.0
      %v3452 = vadd.f32 %v3396, 2.0
      %v3453 = vadd.f32 %v3397, 2.0
      %v3454 = vadd.f32 %v3398, 2.0
      %v3455 = vadd.f32 %v3399, 2.0
      %v3456 = vadd.f32 %v3400, 2.0
      %v3457 = vadd.f32 %v3401, 2.0
      %v3458 = vadd.f32 %v3402, 2.0
      %v3459 = vadd.f32 %v3403, 2.0
      %v3460 = vadd.f32 %v3404, 2.0
      %v3461 = vadd.f32 %v3405, 2.0
      %v3462 = vadd.f32 %v3406, 2.0
      %v3463 = vadd.f32 %v3407, 2.0
      %v3464 = vadd.f32 %v3408, 2.0
      %v3465 = vadd.f32 %v3409, 2.0
      %v3466 = vrcp.pop %v3410
      %v3467 = vrcp.pop %v3411
      %v3468 = vrcp.pop %v3412
      %v3469 = vrcp.pop %v3413
      %v3470 = vrcp.pop %v3414
      %v3471 = vrcp.pop %v3415
      %v3472 = vrcp.pop %v3416
      %v3473 = vrcp.pop %v3417
      %v3474 = vrcp.pop %v3418
      %v3475 = vrcp.pop %v3419
      %v3476 = vrcp.pop %v3420
      %v3477 = vrcp.pop %v3421
      %v3478 = vrcp.pop %v3422
      %v3479 = vrcp.pop %v3423
      %v3480 = vrcp.pop %v3424
      %v3481 = vrcp.pop %v3425
      %v3482 = vrcp.pop %v3426
      %v3483 = vrcp.pop %v3427
      %v3484 = vrcp.pop %v3428
      %v3485 = vrcp.pop %v3429
      %v3486 = vrcp.pop %v3430
      %v3487 = vrcp.pop %v3431
      %v3488 = vrcp.pop %v3432
      %v3489 = vrcp.pop %v3433
      %v3490 = vrcp.pop %v3434
      %v3491 = vrcp.pop %v3435
      %v3492 = vrcp.pop %v3436
      %v3493 = vrcp.pop %v3437
      %v3494 = vrcp.pop %v3438
      %v3495 = vrcp.pop %v3439
      %v3496 = vrcp.pop %v3440
      %v3497 = vrcp.pop %v3441
      %v3498 = vrcp.pop %v3442
      %v3499 = vrcp.pop %v3443
      %v3500 = vrcp.pop %v3444
      %v3501 = vrcp.pop %v3445
      %v3502 = vrcp.pop %v3446
      %v3503 = vrcp.pop %v3447
      %v3504 = vrcp.pop %v3448
      %v3505 = vrcp.pop %v3449
      %v3506 = vrcp.pop %v3450
      %v3507 = vrcp.pop %v3451
      %v3508 = vrcp.pop %v3452
      %v3509 = vrcp.pop %v3453
      %v3510 = vrcp.pop %v3454
      %v3511 = vrcp.pop %v3455
      %v3512 = vrcp.pop %v3456
      %v3513 = vrcp.pop %v3457
      %v3514 = vrcp.pop %v3458
      %v3515 = vrcp.pop %v3459
      %v3516 = vrcp.pop %v3460
      %v3517 = vrcp.pop %v3461
      %v3518 = vrcp.pop %v3462
      %v3519 = vrcp.pop %v3463
      %v3520 = vrcp.pop %v3464
      %v3521 = vrcp.pop %v3465
      %v3522 = vmul.f32 %v3354, %v3466
      %v3523 = vmul.f32 %v3355, %v3467
      %v3524 = vmul.f32 %v3356, %v3468
      %v3525 = vmul.f32 %v3357, %v3469
      %v3526 = vmul.f32 %v3358, %v3470
      %v3527 = vmul.f32 %v3359, %v3471
      %v3528 = vmul.f32 %v3360, %v3472
      %v3529 = vmul.f32 %v3361, %v3473
      %v3530 = vmul.f32 %v3362, %v3474
      %v3531 = vmul.f32 %v3363, %v3475
      %v3532 = vmul.f32 %v3364, %v3476
      %v3533 = vmul.f32 %v3365, %v3477
      %v3534 = vmul.f32 %v3366, %v3478
      %v3535 = vmul.f32 %v3367, %v3479
      %v3536 = vmul.f32 %v3368, %v3480
      %v3537 = vmul.f32 %v3369, %v3481
      %v3538 = vmul.f32 %v3370, %v3482
      %v3539 = vmul.f32 %v3371, %v3483
      %v3540 = vmul.f32 %v3372, %v3484
      %v3541 = vmul.f32 %v3373, %v3485
      %v3542 = vmul.f32 %v3374, %v3486
      %v3543 = vmul.f32 %v3375, %v3487
      %v3544 = vmul.f32 %v3376, %v3488
      %v3545 = vmul.f32 %v3377, %v3489
      %v3546 = vmul.f32 %v3378, %v3490
      %v3547 = vmul.f32 %v3379, %v3491
      %v3548 = vmul.f32 %v3380, %v3492
      %v3549 = vmul.f32 %v3381, %v3493
      %v3550 = vmul.f32 %v3382, %v3494
      %v3551 = vmul.f32 %v3383, %v3495
      %v3552 = vmul.f32 %v3384, %v3496
      %v3553 = vmul.f32 %v3385, %v3497
      %v3554 = vmul.f32 %v3386, %v3498
      %v3555 = vmul.f32 %v3387, %v3499
      %v3556 = vmul.f32 %v3388, %v3500
      %v3557 = vmul.f32 %v3389, %v3501
      %v3558 = vmul.f32 %v3390, %v3502
      %v3559 = vmul.f32 %v3391, %v3503
      %v3560 = vmul.f32 %v3392, %v3504
      %v3561 = vmul.f32 %v3393, %v3505
      %v3562 = vmul.f32 %v3394, %v3506
      %v3563 = vmul.f32 %v3395, %v3507
      %v3564 = vmul.f32 %v3396, %v3508
      %v3565 = vmul.f32 %v3397, %v3509
      %v3566 = vmul.f32 %v3398, %v3510
      %v3567 = vmul.f32 %v3399, %v3511
      %v3568 = vmul.f32 %v3400, %v3512
      %v3569 = vmul.f32 %v3401, %v3513
      %v3570 = vmul.f32 %v3402, %v3514
      %v3571 = vmul.f32 %v3403, %v3515
      %v3572 = vmul.f32 %v3404, %v3516
      %v3573 = vmul.f32 %v3405, %v3517
      %v3574 = vmul.f32 %v3406, %v3518
      %v3575 = vmul.f32 %v3407, %v3519
      %v3576 = vmul.f32 %v3408, %v3520
      %v3577 = vmul.f32 %v3409, %v3521
      %v3578 = vmul.f32 %v2963, %v3522
      %v3579 = vmul.f32 %v2966, %v3523
      %v3580 = vmul.f32 %v2969, %v3524
      %v3581 = vmul.f32 %v2972, %v3525
      %v3582 = vmul.f32 %v2975, %v3526
      %v3583 = vmul.f32 %v2978, %v3527
      %v3584 = vmul.f32 %v2981, %v3528
      %v3585 = vmul.f32 %v2984, %v3529
      %v3586 = vmul.f32 %v2987, %v3530
      %v3587 = vmul.f32 %v2990, %v3531
      %v3588 = vmul.f32 %v2993, %v3532
      %v3589 = vmul.f32 %v2996, %v3533
      %v3590 = vmul.f32 %v2999, %v3534
      %v3591 = vmul.f32 %v3002, %v3535
      %v3592 = vmul.f32 %v3005, %v3536
      %v3593 = vmul.f32 %v3008, %v3537
      %v3594 = vmul.f32 %v3011, %v3538
      %v3595 = vmul.f32 %v3014, %v3539
      %v3596 = vmul.f32 %v3017, %v3540
      %v3597 = vmul.f32 %v3020, %v3541
      %v3598 = vmul.f32 %v3023, %v3542
      %v3599 = vmul.f32 %v3026, %v3543
      %v3600 = vmul.f32 %v3029, %v3544
      %v3601 = vmul.f32 %v3032, %v3545
      %v3602 = vmul.f32 %v3035, %v3546
      %v3603 = vmul.f32 %v3038, %v3547
      %v3604 = vmul.f32 %v3041, %v3548
      %v3605 = vmul.f32 %v3044, %v3549
      %v3606 = vmul.f32 %v3047, %v3550
      %v3607 = vmul.f32 %v3050, %v3551
      %v3608 = vmul.f32 %v3053, %v3552
      %v3609 = vmul.f32 %v3056, %v3553
      %v3610 = vmul.f32 %v3059, %v3554
      %v3611 = vmul.f32 %v3062, %v3555
      %v3612 = vmul.f32 %v3065, %v3556
      %v3613 = vmul.f32 %v3068, %v3557
      %v3614 = vmul.f32 %v3071, %v3558
      %v3615 = vmul.f32 %v3074, %v3559
      %v3616 = vmul.f32 %v3077, %v3560
      %v3617 = vmul.f32 %v3080, %v3561
      %v3618 = vmul.f32 %v3083, %v3562
      %v3619 = vmul.f32 %v3086, %v3563
      %v3620 = vmul.f32 %v3089, %v3564
      %v3621 = vmul.f32 %v3092, %v3565
      %v3622 = vmul.f32 %v3095, %v3566
      %v3623 = vmul.f32 %v3098, %v3567
      %v3624 = vmul.f32 %v3101, %v3568
      %v3625 = vmul.f32 %v3104, %v3569
      %v3626 = vmul.f32 %v3107, %v3570
      %v3627 = vmul.f32 %v3110, %v3571
      %v3628 = vmul.f32 %v3113, %v3572
      %v3629 = vmul.f32 %v3116, %v3573
      %v3630 = vmul.f32 %v3119, %v3574
      %v3631 = vmul.f32 %v3122, %v3575
      %v3632 = vmul.f32 %v3125, %v3576
      %v3633 = vmul.f32 %v3128, %v3577
      %s3634 = smul.u32 %s19, 16
      %s3635 = ssub.s32 %s3634, 8
      %v3636 = vstv %s3635
      %v3637 = vadd.s32 %v3636, 1
      %v3638 = vadd.s32 %v3636, 2
      %v3639 = vadd.s32 %v3636, 3
      %v3640 = vadd.s32 %v3636, 4
      %v3641 = vadd.s32 %v3636, 5
      %v3642 = vadd.s32 %v3636, 6
      %v3643 = vadd.s32 %v3636, 7
      %v3644 = vadd.s32 %v3636, 8
      %v3645 = vadd.s32 %v3636, 9
      %v3646 = vadd.s32 %v3636, 10
      %v3647 = vadd.s32 %v3636, 11
      %v3648 = vadd.s32 %v3636, 12
      %v3649 = vadd.s32 %v3636, 13
      %v3650 = vadd.s32 %v3636, 14
      %v3651 = vadd.s32 %v3636, 15
      %v3652 = vadd.s32 %v3636, 16
      %v3653 = vadd.s32 %v3636, 17
      %v3654 = vadd.s32 %v3636, 18
      %v3655 = vadd.s32 %v3636, 19
      %v3656 = vadd.s32 %v3636, 20
      %v3657 = vadd.s32 %v3636, 21
      %v3658 = vadd.s32 %v3636, 22
      %v3659 = vadd.s32 %v3636, 23
      %v3660 = vadd.s32 %v3636, 24
      %v3661 = vadd.s32 %v3636, 25
      %v3662 = vadd.s32 %v3636, 26
      %v3663 = vadd.s32 %v3636, 27
      %vm3664 = vcmp.ge.s32.totalorder %v3636, 0
      %vm3665 = vcmp.ge.s32.totalorder %v3637, 0
      %vm3666 = vcmp.ge.s32.totalorder %v3638, 0
      %vm3667 = vcmp.ge.s32.totalorder %v3639, 0
      %vm3668 = vcmp.ge.s32.totalorder %v3640, 0
      %vm3669 = vcmp.ge.s32.totalorder %v3641, 0
      %vm3670 = vcmp.ge.s32.totalorder %v3642, 0
      %vm3671 = vcmp.ge.s32.totalorder %v3643, 0
      %vm3672 = vcmp.ge.s32.totalorder %v3644, 0
      %vm3673 = vcmp.ge.s32.totalorder %v3645, 0
      %vm3674 = vcmp.ge.s32.totalorder %v3646, 0
      %vm3675 = vcmp.ge.s32.totalorder %v3647, 0
      %vm3676 = vcmp.ge.s32.totalorder %v3648, 0
      %vm3677 = vcmp.ge.s32.totalorder %v3649, 0
      %vm3678 = vcmp.ge.s32.totalorder %v3650, 0
      %vm3679 = vcmp.ge.s32.totalorder %v3651, 0
      %vm3680 = vcmp.ge.s32.totalorder %v3652, 0
      %vm3681 = vcmp.ge.s32.totalorder %v3653, 0
      %vm3682 = vcmp.ge.s32.totalorder %v3654, 0
      %vm3683 = vcmp.ge.s32.totalorder %v3655, 0
      %vm3684 = vcmp.ge.s32.totalorder %v3656, 0
      %vm3685 = vcmp.ge.s32.totalorder %v3657, 0
      %vm3686 = vcmp.ge.s32.totalorder %v3658, 0
      %vm3687 = vcmp.ge.s32.totalorder %v3659, 0
      %vm3688 = vcmp.ge.s32.totalorder %v3660, 0
      %vm3689 = vcmp.ge.s32.totalorder %v3661, 0
      %vm3690 = vcmp.ge.s32.totalorder %v3662, 0
      %vm3691 = vcmp.ge.s32.totalorder %v3663, 0
      %vm3692 = vcmp.lt.s32.totalorder %v3636, 16
      %vm3693 = vcmp.lt.s32.totalorder %v3637, 16
      %vm3694 = vcmp.lt.s32.totalorder %v3638, 16
      %vm3695 = vcmp.lt.s32.totalorder %v3639, 16
      %vm3696 = vcmp.lt.s32.totalorder %v3640, 16
      %vm3697 = vcmp.lt.s32.totalorder %v3641, 16
      %vm3698 = vcmp.lt.s32.totalorder %v3642, 16
      %vm3699 = vcmp.lt.s32.totalorder %v3643, 16
      %vm3700 = vcmp.lt.s32.totalorder %v3644, 16
      %vm3701 = vcmp.lt.s32.totalorder %v3645, 16
      %vm3702 = vcmp.lt.s32.totalorder %v3646, 16
      %vm3703 = vcmp.lt.s32.totalorder %v3647, 16
      %vm3704 = vcmp.lt.s32.totalorder %v3648, 16
      %vm3705 = vcmp.lt.s32.totalorder %v3649, 16
      %vm3706 = vcmp.lt.s32.totalorder %v3650, 16
      %vm3707 = vcmp.lt.s32.totalorder %v3651, 16
      %vm3708 = vcmp.lt.s32.totalorder %v3652, 16
      %vm3709 = vcmp.lt.s32.totalorder %v3653, 16
      %vm3710 = vcmp.lt.s32.totalorder %v3654, 16
      %vm3711 = vcmp.lt.s32.totalorder %v3655, 16
      %vm3712 = vcmp.lt.s32.totalorder %v3656, 16
      %vm3713 = vcmp.lt.s32.totalorder %v3657, 16
      %vm3714 = vcmp.lt.s32.totalorder %v3658, 16
      %vm3715 = vcmp.lt.s32.totalorder %v3659, 16
      %vm3716 = vcmp.lt.s32.totalorder %v3660, 16
      %vm3717 = vcmp.lt.s32.totalorder %v3661, 16
      %vm3718 = vcmp.lt.s32.totalorder %v3662, 16
      %vm3719 = vcmp.lt.s32.totalorder %v3663, 16
      %vm3720 = vmand %vm3664, %vm3692
      %vm3721 = vmand %vm3665, %vm3693
      %vm3722 = vmand %vm3666, %vm3694
      %vm3723 = vmand %vm3667, %vm3695
      %vm3724 = vmand %vm3668, %vm3696
      %vm3725 = vmand %vm3669, %vm3697
      %vm3726 = vmand %vm3670, %vm3698
      %vm3727 = vmand %vm3671, %vm3699
      %vm3728 = vmand %vm3672, %vm3700
      %vm3729 = vmand %vm3673, %vm3701
      %vm3730 = vmand %vm3674, %vm3702
      %vm3731 = vmand %vm3675, %vm3703
      %vm3732 = vmand %vm3676, %vm3704
      %vm3733 = vmand %vm3677, %vm3705
      %vm3734 = vmand %vm3678, %vm3706
      %vm3735 = vmand %vm3679, %vm3707
      %vm3736 = vmand %vm3680, %vm3708
      %vm3737 = vmand %vm3681, %vm3709
      %vm3738 = vmand %vm3682, %vm3710
      %vm3739 = vmand %vm3683, %vm3711
      %vm3740 = vmand %vm3684, %vm3712
      %vm3741 = vmand %vm3685, %vm3713
      %vm3742 = vmand %vm3686, %vm3714
      %vm3743 = vmand %vm3687, %vm3715
      %vm3744 = vmand %vm3688, %vm3716
      %vm3745 = vmand %vm3689, %vm3717
      %vm3746 = vmand %vm3690, %vm3718
      %vm3747 = vmand %vm3691, %vm3719
      %v3748 = vsel %vm3720, 1, 0
      %v3749 = vsel %vm3721, 1, 0
      %v3750 = vsel %vm3722, 1, 0
      %v3751 = vsel %vm3723, 1, 0
      %v3752 = vsel %vm3724, 1, 0
      %v3753 = vsel %vm3725, 1, 0
      %v3754 = vsel %vm3726, 1, 0
      %v3755 = vsel %vm3727, 1, 0
      %v3756 = vsel %vm3728, 1, 0
      %v3757 = vsel %vm3729, 1, 0
      %v3758 = vsel %vm3730, 1, 0
      %v3759 = vsel %vm3731, 1, 0
      %v3760 = vsel %vm3732, 1, 0
      %v3761 = vsel %vm3733, 1, 0
      %v3762 = vsel %vm3734, 1, 0
      %v3763 = vsel %vm3735, 1, 0
      %v3764 = vsel %vm3736, 1, 0
      %v3765 = vsel %vm3737, 1, 0
      %v3766 = vsel %vm3738, 1, 0
      %v3767 = vsel %vm3739, 1, 0
      %v3768 = vsel %vm3740, 1, 0
      %v3769 = vsel %vm3741, 1, 0
      %v3770 = vsel %vm3742, 1, 0
      %v3771 = vsel %vm3743, 1, 0
      %v3772 = vsel %vm3744, 1, 0
      %v3773 = vsel %vm3745, 1, 0
      %v3774 = vsel %vm3746, 1, 0
      %v3775 = vsel %vm3747, 1, 0
      %vm3776 = vcmp.eq.s32.totalorder %v3748, 1
      %vm3777 = vcmp.eq.s32.totalorder %v3749, 1
      %vm3778 = vcmp.eq.s32.totalorder %v3750, 1
      %vm3779 = vcmp.eq.s32.totalorder %v3751, 1
      %vm3780 = vcmp.eq.s32.totalorder %v3752, 1
      %vm3781 = vcmp.eq.s32.totalorder %v3753, 1
      %vm3782 = vcmp.eq.s32.totalorder %v3754, 1
      %vm3783 = vcmp.eq.s32.totalorder %v3755, 1
      %vm3784 = vcmp.eq.s32.totalorder %v3756, 1
      %vm3785 = vcmp.eq.s32.totalorder %v3757, 1
      %vm3786 = vcmp.eq.s32.totalorder %v3758, 1
      %vm3787 = vcmp.eq.s32.totalorder %v3759, 1
      %vm3788 = vcmp.eq.s32.totalorder %v3760, 1
      %vm3789 = vcmp.eq.s32.totalorder %v3761, 1
      %vm3790 = vcmp.eq.s32.totalorder %v3762, 1
      %vm3791 = vcmp.eq.s32.totalorder %v3763, 1
      %vm3792 = vcmp.eq.s32.totalorder %v3764, 1
      %vm3793 = vcmp.eq.s32.totalorder %v3765, 1
      %vm3794 = vcmp.eq.s32.totalorder %v3766, 1
      %vm3795 = vcmp.eq.s32.totalorder %v3767, 1
      %vm3796 = vcmp.eq.s32.totalorder %v3768, 1
      %vm3797 = vcmp.eq.s32.totalorder %v3769, 1
      %vm3798 = vcmp.eq.s32.totalorder %v3770, 1
      %vm3799 = vcmp.eq.s32.totalorder %v3771, 1
      %vm3800 = vcmp.eq.s32.totalorder %v3772, 1
      %vm3801 = vcmp.eq.s32.totalorder %v3773, 1
      %vm3802 = vcmp.eq.s32.totalorder %v3774, 1
      %vm3803 = vcmp.eq.s32.totalorder %v3775, 1
      %v3804 = vsel %vm3776, %v3578, -3e+38
      %v3805 = vsel %vm3776, %v3579, -3e+38
      %v3806 = vsel %vm3777, %v3580, -3e+38
      %v3807 = vsel %vm3777, %v3581, -3e+38
      %v3808 = vsel %vm3778, %v3582, -3e+38
      %v3809 = vsel %vm3778, %v3583, -3e+38
      %v3810 = vsel %vm3779, %v3584, -3e+38
      %v3811 = vsel %vm3779, %v3585, -3e+38
      %v3812 = vsel %vm3780, %v3586, -3e+38
      %v3813 = vsel %vm3780, %v3587, -3e+38
      %v3814 = vsel %vm3781, %v3588, -3e+38
      %v3815 = vsel %vm3781, %v3589, -3e+38
      %v3816 = vsel %vm3782, %v3590, -3e+38
      %v3817 = vsel %vm3782, %v3591, -3e+38
      %v3818 = vsel %vm3783, %v3592, -3e+38
      %v3819 = vsel %vm3783, %v3593, -3e+38
      %v3820 = vsel %vm3784, %v3594, -3e+38
      %v3821 = vsel %vm3784, %v3595, -3e+38
      %v3822 = vsel %vm3785, %v3596, -3e+38
      %v3823 = vsel %vm3785, %v3597, -3e+38
      %v3824 = vsel %vm3786, %v3598, -3e+38
      %v3825 = vsel %vm3786, %v3599, -3e+38
      %v3826 = vsel %vm3787, %v3600, -3e+38
      %v3827 = vsel %vm3787, %v3601, -3e+38
      %v3828 = vsel %vm3788, %v3602, -3e+38
      %v3829 = vsel %vm3788, %v3603, -3e+38
      %v3830 = vsel %vm3789, %v3604, -3e+38
      %v3831 = vsel %vm3789, %v3605, -3e+38
      %v3832 = vsel %vm3790, %v3606, -3e+38
      %v3833 = vsel %vm3790, %v3607, -3e+38
      %v3834 = vsel %vm3791, %v3608, -3e+38
      %v3835 = vsel %vm3791, %v3609, -3e+38
      %v3836 = vsel %vm3792, %v3610, -3e+38
      %v3837 = vsel %vm3792, %v3611, -3e+38
      %v3838 = vsel %vm3793, %v3612, -3e+38
      %v3839 = vsel %vm3793, %v3613, -3e+38
      %v3840 = vsel %vm3794, %v3614, -3e+38
      %v3841 = vsel %vm3794, %v3615, -3e+38
      %v3842 = vsel %vm3795, %v3616, -3e+38
      %v3843 = vsel %vm3795, %v3617, -3e+38
      %v3844 = vsel %vm3796, %v3618, -3e+38
      %v3845 = vsel %vm3796, %v3619, -3e+38
      %v3846 = vsel %vm3797, %v3620, -3e+38
      %v3847 = vsel %vm3797, %v3621, -3e+38
      %v3848 = vsel %vm3798, %v3622, -3e+38
      %v3849 = vsel %vm3798, %v3623, -3e+38
      %v3850 = vsel %vm3799, %v3624, -3e+38
      %v3851 = vsel %vm3799, %v3625, -3e+38
      %v3852 = vsel %vm3800, %v3626, -3e+38
      %v3853 = vsel %vm3800, %v3627, -3e+38
      %v3854 = vsel %vm3801, %v3628, -3e+38
      %v3855 = vsel %vm3801, %v3629, -3e+38
      %v3856 = vsel %vm3802, %v3630, -3e+38
      %v3857 = vsel %vm3802, %v3631, -3e+38
      %v3858 = vsel %vm3803, %v3632, -3e+38
      %v3859 = vsel %vm3803, %v3633, -3e+38
      %v3860 = vmax.f32 %v3804, -3e+38
      %v3861 = vmax.f32 %v3805, -3e+38
      %v3862 = vmax.f32 %v3806, %v3808
      %v3863 = vmax.f32 %v3807, %v3809
      %v3864 = vmax.f32 %v3810, %v3812
      %v3865 = vmax.f32 %v3811, %v3813
      %v3866 = vmax.f32 %v3814, %v3816
      %v3867 = vmax.f32 %v3815, %v3817
      %v3868 = vmax.f32 %v3818, %v3820
      %v3869 = vmax.f32 %v3819, %v3821
      %v3870 = vmax.f32 %v3822, %v3824
      %v3871 = vmax.f32 %v3823, %v3825
      %v3872 = vmax.f32 %v3826, %v3828
      %v3873 = vmax.f32 %v3827, %v3829
      %v3874 = vmax.f32 %v3830, %v3832
      %v3875 = vmax.f32 %v3831, %v3833
      %v3876 = vmax.f32 %v3834, %v3836
      %v3877 = vmax.f32 %v3835, %v3837
      %v3878 = vmax.f32 %v3838, %v3840
      %v3879 = vmax.f32 %v3839, %v3841
      %v3880 = vmax.f32 %v3842, %v3844
      %v3881 = vmax.f32 %v3843, %v3845
      %v3882 = vmax.f32 %v3846, %v3848
      %v3883 = vmax.f32 %v3847, %v3849
      %v3884 = vmax.f32 %v3850, %v3852
      %v3885 = vmax.f32 %v3851, %v3853
      %v3886 = vmax.f32 %v3854, %v3856
      %v3887 = vmax.f32 %v3855, %v3857
      %v3888 = vmax.f32 %v3860, %v3806
      %v3889 = vmax.f32 %v3861, %v3807
      %v3890 = vmax.f32 %v3862, %v3810
      %v3891 = vmax.f32 %v3863, %v3811
      %v3892 = vmax.f32 %v3864, %v3814
      %v3893 = vmax.f32 %v3865, %v3815
      %v3894 = vmax.f32 %v3866, %v3818
      %v3895 = vmax.f32 %v3867, %v3819
      %v3896 = vmax.f32 %v3868, %v3822
      %v3897 = vmax.f32 %v3869, %v3823
      %v3898 = vmax.f32 %v3870, %v3826
      %v3899 = vmax.f32 %v3871, %v3827
      %v3900 = vmax.f32 %v3872, %v3830
      %v3901 = vmax.f32 %v3873, %v3831
      %v3902 = vmax.f32 %v3874, %v3834
      %v3903 = vmax.f32 %v3875, %v3835
      %v3904 = vmax.f32 %v3876, %v3838
      %v3905 = vmax.f32 %v3877, %v3839
      %v3906 = vmax.f32 %v3878, %v3842
      %v3907 = vmax.f32 %v3879, %v3843
      %v3908 = vmax.f32 %v3880, %v3846
      %v3909 = vmax.f32 %v3881, %v3847
      %v3910 = vmax.f32 %v3882, %v3850
      %v3911 = vmax.f32 %v3883, %v3851
      %v3912 = vmax.f32 %v3884, %v3854
      %v3913 = vmax.f32 %v3885, %v3855
      %v3914 = vmax.f32 %v3886, %v3858
      %v3915 = vmax.f32 %v3887, %v3859
      %vm3944 = vcmask 1040384
      %v3945 = vrot.slane %v3888, 7
      %v3946 = vrot.slane %v3889, 7
      %v3947 = vsel %vm3944, %v3945, %v3946
      %v3948 = vrot.slane %v3890, 7
      %v3949 = vrot.slane %v3891, 7
      %v3950 = vsel %vm3944, %v3948, %v3949
      %v3951 = vrot.slane %v3892, 7
      %v3952 = vrot.slane %v3893, 7
      %v3953 = vsel %vm3944, %v3951, %v3952
      %v3954 = vrot.slane %v3894, 7
      %v3955 = vrot.slane %v3895, 7
      %v3956 = vsel %vm3944, %v3954, %v3955
      %v3957 = vrot.slane %v3896, 7
      %v3958 = vrot.slane %v3897, 7
      %v3959 = vsel %vm3944, %v3957, %v3958
      %v3960 = vrot.slane %v3898, 7
      %v3961 = vrot.slane %v3899, 7
      %v3962 = vsel %vm3944, %v3960, %v3961
      %v3963 = vrot.slane %v3900, 7
      %v3964 = vrot.slane %v3901, 7
      %v3965 = vsel %vm3944, %v3963, %v3964
      %v3966 = vrot.slane %v3902, 7
      %v3967 = vrot.slane %v3903, 7
      %v3968 = vsel %vm3944, %v3966, %v3967
      %v3969 = vrot.slane %v3904, 7
      %v3970 = vrot.slane %v3905, 7
      %v3971 = vsel %vm3944, %v3969, %v3970
      %v3972 = vrot.slane %v3906, 7
      %v3973 = vrot.slane %v3907, 7
      %v3974 = vsel %vm3944, %v3972, %v3973
      %v3975 = vrot.slane %v3908, 7
      %v3976 = vrot.slane %v3909, 7
      %v3977 = vsel %vm3944, %v3975, %v3976
      %v3978 = vrot.slane %v3910, 7
      %v3979 = vrot.slane %v3911, 7
      %v3980 = vsel %vm3944, %v3978, %v3979
      %v3981 = vrot.slane %v3912, 7
      %v3982 = vrot.slane %v3913, 7
      %v3983 = vsel %vm3944, %v3981, %v3982
      %v3984 = vrot.slane %v3914, 7
      %v3985 = vrot.slane %v3915, 7
      %v3986 = vsel %vm3944, %v3984, %v3985
      %v4015 = vsel %vm3944, -3e+38, %v3945
      %v4016 = vsel %vm3944, -3e+38, %v3948
      %v4017 = vsel %vm3944, -3e+38, %v3951
      %v4018 = vsel %vm3944, -3e+38, %v3954
      %v4019 = vsel %vm3944, -3e+38, %v3957
      %v4020 = vsel %vm3944, -3e+38, %v3960
      %v4021 = vsel %vm3944, -3e+38, %v3963
      %v4022 = vsel %vm3944, -3e+38, %v3966
      %v4023 = vsel %vm3944, -3e+38, %v3969
      %v4024 = vsel %vm3944, -3e+38, %v3972
      %v4025 = vsel %vm3944, -3e+38, %v3975
      %v4026 = vsel %vm3944, -3e+38, %v3978
      %v4027 = vsel %vm3944, -3e+38, %v3981
      %v4028 = vsel %vm3944, -3e+38, %v3984
      %v4043 = vrot.slane %v4015, 2
      %v4044 = vrot.slane %v4015, 4
      %v4045 = vrot.slane %v4015, 6
      %v4046 = vrot.slane %v3947, 2
      %v4047 = vrot.slane %v3947, 4
      %v4048 = vrot.slane %v3947, 6
      %v4049 = vrot.slane %v4016, 2
      %v4050 = vrot.slane %v4016, 4
      %v4051 = vrot.slane %v4016, 6
      %v4052 = vrot.slane %v3950, 2
      %v4053 = vrot.slane %v3950, 4
      %v4054 = vrot.slane %v3950, 6
      %v4055 = vrot.slane %v4017, 2
      %v4056 = vrot.slane %v4017, 4
      %v4057 = vrot.slane %v4017, 6
      %v4058 = vrot.slane %v3953, 2
      %v4059 = vrot.slane %v3953, 4
      %v4060 = vrot.slane %v3953, 6
      %v4061 = vrot.slane %v4018, 2
      %v4062 = vrot.slane %v4018, 4
      %v4063 = vrot.slane %v4018, 6
      %v4064 = vrot.slane %v3956, 2
      %v4065 = vrot.slane %v3956, 4
      %v4066 = vrot.slane %v3956, 6
      %v4067 = vrot.slane %v4019, 2
      %v4068 = vrot.slane %v4019, 4
      %v4069 = vrot.slane %v4019, 6
      %v4070 = vrot.slane %v3959, 2
      %v4071 = vrot.slane %v3959, 4
      %v4072 = vrot.slane %v3959, 6
      %v4073 = vrot.slane %v4020, 2
      %v4074 = vrot.slane %v4020, 4
      %v4075 = vrot.slane %v4020, 6
      %v4076 = vrot.slane %v3962, 2
      %v4077 = vrot.slane %v3962, 4
      %v4078 = vrot.slane %v3962, 6
      %v4079 = vrot.slane %v4021, 2
      %v4080 = vrot.slane %v4021, 4
      %v4081 = vrot.slane %v4021, 6
      %v4082 = vrot.slane %v3965, 2
      %v4083 = vrot.slane %v3965, 4
      %v4084 = vrot.slane %v3965, 6
      %v4085 = vrot.slane %v4022, 2
      %v4086 = vrot.slane %v4022, 4
      %v4087 = vrot.slane %v4022, 6
      %v4088 = vrot.slane %v3968, 2
      %v4089 = vrot.slane %v3968, 4
      %v4090 = vrot.slane %v3968, 6
      %v4091 = vrot.slane %v4023, 2
      %v4092 = vrot.slane %v4023, 4
      %v4093 = vrot.slane %v4023, 6
      %v4094 = vrot.slane %v3971, 2
      %v4095 = vrot.slane %v3971, 4
      %v4096 = vrot.slane %v3971, 6
      %v4097 = vrot.slane %v4024, 2
      %v4098 = vrot.slane %v4024, 4
      %v4099 = vrot.slane %v4024, 6
      %v4100 = vrot.slane %v3974, 2
      %v4101 = vrot.slane %v3974, 4
      %v4102 = vrot.slane %v3974, 6
      %v4103 = vrot.slane %v4025, 2
      %v4104 = vrot.slane %v4025, 4
      %v4105 = vrot.slane %v4025, 6
      %v4106 = vrot.slane %v3977, 2
      %v4107 = vrot.slane %v3977, 4
      %v4108 = vrot.slane %v3977, 6
      %v4109 = vrot.slane %v4026, 2
      %v4110 = vrot.slane %v4026, 4
      %v4111 = vrot.slane %v4026, 6
      %v4112 = vrot.slane %v3980, 2
      %v4113 = vrot.slane %v3980, 4
      %v4114 = vrot.slane %v3980, 6
      %v4115 = vrot.slane %v4027, 2
      %v4116 = vrot.slane %v4027, 4
      %v4117 = vrot.slane %v4027, 6
      %v4118 = vrot.slane %v3983, 2
      %v4119 = vrot.slane %v3983, 4
      %v4120 = vrot.slane %v3983, 6
      %v4121 = vrot.slane %v4028, 2
      %v4122 = vrot.slane %v4028, 4
      %v4123 = vrot.slane %v4028, 6
      %v4124 = vrot.slane %v3986, 2
      %v4125 = vrot.slane %v3986, 4
      %v4126 = vrot.slane %v3986, 6
      %vm4211 = vcmask 1042434
      %vm4212 = vmor %vm3944, %vm4211
      %vm4213 = vcmask 1044484
      %vm4214 = vmor %vm4212, %vm4213
      %vm4215 = vcmask 1046534
      %vm4216 = vmor %vm4214, %vm4215
      %v4217 = vrot.slane %v4015, 7
      %v4218 = vrot.slane %v4217, 2
      %v4219 = vrot.slane %v4043, 7
      %v4220 = vsel %vm4216, %v4218, %v4219
      %v4221 = vrot.slane %v4219, 2
      %v4222 = vrot.slane %v4044, 7
      %v4223 = vsel %vm4216, %v4221, %v4222
      %v4224 = vrot.slane %v4222, 2
      %v4225 = vrot.slane %v4045, 7
      %v4226 = vsel %vm4216, %v4224, %v4225
      %v4227 = vrot.slane %v4225, 2
      %v4228 = vrot.slane %v3947, 7
      %v4229 = vsel %vm4216, %v4227, %v4228
      %v4230 = vrot.slane %v4228, 2
      %v4231 = vrot.slane %v4046, 7
      %v4232 = vsel %vm4216, %v4230, %v4231
      %v4233 = vrot.slane %v4231, 2
      %v4234 = vrot.slane %v4047, 7
      %v4235 = vsel %vm4216, %v4233, %v4234
      %v4236 = vrot.slane %v4234, 2
      %v4237 = vrot.slane %v4048, 7
      %v4238 = vsel %vm4216, %v4236, %v4237
      %v4239 = vrot.slane %v4237, 2
      %v4240 = vrot.slane %v3946, 7
      %v4241 = vsel %vm4216, %v4239, %v4240
      %v4242 = vrot.slane %v4016, 7
      %v4243 = vrot.slane %v4242, 2
      %v4244 = vrot.slane %v4049, 7
      %v4245 = vsel %vm4216, %v4243, %v4244
      %v4246 = vrot.slane %v4244, 2
      %v4247 = vrot.slane %v4050, 7
      %v4248 = vsel %vm4216, %v4246, %v4247
      %v4249 = vrot.slane %v4247, 2
      %v4250 = vrot.slane %v4051, 7
      %v4251 = vsel %vm4216, %v4249, %v4250
      %v4252 = vrot.slane %v4250, 2
      %v4253 = vrot.slane %v3950, 7
      %v4254 = vsel %vm4216, %v4252, %v4253
      %v4255 = vrot.slane %v4253, 2
      %v4256 = vrot.slane %v4052, 7
      %v4257 = vsel %vm4216, %v4255, %v4256
      %v4258 = vrot.slane %v4256, 2
      %v4259 = vrot.slane %v4053, 7
      %v4260 = vsel %vm4216, %v4258, %v4259
      %v4261 = vrot.slane %v4259, 2
      %v4262 = vrot.slane %v4054, 7
      %v4263 = vsel %vm4216, %v4261, %v4262
      %v4264 = vrot.slane %v4262, 2
      %v4265 = vrot.slane %v3949, 7
      %v4266 = vsel %vm4216, %v4264, %v4265
      %v4267 = vrot.slane %v4017, 7
      %v4268 = vrot.slane %v4267, 2
      %v4269 = vrot.slane %v4055, 7
      %v4270 = vsel %vm4216, %v4268, %v4269
      %v4271 = vrot.slane %v4269, 2
      %v4272 = vrot.slane %v4056, 7
      %v4273 = vsel %vm4216, %v4271, %v4272
      %v4274 = vrot.slane %v4272, 2
      %v4275 = vrot.slane %v4057, 7
      %v4276 = vsel %vm4216, %v4274, %v4275
      %v4277 = vrot.slane %v4275, 2
      %v4278 = vrot.slane %v3953, 7
      %v4279 = vsel %vm4216, %v4277, %v4278
      %v4280 = vrot.slane %v4278, 2
      %v4281 = vrot.slane %v4058, 7
      %v4282 = vsel %vm4216, %v4280, %v4281
      %v4283 = vrot.slane %v4281, 2
      %v4284 = vrot.slane %v4059, 7
      %v4285 = vsel %vm4216, %v4283, %v4284
      %v4286 = vrot.slane %v4284, 2
      %v4287 = vrot.slane %v4060, 7
      %v4288 = vsel %vm4216, %v4286, %v4287
      %v4289 = vrot.slane %v4287, 2
      %v4290 = vrot.slane %v3952, 7
      %v4291 = vsel %vm4216, %v4289, %v4290
      %v4292 = vrot.slane %v4018, 7
      %v4293 = vrot.slane %v4292, 2
      %v4294 = vrot.slane %v4061, 7
      %v4295 = vsel %vm4216, %v4293, %v4294
      %v4296 = vrot.slane %v4294, 2
      %v4297 = vrot.slane %v4062, 7
      %v4298 = vsel %vm4216, %v4296, %v4297
      %v4299 = vrot.slane %v4297, 2
      %v4300 = vrot.slane %v4063, 7
      %v4301 = vsel %vm4216, %v4299, %v4300
      %v4302 = vrot.slane %v4300, 2
      %v4303 = vrot.slane %v3956, 7
      %v4304 = vsel %vm4216, %v4302, %v4303
      %v4305 = vrot.slane %v4303, 2
      %v4306 = vrot.slane %v4064, 7
      %v4307 = vsel %vm4216, %v4305, %v4306
      %v4308 = vrot.slane %v4306, 2
      %v4309 = vrot.slane %v4065, 7
      %v4310 = vsel %vm4216, %v4308, %v4309
      %v4311 = vrot.slane %v4309, 2
      %v4312 = vrot.slane %v4066, 7
      %v4313 = vsel %vm4216, %v4311, %v4312
      %v4314 = vrot.slane %v4312, 2
      %v4315 = vrot.slane %v3955, 7
      %v4316 = vsel %vm4216, %v4314, %v4315
      %v4317 = vrot.slane %v4019, 7
      %v4318 = vrot.slane %v4317, 2
      %v4319 = vrot.slane %v4067, 7
      %v4320 = vsel %vm4216, %v4318, %v4319
      %v4321 = vrot.slane %v4319, 2
      %v4322 = vrot.slane %v4068, 7
      %v4323 = vsel %vm4216, %v4321, %v4322
      %v4324 = vrot.slane %v4322, 2
      %v4325 = vrot.slane %v4069, 7
      %v4326 = vsel %vm4216, %v4324, %v4325
      %v4327 = vrot.slane %v4325, 2
      %v4328 = vrot.slane %v3959, 7
      %v4329 = vsel %vm4216, %v4327, %v4328
      %v4330 = vrot.slane %v4328, 2
      %v4331 = vrot.slane %v4070, 7
      %v4332 = vsel %vm4216, %v4330, %v4331
      %v4333 = vrot.slane %v4331, 2
      %v4334 = vrot.slane %v4071, 7
      %v4335 = vsel %vm4216, %v4333, %v4334
      %v4336 = vrot.slane %v4334, 2
      %v4337 = vrot.slane %v4072, 7
      %v4338 = vsel %vm4216, %v4336, %v4337
      %v4339 = vrot.slane %v4337, 2
      %v4340 = vrot.slane %v3958, 7
      %v4341 = vsel %vm4216, %v4339, %v4340
      %v4342 = vrot.slane %v4020, 7
      %v4343 = vrot.slane %v4342, 2
      %v4344 = vrot.slane %v4073, 7
      %v4345 = vsel %vm4216, %v4343, %v4344
      %v4346 = vrot.slane %v4344, 2
      %v4347 = vrot.slane %v4074, 7
      %v4348 = vsel %vm4216, %v4346, %v4347
      %v4349 = vrot.slane %v4347, 2
      %v4350 = vrot.slane %v4075, 7
      %v4351 = vsel %vm4216, %v4349, %v4350
      %v4352 = vrot.slane %v4350, 2
      %v4353 = vrot.slane %v3962, 7
      %v4354 = vsel %vm4216, %v4352, %v4353
      %v4355 = vrot.slane %v4353, 2
      %v4356 = vrot.slane %v4076, 7
      %v4357 = vsel %vm4216, %v4355, %v4356
      %v4358 = vrot.slane %v4356, 2
      %v4359 = vrot.slane %v4077, 7
      %v4360 = vsel %vm4216, %v4358, %v4359
      %v4361 = vrot.slane %v4359, 2
      %v4362 = vrot.slane %v4078, 7
      %v4363 = vsel %vm4216, %v4361, %v4362
      %v4364 = vrot.slane %v4362, 2
      %v4365 = vrot.slane %v3961, 7
      %v4366 = vsel %vm4216, %v4364, %v4365
      %v4367 = vrot.slane %v4021, 7
      %v4368 = vrot.slane %v4367, 2
      %v4369 = vrot.slane %v4079, 7
      %v4370 = vsel %vm4216, %v4368, %v4369
      %v4371 = vrot.slane %v4369, 2
      %v4372 = vrot.slane %v4080, 7
      %v4373 = vsel %vm4216, %v4371, %v4372
      %v4374 = vrot.slane %v4372, 2
      %v4375 = vrot.slane %v4081, 7
      %v4376 = vsel %vm4216, %v4374, %v4375
      %v4377 = vrot.slane %v4375, 2
      %v4378 = vrot.slane %v3965, 7
      %v4379 = vsel %vm4216, %v4377, %v4378
      %v4380 = vrot.slane %v4378, 2
      %v4381 = vrot.slane %v4082, 7
      %v4382 = vsel %vm4216, %v4380, %v4381
      %v4383 = vrot.slane %v4381, 2
      %v4384 = vrot.slane %v4083, 7
      %v4385 = vsel %vm4216, %v4383, %v4384
      %v4386 = vrot.slane %v4384, 2
      %v4387 = vrot.slane %v4084, 7
      %v4388 = vsel %vm4216, %v4386, %v4387
      %v4389 = vrot.slane %v4387, 2
      %v4390 = vrot.slane %v3964, 7
      %v4391 = vsel %vm4216, %v4389, %v4390
      %v4392 = vrot.slane %v4022, 7
      %v4393 = vrot.slane %v4392, 2
      %v4394 = vrot.slane %v4085, 7
      %v4395 = vsel %vm4216, %v4393, %v4394
      %v4396 = vrot.slane %v4394, 2
      %v4397 = vrot.slane %v4086, 7
      %v4398 = vsel %vm4216, %v4396, %v4397
      %v4399 = vrot.slane %v4397, 2
      %v4400 = vrot.slane %v4087, 7
      %v4401 = vsel %vm4216, %v4399, %v4400
      %v4402 = vrot.slane %v4400, 2
      %v4403 = vrot.slane %v3968, 7
      %v4404 = vsel %vm4216, %v4402, %v4403
      %v4405 = vrot.slane %v4403, 2
      %v4406 = vrot.slane %v4088, 7
      %v4407 = vsel %vm4216, %v4405, %v4406
      %v4408 = vrot.slane %v4406, 2
      %v4409 = vrot.slane %v4089, 7
      %v4410 = vsel %vm4216, %v4408, %v4409
      %v4411 = vrot.slane %v4409, 2
      %v4412 = vrot.slane %v4090, 7
      %v4413 = vsel %vm4216, %v4411, %v4412
      %v4414 = vrot.slane %v4412, 2
      %v4415 = vrot.slane %v3967, 7
      %v4416 = vsel %vm4216, %v4414, %v4415
      %v4417 = vrot.slane %v4023, 7
      %v4418 = vrot.slane %v4417, 2
      %v4419 = vrot.slane %v4091, 7
      %v4420 = vsel %vm4216, %v4418, %v4419
      %v4421 = vrot.slane %v4419, 2
      %v4422 = vrot.slane %v4092, 7
      %v4423 = vsel %vm4216, %v4421, %v4422
      %v4424 = vrot.slane %v4422, 2
      %v4425 = vrot.slane %v4093, 7
      %v4426 = vsel %vm4216, %v4424, %v4425
      %v4427 = vrot.slane %v4425, 2
      %v4428 = vrot.slane %v3971, 7
      %v4429 = vsel %vm4216, %v4427, %v4428
      %v4430 = vrot.slane %v4428, 2
      %v4431 = vrot.slane %v4094, 7
      %v4432 = vsel %vm4216, %v4430, %v4431
      %v4433 = vrot.slane %v4431, 2
      %v4434 = vrot.slane %v4095, 7
      %v4435 = vsel %vm4216, %v4433, %v4434
      %v4436 = vrot.slane %v4434, 2
      %v4437 = vrot.slane %v4096, 7
      %v4438 = vsel %vm4216, %v4436, %v4437
      %v4439 = vrot.slane %v4437, 2
      %v4440 = vrot.slane %v3970, 7
      %v4441 = vsel %vm4216, %v4439, %v4440
      %v4442 = vrot.slane %v4024, 7
      %v4443 = vrot.slane %v4442, 2
      %v4444 = vrot.slane %v4097, 7
      %v4445 = vsel %vm4216, %v4443, %v4444
      %v4446 = vrot.slane %v4444, 2
      %v4447 = vrot.slane %v4098, 7
      %v4448 = vsel %vm4216, %v4446, %v4447
      %v4449 = vrot.slane %v4447, 2
      %v4450 = vrot.slane %v4099, 7
      %v4451 = vsel %vm4216, %v4449, %v4450
      %v4452 = vrot.slane %v4450, 2
      %v4453 = vrot.slane %v3974, 7
      %v4454 = vsel %vm4216, %v4452, %v4453
      %v4455 = vrot.slane %v4453, 2
      %v4456 = vrot.slane %v4100, 7
      %v4457 = vsel %vm4216, %v4455, %v4456
      %v4458 = vrot.slane %v4456, 2
      %v4459 = vrot.slane %v4101, 7
      %v4460 = vsel %vm4216, %v4458, %v4459
      %v4461 = vrot.slane %v4459, 2
      %v4462 = vrot.slane %v4102, 7
      %v4463 = vsel %vm4216, %v4461, %v4462
      %v4464 = vrot.slane %v4462, 2
      %v4465 = vrot.slane %v3973, 7
      %v4466 = vsel %vm4216, %v4464, %v4465
      %v4467 = vrot.slane %v4025, 7
      %v4468 = vrot.slane %v4467, 2
      %v4469 = vrot.slane %v4103, 7
      %v4470 = vsel %vm4216, %v4468, %v4469
      %v4471 = vrot.slane %v4469, 2
      %v4472 = vrot.slane %v4104, 7
      %v4473 = vsel %vm4216, %v4471, %v4472
      %v4474 = vrot.slane %v4472, 2
      %v4475 = vrot.slane %v4105, 7
      %v4476 = vsel %vm4216, %v4474, %v4475
      %v4477 = vrot.slane %v4475, 2
      %v4478 = vrot.slane %v3977, 7
      %v4479 = vsel %vm4216, %v4477, %v4478
      %v4480 = vrot.slane %v4478, 2
      %v4481 = vrot.slane %v4106, 7
      %v4482 = vsel %vm4216, %v4480, %v4481
      %v4483 = vrot.slane %v4481, 2
      %v4484 = vrot.slane %v4107, 7
      %v4485 = vsel %vm4216, %v4483, %v4484
      %v4486 = vrot.slane %v4484, 2
      %v4487 = vrot.slane %v4108, 7
      %v4488 = vsel %vm4216, %v4486, %v4487
      %v4489 = vrot.slane %v4487, 2
      %v4490 = vrot.slane %v3976, 7
      %v4491 = vsel %vm4216, %v4489, %v4490
      %v4492 = vrot.slane %v4026, 7
      %v4493 = vrot.slane %v4492, 2
      %v4494 = vrot.slane %v4109, 7
      %v4495 = vsel %vm4216, %v4493, %v4494
      %v4496 = vrot.slane %v4494, 2
      %v4497 = vrot.slane %v4110, 7
      %v4498 = vsel %vm4216, %v4496, %v4497
      %v4499 = vrot.slane %v4497, 2
      %v4500 = vrot.slane %v4111, 7
      %v4501 = vsel %vm4216, %v4499, %v4500
      %v4502 = vrot.slane %v4500, 2
      %v4503 = vrot.slane %v3980, 7
      %v4504 = vsel %vm4216, %v4502, %v4503
      %v4505 = vrot.slane %v4503, 2
      %v4506 = vrot.slane %v4112, 7
      %v4507 = vsel %vm4216, %v4505, %v4506
      %v4508 = vrot.slane %v4506, 2
      %v4509 = vrot.slane %v4113, 7
      %v4510 = vsel %vm4216, %v4508, %v4509
      %v4511 = vrot.slane %v4509, 2
      %v4512 = vrot.slane %v4114, 7
      %v4513 = vsel %vm4216, %v4511, %v4512
      %v4514 = vrot.slane %v4512, 2
      %v4515 = vrot.slane %v3979, 7
      %v4516 = vsel %vm4216, %v4514, %v4515
      %v4517 = vrot.slane %v4027, 7
      %v4518 = vrot.slane %v4517, 2
      %v4519 = vrot.slane %v4115, 7
      %v4520 = vsel %vm4216, %v4518, %v4519
      %v4521 = vrot.slane %v4519, 2
      %v4522 = vrot.slane %v4116, 7
      %v4523 = vsel %vm4216, %v4521, %v4522
      %v4524 = vrot.slane %v4522, 2
      %v4525 = vrot.slane %v4117, 7
      %v4526 = vsel %vm4216, %v4524, %v4525
      %v4527 = vrot.slane %v4525, 2
      %v4528 = vrot.slane %v3983, 7
      %v4529 = vsel %vm4216, %v4527, %v4528
      %v4530 = vrot.slane %v4528, 2
      %v4531 = vrot.slane %v4118, 7
      %v4532 = vsel %vm4216, %v4530, %v4531
      %v4533 = vrot.slane %v4531, 2
      %v4534 = vrot.slane %v4119, 7
      %v4535 = vsel %vm4216, %v4533, %v4534
      %v4536 = vrot.slane %v4534, 2
      %v4537 = vrot.slane %v4120, 7
      %v4538 = vsel %vm4216, %v4536, %v4537
      %v4539 = vrot.slane %v4537, 2
      %v4540 = vrot.slane %v3982, 7
      %v4541 = vsel %vm4216, %v4539, %v4540
      %v4542 = vrot.slane %v4028, 7
      %v4543 = vrot.slane %v4542, 2
      %v4544 = vrot.slane %v4121, 7
      %v4545 = vsel %vm4216, %v4543, %v4544
      %v4546 = vrot.slane %v4544, 2
      %v4547 = vrot.slane %v4122, 7
      %v4548 = vsel %vm4216, %v4546, %v4547
      %v4549 = vrot.slane %v4547, 2
      %v4550 = vrot.slane %v4123, 7
      %v4551 = vsel %vm4216, %v4549, %v4550
      %v4552 = vrot.slane %v4550, 2
      %v4553 = vrot.slane %v3986, 7
      %v4554 = vsel %vm4216, %v4552, %v4553
      %v4555 = vrot.slane %v4553, 2
      %v4556 = vrot.slane %v4124, 7
      %v4557 = vsel %vm4216, %v4555, %v4556
      %v4558 = vrot.slane %v4556, 2
      %v4559 = vrot.slane %v4125, 7
      %v4560 = vsel %vm4216, %v4558, %v4559
      %v4561 = vrot.slane %v4559, 2
      %v4562 = vrot.slane %v4126, 7
      %v4563 = vsel %vm4216, %v4561, %v4562
      %v4564 = vrot.slane %v4562, 2
      %v4565 = vrot.slane %v3985, 7
      %v4566 = vsel %vm4216, %v4564, %v4565
      %v4679 = vmax.f32 %v4015, %v4220
      %v4680 = vmax.f32 %v4043, %v4223
      %v4681 = vmax.f32 %v4044, %v4226
      %v4682 = vmax.f32 %v4045, %v4229
      %v4683 = vmax.f32 %v3947, %v4232
      %v4684 = vmax.f32 %v4046, %v4235
      %v4685 = vmax.f32 %v4047, %v4238
      %v4686 = vmax.f32 %v4048, %v4241
      %v4687 = vmax.f32 %v4016, %v4245
      %v4688 = vmax.f32 %v4049, %v4248
      %v4689 = vmax.f32 %v4050, %v4251
      %v4690 = vmax.f32 %v4051, %v4254
      %v4691 = vmax.f32 %v3950, %v4257
      %v4692 = vmax.f32 %v4052, %v4260
      %v4693 = vmax.f32 %v4053, %v4263
      %v4694 = vmax.f32 %v4054, %v4266
      %v4695 = vmax.f32 %v4017, %v4270
      %v4696 = vmax.f32 %v4055, %v4273
      %v4697 = vmax.f32 %v4056, %v4276
      %v4698 = vmax.f32 %v4057, %v4279
      %v4699 = vmax.f32 %v3953, %v4282
      %v4700 = vmax.f32 %v4058, %v4285
      %v4701 = vmax.f32 %v4059, %v4288
      %v4702 = vmax.f32 %v4060, %v4291
      %v4703 = vmax.f32 %v4018, %v4295
      %v4704 = vmax.f32 %v4061, %v4298
      %v4705 = vmax.f32 %v4062, %v4301
      %v4706 = vmax.f32 %v4063, %v4304
      %v4707 = vmax.f32 %v3956, %v4307
      %v4708 = vmax.f32 %v4064, %v4310
      %v4709 = vmax.f32 %v4065, %v4313
      %v4710 = vmax.f32 %v4066, %v4316
      %v4711 = vmax.f32 %v4019, %v4320
      %v4712 = vmax.f32 %v4067, %v4323
      %v4713 = vmax.f32 %v4068, %v4326
      %v4714 = vmax.f32 %v4069, %v4329
      %v4715 = vmax.f32 %v3959, %v4332
      %v4716 = vmax.f32 %v4070, %v4335
      %v4717 = vmax.f32 %v4071, %v4338
      %v4718 = vmax.f32 %v4072, %v4341
      %v4719 = vmax.f32 %v4020, %v4345
      %v4720 = vmax.f32 %v4073, %v4348
      %v4721 = vmax.f32 %v4074, %v4351
      %v4722 = vmax.f32 %v4075, %v4354
      %v4723 = vmax.f32 %v3962, %v4357
      %v4724 = vmax.f32 %v4076, %v4360
      %v4725 = vmax.f32 %v4077, %v4363
      %v4726 = vmax.f32 %v4078, %v4366
      %v4727 = vmax.f32 %v4021, %v4370
      %v4728 = vmax.f32 %v4079, %v4373
      %v4729 = vmax.f32 %v4080, %v4376
      %v4730 = vmax.f32 %v4081, %v4379
      %v4731 = vmax.f32 %v3965, %v4382
      %v4732 = vmax.f32 %v4082, %v4385
      %v4733 = vmax.f32 %v4083, %v4388
      %v4734 = vmax.f32 %v4084, %v4391
      %v4735 = vmax.f32 %v4022, %v4395
      %v4736 = vmax.f32 %v4085, %v4398
      %v4737 = vmax.f32 %v4086, %v4401
      %v4738 = vmax.f32 %v4087, %v4404
      %v4739 = vmax.f32 %v3968, %v4407
      %v4740 = vmax.f32 %v4088, %v4410
      %v4741 = vmax.f32 %v4089, %v4413
      %v4742 = vmax.f32 %v4090, %v4416
      %v4743 = vmax.f32 %v4023, %v4420
      %v4744 = vmax.f32 %v4091, %v4423
      %v4745 = vmax.f32 %v4092, %v4426
      %v4746 = vmax.f32 %v4093, %v4429
      %v4747 = vmax.f32 %v3971, %v4432
      %v4748 = vmax.f32 %v4094, %v4435
      %v4749 = vmax.f32 %v4095, %v4438
      %v4750 = vmax.f32 %v4096, %v4441
      %v4751 = vmax.f32 %v4024, %v4445
      %v4752 = vmax.f32 %v4097, %v4448
      %v4753 = vmax.f32 %v4098, %v4451
      %v4754 = vmax.f32 %v4099, %v4454
      %v4755 = vmax.f32 %v3974, %v4457
      %v4756 = vmax.f32 %v4100, %v4460
      %v4757 = vmax.f32 %v4101, %v4463
      %v4758 = vmax.f32 %v4102, %v4466
      %v4759 = vmax.f32 %v4025, %v4470
      %v4760 = vmax.f32 %v4103, %v4473
      %v4761 = vmax.f32 %v4104, %v4476
      %v4762 = vmax.f32 %v4105, %v4479
      %v4763 = vmax.f32 %v3977, %v4482
      %v4764 = vmax.f32 %v4106, %v4485
      %v4765 = vmax.f32 %v4107, %v4488
      %v4766 = vmax.f32 %v4108, %v4491
      %v4767 = vmax.f32 %v4026, %v4495
      %v4768 = vmax.f32 %v4109, %v4498
      %v4769 = vmax.f32 %v4110, %v4501
      %v4770 = vmax.f32 %v4111, %v4504
      %v4771 = vmax.f32 %v3980, %v4507
      %v4772 = vmax.f32 %v4112, %v4510
      %v4773 = vmax.f32 %v4113, %v4513
      %v4774 = vmax.f32 %v4114, %v4516
      %v4775 = vmax.f32 %v4027, %v4520
      %v4776 = vmax.f32 %v4115, %v4523
      %v4777 = vmax.f32 %v4116, %v4526
      %v4778 = vmax.f32 %v4117, %v4529
      %v4779 = vmax.f32 %v3983, %v4532
      %v4780 = vmax.f32 %v4118, %v4535
      %v4781 = vmax.f32 %v4119, %v4538
      %v4782 = vmax.f32 %v4120, %v4541
      %v4783 = vmax.f32 %v4028, %v4545
      %v4784 = vmax.f32 %v4121, %v4548
      %v4785 = vmax.f32 %v4122, %v4551
      %v4786 = vmax.f32 %v4123, %v4554
      %v4787 = vmax.f32 %v3986, %v4557
      %v4788 = vmax.f32 %v4124, %v4560
      %v4789 = vmax.f32 %v4125, %v4563
      %v4790 = vmax.f32 %v4126, %v4566
      %v4791 = vrot.slane %v4220, 7
      %v4792 = vrot.slane %v4791, 2
      %v4793 = vrot.slane %v4223, 7
      %v4794 = vrot.slane %v4793, 2
      %v4795 = vrot.slane %v4226, 7
      %v4796 = vrot.slane %v4795, 2
      %v4797 = vrot.slane %v4229, 7
      %v4798 = vrot.slane %v4797, 2
      %v4799 = vrot.slane %v4232, 7
      %v4800 = vrot.slane %v4799, 2
      %v4801 = vrot.slane %v4235, 7
      %v4802 = vrot.slane %v4801, 2
      %v4803 = vrot.slane %v4238, 7
      %v4804 = vrot.slane %v4803, 2
      %v4805 = vrot.slane %v4241, 7
      %v4806 = vrot.slane %v4805, 2
      %v4807 = vrot.slane %v4245, 7
      %v4808 = vrot.slane %v4807, 2
      %v4809 = vrot.slane %v4248, 7
      %v4810 = vrot.slane %v4809, 2
      %v4811 = vrot.slane %v4251, 7
      %v4812 = vrot.slane %v4811, 2
      %v4813 = vrot.slane %v4254, 7
      %v4814 = vrot.slane %v4813, 2
      %v4815 = vrot.slane %v4257, 7
      %v4816 = vrot.slane %v4815, 2
      %v4817 = vrot.slane %v4260, 7
      %v4818 = vrot.slane %v4817, 2
      %v4819 = vrot.slane %v4263, 7
      %v4820 = vrot.slane %v4819, 2
      %v4821 = vrot.slane %v4266, 7
      %v4822 = vrot.slane %v4821, 2
      %v4823 = vrot.slane %v4270, 7
      %v4824 = vrot.slane %v4823, 2
      %v4825 = vrot.slane %v4273, 7
      %v4826 = vrot.slane %v4825, 2
      %v4827 = vrot.slane %v4276, 7
      %v4828 = vrot.slane %v4827, 2
      %v4829 = vrot.slane %v4279, 7
      %v4830 = vrot.slane %v4829, 2
      %v4831 = vrot.slane %v4282, 7
      %v4832 = vrot.slane %v4831, 2
      %v4833 = vrot.slane %v4285, 7
      %v4834 = vrot.slane %v4833, 2
      %v4835 = vrot.slane %v4288, 7
      %v4836 = vrot.slane %v4835, 2
      %v4837 = vrot.slane %v4291, 7
      %v4838 = vrot.slane %v4837, 2
      %v4839 = vrot.slane %v4295, 7
      %v4840 = vrot.slane %v4839, 2
      %v4841 = vrot.slane %v4298, 7
      %v4842 = vrot.slane %v4841, 2
      %v4843 = vrot.slane %v4301, 7
      %v4844 = vrot.slane %v4843, 2
      %v4845 = vrot.slane %v4304, 7
      %v4846 = vrot.slane %v4845, 2
      %v4847 = vrot.slane %v4307, 7
      %v4848 = vrot.slane %v4847, 2
      %v4849 = vrot.slane %v4310, 7
      %v4850 = vrot.slane %v4849, 2
      %v4851 = vrot.slane %v4313, 7
      %v4852 = vrot.slane %v4851, 2
      %v4853 = vrot.slane %v4316, 7
      %v4854 = vrot.slane %v4853, 2
      %v4855 = vrot.slane %v4320, 7
      %v4856 = vrot.slane %v4855, 2
      %v4857 = vrot.slane %v4323, 7
      %v4858 = vrot.slane %v4857, 2
      %v4859 = vrot.slane %v4326, 7
      %v4860 = vrot.slane %v4859, 2
      %v4861 = vrot.slane %v4329, 7
      %v4862 = vrot.slane %v4861, 2
      %v4863 = vrot.slane %v4332, 7
      %v4864 = vrot.slane %v4863, 2
      %v4865 = vrot.slane %v4335, 7
      %v4866 = vrot.slane %v4865, 2
      %v4867 = vrot.slane %v4338, 7
      %v4868 = vrot.slane %v4867, 2
      %v4869 = vrot.slane %v4341, 7
      %v4870 = vrot.slane %v4869, 2
      %v4871 = vrot.slane %v4345, 7
      %v4872 = vrot.slane %v4871, 2
      %v4873 = vrot.slane %v4348, 7
      %v4874 = vrot.slane %v4873, 2
      %v4875 = vrot.slane %v4351, 7
      %v4876 = vrot.slane %v4875, 2
      %v4877 = vrot.slane %v4354, 7
      %v4878 = vrot.slane %v4877, 2
      %v4879 = vrot.slane %v4357, 7
      %v4880 = vrot.slane %v4879, 2
      %v4881 = vrot.slane %v4360, 7
      %v4882 = vrot.slane %v4881, 2
      %v4883 = vrot.slane %v4363, 7
      %v4884 = vrot.slane %v4883, 2
      %v4885 = vrot.slane %v4366, 7
      %v4886 = vrot.slane %v4885, 2
      %v4887 = vrot.slane %v4370, 7
      %v4888 = vrot.slane %v4887, 2
      %v4889 = vrot.slane %v4373, 7
      %v4890 = vrot.slane %v4889, 2
      %v4891 = vrot.slane %v4376, 7
      %v4892 = vrot.slane %v4891, 2
      %v4893 = vrot.slane %v4379, 7
      %v4894 = vrot.slane %v4893, 2
      %v4895 = vrot.slane %v4382, 7
      %v4896 = vrot.slane %v4895, 2
      %v4897 = vrot.slane %v4385, 7
      %v4898 = vrot.slane %v4897, 2
      %v4899 = vrot.slane %v4388, 7
      %v4900 = vrot.slane %v4899, 2
      %v4901 = vrot.slane %v4391, 7
      %v4902 = vrot.slane %v4901, 2
      %v4903 = vrot.slane %v4395, 7
      %v4904 = vrot.slane %v4903, 2
      %v4905 = vrot.slane %v4398, 7
      %v4906 = vrot.slane %v4905, 2
      %v4907 = vrot.slane %v4401, 7
      %v4908 = vrot.slane %v4907, 2
      %v4909 = vrot.slane %v4404, 7
      %v4910 = vrot.slane %v4909, 2
      %v4911 = vrot.slane %v4407, 7
      %v4912 = vrot.slane %v4911, 2
      %v4913 = vrot.slane %v4410, 7
      %v4914 = vrot.slane %v4913, 2
      %v4915 = vrot.slane %v4413, 7
      %v4916 = vrot.slane %v4915, 2
      %v4917 = vrot.slane %v4416, 7
      %v4918 = vrot.slane %v4917, 2
      %v4919 = vrot.slane %v4420, 7
      %v4920 = vrot.slane %v4919, 2
      %v4921 = vrot.slane %v4423, 7
      %v4922 = vrot.slane %v4921, 2
      %v4923 = vrot.slane %v4426, 7
      %v4924 = vrot.slane %v4923, 2
      %v4925 = vrot.slane %v4429, 7
      %v4926 = vrot.slane %v4925, 2
      %v4927 = vrot.slane %v4432, 7
      %v4928 = vrot.slane %v4927, 2
      %v4929 = vrot.slane %v4435, 7
      %v4930 = vrot.slane %v4929, 2
      %v4931 = vrot.slane %v4438, 7
      %v4932 = vrot.slane %v4931, 2
      %v4933 = vrot.slane %v4441, 7
      %v4934 = vrot.slane %v4933, 2
      %v4935 = vrot.slane %v4445, 7
      %v4936 = vrot.slane %v4935, 2
      %v4937 = vrot.slane %v4448, 7
      %v4938 = vrot.slane %v4937, 2
      %v4939 = vrot.slane %v4451, 7
      %v4940 = vrot.slane %v4939, 2
      %v4941 = vrot.slane %v4454, 7
      %v4942 = vrot.slane %v4941, 2
      %v4943 = vrot.slane %v4457, 7
      %v4944 = vrot.slane %v4943, 2
      %v4945 = vrot.slane %v4460, 7
      %v4946 = vrot.slane %v4945, 2
      %v4947 = vrot.slane %v4463, 7
      %v4948 = vrot.slane %v4947, 2
      %v4949 = vrot.slane %v4466, 7
      %v4950 = vrot.slane %v4949, 2
      %v4951 = vrot.slane %v4470, 7
      %v4952 = vrot.slane %v4951, 2
      %v4953 = vrot.slane %v4473, 7
      %v4954 = vrot.slane %v4953, 2
      %v4955 = vrot.slane %v4476, 7
      %v4956 = vrot.slane %v4955, 2
      %v4957 = vrot.slane %v4479, 7
      %v4958 = vrot.slane %v4957, 2
      %v4959 = vrot.slane %v4482, 7
      %v4960 = vrot.slane %v4959, 2
      %v4961 = vrot.slane %v4485, 7
      %v4962 = vrot.slane %v4961, 2
      %v4963 = vrot.slane %v4488, 7
      %v4964 = vrot.slane %v4963, 2
      %v4965 = vrot.slane %v4491, 7
      %v4966 = vrot.slane %v4965, 2
      %v4967 = vrot.slane %v4495, 7
      %v4968 = vrot.slane %v4967, 2
      %v4969 = vrot.slane %v4498, 7
      %v4970 = vrot.slane %v4969, 2
      %v4971 = vrot.slane %v4501, 7
      %v4972 = vrot.slane %v4971, 2
      %v4973 = vrot.slane %v4504, 7
      %v4974 = vrot.slane %v4973, 2
      %v4975 = vrot.slane %v4507, 7
      %v4976 = vrot.slane %v4975, 2
      %v4977 = vrot.slane %v4510, 7
      %v4978 = vrot.slane %v4977, 2
      %v4979 = vrot.slane %v4513, 7
      %v4980 = vrot.slane %v4979, 2
      %v4981 = vrot.slane %v4516, 7
      %v4982 = vrot.slane %v4981, 2
      %v4983 = vrot.slane %v4520, 7
      %v4984 = vrot.slane %v4983, 2
      %v4985 = vrot.slane %v4523, 7
      %v4986 = vrot.slane %v4985, 2
      %v4987 = vrot.slane %v4526, 7
      %v4988 = vrot.slane %v4987, 2
      %v4989 = vrot.slane %v4529, 7
      %v4990 = vrot.slane %v4989, 2
      %v4991 = vrot.slane %v4532, 7
      %v4992 = vrot.slane %v4991, 2
      %v4993 = vrot.slane %v4535, 7
      %v4994 = vrot.slane %v4993, 2
      %v4995 = vrot.slane %v4538, 7
      %v4996 = vrot.slane %v4995, 2
      %v4997 = vrot.slane %v4541, 7
      %v4998 = vrot.slane %v4997, 2
      %v4999 = vrot.slane %v4545, 7
      %v5000 = vrot.slane %v4999, 2
      %v5001 = vrot.slane %v4548, 7
      %v5002 = vrot.slane %v5001, 2
      %v5003 = vrot.slane %v4551, 7
      %v5004 = vrot.slane %v5003, 2
      %v5005 = vrot.slane %v4554, 7
      %v5006 = vrot.slane %v5005, 2
      %v5007 = vrot.slane %v4557, 7
      %v5008 = vrot.slane %v5007, 2
      %v5009 = vrot.slane %v4560, 7
      %v5010 = vrot.slane %v5009, 2
      %v5011 = vrot.slane %v4563, 7
      %v5012 = vrot.slane %v5011, 2
      %v5013 = vrot.slane %v4566, 7
      %v5014 = vrot.slane %v5013, 2
      %v5127 = vmax.f32 %v4679, %v4792
      %v5128 = vmax.f32 %v4680, %v4794
      %v5129 = vmax.f32 %v4681, %v4796
      %v5130 = vmax.f32 %v4682, %v4798
      %v5131 = vmax.f32 %v4683, %v4800
      %v5132 = vmax.f32 %v4684, %v4802
      %v5133 = vmax.f32 %v4685, %v4804
      %v5134 = vmax.f32 %v4686, %v4806
      %v5135 = vmax.f32 %v4687, %v4808
      %v5136 = vmax.f32 %v4688, %v4810
      %v5137 = vmax.f32 %v4689, %v4812
      %v5138 = vmax.f32 %v4690, %v4814
      %v5139 = vmax.f32 %v4691, %v4816
      %v5140 = vmax.f32 %v4692, %v4818
      %v5141 = vmax.f32 %v4693, %v4820
      %v5142 = vmax.f32 %v4694, %v4822
      %v5143 = vmax.f32 %v4695, %v4824
      %v5144 = vmax.f32 %v4696, %v4826
      %v5145 = vmax.f32 %v4697, %v4828
      %v5146 = vmax.f32 %v4698, %v4830
      %v5147 = vmax.f32 %v4699, %v4832
      %v5148 = vmax.f32 %v4700, %v4834
      %v5149 = vmax.f32 %v4701, %v4836
      %v5150 = vmax.f32 %v4702, %v4838
      %v5151 = vmax.f32 %v4703, %v4840
      %v5152 = vmax.f32 %v4704, %v4842
      %v5153 = vmax.f32 %v4705, %v4844
      %v5154 = vmax.f32 %v4706, %v4846
      %v5155 = vmax.f32 %v4707, %v4848
      %v5156 = vmax.f32 %v4708, %v4850
      %v5157 = vmax.f32 %v4709, %v4852
      %v5158 = vmax.f32 %v4710, %v4854
      %v5159 = vmax.f32 %v4711, %v4856
      %v5160 = vmax.f32 %v4712, %v4858
      %v5161 = vmax.f32 %v4713, %v4860
      %v5162 = vmax.f32 %v4714, %v4862
      %v5163 = vmax.f32 %v4715, %v4864
      %v5164 = vmax.f32 %v4716, %v4866
      %v5165 = vmax.f32 %v4717, %v4868
      %v5166 = vmax.f32 %v4718, %v4870
      %v5167 = vmax.f32 %v4719, %v4872
      %v5168 = vmax.f32 %v4720, %v4874
      %v5169 = vmax.f32 %v4721, %v4876
      %v5170 = vmax.f32 %v4722, %v4878
      %v5171 = vmax.f32 %v4723, %v4880
      %v5172 = vmax.f32 %v4724, %v4882
      %v5173 = vmax.f32 %v4725, %v4884
      %v5174 = vmax.f32 %v4726, %v4886
      %v5175 = vmax.f32 %v4727, %v4888
      %v5176 = vmax.f32 %v4728, %v4890
      %v5177 = vmax.f32 %v4729, %v4892
      %v5178 = vmax.f32 %v4730, %v4894
      %v5179 = vmax.f32 %v4731, %v4896
      %v5180 = vmax.f32 %v4732, %v4898
      %v5181 = vmax.f32 %v4733, %v4900
      %v5182 = vmax.f32 %v4734, %v4902
      %v5183 = vmax.f32 %v4735, %v4904
      %v5184 = vmax.f32 %v4736, %v4906
      %v5185 = vmax.f32 %v4737, %v4908
      %v5186 = vmax.f32 %v4738, %v4910
      %v5187 = vmax.f32 %v4739, %v4912
      %v5188 = vmax.f32 %v4740, %v4914
      %v5189 = vmax.f32 %v4741, %v4916
      %v5190 = vmax.f32 %v4742, %v4918
      %v5191 = vmax.f32 %v4743, %v4920
      %v5192 = vmax.f32 %v4744, %v4922
      %v5193 = vmax.f32 %v4745, %v4924
      %v5194 = vmax.f32 %v4746, %v4926
      %v5195 = vmax.f32 %v4747, %v4928
      %v5196 = vmax.f32 %v4748, %v4930
      %v5197 = vmax.f32 %v4749, %v4932
      %v5198 = vmax.f32 %v4750, %v4934
      %v5199 = vmax.f32 %v4751, %v4936
      %v5200 = vmax.f32 %v4752, %v4938
      %v5201 = vmax.f32 %v4753, %v4940
      %v5202 = vmax.f32 %v4754, %v4942
      %v5203 = vmax.f32 %v4755, %v4944
      %v5204 = vmax.f32 %v4756, %v4946
      %v5205 = vmax.f32 %v4757, %v4948
      %v5206 = vmax.f32 %v4758, %v4950
      %v5207 = vmax.f32 %v4759, %v4952
      %v5208 = vmax.f32 %v4760, %v4954
      %v5209 = vmax.f32 %v4761, %v4956
      %v5210 = vmax.f32 %v4762, %v4958
      %v5211 = vmax.f32 %v4763, %v4960
      %v5212 = vmax.f32 %v4764, %v4962
      %v5213 = vmax.f32 %v4765, %v4964
      %v5214 = vmax.f32 %v4766, %v4966
      %v5215 = vmax.f32 %v4767, %v4968
      %v5216 = vmax.f32 %v4768, %v4970
      %v5217 = vmax.f32 %v4769, %v4972
      %v5218 = vmax.f32 %v4770, %v4974
      %v5219 = vmax.f32 %v4771, %v4976
      %v5220 = vmax.f32 %v4772, %v4978
      %v5221 = vmax.f32 %v4773, %v4980
      %v5222 = vmax.f32 %v4774, %v4982
      %v5223 = vmax.f32 %v4775, %v4984
      %v5224 = vmax.f32 %v4776, %v4986
      %v5225 = vmax.f32 %v4777, %v4988
      %v5226 = vmax.f32 %v4778, %v4990
      %v5227 = vmax.f32 %v4779, %v4992
      %v5228 = vmax.f32 %v4780, %v4994
      %v5229 = vmax.f32 %v4781, %v4996
      %v5230 = vmax.f32 %v4782, %v4998
      %v5231 = vmax.f32 %v4783, %v5000
      %v5232 = vmax.f32 %v4784, %v5002
      %v5233 = vmax.f32 %v4785, %v5004
      %v5234 = vmax.f32 %v4786, %v5006
      %v5235 = vmax.f32 %v4787, %v5008
      %v5236 = vmax.f32 %v4788, %v5010
      %v5237 = vmax.f32 %v4789, %v5012
      %v5238 = vmax.f32 %v4790, %v5014
      %s5239 = smul.u32 %s19, 8
      %s5240 = ssub.s32 %s5239, 4
      %v5241 = vstv %s5240
      %v5242 = vadd.s32 %v5241, 1
      %v5243 = vadd.s32 %v5241, 2
      %v5244 = vadd.s32 %v5241, 3
      %v5245 = vadd.s32 %v5241, 4
      %v5246 = vadd.s32 %v5241, 5
      %v5247 = vadd.s32 %v5241, 6
      %v5248 = vadd.s32 %v5241, 7
      %v5249 = vadd.s32 %v5241, 8
      %v5250 = vadd.s32 %v5241, 9
      %v5251 = vadd.s32 %v5241, 10
      %v5252 = vadd.s32 %v5241, 11
      %v5253 = vadd.s32 %v5241, 12
      %v5254 = vadd.s32 %v5241, 13
      %vm5255 = vcmp.ge.s32.totalorder %v5241, 0
      %vm5256 = vcmp.ge.s32.totalorder %v5242, 0
      %vm5257 = vcmp.ge.s32.totalorder %v5243, 0
      %vm5258 = vcmp.ge.s32.totalorder %v5244, 0
      %vm5259 = vcmp.ge.s32.totalorder %v5245, 0
      %vm5260 = vcmp.ge.s32.totalorder %v5246, 0
      %vm5261 = vcmp.ge.s32.totalorder %v5247, 0
      %vm5262 = vcmp.ge.s32.totalorder %v5248, 0
      %vm5263 = vcmp.ge.s32.totalorder %v5249, 0
      %vm5264 = vcmp.ge.s32.totalorder %v5250, 0
      %vm5265 = vcmp.ge.s32.totalorder %v5251, 0
      %vm5266 = vcmp.ge.s32.totalorder %v5252, 0
      %vm5267 = vcmp.ge.s32.totalorder %v5253, 0
      %vm5268 = vcmp.ge.s32.totalorder %v5254, 0
      %vm5269 = vcmp.lt.s32.totalorder %v5241, 8
      %vm5270 = vcmp.lt.s32.totalorder %v5242, 8
      %vm5271 = vcmp.lt.s32.totalorder %v5243, 8
      %vm5272 = vcmp.lt.s32.totalorder %v5244, 8
      %vm5273 = vcmp.lt.s32.totalorder %v5245, 8
      %vm5274 = vcmp.lt.s32.totalorder %v5246, 8
      %vm5275 = vcmp.lt.s32.totalorder %v5247, 8
      %vm5276 = vcmp.lt.s32.totalorder %v5248, 8
      %vm5277 = vcmp.lt.s32.totalorder %v5249, 8
      %vm5278 = vcmp.lt.s32.totalorder %v5250, 8
      %vm5279 = vcmp.lt.s32.totalorder %v5251, 8
      %vm5280 = vcmp.lt.s32.totalorder %v5252, 8
      %vm5281 = vcmp.lt.s32.totalorder %v5253, 8
      %vm5282 = vcmp.lt.s32.totalorder %v5254, 8
      %vm5283 = vmand %vm5255, %vm5269
      %vm5284 = vmand %vm5256, %vm5270
      %vm5285 = vmand %vm5257, %vm5271
      %vm5286 = vmand %vm5258, %vm5272
      %vm5287 = vmand %vm5259, %vm5273
      %vm5288 = vmand %vm5260, %vm5274
      %vm5289 = vmand %vm5261, %vm5275
      %vm5290 = vmand %vm5262, %vm5276
      %vm5291 = vmand %vm5263, %vm5277
      %vm5292 = vmand %vm5264, %vm5278
      %vm5293 = vmand %vm5265, %vm5279
      %vm5294 = vmand %vm5266, %vm5280
      %vm5295 = vmand %vm5267, %vm5281
      %vm5296 = vmand %vm5268, %vm5282
      %v5297 = vsel %vm5283, 1, 0
      %v5298 = vsel %vm5284, 1, 0
      %v5299 = vsel %vm5285, 1, 0
      %v5300 = vsel %vm5286, 1, 0
      %v5301 = vsel %vm5287, 1, 0
      %v5302 = vsel %vm5288, 1, 0
      %v5303 = vsel %vm5289, 1, 0
      %v5304 = vsel %vm5290, 1, 0
      %v5305 = vsel %vm5291, 1, 0
      %v5306 = vsel %vm5292, 1, 0
      %v5307 = vsel %vm5293, 1, 0
      %v5308 = vsel %vm5294, 1, 0
      %v5309 = vsel %vm5295, 1, 0
      %v5310 = vsel %vm5296, 1, 0
      %vm5311 = vcmp.eq.s32.totalorder %v5297, 1
      %vm5312 = vcmp.eq.s32.totalorder %v5298, 1
      %vm5313 = vcmp.eq.s32.totalorder %v5299, 1
      %vm5314 = vcmp.eq.s32.totalorder %v5300, 1
      %vm5315 = vcmp.eq.s32.totalorder %v5301, 1
      %vm5316 = vcmp.eq.s32.totalorder %v5302, 1
      %vm5317 = vcmp.eq.s32.totalorder %v5303, 1
      %vm5318 = vcmp.eq.s32.totalorder %v5304, 1
      %vm5319 = vcmp.eq.s32.totalorder %v5305, 1
      %vm5320 = vcmp.eq.s32.totalorder %v5306, 1
      %vm5321 = vcmp.eq.s32.totalorder %v5307, 1
      %vm5322 = vcmp.eq.s32.totalorder %v5308, 1
      %vm5323 = vcmp.eq.s32.totalorder %v5309, 1
      %vm5324 = vcmp.eq.s32.totalorder %v5310, 1
      %v5325 = vsel %vm5311, %v5127, 0.0
      %v5326 = vsel %vm5311, %v5128, 0.0
      %v5327 = vsel %vm5311, %v5129, 0.0
      %v5328 = vsel %vm5311, %v5130, 0.0
      %v5329 = vsel %vm5311, %v5131, 0.0
      %v5330 = vsel %vm5311, %v5132, 0.0
      %v5331 = vsel %vm5311, %v5133, 0.0
      %v5332 = vsel %vm5311, %v5134, 0.0
      %v5333 = vsel %vm5312, %v5135, 0.0
      %v5334 = vsel %vm5312, %v5136, 0.0
      %v5335 = vsel %vm5312, %v5137, 0.0
      %v5336 = vsel %vm5312, %v5138, 0.0
      %v5337 = vsel %vm5312, %v5139, 0.0
      %v5338 = vsel %vm5312, %v5140, 0.0
      %v5339 = vsel %vm5312, %v5141, 0.0
      %v5340 = vsel %vm5312, %v5142, 0.0
      %v5341 = vsel %vm5313, %v5143, 0.0
      %v5342 = vsel %vm5313, %v5144, 0.0
      %v5343 = vsel %vm5313, %v5145, 0.0
      %v5344 = vsel %vm5313, %v5146, 0.0
      %v5345 = vsel %vm5313, %v5147, 0.0
      %v5346 = vsel %vm5313, %v5148, 0.0
      %v5347 = vsel %vm5313, %v5149, 0.0
      %v5348 = vsel %vm5313, %v5150, 0.0
      %v5349 = vsel %vm5314, %v5151, 0.0
      %v5350 = vsel %vm5314, %v5152, 0.0
      %v5351 = vsel %vm5314, %v5153, 0.0
      %v5352 = vsel %vm5314, %v5154, 0.0
      %v5353 = vsel %vm5314, %v5155, 0.0
      %v5354 = vsel %vm5314, %v5156, 0.0
      %v5355 = vsel %vm5314, %v5157, 0.0
      %v5356 = vsel %vm5314, %v5158, 0.0
      %v5357 = vsel %vm5315, %v5159, 0.0
      %v5358 = vsel %vm5315, %v5160, 0.0
      %v5359 = vsel %vm5315, %v5161, 0.0
      %v5360 = vsel %vm5315, %v5162, 0.0
      %v5361 = vsel %vm5315, %v5163, 0.0
      %v5362 = vsel %vm5315, %v5164, 0.0
      %v5363 = vsel %vm5315, %v5165, 0.0
      %v5364 = vsel %vm5315, %v5166, 0.0
      %v5365 = vsel %vm5316, %v5167, 0.0
      %v5366 = vsel %vm5316, %v5168, 0.0
      %v5367 = vsel %vm5316, %v5169, 0.0
      %v5368 = vsel %vm5316, %v5170, 0.0
      %v5369 = vsel %vm5316, %v5171, 0.0
      %v5370 = vsel %vm5316, %v5172, 0.0
      %v5371 = vsel %vm5316, %v5173, 0.0
      %v5372 = vsel %vm5316, %v5174, 0.0
      %v5373 = vsel %vm5317, %v5175, 0.0
      %v5374 = vsel %vm5317, %v5176, 0.0
      %v5375 = vsel %vm5317, %v5177, 0.0
      %v5376 = vsel %vm5317, %v5178, 0.0
      %v5377 = vsel %vm5317, %v5179, 0.0
      %v5378 = vsel %vm5317, %v5180, 0.0
      %v5379 = vsel %vm5317, %v5181, 0.0
      %v5380 = vsel %vm5317, %v5182, 0.0
      %v5381 = vsel %vm5318, %v5183, 0.0
      %v5382 = vsel %vm5318, %v5184, 0.0
      %v5383 = vsel %vm5318, %v5185, 0.0
      %v5384 = vsel %vm5318, %v5186, 0.0
      %v5385 = vsel %vm5318, %v5187, 0.0
      %v5386 = vsel %vm5318, %v5188, 0.0
      %v5387 = vsel %vm5318, %v5189, 0.0
      %v5388 = vsel %vm5318, %v5190, 0.0
      %v5389 = vsel %vm5319, %v5191, 0.0
      %v5390 = vsel %vm5319, %v5192, 0.0
      %v5391 = vsel %vm5319, %v5193, 0.0
      %v5392 = vsel %vm5319, %v5194, 0.0
      %v5393 = vsel %vm5319, %v5195, 0.0
      %v5394 = vsel %vm5319, %v5196, 0.0
      %v5395 = vsel %vm5319, %v5197, 0.0
      %v5396 = vsel %vm5319, %v5198, 0.0
      %v5397 = vsel %vm5320, %v5199, 0.0
      %v5398 = vsel %vm5320, %v5200, 0.0
      %v5399 = vsel %vm5320, %v5201, 0.0
      %v5400 = vsel %vm5320, %v5202, 0.0
      %v5401 = vsel %vm5320, %v5203, 0.0
      %v5402 = vsel %vm5320, %v5204, 0.0
      %v5403 = vsel %vm5320, %v5205, 0.0
      %v5404 = vsel %vm5320, %v5206, 0.0
      %v5405 = vsel %vm5321, %v5207, 0.0
      %v5406 = vsel %vm5321, %v5208, 0.0
      %v5407 = vsel %vm5321, %v5209, 0.0
      %v5408 = vsel %vm5321, %v5210, 0.0
      %v5409 = vsel %vm5321, %v5211, 0.0
      %v5410 = vsel %vm5321, %v5212, 0.0
      %v5411 = vsel %vm5321, %v5213, 0.0
      %v5412 = vsel %vm5321, %v5214, 0.0
      %v5413 = vsel %vm5322, %v5215, 0.0
      %v5414 = vsel %vm5322, %v5216, 0.0
      %v5415 = vsel %vm5322, %v5217, 0.0
      %v5416 = vsel %vm5322, %v5218, 0.0
      %v5417 = vsel %vm5322, %v5219, 0.0
      %v5418 = vsel %vm5322, %v5220, 0.0
      %v5419 = vsel %vm5322, %v5221, 0.0
      %v5420 = vsel %vm5322, %v5222, 0.0
      %v5421 = vsel %vm5323, %v5223, 0.0
      %v5422 = vsel %vm5323, %v5224, 0.0
      %v5423 = vsel %vm5323, %v5225, 0.0
      %v5424 = vsel %vm5323, %v5226, 0.0
      %v5425 = vsel %vm5323, %v5227, 0.0
      %v5426 = vsel %vm5323, %v5228, 0.0
      %v5427 = vsel %vm5323, %v5229, 0.0
      %v5428 = vsel %vm5323, %v5230, 0.0
      %v5429 = vsel %vm5324, %v5231, 0.0
      %v5430 = vsel %vm5324, %v5232, 0.0
      %v5431 = vsel %vm5324, %v5233, 0.0
      %v5432 = vsel %vm5324, %v5234, 0.0
      %v5433 = vsel %vm5324, %v5235, 0.0
      %v5434 = vsel %vm5324, %v5236, 0.0
      %v5435 = vsel %vm5324, %v5237, 0.0
      %v5436 = vsel %vm5324, %v5238, 0.0
      %v5549 = vperm.slane %v5325, 0
      %v5550 = vperm.slane %v5326, 0
      %v5551 = vperm.slane %v5327, 0
      %v5552 = vperm.slane %v5328, 0
      %v5553 = vperm.slane %v5329, 0
      %v5554 = vperm.slane %v5330, 0
      %v5555 = vperm.slane %v5331, 0
      %v5556 = vperm.slane %v5332, 0
      %v5557 = vperm.slane %v5333, 0
      %v5558 = vperm.slane %v5334, 0
      %v5559 = vperm.slane %v5335, 0
      %v5560 = vperm.slane %v5336, 0
      %v5561 = vperm.slane %v5337, 0
      %v5562 = vperm.slane %v5338, 0
      %v5563 = vperm.slane %v5339, 0
      %v5564 = vperm.slane %v5340, 0
      %v5565 = vperm.slane %v5341, 0
      %v5566 = vperm.slane %v5342, 0
      %v5567 = vperm.slane %v5343, 0
      %v5568 = vperm.slane %v5344, 0
      %v5569 = vperm.slane %v5345, 0
      %v5570 = vperm.slane %v5346, 0
      %v5571 = vperm.slane %v5347, 0
      %v5572 = vperm.slane %v5348, 0
      %v5573 = vperm.slane %v5349, 0
      %v5574 = vperm.slane %v5350, 0
      %v5575 = vperm.slane %v5351, 0
      %v5576 = vperm.slane %v5352, 0
      %v5577 = vperm.slane %v5353, 0
      %v5578 = vperm.slane %v5354, 0
      %v5579 = vperm.slane %v5355, 0
      %v5580 = vperm.slane %v5356, 0
      %v5581 = vperm.slane %v5357, 0
      %v5582 = vperm.slane %v5358, 0
      %v5583 = vperm.slane %v5359, 0
      %v5584 = vperm.slane %v5360, 0
      %v5585 = vperm.slane %v5361, 0
      %v5586 = vperm.slane %v5362, 0
      %v5587 = vperm.slane %v5363, 0
      %v5588 = vperm.slane %v5364, 0
      %v5589 = vperm.slane %v5365, 0
      %v5590 = vperm.slane %v5366, 0
      %v5591 = vperm.slane %v5367, 0
      %v5592 = vperm.slane %v5368, 0
      %v5593 = vperm.slane %v5369, 0
      %v5594 = vperm.slane %v5370, 0
      %v5595 = vperm.slane %v5371, 0
      %v5596 = vperm.slane %v5372, 0
      %v5597 = vperm.slane %v5373, 0
      %v5598 = vperm.slane %v5374, 0
      %v5599 = vperm.slane %v5375, 0
      %v5600 = vperm.slane %v5376, 0
      %v5601 = vperm.slane %v5377, 0
      %v5602 = vperm.slane %v5378, 0
      %v5603 = vperm.slane %v5379, 0
      %v5604 = vperm.slane %v5380, 0
      %v5605 = vperm.slane %v5381, 0
      %v5606 = vperm.slane %v5382, 0
      %v5607 = vperm.slane %v5383, 0
      %v5608 = vperm.slane %v5384, 0
      %v5609 = vperm.slane %v5385, 0
      %v5610 = vperm.slane %v5386, 0
      %v5611 = vperm.slane %v5387, 0
      %v5612 = vperm.slane %v5388, 0
      %v5613 = vperm.slane %v5389, 0
      %v5614 = vperm.slane %v5390, 0
      %v5615 = vperm.slane %v5391, 0
      %v5616 = vperm.slane %v5392, 0
      %v5617 = vperm.slane %v5393, 0
      %v5618 = vperm.slane %v5394, 0
      %v5619 = vperm.slane %v5395, 0
      %v5620 = vperm.slane %v5396, 0
      %v5621 = vperm.slane %v5397, 0
      %v5622 = vperm.slane %v5398, 0
      %v5623 = vperm.slane %v5399, 0
      %v5624 = vperm.slane %v5400, 0
      %v5625 = vperm.slane %v5401, 0
      %v5626 = vperm.slane %v5402, 0
      %v5627 = vperm.slane %v5403, 0
      %v5628 = vperm.slane %v5404, 0
      %v5629 = vperm.slane %v5405, 0
      %v5630 = vperm.slane %v5406, 0
      %v5631 = vperm.slane %v5407, 0
      %v5632 = vperm.slane %v5408, 0
      %v5633 = vperm.slane %v5409, 0
      %v5634 = vperm.slane %v5410, 0
      %v5635 = vperm.slane %v5411, 0
      %v5636 = vperm.slane %v5412, 0
      %v5637 = vperm.slane %v5413, 0
      %v5638 = vperm.slane %v5414, 0
      %v5639 = vperm.slane %v5415, 0
      %v5640 = vperm.slane %v5416, 0
      %v5641 = vperm.slane %v5417, 0
      %v5642 = vperm.slane %v5418, 0
      %v5643 = vperm.slane %v5419, 0
      %v5644 = vperm.slane %v5420, 0
      %v5645 = vperm.slane %v5421, 0
      %v5646 = vperm.slane %v5422, 0
      %v5647 = vperm.slane %v5423, 0
      %v5648 = vperm.slane %v5424, 0
      %v5649 = vperm.slane %v5425, 0
      %v5650 = vperm.slane %v5426, 0
      %v5651 = vperm.slane %v5427, 0
      %v5652 = vperm.slane %v5428, 0
      %v5653 = vperm.slane %v5429, 0
      %v5654 = vperm.slane %v5430, 0
      %v5655 = vperm.slane %v5431, 0
      %v5656 = vperm.slane %v5432, 0
      %v5657 = vperm.slane %v5433, 0
      %v5658 = vperm.slane %v5434, 0
      %v5659 = vperm.slane %v5435, 0
      %v5660 = vperm.slane %v5436, 0
      %vm5661 = vcmask 1041409
      %v5662 = vsel %vm5661, %v5550, %v5549
      %v5663 = vsel %vm4211, %v5551, %v5662
      %vm5664 = vcmask 1043459
      %v5665 = vsel %vm5664, %v5552, %v5663
      %v5666 = vsel %vm4213, %v5553, %v5665
      %vm5667 = vcmask 1045509
      %v5668 = vsel %vm5667, %v5554, %v5666
      %v5669 = vsel %vm4215, %v5555, %v5668
      %vm5670 = vcmask 1047559
      %v5671 = vsel %vm5670, %v5556, %v5669
      %v5672 = vsel %vm5661, %v5558, %v5557
      %v5673 = vsel %vm4211, %v5559, %v5672
      %v5674 = vsel %vm5664, %v5560, %v5673
      %v5675 = vsel %vm4213, %v5561, %v5674
      %v5676 = vsel %vm5667, %v5562, %v5675
      %v5677 = vsel %vm4215, %v5563, %v5676
      %v5678 = vsel %vm5670, %v5564, %v5677
      %v5679 = vsel %vm5661, %v5566, %v5565
      %v5680 = vsel %vm4211, %v5567, %v5679
      %v5681 = vsel %vm5664, %v5568, %v5680
      %v5682 = vsel %vm4213, %v5569, %v5681
      %v5683 = vsel %vm5667, %v5570, %v5682
      %v5684 = vsel %vm4215, %v5571, %v5683
      %v5685 = vsel %vm5670, %v5572, %v5684
      %v5686 = vsel %vm5661, %v5574, %v5573
      %v5687 = vsel %vm4211, %v5575, %v5686
      %v5688 = vsel %vm5664, %v5576, %v5687
      %v5689 = vsel %vm4213, %v5577, %v5688
      %v5690 = vsel %vm5667, %v5578, %v5689
      %v5691 = vsel %vm4215, %v5579, %v5690
      %v5692 = vsel %vm5670, %v5580, %v5691
      %v5693 = vsel %vm5661, %v5582, %v5581
      %v5694 = vsel %vm4211, %v5583, %v5693
      %v5695 = vsel %vm5664, %v5584, %v5694
      %v5696 = vsel %vm4213, %v5585, %v5695
      %v5697 = vsel %vm5667, %v5586, %v5696
      %v5698 = vsel %vm4215, %v5587, %v5697
      %v5699 = vsel %vm5670, %v5588, %v5698
      %v5700 = vsel %vm5661, %v5590, %v5589
      %v5701 = vsel %vm4211, %v5591, %v5700
      %v5702 = vsel %vm5664, %v5592, %v5701
      %v5703 = vsel %vm4213, %v5593, %v5702
      %v5704 = vsel %vm5667, %v5594, %v5703
      %v5705 = vsel %vm4215, %v5595, %v5704
      %v5706 = vsel %vm5670, %v5596, %v5705
      %v5707 = vsel %vm5661, %v5598, %v5597
      %v5708 = vsel %vm4211, %v5599, %v5707
      %v5709 = vsel %vm5664, %v5600, %v5708
      %v5710 = vsel %vm4213, %v5601, %v5709
      %v5711 = vsel %vm5667, %v5602, %v5710
      %v5712 = vsel %vm4215, %v5603, %v5711
      %v5713 = vsel %vm5670, %v5604, %v5712
      %v5714 = vsel %vm5661, %v5606, %v5605
      %v5715 = vsel %vm4211, %v5607, %v5714
      %v5716 = vsel %vm5664, %v5608, %v5715
      %v5717 = vsel %vm4213, %v5609, %v5716
      %v5718 = vsel %vm5667, %v5610, %v5717
      %v5719 = vsel %vm4215, %v5611, %v5718
      %v5720 = vsel %vm5670, %v5612, %v5719
      %v5721 = vsel %vm5661, %v5614, %v5613
      %v5722 = vsel %vm4211, %v5615, %v5721
      %v5723 = vsel %vm5664, %v5616, %v5722
      %v5724 = vsel %vm4213, %v5617, %v5723
      %v5725 = vsel %vm5667, %v5618, %v5724
      %v5726 = vsel %vm4215, %v5619, %v5725
      %v5727 = vsel %vm5670, %v5620, %v5726
      %v5728 = vsel %vm5661, %v5622, %v5621
      %v5729 = vsel %vm4211, %v5623, %v5728
      %v5730 = vsel %vm5664, %v5624, %v5729
      %v5731 = vsel %vm4213, %v5625, %v5730
      %v5732 = vsel %vm5667, %v5626, %v5731
      %v5733 = vsel %vm4215, %v5627, %v5732
      %v5734 = vsel %vm5670, %v5628, %v5733
      %v5735 = vsel %vm5661, %v5630, %v5629
      %v5736 = vsel %vm4211, %v5631, %v5735
      %v5737 = vsel %vm5664, %v5632, %v5736
      %v5738 = vsel %vm4213, %v5633, %v5737
      %v5739 = vsel %vm5667, %v5634, %v5738
      %v5740 = vsel %vm4215, %v5635, %v5739
      %v5741 = vsel %vm5670, %v5636, %v5740
      %v5742 = vsel %vm5661, %v5638, %v5637
      %v5743 = vsel %vm4211, %v5639, %v5742
      %v5744 = vsel %vm5664, %v5640, %v5743
      %v5745 = vsel %vm4213, %v5641, %v5744
      %v5746 = vsel %vm5667, %v5642, %v5745
      %v5747 = vsel %vm4215, %v5643, %v5746
      %v5748 = vsel %vm5670, %v5644, %v5747
      %v5749 = vsel %vm5661, %v5646, %v5645
      %v5750 = vsel %vm4211, %v5647, %v5749
      %v5751 = vsel %vm5664, %v5648, %v5750
      %v5752 = vsel %vm4213, %v5649, %v5751
      %v5753 = vsel %vm5667, %v5650, %v5752
      %v5754 = vsel %vm4215, %v5651, %v5753
      %v5755 = vsel %vm5670, %v5652, %v5754
      %v5756 = vsel %vm5661, %v5654, %v5653
      %v5757 = vsel %vm4211, %v5655, %v5756
      %v5758 = vsel %vm5664, %v5656, %v5757
      %v5759 = vsel %vm4213, %v5657, %v5758
      %v5760 = vsel %vm5667, %v5658, %v5759
      %v5761 = vsel %vm4215, %v5659, %v5760
      %v5762 = vsel %vm5670, %v5660, %v5761
      %v5764 = vrot.slane 0.0, 6
      %v5765 = vrot.slane %v5671, 6
      %v5766 = vrot.slane %v5678, 6
      %v5767 = vrot.slane %v5685, 6
      %v5768 = vrot.slane %v5692, 6
      %v5769 = vrot.slane %v5699, 6
      %v5770 = vrot.slane %v5706, 6
      %v5771 = vrot.slane %v5713, 6
      %v5772 = vrot.slane %v5720, 6
      %v5773 = vrot.slane %v5727, 6
      %v5774 = vrot.slane %v5734, 6
      %v5775 = vrot.slane %v5741, 6
      %v5776 = vrot.slane %v5748, 6
      %v5777 = vrot.slane %v5755, 6
      %v5778 = vrot.slane %v5762, 6
      %v5794 = vsel %vm329, 0.0, %v5764
      %v5795 = vsel %vm329, 0.0, %v5765
      %v5796 = vsel %vm329, 0.0, %v5766
      %v5797 = vsel %vm329, 0.0, %v5767
      %v5798 = vsel %vm329, 0.0, %v5768
      %v5799 = vsel %vm329, 0.0, %v5769
      %v5800 = vsel %vm329, 0.0, %v5770
      %v5801 = vsel %vm329, 0.0, %v5771
      %v5802 = vsel %vm329, 0.0, %v5772
      %v5803 = vsel %vm329, 0.0, %v5773
      %v5804 = vsel %vm329, 0.0, %v5774
      %v5805 = vsel %vm329, 0.0, %v5775
      %v5806 = vsel %vm329, 0.0, %v5776
      %v5807 = vsel %vm329, 0.0, %v5777
      %v5808 = vsel %vm329, 0.0, %v5778
      %v5809 = vsel %vm329, %v5764, 0.0
      %v5810 = vsel %vm329, %v5765, 0.0
      %v5811 = vsel %vm329, %v5766, 0.0
      %v5812 = vsel %vm329, %v5767, 0.0
      %v5813 = vsel %vm329, %v5768, 0.0
      %v5814 = vsel %vm329, %v5769, 0.0
      %v5815 = vsel %vm329, %v5770, 0.0
      %v5816 = vsel %vm329, %v5771, 0.0
      %v5817 = vsel %vm329, %v5772, 0.0
      %v5818 = vsel %vm329, %v5773, 0.0
      %v5819 = vsel %vm329, %v5774, 0.0
      %v5820 = vsel %vm329, %v5775, 0.0
      %v5821 = vsel %vm329, %v5776, 0.0
      %v5822 = vsel %vm329, %v5777, 0.0
      %v5823 = vsel %vm329, %v5778, 0.0
      %v5824 = vld [vmem:[%s2] sm:$0xff]
      %v5825 = vld [vmem:[%s2 + $0x8] sm:$0xff]
      %v5826 = vld [vmem:[%s2 + $0x10] sm:$0xff]
      %v5827 = vld [vmem:[%s2 + $0x18] sm:$0xff]
      %v5828 = vld [vmem:[%s2 + $0x20] sm:$0xff]
      %v5829 = vld [vmem:[%s2 + $0x28] sm:$0xff]
      %v5830 = vld [vmem:[%s2 + $0x30] sm:$0xff]
      %v5831 = vld [vmem:[%s2 + $0x38] sm:$0xff]
      %v5832 = vld [vmem:[%s2 + $0x40] sm:$0xff]
      %v5833 = vld [vmem:[%s2 + $0x48] sm:$0xff]
      %v5834 = vld [vmem:[%s2 + $0x50] sm:$0xff]
      %v5835 = vld [vmem:[%s2 + $0x58] sm:$0xff]
      %v5836 = vld [vmem:[%s2 + $0x60] sm:$0xff]
      %v5837 = vld [vmem:[%s2 + $0x68] sm:$0xff]
      %v5838 = vld [vmem:[%s2 + $0x70] sm:$0xff]
      %v5839 = vld [vmem:[%s2 + $0x78] sm:$0xff]
      %v5840 = vld [vmem:[%s2 + $0x80] sm:$0xff]
      %v5841 = vld [vmem:[%s2 + $0x88] sm:$0xff]
      %v5842 = vld [vmem:[%s2 + $0x90] sm:$0xff]
      %v5843 = vld [vmem:[%s2 + $0x98] sm:$0xff]
      %v5844 = vld [vmem:[%s2 + $0xa0] sm:$0xff]
      %v5845 = vld [vmem:[%s2 + $0xa8] sm:$0xff]
      %v5846 = vld [vmem:[%s2 + $0xb0] sm:$0xff]
      %v5847 = vld [vmem:[%s2 + $0xb8] sm:$0xff]
      %v5848 = vld [vmem:[%s2 + $0xc0] sm:$0xff]
      %v5849 = vld [vmem:[%s2 + $0xc8] sm:$0xff]
      %v5850 = vld [vmem:[%s2 + $0xd0] sm:$0xff]
      %v5851 = vld [vmem:[%s2 + $0xd8] sm:$0xff]
      %v5852 = vld [vmem:[%s2 + $0xe0] sm:$0xff]
      %v5853 = vld [vmem:[%s2 + $0xe8] sm:$0xff]
      %v5854 = vld [vmem:[%s2 + $0xf0] sm:$0xff]
      %v5855 = vld [vmem:[%s2 + $0xf8] sm:$0xff]
      %v5856 = vld [vmem:[%s2 + $0x100] sm:$0xff]
      %v5857 = vld [vmem:[%s2 + $0x108] sm:$0xff]
      %v5858 = vld [vmem:[%s2 + $0x110] sm:$0xff]
      %v5859 = vld [vmem:[%s2 + $0x118] sm:$0xff]
      %v5886 = vrot.slane %v5794, 2
      %v5887 = vrot.slane %v5809, 2
      %v5888 = vsel %vm642, %v5886, %v5887
      %v5889 = vrot.slane %v5795, 2
      %v5890 = vrot.slane %v5810, 2
      %v5891 = vsel %vm642, %v5889, %v5890
      %v5892 = vrot.slane %v5796, 2
      %v5893 = vrot.slane %v5811, 2
      %v5894 = vsel %vm642, %v5892, %v5893
      %v5895 = vrot.slane %v5797, 2
      %v5896 = vrot.slane %v5812, 2
      %v5897 = vsel %vm642, %v5895, %v5896
      %v5898 = vrot.slane %v5798, 2
      %v5899 = vrot.slane %v5813, 2
      %v5900 = vsel %vm642, %v5898, %v5899
      %v5901 = vrot.slane %v5799, 2
      %v5902 = vrot.slane %v5814, 2
      %v5903 = vsel %vm642, %v5901, %v5902
      %v5904 = vrot.slane %v5800, 2
      %v5905 = vrot.slane %v5815, 2
      %v5906 = vsel %vm642, %v5904, %v5905
      %v5907 = vrot.slane %v5801, 2
      %v5908 = vrot.slane %v5816, 2
      %v5909 = vsel %vm642, %v5907, %v5908
      %v5910 = vrot.slane %v5802, 2
      %v5911 = vrot.slane %v5817, 2
      %v5912 = vsel %vm642, %v5910, %v5911
      %v5913 = vrot.slane %v5803, 2
      %v5914 = vrot.slane %v5818, 2
      %v5915 = vsel %vm642, %v5913, %v5914
      %v5916 = vrot.slane %v5804, 2
      %v5917 = vrot.slane %v5819, 2
      %v5918 = vsel %vm642, %v5916, %v5917
      %v5919 = vrot.slane %v5805, 2
      %v5920 = vrot.slane %v5820, 2
      %v5921 = vsel %vm642, %v5919, %v5920
      %v5922 = vrot.slane %v5806, 2
      %v5923 = vrot.slane %v5821, 2
      %v5924 = vsel %vm642, %v5922, %v5923
      %5925 = vrot.lane.b32.xlu0 %v5888, 32
      %v5926 = vpop.permute.xlu0 %5925
      %5927 = vrot.lane.b32.xlu0 %v5891, 32
      %v5928 = vpop.permute.xlu0 %5927
      %5929 = vrot.lane.b32.xlu0 %v5894, 32
      %v5930 = vpop.permute.xlu0 %5929
      %5931 = vrot.lane.b32.xlu0 %v5897, 32
      %v5932 = vpop.permute.xlu0 %5931
      %5933 = vrot.lane.b32.xlu0 %v5900, 32
      %v5934 = vpop.permute.xlu0 %5933
      %5935 = vrot.lane.b32.xlu0 %v5903, 32
      %v5936 = vpop.permute.xlu0 %5935
      %5937 = vrot.lane.b32.xlu0 %v5906, 32
      %v5938 = vpop.permute.xlu0 %5937
      %5939 = vrot.lane.b32.xlu0 %v5909, 32
      %v5940 = vpop.permute.xlu0 %5939
      %5941 = vrot.lane.b32.xlu0 %v5912, 32
      %v5942 = vpop.permute.xlu0 %5941
      %5943 = vrot.lane.b32.xlu0 %v5915, 32
      %v5944 = vpop.permute.xlu0 %5943
      %5945 = vrot.lane.b32.xlu0 %v5918, 32
      %v5946 = vpop.permute.xlu0 %5945
      %5947 = vrot.lane.b32.xlu0 %v5921, 32
      %v5948 = vpop.permute.xlu0 %5947
      %5949 = vrot.lane.b32.xlu0 %v5924, 32
      %v5950 = vpop.permute.xlu0 %5949
      %v5964 = vrot.slane %v5794, 4
      %v5965 = vrot.slane %v5809, 4
      %v5966 = vsel %vm951, %v5964, %v5965
      %v5967 = vrot.slane %v5795, 4
      %v5968 = vrot.slane %v5810, 4
      %v5969 = vsel %vm951, %v5967, %v5968
      %v5970 = vrot.slane %v5796, 4
      %v5971 = vrot.slane %v5811, 4
      %v5972 = vsel %vm951, %v5970, %v5971
      %v5973 = vrot.slane %v5797, 4
      %v5974 = vrot.slane %v5812, 4
      %v5975 = vsel %vm951, %v5973, %v5974
      %v5976 = vrot.slane %v5798, 4
      %v5977 = vrot.slane %v5813, 4
      %v5978 = vsel %vm951, %v5976, %v5977
      %v5979 = vrot.slane %v5799, 4
      %v5980 = vrot.slane %v5814, 4
      %v5981 = vsel %vm951, %v5979, %v5980
      %v5982 = vrot.slane %v5800, 4
      %v5983 = vrot.slane %v5815, 4
      %v5984 = vsel %vm951, %v5982, %v5983
      %v5985 = vrot.slane %v5801, 4
      %v5986 = vrot.slane %v5816, 4
      %v5987 = vsel %vm951, %v5985, %v5986
      %v5988 = vrot.slane %v5802, 4
      %v5989 = vrot.slane %v5817, 4
      %v5990 = vsel %vm951, %v5988, %v5989
      %v5991 = vrot.slane %v5803, 4
      %v5992 = vrot.slane %v5818, 4
      %v5993 = vsel %vm951, %v5991, %v5992
      %v5994 = vrot.slane %v5804, 4
      %v5995 = vrot.slane %v5819, 4
      %v5996 = vsel %vm951, %v5994, %v5995
      %v5997 = vrot.slane %v5805, 4
      %v5998 = vrot.slane %v5820, 4
      %v5999 = vsel %vm951, %v5997, %v5998
      %v6000 = vrot.slane %v5806, 4
      %v6001 = vrot.slane %v5821, 4
      %v6002 = vsel %vm951, %v6000, %v6001
      %6003 = vrot.lane.b32.xlu0 %v5966, 64
      %v6004 = vpop.permute.xlu0 %6003
      %6005 = vrot.lane.b32.xlu0 %v5969, 64
      %v6006 = vpop.permute.xlu0 %6005
      %6007 = vrot.lane.b32.xlu0 %v5972, 64
      %v6008 = vpop.permute.xlu0 %6007
      %6009 = vrot.lane.b32.xlu0 %v5975, 64
      %v6010 = vpop.permute.xlu0 %6009
      %6011 = vrot.lane.b32.xlu0 %v5978, 64
      %v6012 = vpop.permute.xlu0 %6011
      %6013 = vrot.lane.b32.xlu0 %v5981, 64
      %v6014 = vpop.permute.xlu0 %6013
      %6015 = vrot.lane.b32.xlu0 %v5984, 64
      %v6016 = vpop.permute.xlu0 %6015
      %6017 = vrot.lane.b32.xlu0 %v5987, 64
      %v6018 = vpop.permute.xlu0 %6017
      %6019 = vrot.lane.b32.xlu0 %v5990, 64
      %v6020 = vpop.permute.xlu0 %6019
      %6021 = vrot.lane.b32.xlu0 %v5993, 64
      %v6022 = vpop.permute.xlu0 %6021
      %6023 = vrot.lane.b32.xlu0 %v5996, 64
      %v6024 = vpop.permute.xlu0 %6023
      %6025 = vrot.lane.b32.xlu0 %v5999, 64
      %v6026 = vpop.permute.xlu0 %6025
      %6027 = vrot.lane.b32.xlu0 %v6002, 64
      %v6028 = vpop.permute.xlu0 %6027
      %6044 = vrot.lane.b32.xlu0 %v5795, 96
      %v6045 = vpop.permute.xlu0 %6044
      %6046 = vrot.lane.b32.xlu0 %v5796, 96
      %v6047 = vpop.permute.xlu0 %6046
      %6048 = vrot.lane.b32.xlu0 %v5797, 96
      %v6049 = vpop.permute.xlu0 %6048
      %6050 = vrot.lane.b32.xlu0 %v5798, 96
      %v6051 = vpop.permute.xlu0 %6050
      %6052 = vrot.lane.b32.xlu0 %v5799, 96
      %v6053 = vpop.permute.xlu0 %6052
      %6054 = vrot.lane.b32.xlu0 %v5800, 96
      %v6055 = vpop.permute.xlu0 %6054
      %6056 = vrot.lane.b32.xlu0 %v5801, 96
      %v6057 = vpop.permute.xlu0 %6056
      %6058 = vrot.lane.b32.xlu0 %v5802, 96
      %v6059 = vpop.permute.xlu0 %6058
      %6060 = vrot.lane.b32.xlu0 %v5803, 96
      %v6061 = vpop.permute.xlu0 %6060
      %6062 = vrot.lane.b32.xlu0 %v5804, 96
      %v6063 = vpop.permute.xlu0 %6062
      %6064 = vrot.lane.b32.xlu0 %v5805, 96
      %v6065 = vpop.permute.xlu0 %6064
      %6066 = vrot.lane.b32.xlu0 %v5806, 96
      %v6067 = vpop.permute.xlu0 %6066
      %6068 = vrot.lane.b32.xlu0 %v5807, 96
      %v6069 = vpop.permute.xlu0 %6068
      %6070 = vrot.lane.b32.xlu0 %v5808, 96
      %v6071 = vpop.permute.xlu0 %6070
      %v6088 = vrot.slane %v5807, 2
      %v6089 = vrot.slane %v5822, 2
      %v6090 = vsel %vm642, %v6088, %v6089
      %v6091 = vrot.slane %v5808, 2
      %v6092 = vrot.slane %v5823, 2
      %v6093 = vsel %vm642, %v6091, %v6092
      %v6108 = vrot.slane %v5807, 4
      %v6109 = vrot.slane %v5822, 4
      %v6110 = vsel %vm951, %v6108, %v6109
      %v6111 = vrot.slane %v5808, 4
      %v6112 = vrot.slane %v5823, 4
      %v6113 = vsel %vm951, %v6111, %v6112
      %6114 = vrot.lane.b32.xlu0 %v5969, 32
      %v6115 = vpop.permute.xlu0 %6114
      %6116 = vrot.lane.b32.xlu0 %v5972, 32
      %v6117 = vpop.permute.xlu0 %6116
      %6118 = vrot.lane.b32.xlu0 %v5975, 32
      %v6119 = vpop.permute.xlu0 %6118
      %6120 = vrot.lane.b32.xlu0 %v5978, 32
      %v6121 = vpop.permute.xlu0 %6120
      %6122 = vrot.lane.b32.xlu0 %v5981, 32
      %v6123 = vpop.permute.xlu0 %6122
      %6124 = vrot.lane.b32.xlu0 %v5984, 32
      %v6125 = vpop.permute.xlu0 %6124
      %6126 = vrot.lane.b32.xlu0 %v5987, 32
      %v6127 = vpop.permute.xlu0 %6126
      %6128 = vrot.lane.b32.xlu0 %v5990, 32
      %v6129 = vpop.permute.xlu0 %6128
      %6130 = vrot.lane.b32.xlu0 %v5993, 32
      %v6131 = vpop.permute.xlu0 %6130
      %6132 = vrot.lane.b32.xlu0 %v5996, 32
      %v6133 = vpop.permute.xlu0 %6132
      %6134 = vrot.lane.b32.xlu0 %v5999, 32
      %v6135 = vpop.permute.xlu0 %6134
      %6136 = vrot.lane.b32.xlu0 %v6002, 32
      %v6137 = vpop.permute.xlu0 %6136
      %6138 = vrot.lane.b32.xlu0 %v6110, 32
      %v6139 = vpop.permute.xlu0 %6138
      %6140 = vrot.lane.b32.xlu0 %v6113, 32
      %v6141 = vpop.permute.xlu0 %6140
      %6156 = vrot.lane.b32.xlu0 %v5797, 64
      %v6157 = vpop.permute.xlu0 %6156
      %6158 = vrot.lane.b32.xlu0 %v5798, 64
      %v6159 = vpop.permute.xlu0 %6158
      %6160 = vrot.lane.b32.xlu0 %v5799, 64
      %v6161 = vpop.permute.xlu0 %6160
      %6162 = vrot.lane.b32.xlu0 %v5800, 64
      %v6163 = vpop.permute.xlu0 %6162
      %6164 = vrot.lane.b32.xlu0 %v5801, 64
      %v6165 = vpop.permute.xlu0 %6164
      %6166 = vrot.lane.b32.xlu0 %v5802, 64
      %v6167 = vpop.permute.xlu0 %6166
      %6168 = vrot.lane.b32.xlu0 %v5803, 64
      %v6169 = vpop.permute.xlu0 %6168
      %6170 = vrot.lane.b32.xlu0 %v5804, 64
      %v6171 = vpop.permute.xlu0 %6170
      %6172 = vrot.lane.b32.xlu0 %v5805, 64
      %v6173 = vpop.permute.xlu0 %6172
      %6174 = vrot.lane.b32.xlu0 %v5806, 64
      %v6175 = vpop.permute.xlu0 %6174
      %6176 = vrot.lane.b32.xlu0 %v5807, 64
      %v6177 = vpop.permute.xlu0 %6176
      %6178 = vrot.lane.b32.xlu0 %v5808, 64
      %v6179 = vpop.permute.xlu0 %6178
      %6180 = vrot.lane.b32.xlu0 %v5794, 64
      %v6181 = vpop.permute.xlu0 %6180
      %6195 = vrot.lane.b32.xlu0 %v5897, 96
      %v6196 = vpop.permute.xlu0 %6195
      %6197 = vrot.lane.b32.xlu0 %v5900, 96
      %v6198 = vpop.permute.xlu0 %6197
      %6199 = vrot.lane.b32.xlu0 %v5903, 96
      %v6200 = vpop.permute.xlu0 %6199
      %6201 = vrot.lane.b32.xlu0 %v5906, 96
      %v6202 = vpop.permute.xlu0 %6201
      %6203 = vrot.lane.b32.xlu0 %v5909, 96
      %v6204 = vpop.permute.xlu0 %6203
      %6205 = vrot.lane.b32.xlu0 %v5912, 96
      %v6206 = vpop.permute.xlu0 %6205
      %6207 = vrot.lane.b32.xlu0 %v5915, 96
      %v6208 = vpop.permute.xlu0 %6207
      %6209 = vrot.lane.b32.xlu0 %v5918, 96
      %v6210 = vpop.permute.xlu0 %6209
      %6211 = vrot.lane.b32.xlu0 %v5921, 96
      %v6212 = vpop.permute.xlu0 %6211
      %6213 = vrot.lane.b32.xlu0 %v5924, 96
      %v6214 = vpop.permute.xlu0 %6213
      %6215 = vrot.lane.b32.xlu0 %v6090, 96
      %v6216 = vpop.permute.xlu0 %6215
      %6217 = vrot.lane.b32.xlu0 %v6093, 96
      %v6218 = vpop.permute.xlu0 %6217
      %6219 = vrot.lane.b32.xlu0 %v5888, 96
      %v6220 = vpop.permute.xlu0 %6219
      %vm6234 = vcmask 261120
      %v6235 = vsel %vm6234, %v5794, %v5926
      %v6236 = vsel %vm6234, %v5795, %v5928
      %v6237 = vsel %vm6234, %v5796, %v5930
      %v6238 = vsel %vm6234, %v5797, %v5932
      %v6239 = vsel %vm6234, %v5798, %v5934
      %v6240 = vsel %vm6234, %v5799, %v5936
      %v6241 = vsel %vm6234, %v5800, %v5938
      %v6242 = vsel %vm6234, %v5801, %v5940
      %v6243 = vsel %vm6234, %v5802, %v5942
      %v6244 = vsel %vm6234, %v5803, %v5944
      %v6245 = vsel %vm6234, %v5804, %v5946
      %v6246 = vsel %vm6234, %v5805, %v5948
      %v6247 = vsel %vm6234, %v5806, %v5950
      %vm6248 = vcmask 523264
      %v6249 = vsel %vm6248, %v6235, %v6004
      %v6250 = vsel %vm6248, %v6236, %v6006
      %v6251 = vsel %vm6248, %v6237, %v6008
      %v6252 = vsel %vm6248, %v6238, %v6010
      %v6253 = vsel %vm6248, %v6239, %v6012
      %v6254 = vsel %vm6248, %v6240, %v6014
      %v6255 = vsel %vm6248, %v6241, %v6016
      %v6256 = vsel %vm6248, %v6242, %v6018
      %v6257 = vsel %vm6248, %v6243, %v6020
      %v6258 = vsel %vm6248, %v6244, %v6022
      %v6259 = vsel %vm6248, %v6245, %v6024
      %v6260 = vsel %vm6248, %v6246, %v6026
      %v6261 = vsel %vm6248, %v6247, %v6028
      %vm6262 = vcmask 785408
      %v6263 = vsel %vm6262, %v6249, %v6045
      %v6264 = vsel %vm6262, %v6249, %v6047
      %v6265 = vsel %vm6262, %v6250, %v6049
      %v6266 = vsel %vm6262, %v6251, %v6051
      %v6267 = vsel %vm6262, %v6252, %v6053
      %v6268 = vsel %vm6262, %v6253, %v6055
      %v6269 = vsel %vm6262, %v6254, %v6057
      %v6270 = vsel %vm6262, %v6255, %v6059
      %v6271 = vsel %vm6262, %v6256, %v6061
      %v6272 = vsel %vm6262, %v6257, %v6063
      %v6273 = vsel %vm6262, %v6258, %v6065
      %v6274 = vsel %vm6262, %v6259, %v6067
      %v6275 = vsel %vm6262, %v6260, %v6069
      %v6276 = vsel %vm6262, %v6261, %v6071
      %v6277 = vsel %vm6234, %v5891, %v6115
      %v6278 = vsel %vm6234, %v5894, %v6117
      %v6279 = vsel %vm6234, %v5897, %v6119
      %v6280 = vsel %vm6234, %v5900, %v6121
      %v6281 = vsel %vm6234, %v5903, %v6123
      %v6282 = vsel %vm6234, %v5906, %v6125
      %v6283 = vsel %vm6234, %v5909, %v6127
      %v6284 = vsel %vm6234, %v5912, %v6129
      %v6285 = vsel %vm6234, %v5915, %v6131
      %v6286 = vsel %vm6234, %v5918, %v6133
      %v6287 = vsel %vm6234, %v5921, %v6135
      %v6288 = vsel %vm6234, %v5924, %v6137
      %v6289 = vsel %vm6234, %v6090, %v6139
      %v6290 = vsel %vm6234, %v6093, %v6141
      %v6291 = vsel %vm6248, %v6277, %v6157
      %v6292 = vsel %vm6248, %v6278, %v6159
      %v6293 = vsel %vm6248, %v6279, %v6161
      %v6294 = vsel %vm6248, %v6280, %v6163
      %v6295 = vsel %vm6248, %v6281, %v6165
      %v6296 = vsel %vm6248, %v6282, %v6167
      %v6297 = vsel %vm6248, %v6283, %v6169
      %v6298 = vsel %vm6248, %v6284, %v6171
      %v6299 = vsel %vm6248, %v6285, %v6173
      %v6300 = vsel %vm6248, %v6286, %v6175
      %v6301 = vsel %vm6248, %v6287, %v6177
      %v6302 = vsel %vm6248, %v6288, %v6179
      %v6303 = vsel %vm6248, %v6289, %v6181
      %v6304 = vsel %vm6248, %v6290, %v6181
      %v6305 = vsel %vm6262, %v6291, %v6196
      %v6306 = vsel %vm6262, %v6292, %v6198
      %v6307 = vsel %vm6262, %v6293, %v6200
      %v6308 = vsel %vm6262, %v6294, %v6202
      %v6309 = vsel %vm6262, %v6295, %v6204
      %v6310 = vsel %vm6262, %v6296, %v6206
      %v6311 = vsel %vm6262, %v6297, %v6208
      %v6312 = vsel %vm6262, %v6298, %v6210
      %v6313 = vsel %vm6262, %v6299, %v6212
      %v6314 = vsel %vm6262, %v6300, %v6214
      %v6315 = vsel %vm6262, %v6301, %v6216
      %v6316 = vsel %vm6262, %v6302, %v6218
      %v6317 = vsel %vm6262, %v6303, %v6220
      %v6318 = vsel %vm6262, %v6304, %v6220
      %v6319 = vsel %vm6234, %v5975, 0
      %v6321 = vsel %vm6234, %v5978, 0
      %v6323 = vsel %vm6234, %v5981, 0
      %v6325 = vsel %vm6234, %v5984, 0
      %v6327 = vsel %vm6234, %v5987, 0
      %v6329 = vsel %vm6234, %v5990, 0
      %v6331 = vsel %vm6234, %v5993, 0
      %v6333 = vsel %vm6234, %v5996, 0
      %v6335 = vsel %vm6234, %v5999, 0
      %v6337 = vsel %vm6234, %v6002, 0
      %v6339 = vsel %vm6234, %v6110, 0
      %v6341 = vsel %vm6234, %v6113, 0
      %v6343 = vsel %vm6234, %v5966, 0
      %6345 = vmatpush.msra.mxu0 %v5839
      %6346 = vmatpush.msra.mxu0 %v5838
      %6347 = vmatpush.msra.mxu0 %v5837
      %6348 = vmatpush.msra.mxu0 %v5836
      %6349 = vmatpush.msra.mxu0 %v5835
      %6350 = vmatpush.msra.mxu0 %v5834
      %6351 = vmatpush.msra.mxu0 %v5833
      %6352 = vmatpush.msra.mxu0 %v5832
      %6353 = vmatpush.msra.mxu0 %v5831
      %6354 = vmatpush.msra.mxu0 %v5830
      %6355 = vmatpush.msra.mxu0 %v5829
      %6356 = vmatpush.msra.mxu0 %v5828
      %6357 = vmatpush.msra.mxu0 %v5827
      %6358 = vmatpush.msra.mxu0 %v5826
      %6359 = vmatpush.msra.mxu0 %v5825
      %6360 = vmatpush.msra.mxu0 %v5824
      %6361 = vmatmul.f32.gmra.mxu0 %v6263
      %v6362 = vpop.f32.mrf.mxu0
      %6363 = vmatmul.f32.gmra.mxu0 %v6264
      %v6364 = vpop.f32.mrf.mxu0
      %6365 = vmatmul.f32.gmra.mxu0 %v6265
      %v6366 = vpop.f32.mrf.mxu0
      %6367 = vmatmul.f32.gmra.mxu0 %v6266
      %v6368 = vpop.f32.mrf.mxu0
      %v6369 = vadd.f32 0.0, %v6368
      %6370 = vmatmul.f32.gmra.mxu0 %v6267
      %v6371 = vpop.f32.mrf.mxu0
      %v6372 = vadd.f32 0.0, %v6371
      %6373 = vmatmul.f32.gmra.mxu0 %v6268
      %v6374 = vpop.f32.mrf.mxu0
      %v6375 = vadd.f32 0.0, %v6374
      %6376 = vmatmul.f32.gmra.mxu0 %v6269
      %v6377 = vpop.f32.mrf.mxu0
      %v6378 = vadd.f32 0.0, %v6377
      %6379 = vmatmul.f32.gmra.mxu0 %v6270
      %v6380 = vpop.f32.mrf.mxu0
      %v6381 = vadd.f32 0.0, %v6380
      %6382 = vmatmul.f32.gmra.mxu0 %v6271
      %v6383 = vpop.f32.mrf.mxu0
      %v6384 = vadd.f32 0.0, %v6383
      %6385 = vmatmul.f32.gmra.mxu0 %v6272
      %v6386 = vpop.f32.mrf.mxu0
      %v6387 = vadd.f32 0.0, %v6386
      %6388 = vmatmul.f32.gmra.mxu0 %v6273
      %v6389 = vpop.f32.mrf.mxu0
      %v6390 = vadd.f32 0.0, %v6389
      %6391 = vmatmul.f32.gmra.mxu0 %v6274
      %v6392 = vpop.f32.mrf.mxu0
      %v6393 = vadd.f32 0.0, %v6392
      %6394 = vmatmul.f32.gmra.mxu0 %v6275
      %v6395 = vpop.f32.mrf.mxu0
      %6396 = vmatmul.f32.gmra.mxu0 %v6276
      %v6397 = vpop.f32.mrf.mxu0
      %6398 = vdwg.mxu0
      %6399 = vmatpush.msra.mxu0 %v5855
      %6400 = vmatpush.msra.mxu0 %v5854
      %6401 = vmatpush.msra.mxu0 %v5853
      %6402 = vmatpush.msra.mxu0 %v5852
      %6403 = vmatpush.msra.mxu0 %v5851
      %6404 = vmatpush.msra.mxu0 %v5850
      %6405 = vmatpush.msra.mxu0 %v5849
      %6406 = vmatpush.msra.mxu0 %v5848
      %6407 = vmatpush.msra.mxu0 %v5847
      %6408 = vmatpush.msra.mxu0 %v5846
      %6409 = vmatpush.msra.mxu0 %v5845
      %6410 = vmatpush.msra.mxu0 %v5844
      %6411 = vmatpush.msra.mxu0 %v5843
      %6412 = vmatpush.msra.mxu0 %v5842
      %6413 = vmatpush.msra.mxu0 %v5841
      %6414 = vmatpush.msra.mxu0 %v5840
      %6415 = vmatmul.f32.gmra.mxu0 %v6305
      %v6416 = vpop.f32.mrf.mxu0
      %6417 = vmatmul.f32.gmra.mxu0 %v6306
      %v6418 = vpop.f32.mrf.mxu0
      %6419 = vmatmul.f32.gmra.mxu0 %v6307
      %v6420 = vpop.f32.mrf.mxu0
      %6421 = vmatmul.f32.gmra.mxu0 %v6308
      %v6422 = vpop.f32.mrf.mxu0
      %v6423 = vadd.f32 %v6369, %v6422
      %6424 = vmatmul.f32.gmra.mxu0 %v6309
      %v6425 = vpop.f32.mrf.mxu0
      %v6426 = vadd.f32 %v6372, %v6425
      %6427 = vmatmul.f32.gmra.mxu0 %v6310
      %v6428 = vpop.f32.mrf.mxu0
      %v6429 = vadd.f32 %v6375, %v6428
      %6430 = vmatmul.f32.gmra.mxu0 %v6311
      %v6431 = vpop.f32.mrf.mxu0
      %v6432 = vadd.f32 %v6378, %v6431
      %6433 = vmatmul.f32.gmra.mxu0 %v6312
      %v6434 = vpop.f32.mrf.mxu0
      %v6435 = vadd.f32 %v6381, %v6434
      %6436 = vmatmul.f32.gmra.mxu0 %v6313
      %v6437 = vpop.f32.mrf.mxu0
      %v6438 = vadd.f32 %v6384, %v6437
      %6439 = vmatmul.f32.gmra.mxu0 %v6314
      %v6440 = vpop.f32.mrf.mxu0
      %v6441 = vadd.f32 %v6387, %v6440
      %6442 = vmatmul.f32.gmra.mxu0 %v6315
      %v6443 = vpop.f32.mrf.mxu0
      %v6444 = vadd.f32 %v6390, %v6443
      %6445 = vmatmul.f32.gmra.mxu0 %v6316
      %v6446 = vpop.f32.mrf.mxu0
      %v6447 = vadd.f32 %v6393, %v6446
      %6448 = vmatmul.f32.gmra.mxu0 %v6317
      %v6449 = vpop.f32.mrf.mxu0
      %6450 = vmatmul.f32.gmra.mxu0 %v6318
      %v6451 = vpop.f32.mrf.mxu0
      %6452 = vdwg.mxu0
      %6453 = vmatpush.msra.mxu0 0.0
      %6454 = vmatpush.msra.mxu0 0.0
      %6455 = vmatpush.msra.mxu0 0.0
      %6456 = vmatpush.msra.mxu0 0.0
      %6457 = vmatpush.msra.mxu0 0.0
      %6458 = vmatpush.msra.mxu0 0.0
      %6459 = vmatpush.msra.mxu0 0.0
      %6460 = vmatpush.msra.mxu0 0.0
      %6461 = vmatpush.msra.mxu0 0.0
      %6462 = vmatpush.msra.mxu0 0.0
      %6463 = vmatpush.msra.mxu0 0.0
      %6464 = vmatpush.msra.mxu0 0.0
      %6465 = vmatpush.msra.mxu0 %v5859
      %6466 = vmatpush.msra.mxu0 %v5858
      %6467 = vmatpush.msra.mxu0 %v5857
      %6468 = vmatpush.msra.mxu0 %v5856
      %6469 = vmatmul.f32.gmra.mxu0 %v6319
      %v6470 = vpop.f32.mrf.mxu0
      %6471 = vmatmul.f32.gmra.mxu0 %v6321
      %v6472 = vpop.f32.mrf.mxu0
      %6473 = vmatmul.f32.gmra.mxu0 %v6323
      %v6474 = vpop.f32.mrf.mxu0
      %6475 = vmatmul.f32.gmra.mxu0 %v6325
      %v6476 = vpop.f32.mrf.mxu0
      %v6477 = vadd.f32 %v6423, %v6476
      %6478 = vmatmul.f32.gmra.mxu0 %v6327
      %v6479 = vpop.f32.mrf.mxu0
      %v6480 = vadd.f32 %v6426, %v6479
      %6481 = vmatmul.f32.gmra.mxu0 %v6329
      %v6482 = vpop.f32.mrf.mxu0
      %v6483 = vadd.f32 %v6429, %v6482
      %6484 = vmatmul.f32.gmra.mxu0 %v6331
      %v6485 = vpop.f32.mrf.mxu0
      %v6486 = vadd.f32 %v6432, %v6485
      %6487 = vmatmul.f32.gmra.mxu0 %v6333
      %v6488 = vpop.f32.mrf.mxu0
      %v6489 = vadd.f32 %v6435, %v6488
      %6490 = vmatmul.f32.gmra.mxu0 %v6335
      %v6491 = vpop.f32.mrf.mxu0
      %v6492 = vadd.f32 %v6438, %v6491
      %6493 = vmatmul.f32.gmra.mxu0 %v6337
      %v6494 = vpop.f32.mrf.mxu0
      %v6495 = vadd.f32 %v6441, %v6494
      %6496 = vmatmul.f32.gmra.mxu0 %v6339
      %v6497 = vpop.f32.mrf.mxu0
      %v6498 = vadd.f32 %v6444, %v6497
      %6499 = vmatmul.f32.gmra.mxu0 %v6341
      %v6500 = vpop.f32.mrf.mxu0
      %v6501 = vadd.f32 %v6447, %v6500
      %6502 = vmatmul.f32.gmra.mxu0 %v6343
      %v6503 = vpop.f32.mrf.mxu0
      %6504 = vmatmul.f32.gmra.mxu0 %v6343
      %v6505 = vpop.f32.mrf.mxu0
      %6506 = vdwg.mxu0
      %v6507 = vmin.f32 %v6477, 20.0
      %v6508 = vmin.f32 %v6480, 20.0
      %v6509 = vmin.f32 %v6483, 20.0
      %v6510 = vmin.f32 %v6486, 20.0
      %v6511 = vmin.f32 %v6489, 20.0
      %v6512 = vmin.f32 %v6492, 20.0
      %v6513 = vmin.f32 %v6495, 20.0
      %v6514 = vmin.f32 %v6498, 20.0
      %v6515 = vmin.f32 %v6501, 20.0
      %v6516 = vmul.f32 %v6507, 1.442695
      %v6517 = vpow.pop %v6516
      %v6518 = vmul.f32 %v6508, 1.442695
      %v6519 = vpow.pop %v6518
      %v6520 = vmul.f32 %v6509, 1.442695
      %v6521 = vpow.pop %v6520
      %v6522 = vmul.f32 %v6510, 1.442695
      %v6523 = vpow.pop %v6522
      %v6524 = vmul.f32 %v6511, 1.442695
      %v6525 = vpow.pop %v6524
      %v6526 = vmul.f32 %v6512, 1.442695
      %v6527 = vpow.pop %v6526
      %v6528 = vmul.f32 %v6513, 1.442695
      %v6529 = vpow.pop %v6528
      %v6530 = vmul.f32 %v6514, 1.442695
      %v6531 = vpow.pop %v6530
      %v6532 = vmul.f32 %v6515, 1.442695
      %v6533 = vpow.pop %v6532
      %v6534 = vadd.f32 %v6517, 2.0
      %v6535 = vadd.f32 %v6519, 2.0
      %v6536 = vadd.f32 %v6521, 2.0
      %v6537 = vadd.f32 %v6523, 2.0
      %v6538 = vadd.f32 %v6525, 2.0
      %v6539 = vadd.f32 %v6527, 2.0
      %v6540 = vadd.f32 %v6529, 2.0
      %v6541 = vadd.f32 %v6531, 2.0
      %v6542 = vadd.f32 %v6533, 2.0
      %v6543 = vmul.f32 %v6517, %v6534
      %v6544 = vmul.f32 %v6519, %v6535
      %v6545 = vmul.f32 %v6521, %v6536
      %v6546 = vmul.f32 %v6523, %v6537
      %v6547 = vmul.f32 %v6525, %v6538
      %v6548 = vmul.f32 %v6527, %v6539
      %v6549 = vmul.f32 %v6529, %v6540
      %v6550 = vmul.f32 %v6531, %v6541
      %v6551 = vmul.f32 %v6533, %v6542
      %v6552 = vadd.f32 %v6543, 2.0
      %v6553 = vadd.f32 %v6544, 2.0
      %v6554 = vadd.f32 %v6545, 2.0
      %v6555 = vadd.f32 %v6546, 2.0
      %v6556 = vadd.f32 %v6547, 2.0
      %v6557 = vadd.f32 %v6548, 2.0
      %v6558 = vadd.f32 %v6549, 2.0
      %v6559 = vadd.f32 %v6550, 2.0
      %v6560 = vadd.f32 %v6551, 2.0
      %v6561 = vrcp.pop %v6552
      %v6562 = vrcp.pop %v6553
      %v6563 = vrcp.pop %v6554
      %v6564 = vrcp.pop %v6555
      %v6565 = vrcp.pop %v6556
      %v6566 = vrcp.pop %v6557
      %v6567 = vrcp.pop %v6558
      %v6568 = vrcp.pop %v6559
      %v6569 = vrcp.pop %v6560
      %v6570 = vmul.f32 %v6543, %v6561
      %v6571 = vmul.f32 %v6544, %v6562
      %v6572 = vmul.f32 %v6545, %v6563
      %v6573 = vmul.f32 %v6546, %v6564
      %v6574 = vmul.f32 %v6547, %v6565
      %v6575 = vmul.f32 %v6548, %v6566
      %v6576 = vmul.f32 %v6549, %v6567
      %v6577 = vmul.f32 %v6550, %v6568
      %v6578 = vmul.f32 %v6551, %v6569
      %v6579 = vmul.f32 %v6477, %v6570
      %v6580 = vmul.f32 %v6480, %v6571
      %v6581 = vmul.f32 %v6483, %v6572
      %v6582 = vmul.f32 %v6486, %v6573
      %v6583 = vmul.f32 %v6489, %v6574
      %v6584 = vmul.f32 %v6492, %v6575
      %v6585 = vmul.f32 %v6495, %v6576
      %v6586 = vmul.f32 %v6498, %v6577
      %v6587 = vmul.f32 %v6501, %v6578
      %v6588 = vsel %vm5314, %v6579, -3e+38
      %v6589 = vsel %vm5315, %v6580, -3e+38
      %v6590 = vsel %vm5316, %v6581, -3e+38
      %v6591 = vsel %vm5317, %v6582, -3e+38
      %v6592 = vsel %vm5318, %v6583, -3e+38
      %v6593 = vsel %vm5319, %v6584, -3e+38
      %v6594 = vsel %vm5320, %v6585, -3e+38
      %v6595 = vsel %vm5321, %v6586, -3e+38
      %v6596 = vsel %vm5322, %v6587, -3e+38
      %v6597 = vmax.f32 %v6588, %v6589
      %v6598 = vmax.f32 %v6590, %v6591
      %v6599 = vmax.f32 %v6592, %v6593
      %v6600 = vmax.f32 %v6594, %v6595
      %v6601 = vmax.f32 %v6597, %v6590
      %v6602 = vmax.f32 %v6598, %v6592
      %v6603 = vmax.f32 %v6599, %v6594
      %v6604 = vmax.f32 %v6600, %v6596
      %v6609 = vrot.slane %v6601, 7
      %v6610 = vrot.slane %v6602, 7
      %v6611 = vrot.slane %v6603, 7
      %v6612 = vrot.slane %v6604, 7
      %v6617 = vsel %vm3944, -3e+38, %v6609
      %v6618 = vsel %vm3944, -3e+38, %v6610
      %v6619 = vsel %vm3944, -3e+38, %v6611
      %v6620 = vsel %vm3944, -3e+38, %v6612
      %v6625 = vrot.slane %v6617, 2
      %v6626 = vrot.slane %v6617, 4
      %v6627 = vrot.slane %v6617, 6
      %v6628 = vrot.slane %v6618, 2
      %v6629 = vrot.slane %v6618, 4
      %v6630 = vrot.slane %v6618, 6
      %v6631 = vrot.slane %v6619, 2
      %v6632 = vrot.slane %v6619, 4
      %v6633 = vrot.slane %v6619, 6
      %v6634 = vrot.slane %v6620, 2
      %v6635 = vrot.slane %v6620, 4
      %v6636 = vrot.slane %v6620, 6
      %v6649 = vrot.slane %v6617, 7
      %v6650 = vrot.slane %v6649, 2
      %v6651 = vrot.slane %v6625, 7
      %v6652 = vsel %vm4216, %v6650, %v6651
      %v6653 = vrot.slane %v6651, 2
      %v6654 = vrot.slane %v6626, 7
      %v6655 = vsel %vm4216, %v6653, %v6654
      %v6656 = vrot.slane %v6654, 2
      %v6657 = vrot.slane %v6627, 7
      %v6658 = vsel %vm4216, %v6656, %v6657
      %v6659 = vrot.slane %v6657, 2
      %v6660 = vrot.slane %v6609, 7
      %v6661 = vsel %vm4216, %v6659, %v6660
      %v6662 = vrot.slane %v6618, 7
      %v6663 = vrot.slane %v6662, 2
      %v6664 = vrot.slane %v6628, 7
      %v6665 = vsel %vm4216, %v6663, %v6664
      %v6666 = vrot.slane %v6664, 2
      %v6667 = vrot.slane %v6629, 7
      %v6668 = vsel %vm4216, %v6666, %v6667
      %v6669 = vrot.slane %v6667, 2
      %v6670 = vrot.slane %v6630, 7
      %v6671 = vsel %vm4216, %v6669, %v6670
      %v6672 = vrot.slane %v6670, 2
      %v6673 = vrot.slane %v6610, 7
      %v6674 = vsel %vm4216, %v6672, %v6673
      %v6675 = vrot.slane %v6619, 7
      %v6676 = vrot.slane %v6675, 2
      %v6677 = vrot.slane %v6631, 7
      %v6678 = vsel %vm4216, %v6676, %v6677
      %v6679 = vrot.slane %v6677, 2
      %v6680 = vrot.slane %v6632, 7
      %v6681 = vsel %vm4216, %v6679, %v6680
      %v6682 = vrot.slane %v6680, 2
      %v6683 = vrot.slane %v6633, 7
      %v6684 = vsel %vm4216, %v6682, %v6683
      %v6685 = vrot.slane %v6683, 2
      %v6686 = vrot.slane %v6611, 7
      %v6687 = vsel %vm4216, %v6685, %v6686
      %v6688 = vrot.slane %v6620, 7
      %v6689 = vrot.slane %v6688, 2
      %v6690 = vrot.slane %v6634, 7
      %v6691 = vsel %vm4216, %v6689, %v6690
      %v6692 = vrot.slane %v6690, 2
      %v6693 = vrot.slane %v6635, 7
      %v6694 = vsel %vm4216, %v6692, %v6693
      %v6695 = vrot.slane %v6693, 2
      %v6696 = vrot.slane %v6636, 7
      %v6697 = vsel %vm4216, %v6695, %v6696
      %v6698 = vrot.slane %v6696, 2
      %v6699 = vrot.slane %v6612, 7
      %v6700 = vsel %vm4216, %v6698, %v6699
      %v6717 = vmax.f32 %v6617, %v6652
      %v6718 = vmax.f32 %v6625, %v6655
      %v6719 = vmax.f32 %v6626, %v6658
      %v6720 = vmax.f32 %v6627, %v6661
      %v6721 = vmax.f32 %v6618, %v6665
      %v6722 = vmax.f32 %v6628, %v6668
      %v6723 = vmax.f32 %v6629, %v6671
      %v6724 = vmax.f32 %v6630, %v6674
      %v6725 = vmax.f32 %v6619, %v6678
      %v6726 = vmax.f32 %v6631, %v6681
      %v6727 = vmax.f32 %v6632, %v6684
      %v6728 = vmax.f32 %v6633, %v6687
      %v6729 = vmax.f32 %v6620, %v6691
      %v6730 = vmax.f32 %v6634, %v6694
      %v6731 = vmax.f32 %v6635, %v6697
      %v6732 = vmax.f32 %v6636, %v6700
      %v6733 = vrot.slane %v6652, 7
      %v6734 = vrot.slane %v6733, 2
      %v6735 = vrot.slane %v6655, 7
      %v6736 = vrot.slane %v6735, 2
      %v6737 = vrot.slane %v6658, 7
      %v6738 = vrot.slane %v6737, 2
      %v6739 = vrot.slane %v6661, 7
      %v6740 = vrot.slane %v6739, 2
      %v6741 = vrot.slane %v6665, 7
      %v6742 = vrot.slane %v6741, 2
      %v6743 = vrot.slane %v6668, 7
      %v6744 = vrot.slane %v6743, 2
      %v6745 = vrot.slane %v6671, 7
      %v6746 = vrot.slane %v6745, 2
      %v6747 = vrot.slane %v6674, 7
      %v6748 = vrot.slane %v6747, 2
      %v6749 = vrot.slane %v6678, 7
      %v6750 = vrot.slane %v6749, 2
      %v6751 = vrot.slane %v6681, 7
      %v6752 = vrot.slane %v6751, 2
      %v6753 = vrot.slane %v6684, 7
      %v6754 = vrot.slane %v6753, 2
      %v6755 = vrot.slane %v6687, 7
      %v6756 = vrot.slane %v6755, 2
      %v6757 = vrot.slane %v6691, 7
      %v6758 = vrot.slane %v6757, 2
      %v6759 = vrot.slane %v6694, 7
      %v6760 = vrot.slane %v6759, 2
      %v6761 = vrot.slane %v6697, 7
      %v6762 = vrot.slane %v6761, 2
      %v6763 = vrot.slane %v6700, 7
      %v6764 = vrot.slane %v6763, 2
      %v6781 = vmax.f32 %v6717, %v6734
      %v6782 = vmax.f32 %v6718, %v6736
      %v6783 = vmax.f32 %v6719, %v6738
      %v6784 = vmax.f32 %v6720, %v6740
      %v6785 = vmax.f32 %v6721, %v6742
      %v6786 = vmax.f32 %v6722, %v6744
      %v6787 = vmax.f32 %v6723, %v6746
      %v6788 = vmax.f32 %v6724, %v6748
      %v6789 = vmax.f32 %v6725, %v6750
      %v6790 = vmax.f32 %v6726, %v6752
      %v6791 = vmax.f32 %v6727, %v6754
      %v6792 = vmax.f32 %v6728, %v6756
      %v6793 = vmax.f32 %v6729, %v6758
      %v6794 = vmax.f32 %v6730, %v6760
      %v6795 = vmax.f32 %v6731, %v6762
      %v6796 = vmax.f32 %v6732, %v6764
      %v6797 = vadd.f32 %v221, %v223
      %v6798 = vadd.f32 %v222, %v224
      %v6799 = vadd.f32 %v229, %v231
      %v6800 = vadd.f32 %v230, %v232
      %v6801 = vadd.f32 %v237, %v239
      %v6802 = vadd.f32 %v238, %v240
      %v6803 = vadd.f32 %v245, %v247
      %v6804 = vadd.f32 %v246, %v248
      %v6805 = vadd.f32 %v6797, %v225
      %v6806 = vadd.f32 %v6798, %v226
      %v6807 = vadd.f32 %v6799, %v233
      %v6808 = vadd.f32 %v6800, %v234
      %v6809 = vadd.f32 %v6801, %v241
      %v6810 = vadd.f32 %v6802, %v242
      %v6811 = vadd.f32 %v6803, %v249
      %v6812 = vadd.f32 %v6804, %v250
      %v6813 = vadd.f32 %v6805, %v227
      %v6814 = vadd.f32 %v6806, %v228
      %v6815 = vadd.f32 %v6807, %v235
      %v6816 = vadd.f32 %v6808, %v236
      %v6817 = vadd.f32 %v6809, %v243
      %v6818 = vadd.f32 %v6810, %v244
      %v6819 = vadd.f32 %v6811, %v251
      %v6820 = vadd.f32 %v6812, %v252
      %v6829 = vrot.slane %v6813, 4
      %v6830 = vrot.slane %v6814, 4
      %v6831 = vrot.slane %v6815, 4
      %v6832 = vrot.slane %v6816, 4
      %v6833 = vrot.slane %v6817, 4
      %v6834 = vrot.slane %v6818, 4
      %v6835 = vrot.slane %v6819, 4
      %v6836 = vrot.slane %v6820, 4
      %v6845 = vrot.slane %v6813, 5
      %v6846 = vrot.slane %v6845, 4
      %v6847 = vrot.slane %v6829, 5
      %v6848 = vrot.slane %v6847, 4
      %v6849 = vrot.slane %v6814, 5
      %v6850 = vrot.slane %v6849, 4
      %v6851 = vrot.slane %v6830, 5
      %v6852 = vrot.slane %v6851, 4
      %v6853 = vrot.slane %v6815, 5
      %v6854 = vrot.slane %v6853, 4
      %v6855 = vrot.slane %v6831, 5
      %v6856 = vrot.slane %v6855, 4
      %v6857 = vrot.slane %v6816, 5
      %v6858 = vrot.slane %v6857, 4
      %v6859 = vrot.slane %v6832, 5
      %v6860 = vrot.slane %v6859, 4
      %v6861 = vrot.slane %v6817, 5
      %v6862 = vrot.slane %v6861, 4
      %v6863 = vrot.slane %v6833, 5
      %v6864 = vrot.slane %v6863, 4
      %v6865 = vrot.slane %v6818, 5
      %v6866 = vrot.slane %v6865, 4
      %v6867 = vrot.slane %v6834, 5
      %v6868 = vrot.slane %v6867, 4
      %v6869 = vrot.slane %v6819, 5
      %v6870 = vrot.slane %v6869, 4
      %v6871 = vrot.slane %v6835, 5
      %v6872 = vrot.slane %v6871, 4
      %v6873 = vrot.slane %v6820, 5
      %v6874 = vrot.slane %v6873, 4
      %v6875 = vrot.slane %v6836, 5
      %v6876 = vrot.slane %v6875, 4
      %v6893 = vadd.f32 %v6813, %v6846
      %v6894 = vadd.f32 %v6829, %v6848
      %v6895 = vadd.f32 %v6814, %v6850
      %v6896 = vadd.f32 %v6830, %v6852
      %v6897 = vadd.f32 %v6815, %v6854
      %v6898 = vadd.f32 %v6831, %v6856
      %v6899 = vadd.f32 %v6816, %v6858
      %v6900 = vadd.f32 %v6832, %v6860
      %v6901 = vadd.f32 %v6817, %v6862
      %v6902 = vadd.f32 %v6833, %v6864
      %v6903 = vadd.f32 %v6818, %v6866
      %v6904 = vadd.f32 %v6834, %v6868
      %v6905 = vadd.f32 %v6819, %v6870
      %v6906 = vadd.f32 %v6835, %v6872
      %v6907 = vadd.f32 %v6820, %v6874
      %v6908 = vadd.f32 %v6836, %v6876
      %v6909 = vrot.slane %v6813, 6
      %v6910 = vrot.slane %v6909, 4
      %v6911 = vrot.slane %v6829, 6
      %v6912 = vrot.slane %v6911, 4
      %v6913 = vrot.slane %v6814, 6
      %v6914 = vrot.slane %v6913, 4
      %v6915 = vrot.slane %v6830, 6
      %v6916 = vrot.slane %v6915, 4
      %v6917 = vrot.slane %v6815, 6
      %v6918 = vrot.slane %v6917, 4
      %v6919 = vrot.slane %v6831, 6
      %v6920 = vrot.slane %v6919, 4
      %v6921 = vrot.slane %v6816, 6
      %v6922 = vrot.slane %v6921, 4
      %v6923 = vrot.slane %v6832, 6
      %v6924 = vrot.slane %v6923, 4
      %v6925 = vrot.slane %v6817, 6
      %v6926 = vrot.slane %v6925, 4
      %v6927 = vrot.slane %v6833, 6
      %v6928 = vrot.slane %v6927, 4
      %v6929 = vrot.slane %v6818, 6
      %v6930 = vrot.slane %v6929, 4
      %v6931 = vrot.slane %v6834, 6
      %v6932 = vrot.slane %v6931, 4
      %v6933 = vrot.slane %v6819, 6
      %v6934 = vrot.slane %v6933, 4
      %v6935 = vrot.slane %v6835, 6
      %v6936 = vrot.slane %v6935, 4
      %v6937 = vrot.slane %v6820, 6
      %v6938 = vrot.slane %v6937, 4
      %v6939 = vrot.slane %v6836, 6
      %v6940 = vrot.slane %v6939, 4
      %v6957 = vadd.f32 %v6893, %v6910
      %v6958 = vadd.f32 %v6894, %v6912
      %v6959 = vadd.f32 %v6895, %v6914
      %v6960 = vadd.f32 %v6896, %v6916
      %v6961 = vadd.f32 %v6897, %v6918
      %v6962 = vadd.f32 %v6898, %v6920
      %v6963 = vadd.f32 %v6899, %v6922
      %v6964 = vadd.f32 %v6900, %v6924
      %v6965 = vadd.f32 %v6901, %v6926
      %v6966 = vadd.f32 %v6902, %v6928
      %v6967 = vadd.f32 %v6903, %v6930
      %v6968 = vadd.f32 %v6904, %v6932
      %v6969 = vadd.f32 %v6905, %v6934
      %v6970 = vadd.f32 %v6906, %v6936
      %v6971 = vadd.f32 %v6907, %v6938
      %v6972 = vadd.f32 %v6908, %v6940
      %v6973 = vrot.slane %v6813, 7
      %v6974 = vrot.slane %v6973, 4
      %v6975 = vrot.slane %v6829, 7
      %v6976 = vrot.slane %v6975, 4
      %v6977 = vrot.slane %v6814, 7
      %v6978 = vrot.slane %v6977, 4
      %v6979 = vrot.slane %v6830, 7
      %v6980 = vrot.slane %v6979, 4
      %v6981 = vrot.slane %v6815, 7
      %v6982 = vrot.slane %v6981, 4
      %v6983 = vrot.slane %v6831, 7
      %v6984 = vrot.slane %v6983, 4
      %v6985 = vrot.slane %v6816, 7
      %v6986 = vrot.slane %v6985, 4
      %v6987 = vrot.slane %v6832, 7
      %v6988 = vrot.slane %v6987, 4
      %v6989 = vrot.slane %v6817, 7
      %v6990 = vrot.slane %v6989, 4
      %v6991 = vrot.slane %v6833, 7
      %v6992 = vrot.slane %v6991, 4
      %v6993 = vrot.slane %v6818, 7
      %v6994 = vrot.slane %v6993, 4
      %v6995 = vrot.slane %v6834, 7
      %v6996 = vrot.slane %v6995, 4
      %v6997 = vrot.slane %v6819, 7
      %v6998 = vrot.slane %v6997, 4
      %v6999 = vrot.slane %v6835, 7
      %v7000 = vrot.slane %v6999, 4
      %v7001 = vrot.slane %v6820, 7
      %v7002 = vrot.slane %v7001, 4
      %v7003 = vrot.slane %v6836, 7
      %v7004 = vrot.slane %v7003, 4
      %v7021 = vadd.f32 %v6957, %v6974
      %v7022 = vadd.f32 %v6958, %v6976
      %v7023 = vadd.f32 %v6959, %v6978
      %v7024 = vadd.f32 %v6960, %v6980
      %v7025 = vadd.f32 %v6961, %v6982
      %v7026 = vadd.f32 %v6962, %v6984
      %v7027 = vadd.f32 %v6963, %v6986
      %v7028 = vadd.f32 %v6964, %v6988
      %v7029 = vadd.f32 %v6965, %v6990
      %v7030 = vadd.f32 %v6966, %v6992
      %v7031 = vadd.f32 %v6967, %v6994
      %v7032 = vadd.f32 %v6968, %v6996
      %v7033 = vadd.f32 %v6969, %v6998
      %v7034 = vadd.f32 %v6970, %v7000
      %v7035 = vadd.f32 %v6971, %v7002
      %v7036 = vadd.f32 %v6972, %v7004
      %v7037 = vmul.f32 %v7021, 0.0625
      %v7038 = vmul.f32 %v7022, 0.0625
      %v7039 = vmul.f32 %v7023, 0.0625
      %v7040 = vmul.f32 %v7024, 0.0625
      %v7041 = vmul.f32 %v7025, 0.0625
      %v7042 = vmul.f32 %v7026, 0.0625
      %v7043 = vmul.f32 %v7027, 0.0625
      %v7044 = vmul.f32 %v7028, 0.0625
      %v7045 = vmul.f32 %v7029, 0.0625
      %v7046 = vmul.f32 %v7030, 0.0625
      %v7047 = vmul.f32 %v7031, 0.0625
      %v7048 = vmul.f32 %v7032, 0.0625
      %v7049 = vmul.f32 %v7033, 0.0625
      %v7050 = vmul.f32 %v7034, 0.0625
      %v7051 = vmul.f32 %v7035, 0.0625
      %v7052 = vmul.f32 %v7036, 0.0625
      %7053 = vst [vmem:[%s199] sm:$0xff] 0.0
      %7054 = vst [vmem:[%s199 + $0x8] sm:$0xff] 0.0
      %v7071 = vperm.slane %v6781, 0
      %v7072 = vperm.slane %v6782, 0
      %v7073 = vperm.slane %v6783, 0
      %v7074 = vperm.slane %v6784, 0
      %v7075 = vperm.slane %v6785, 0
      %v7076 = vperm.slane %v6786, 0
      %v7077 = vperm.slane %v6787, 0
      %v7078 = vperm.slane %v6788, 0
      %v7079 = vperm.slane %v6789, 0
      %v7080 = vperm.slane %v6790, 0
      %v7081 = vperm.slane %v6791, 0
      %v7082 = vperm.slane %v6792, 0
      %v7083 = vperm.slane %v6793, 0
      %v7084 = vperm.slane %v6794, 0
      %v7085 = vperm.slane %v6795, 0
      %v7086 = vperm.slane %v6796, 0
      %v7087 = vsel %vm5661, %v7072, %v7071
      %v7088 = vsel %vm4211, %v7073, %v7087
      %v7089 = vsel %vm5664, %v7074, %v7088
      %v7090 = vsel %vm4213, %v7075, %v7089
      %v7091 = vsel %vm5667, %v7076, %v7090
      %v7092 = vsel %vm4215, %v7077, %v7091
      %v7093 = vsel %vm5670, %v7078, %v7092
      %v7094 = vsel %vm5661, %v7080, %v7079
      %v7095 = vsel %vm4211, %v7081, %v7094
      %v7096 = vsel %vm5664, %v7082, %v7095
      %v7097 = vsel %vm4213, %v7083, %v7096
      %v7098 = vsel %vm5667, %v7084, %v7097
      %v7099 = vsel %vm4215, %v7085, %v7098
      %v7100 = vsel %vm5670, %v7086, %v7099
      %7103 = vst.msk [vmem:[%s199] sm:$0xff] %vm6234, %v7093
      %7104 = vst.msk [vmem:[%s199 + $0x8] sm:$0xff] %vm6234, %v7100
      %v7121 = vperm.slane %v7037, 0
      %v7122 = vperm.slane %v7038, 0
      %v7123 = vperm.slane %v7039, 0
      %v7124 = vperm.slane %v7040, 0
      %v7125 = vperm.slane %v7041, 0
      %v7126 = vperm.slane %v7042, 0
      %v7127 = vperm.slane %v7043, 0
      %v7128 = vperm.slane %v7044, 0
      %v7129 = vperm.slane %v7045, 0
      %v7130 = vperm.slane %v7046, 0
      %v7131 = vperm.slane %v7047, 0
      %v7132 = vperm.slane %v7048, 0
      %v7133 = vperm.slane %v7049, 0
      %v7134 = vperm.slane %v7050, 0
      %v7135 = vperm.slane %v7051, 0
      %v7136 = vperm.slane %v7052, 0
      %v7137 = vsel %vm5661, %v7122, %v7121
      %v7138 = vsel %vm4211, %v7123, %v7137
      %v7139 = vsel %vm5664, %v7124, %v7138
      %v7140 = vsel %vm4213, %v7125, %v7139
      %v7141 = vsel %vm5667, %v7126, %v7140
      %v7142 = vsel %vm4215, %v7127, %v7141
      %v7143 = vsel %vm5670, %v7128, %v7142
      %v7144 = vsel %vm5661, %v7130, %v7129
      %v7145 = vsel %vm4211, %v7131, %v7144
      %v7146 = vsel %vm5664, %v7132, %v7145
      %v7147 = vsel %vm4213, %v7133, %v7146
      %v7148 = vsel %vm5667, %v7134, %v7147
      %v7149 = vsel %vm4215, %v7135, %v7148
      %v7150 = vsel %vm5670, %v7136, %v7149
      %7151 = vrot.lane.b32.xlu0 %v7143, 32
      %v7152 = vpop.permute.xlu0 %7151
      %7153 = vrot.lane.b32.xlu0 %v7150, 32
      %v7154 = vpop.permute.xlu0 %7153
      %vm7157 = vcmask 285952
      %7158 = vst.msk [vmem:[%s199] sm:$0xff] %vm7157, %v7152
      %7159 = vst.msk [vmem:[%s199 + $0x8] sm:$0xff] %vm7157, %v7154
      %vm7160 = vcmask 294168
      %7161 = vst.msk [vmem:[%s199] sm:$0xff] %vm7160, 1.0
      %7162 = vst.msk [vmem:[%s199 + $0x8] sm:$0xff] %vm7160, 1.0
      %s7163 = smul.u32 2, %s19
      %p7164 = scmp.lt.s32.totalorder %s18, 3
      %s7165 = scalar_select %p7164, %s18, 3
      %p7166 = scmp.lt.s32.totalorder %s7163, 1
      %s7167 = scalar_select %p7166, %s7163, 1
      %s7168 = smul.addr %s7165, 2
      %s7169 = sadd.s32 %s7167, %s7168
      %s7170 = smul.addr %s7169, 8
      %s7171 = scalar_lea.vmem %s3, %s7170
      // Predicated region
      $region33: #{point_cloud_to_2d_forward.2} parent=31 // pred_check
        %p7172 = pneg %p116
      $region34: #{point_cloud_to_2d_forward.2} parent=31 // pred_check_branch
        %7174 = sbr.rel (%p7172) target = $region36
      $region35: #{point_cloud_to_2d_forward.2} parent=31 // pred_region
        %s7175 = smul.u32 2, %s19
      $region36: #{point_cloud_to_2d_forward.2} parent=31 // pred_fallthru
        _
    $region32: #{point_cloud_to_2d_forward.2} parent=5 // pred_fallthru
      _
    %p7176 = scmp.le.s32.totalorder 2, %s9
    // Predicated region
    $region37: #{point_cloud_to_2d_forward.2} parent=5 // pred_check
      %p7177 = pneg %p7176
    $region38: #{point_cloud_to_2d_forward.2} parent=5 // pred_check_branch
      %7179 = sbr.rel (%p7177) target = $region40
    $region39: #{point_cloud_to_2d_forward.2} parent=5 // pred_region
      %s7180 = ssub.s32 %s9, 2
      // Predicated region
      $region41: #{point_cloud_to_2d_forward.2} parent=39 // pred_check
        %p7181 = pneg %p122
      $region42: #{point_cloud_to_2d_forward.2} parent=39 // pred_check_branch
        %7183 = sbr.rel (%p7181) target = $region44
      $region43: #{point_cloud_to_2d_forward.2} parent=39 // pred_region
        %s7184 = smul.u32 2, %s21
        %p7185 = scmp.lt.s32.totalorder %s20, 3
        %s7186 = scalar_select %p7185, %s20, 3
        %p7187 = scmp.lt.s32.totalorder %s7184, 1
        %s7188 = scalar_select %p7187, %s7184, 1
        %s7189 = smul.addr %s7186, 2
        %s7190 = sadd.s32 %s7188, %s7189
        %s7191 = smul.addr %s7190, 8
        %s7192 = scalar_lea.vmem %s3, %s7191
      $region44: #{point_cloud_to_2d_forward.2} parent=39 // pred_fallthru
        _
    $region40: #{point_cloud_to_2d_forward.2} parent=5 // pred_fallthru
      _
  $region6: #{point_cloud_to_2d_forward.2} parent=0 // loop_footer
    %s13 = sadd.s32 1, %s9
  $region7: #{point_cloud_to_2d_forward.2} parent=0 // loop_footer_branch
    %8 = sbr.rel target = $region3
  $region8: #{point_cloud_to_2d_forward.2} parent=0 // loop_exit
    _

</llo_original>
